<compile_context>
chip_gen: v6e
topology: v6e:2x2x1
jax: 0.10.0
libtpu: 0.0.40
codegen_flags: <defaults>
</compile_context>

<pallas_src>
import functools
import math

import jax
import jax.numpy as jnp
from jax.experimental import pallas as pl
from jax.experimental.pallas import tpu as pltpu


def _round_up(v, m):
    return ((v + m - 1) // m) * m


# ----------------------------------------------------------------------------
# Pallas kernel: the whole network as 6 fused, VMEM-resident, lane-dense
# matmuls (+ folded-BN shift, ReLU, final tanh^2).
# ----------------------------------------------------------------------------
def _fused_net_kernel(*refs, n_layers, has_shift):
    x_ref = refs[0]
    mat_refs = refs[1:1 + n_layers]
    n_shift = sum(has_shift)
    shift_refs = refs[1 + n_layers:1 + n_layers + n_shift]
    o_ref = refs[1 + n_layers + n_shift]

    h = x_ref[...]                                 # (bm, D0) bf16 activations
    si = 0
    for li in range(n_layers):                     # statically unrolled (6 layers)
        acc = jnp.dot(h, mat_refs[li][...],        # bf16 MXU inputs
                      preferred_element_type=jnp.float32)
        if has_shift[li]:                          # folded-BN shift (encoder only)
            acc = acc + shift_refs[si][...]
            si += 1
        acc = jnp.maximum(acc, 0.0)                # ReLU in f32 on the accumulator
        if li + 1 < n_layers:
            h = acc.astype(jnp.bfloat16)           # bf16 inter-layer activations
            # decoder layer 0 is followed by Dropout(0.7): identity in eval mode.
        else:
            t = jnp.tanh(acc)                      # final tanh(x)**2
            o_ref[...] = (t * t).astype(o_ref.dtype)


def _vmem_limit_bytes(bm, d_in0, d_out, mats, shifts):
    """Conservative VMEM budget for the fused call (bytes)."""
    widths = [int(m.shape[1]) for m in mats]
    est = 0
    est += 2 * bm * d_in0 * 2                                   # input blocks, bf16, 2 bufs
    est += 2 * bm * d_out * 4                                   # output blocks, f32, 2 bufs
    est += 2 * sum(int(m.size) * 2 for m in mats)               # layer matrices, bf16
    est += 2 * sum(int(s.size) * 4 for s in shifts if s is not None)
    est += bm * max(widths + [d_in0]) * (4 + 2) * 2             # live f32 acc + bf16 h temps
    # 2x headroom for compiler-internal scratch / spills, floor at the 32 MiB
    # default scoped limit, cap at v7x's 64 MiB physical VMEM.
    return min(64 << 20, max(32 << 20, 2 * est))


def fused_forward(x_nchw, layer_mats_bf16, layer_shifts, out_c, out_hw):
    """Runs the whole Relevant_Region forward in a single pallas_call.

    x_nchw:          (N, C, H, W) float32
    layer_mats_bf16: list of (D_in, D_out) bf16 dense layer matrices
    layer_shifts:    list of (1, D_out) float32 shift vectors or None
    """
    N = x_nchw.shape[0]
    # Row-major flatten == NCHW flatten; bf16 halves input DMA bytes.
    x_flat = x_nchw.reshape(N, -1).astype(jnp.bfloat16)
    d_in0 = x_flat.shape[1]
    d_out = int(layer_mats_bf16[-1].shape[1])

    # --- batch (M) tiling -----------------------------------------------------
    # bf16 packs two rows per sublane -> pad M to a multiple of 16.
    n_pad = _round_up(max(N, 1), 16)
    if n_pad < 32:
        # Tiny batch: one grid step.  Splitting would only add padding waste.
        bm = n_pad
    else:
        # Guarantee >= 2 grid steps (shards across v7x's two TensorCores and
        # lets step i+1 DMA overlap step i compute); cap tiles at 256 rows to
        # bound per-step VMEM and stay near the HBM-roofline sweet spot.
        bm = min(256, _round_up(pl.cdiv(n_pad, 2), 16))
    n_pad = _round_up(n_pad, bm)
    grid = (n_pad // bm,)

    if n_pad != N:
        x_flat = jnp.pad(x_flat, ((0, n_pad - N), (0, 0)))

    shift_args = [s for s in layer_shifts if s is not None]
    has_shift = tuple(s is not None for s in layer_shifts)

    kernel = functools.partial(_fused_net_kernel,
                               n_layers=len(layer_mats_bf16),
                               has_shift=has_shift)

    vmem_limit = _vmem_limit_bytes(bm, d_in0, d_out, layer_mats_bf16, layer_shifts)
    cost = pl.CostEstimate(
        flops=2 * n_pad * sum(int(m.shape[0]) * int(m.shape[1])
                              for m in layer_mats_bf16),
        transcendentals=n_pad * d_out,                       # final tanh
        bytes_accessed=(n_pad * d_in0 * 2 + n_pad * d_out * 4
                        + sum(int(m.size) * 2 for m in layer_mats_bf16)
                        + sum(int(s.size) * 4 for s in shift_args)),
    )

    def _build_call(single_buffer_weights):
        # Constant-index operands (weights / shifts): double buffering only
        # wastes VMEM, so request a single buffer when supported.
        const_kwargs = (dict(pipeline_mode=pl.Buffered(1))
                        if single_buffer_weights else {})
        in_specs = [pl.BlockSpec((bm, d_in0), lambda i: (i, 0))]
        in_specs += [pl.BlockSpec(m.shape, lambda i: (0, 0), **const_kwargs)
                     for m in layer_mats_bf16]
        in_specs += [pl.BlockSpec(s.shape, lambda i: (0, 0), **const_kwargs)
                     for s in shift_args]
        return pl.pallas_call(
            kernel,
            out_shape=jax.ShapeDtypeStruct((n_pad, d_out), jnp.float32),
            grid_spec=pltpu.PrefetchScalarGridSpec(
                num_scalar_prefetch=0,
                grid=grid,
                in_specs=in_specs,
                out_specs=pl.BlockSpec((bm, d_out), lambda i: (i, 0)),
            ),
            compiler_params=pltpu.CompilerParams(
                dimension_semantics=("parallel",),
                vmem_limit_bytes=int(vmem_limit)),
            cost_estimate=cost,
        )

    args = (x_flat, *layer_mats_bf16, *shift_args)
    try:
        y_flat = _build_call(True)(*args)
    except Exception:
        # pl.Buffered(1) not supported by this jax/libtpu build: fall back to
        # default (double-buffered) constant operands.
        y_flat = _build_call(False)(*args)

    H, W = out_hw
    return y_flat[:N].reshape(N, out_c, H, W)


# ----------------------------------------------------------------------------
# Host-side, one-time weight preprocessing (exact, f32) + pure-JAX reference.
# ----------------------------------------------------------------------------
def _conv2d_s2_p1(x, w_oihw):
    """PyTorch Conv2d(k=4, stride=2, pad=1, bias=False), NCHW/OIHW, f32."""
    return jax.lax.conv_general_dilated(
        x, w_oihw, window_strides=(2, 2), padding=((1, 1), (1, 1)),
        dimension_numbers=("NCHW", "OIHW", "NCHW"),
        precision=jax.lax.Precision.HIGHEST)


def _convt2d_s2_p1(x, w_io):
    """PyTorch ConvTranspose2d(k=4, stride=2, pad=1, bias=False).
    w_io is the PyTorch (C_in, C_out, kH, kW) weight.  Implemented as the
    equivalent stride-1 conv of the zero-dilated input with the flipped,
    IO-swapped kernel (padding = k - 1 - p = 2)."""
    w_conv = jnp.flip(w_io, axis=(2, 3)).transpose(1, 0, 2, 3)  # -> OIHW
    return jax.lax.conv_general_dilated(
        x, w_conv, window_strides=(1, 1), padding=((2, 2), (2, 2)),
        lhs_dilation=(2, 2), dimension_numbers=("NCHW", "OIHW", "NCHW"),
        precision=jax.lax.Precision.HIGHEST)


def _dense_layer_matrix(apply_fn, in_shape):
    """Exact (D_in, D_out) matrix of the linear map `apply_fn` (conv / convT),
    built by pushing the identity basis through it: y_flat = x_flat @ T."""
    d_in = math.prod(in_shape)
    basis = jnp.eye(d_in, dtype=jnp.float32).reshape((d_in,) + tuple(in_shape))
    out = apply_fn(basis)                        # (D_in, C_out, Ho, Wo)
    return out.reshape(d_in, -1)                 # (D_in, D_out)


def fold_params(params, in_shape, n_cnv=3, max_hw=32):
    """Folds eval-mode BN into the conv weights and lowers every layer to a
    dense (D_in, D_out) bf16 matrix (+ optional (1, D_out) f32 shift)."""
    c, h, w = in_shape
    assert h % (2 ** n_cnv) == 0 and w % (2 ** n_cnv) == 0
    # Dense Toeplitz matrices scale as (C*H*W)^2: never take this path at the
    # module's 256x256 default (layer-1 matrix alone is tens of GB).
    # TODO(synk): band / K-tiled (blocked im2col) matmuls for larger img_size.
    assert h <= max_hw and w <= max_hw, (
        f"dense layer-matrix path only supports spatial sizes <= {max_hw}; "
        f"got {h}x{w}")
    mats, shifts = [], []
    # encoder: Conv(4,2,1, bias=False) -> BN -> ReLU
    for k in range(n_cnv):
        wk = params["conv_w"][k]                               # (C_out, C_in, 4, 4)
        c_out = wk.shape[0]
        w_folded = wk * params["bn_scale"][k][:, None, None, None]
        t_mat = _dense_layer_matrix(lambda v: _conv2d_s2_p1(v, w_folded),
                                    (c, h, w))
        ho, wo = h // 2, w // 2
        shift = jnp.broadcast_to(params["bn_shift"][k][:, None],
                                 (c_out, ho * wo)).reshape(1, -1)
        mats.append(t_mat.astype(jnp.bfloat16))
        shifts.append(shift.astype(jnp.float32))
        c, h, w = c_out, ho, wo
    # decoder: ConvT(4,2,1, bias=False) -> ReLU
    for k in range(n_cnv):
        wk = params["convt_w"][k]                              # (C_in, C_out, 4, 4)
        c_out = wk.shape[1]
        t_mat = _dense_layer_matrix(lambda v: _convt2d_s2_p1(v, wk), (c, h, w))
        mats.append(t_mat.astype(jnp.bfloat16))
        shifts.append(None)
        c, h, w = c_out, h * 2, w * 2
    return mats, shifts, (c, h, w)


def reference_forward(x, params, n_cnv=3):
    """Pure-JAX (lax conv) reference with matched bf16 weight/activation
    rounding, eval-mode BN, Dropout as identity."""
    def q(a):  # mirror the kernel's bf16 MXU-input rounding
        return a.astype(jnp.bfloat16).astype(jnp.float32)

    h = x.astype(jnp.float32)
    for k in range(n_cnv):
        w = params["conv_w"][k] * params["bn_scale"][k][:, None, None, None]
        h = _conv2d_s2_p1(q(h), q(w)) + params["bn_shift"][k][None, :, None, None]
        h = jnp.maximum(h, 0.0)
    for k in range(n_cnv):
        h = _convt2d_s2_p1(q(h), q(params["convt_w"][k]))
        h = jnp.maximum(h, 0.0)
        # k == 0: nn.Dropout(0.7) -> identity in eval mode.
    t = jnp.tanh(h)
    return t * t


# ----------------------------------------------------------------------------
# Deterministic synthetic parameters matching the module's layer shapes.
# ----------------------------------------------------------------------------
def init_params(key, n_df=8, n_cnv=3, eps=1e-5):
    params = {"conv_w": [], "bn_scale": [], "bn_shift": [], "convt_w": []}
    keys = jax.random.split(key, 4 * n_cnv + n_cnv)
    ki = 0
    n_in = n_out = None
    for k in range(n_cnv):
        if k == 0:
            n_in, n_out = 3, n_df
        else:
            n_in, n_out = 2 ** (k - 1) * n_df, 2 ** k * n_df
        w = 0.1 * jax.random.normal(keys[ki], (n_out, n_in, 4, 4), jnp.float32)
        gamma = 1.0 + 0.05 * jax.random.normal(keys[ki + 1], (n_out,), jnp.float32)
        beta = 0.05 * jax.random.normal(keys[ki + 2], (n_out,), jnp.float32)
        r_mean = 0.05 * jax.random.normal(keys[ki + 3], (n_out,), jnp.float32)
        r_var = jnp.ones((n_out,), jnp.float32)
        ki += 4
        scale = gamma / jnp.sqrt(r_var + eps)          # eval-mode BN fold
        shift = beta - r_mean * scale
        params["conv_w"].append(w)
        params["bn_scale"].append(scale)
        params["bn_shift"].append(shift)
    # decoder: ConvTranspose2d(in=n_out, out=n_in) with the module's channel
    # bookkeeping; PyTorch ConvTranspose weight layout is (C_in, C_out, kH, kW).
    for k in range(n_cnv):
        if k == n_cnv - 1:
            n_in = 3
        w = 0.1 * jax.random.normal(keys[ki], (n_out, n_in, 4, 4), jnp.float32)
        ki += 1
        params["convt_w"].append(w)
        n_in //= 2
        n_out //= 2
    return params


if __name__ == "__main__":
    key = jax.random.PRNGKey(0)
    pkey, xkey = jax.random.split(key)
    params = init_params(pkey, n_df=8, n_cnv=3)

    # Small NCHW input consistent with the module (3 input channels).
    x = jax.random.normal(xkey, (2, 3, 16, 16), jnp.float32)

    # One-time host-side weight preprocessing (fold BN, lower each conv /
    # conv-transpose to a dense layer matrix, cast to bf16), then a single
    # fused Pallas call for the whole forward.
    mats, shifts, (out_c, out_h, out_w) = fold_params(params, x.shape[1:])
    y = fused_forward(x, mats, shifts, out_c, (out_h, out_w))
    y = jax.block_until_ready(y)

    # Validate against the pure-JAX conv reference (same bf16 quantization).
    y_ref = reference_forward(x, params)

    assert y.shape == (2, 3, 16, 16), y.shape
    assert y.dtype == jnp.float32
    assert bool(jnp.all(jnp.isfinite(y)))
    assert bool(jnp.all((y >= 0.0) & (y <= 1.0)))       # tanh(relu(.))**2
    max_err = float(jnp.max(jnp.abs(y - y_ref)))
    assert max_err < 1e-3, f"mismatch vs reference: {max_err}"
    print("KERNEL_OK")
</pallas_src>

<mosaic_0001>
module attributes {stable_mosaic.version = 11 : i64} {
  func.func @_fused_net_kernel(%arg0: i32, %arg1: memref<16x768xbf16, #tpu.memory_space<vmem>>, %arg2: memref<768x512xbf16, #tpu.memory_space<vmem>>, %arg3: memref<512x256xbf16, #tpu.memory_space<vmem>>, %arg4: memref<256x128xbf16, #tpu.memory_space<vmem>>, %arg5: memref<128x256xbf16, #tpu.memory_space<vmem>>, %arg6: memref<256x512xbf16, #tpu.memory_space<vmem>>, %arg7: memref<512x768xbf16, #tpu.memory_space<vmem>>, %arg8: memref<1x512xf32, #tpu.memory_space<vmem>>, %arg9: memref<1x256xf32, #tpu.memory_space<vmem>>, %arg10: memref<1x128xf32, #tpu.memory_space<vmem>>, %arg11: memref<16x768xf32, #tpu.memory_space<vmem>>) attributes {dimension_semantics = [#tpu.dimension_semantics<parallel>], iteration_bounds = array<i64: 1>, scalar_prefetch = 0 : i64, scratch_operands = 0 : i64, tpu.core_type = #tpu.core_type<tc>, window_params = [{transform_indices = @transform_0, window_bounds = array<i64: 16, 768>}, {pipeline_mode = #tpu.pipeline_mode<synchronous>, transform_indices = @transform_1, window_bounds = array<i64: 768, 512>}, {pipeline_mode = #tpu.pipeline_mode<synchronous>, transform_indices = @transform_2, window_bounds = array<i64: 512, 256>}, {pipeline_mode = #tpu.pipeline_mode<synchronous>, transform_indices = @transform_3, window_bounds = array<i64: 256, 128>}, {pipeline_mode = #tpu.pipeline_mode<synchronous>, transform_indices = @transform_4, window_bounds = array<i64: 128, 256>}, {pipeline_mode = #tpu.pipeline_mode<synchronous>, transform_indices = @transform_5, window_bounds = array<i64: 256, 512>}, {pipeline_mode = #tpu.pipeline_mode<synchronous>, transform_indices = @transform_6, window_bounds = array<i64: 512, 768>}, {pipeline_mode = #tpu.pipeline_mode<synchronous>, transform_indices = @transform_7, window_bounds = array<i64: 1, 512>}, {pipeline_mode = #tpu.pipeline_mode<synchronous>, transform_indices = @transform_8, window_bounds = array<i64: 1, 256>}, {pipeline_mode = #tpu.pipeline_mode<synchronous>, transform_indices = @transform_9, window_bounds = array<i64: 1, 128>}, {transform_indices = @transform_10, window_bounds = array<i64: 16, 768>}]} {
    %c0 = arith.constant 0 : index
    %c0_0 = arith.constant 0 : index
    %0 = vector.load %arg1[%c0, %c0_0] : memref<16x768xbf16, #tpu.memory_space<vmem>>, vector<16x768xbf16>
    %c0_1 = arith.constant 0 : index
    %c0_2 = arith.constant 0 : index
    %1 = vector.load %arg2[%c0_1, %c0_2] : memref<768x512xbf16, #tpu.memory_space<vmem>>, vector<768x512xbf16>
    %cst = arith.constant dense<0.000000e+00> : vector<16x512xf32>
    %2 = tpu.matmul %0, %1, %cst {dimension_numbers = #tpu.dot_dimension_numbers<[1], [0], [0], [1], [0, 0, 1, 1], [], []>} : vector<16x768xbf16>, vector<768x512xbf16>, vector<16x512xf32> -> vector<16x512xf32>
    %c0_3 = arith.constant 0 : index
    %c0_4 = arith.constant 0 : index
    %3 = vector.load %arg8[%c0_3, %c0_4] : memref<1x512xf32, #tpu.memory_space<vmem>>, vector<1x512xf32>
    %4 = vector.broadcast %3 : vector<1x512xf32> to vector<16x512xf32>
    %5 = arith.addf %2, %4 : vector<16x512xf32>
    %cst_5 = arith.constant 0.000000e+00 : f32
    %6 = vector.broadcast %cst_5 : f32 to vector<16x512xf32>
    %7 = arith.maximumf %5, %6 : vector<16x512xf32>
    %8 = arith.truncf %7 : vector<16x512xf32> to vector<16x512xbf16>
    %c0_6 = arith.constant 0 : index
    %c0_7 = arith.constant 0 : index
    %9 = vector.load %arg3[%c0_6, %c0_7] : memref<512x256xbf16, #tpu.memory_space<vmem>>, vector<512x256xbf16>
    %cst_8 = arith.constant dense<0.000000e+00> : vector<16x256xf32>
    %10 = tpu.matmul %8, %9, %cst_8 {dimension_numbers = #tpu.dot_dimension_numbers<[1], [0], [0], [1], [0, 0, 1, 1], [], []>} : vector<16x512xbf16>, vector<512x256xbf16>, vector<16x256xf32> -> vector<16x256xf32>
    %c0_9 = arith.constant 0 : index
    %c0_10 = arith.constant 0 : index
    %11 = vector.load %arg9[%c0_9, %c0_10] : memref<1x256xf32, #tpu.memory_space<vmem>>, vector<1x256xf32>
    %12 = vector.broadcast %11 : vector<1x256xf32> to vector<16x256xf32>
    %13 = arith.addf %10, %12 : vector<16x256xf32>
    %cst_11 = arith.constant 0.000000e+00 : f32
    %14 = vector.broadcast %cst_11 : f32 to vector<16x256xf32>
    %15 = arith.maximumf %13, %14 : vector<16x256xf32>
    %16 = arith.truncf %15 : vector<16x256xf32> to vector<16x256xbf16>
    %c0_12 = arith.constant 0 : index
    %c0_13 = arith.constant 0 : index
    %17 = vector.load %arg4[%c0_12, %c0_13] : memref<256x128xbf16, #tpu.memory_space<vmem>>, vector<256x128xbf16>
    %cst_14 = arith.constant dense<0.000000e+00> : vector<16x128xf32>
    %18 = tpu.matmul %16, %17, %cst_14 {dimension_numbers = #tpu.dot_dimension_numbers<[1], [0], [0], [1], [0, 0, 1, 1], [], []>} : vector<16x256xbf16>, vector<256x128xbf16>, vector<16x128xf32> -> vector<16x128xf32>
    %c0_15 = arith.constant 0 : index
    %c0_16 = arith.constant 0 : index
    %19 = vector.load %arg10[%c0_15, %c0_16] : memref<1x128xf32, #tpu.memory_space<vmem>>, vector<1x128xf32>
    %20 = vector.broadcast %19 : vector<1x128xf32> to vector<16x128xf32>
    %21 = arith.addf %18, %20 : vector<16x128xf32>
    %cst_17 = arith.constant 0.000000e+00 : f32
    %22 = vector.broadcast %cst_17 : f32 to vector<16x128xf32>
    %23 = arith.maximumf %21, %22 : vector<16x128xf32>
    %24 = arith.truncf %23 : vector<16x128xf32> to vector<16x128xbf16>
    %c0_18 = arith.constant 0 : index
    %c0_19 = arith.constant 0 : index
    %25 = vector.load %arg5[%c0_18, %c0_19] : memref<128x256xbf16, #tpu.memory_space<vmem>>, vector<128x256xbf16>
    %cst_20 = arith.constant dense<0.000000e+00> : vector<16x256xf32>
    %26 = tpu.matmul %24, %25, %cst_20 {dimension_numbers = #tpu.dot_dimension_numbers<[1], [0], [0], [1], [0, 0, 1, 1], [], []>} : vector<16x128xbf16>, vector<128x256xbf16>, vector<16x256xf32> -> vector<16x256xf32>
    %cst_21 = arith.constant 0.000000e+00 : f32
    %27 = vector.broadcast %cst_21 : f32 to vector<16x256xf32>
    %28 = arith.maximumf %26, %27 : vector<16x256xf32>
    %29 = arith.truncf %28 : vector<16x256xf32> to vector<16x256xbf16>
    %c0_22 = arith.constant 0 : index
    %c0_23 = arith.constant 0 : index
    %30 = vector.load %arg6[%c0_22, %c0_23] : memref<256x512xbf16, #tpu.memory_space<vmem>>, vector<256x512xbf16>
    %cst_24 = arith.constant dense<0.000000e+00> : vector<16x512xf32>
    %31 = tpu.matmul %29, %30, %cst_24 {dimension_numbers = #tpu.dot_dimension_numbers<[1], [0], [0], [1], [0, 0, 1, 1], [], []>} : vector<16x256xbf16>, vector<256x512xbf16>, vector<16x512xf32> -> vector<16x512xf32>
    %cst_25 = arith.constant 0.000000e+00 : f32
    %32 = vector.broadcast %cst_25 : f32 to vector<16x512xf32>
    %33 = arith.maximumf %31, %32 : vector<16x512xf32>
    %34 = arith.truncf %33 : vector<16x512xf32> to vector<16x512xbf16>
    %c0_26 = arith.constant 0 : index
    %c0_27 = arith.constant 0 : index
    %35 = vector.load %arg7[%c0_26, %c0_27] : memref<512x768xbf16, #tpu.memory_space<vmem>>, vector<512x768xbf16>
    %cst_28 = arith.constant dense<0.000000e+00> : vector<16x768xf32>
    %36 = tpu.matmul %34, %35, %cst_28 {dimension_numbers = #tpu.dot_dimension_numbers<[1], [0], [0], [1], [0, 0, 1, 1], [], []>} : vector<16x512xbf16>, vector<512x768xbf16>, vector<16x768xf32> -> vector<16x768xf32>
    %cst_29 = arith.constant 0.000000e+00 : f32
    %37 = vector.broadcast %cst_29 : f32 to vector<16x768xf32>
    %38 = arith.maximumf %36, %37 : vector<16x768xf32>
    %39 = math.tanh %38 : vector<16x768xf32>
    %40 = arith.mulf %39, %39 : vector<16x768xf32>
    %c0_30 = arith.constant 0 : index
    %c0_31 = arith.constant 0 : index
    %41 = vector.load %arg11[%c0_30, %c0_31] : memref<16x768xf32, #tpu.memory_space<vmem>>, vector<16x768xf32>
    tpu.vector_store %arg11[%c0_30, %c0_31], %40 {strides = array<i32>} : memref<16x768xf32, #tpu.memory_space<vmem>>, vector<16x768xf32>,
    return
  }
  func.func @transform_0(%arg0: i32) -> (i32, i32) {
    %c0_i32 = arith.constant 0 : i32
    %c0_i32_0 = arith.constant 0 : i32
    return %arg0, %c0_i32 : i32, i32
  }
  func.func @transform_1(%arg0: i32) -> (i32, i32) {
    %c0_i32 = arith.constant 0 : i32
    %c0_i32_0 = arith.constant 0 : i32
    %c0_i32_1 = arith.constant 0 : i32
    return %c0_i32, %c0_i32_0 : i32, i32
  }
  func.func @transform_2(%arg0: i32) -> (i32, i32) {
    %c0_i32 = arith.constant 0 : i32
    %c0_i32_0 = arith.constant 0 : i32
    %c0_i32_1 = arith.constant 0 : i32
    return %c0_i32, %c0_i32_0 : i32, i32
  }
  func.func @transform_3(%arg0: i32) -> (i32, i32) {
    %c0_i32 = arith.constant 0 : i32
    %c0_i32_0 = arith.constant 0 : i32
    %c0_i32_1 = arith.constant 0 : i32
    return %c0_i32, %c0_i32_0 : i32, i32
  }
  func.func @transform_4(%arg0: i32) -> (i32, i32) {
    %c0_i32 = arith.constant 0 : i32
    %c0_i32_0 = arith.constant 0 : i32
    %c0_i32_1 = arith.constant 0 : i32
    return %c0_i32, %c0_i32_0 : i32, i32
  }
  func.func @transform_5(%arg0: i32) -> (i32, i32) {
    %c0_i32 = arith.constant 0 : i32
    %c0_i32_0 = arith.constant 0 : i32
    %c0_i32_1 = arith.constant 0 : i32
    return %c0_i32, %c0_i32_0 : i32, i32
  }
  func.func @transform_6(%arg0: i32) -> (i32, i32) {
    %c0_i32 = arith.constant 0 : i32
    %c0_i32_0 = arith.constant 0 : i32
    %c0_i32_1 = arith.constant 0 : i32
    return %c0_i32, %c0_i32_0 : i32, i32
  }
  func.func @transform_7(%arg0: i32) -> (i32, i32) {
    %c0_i32 = arith.constant 0 : i32
    %c0_i32_0 = arith.constant 0 : i32
    %c0_i32_1 = arith.constant 0 : i32
    return %c0_i32, %c0_i32_0 : i32, i32
  }
  func.func @transform_8(%arg0: i32) -> (i32, i32) {
    %c0_i32 = arith.constant 0 : i32
    %c0_i32_0 = arith.constant 0 : i32
    %c0_i32_1 = arith.constant 0 : i32
    return %c0_i32, %c0_i32_0 : i32, i32
  }
  func.func @transform_9(%arg0: i32) -> (i32, i32) {
    %c0_i32 = arith.constant 0 : i32
    %c0_i32_0 = arith.constant 0 : i32
    %c0_i32_1 = arith.constant 0 : i32
    return %c0_i32, %c0_i32_0 : i32, i32
  }
  func.func @transform_10(%arg0: i32) -> (i32, i32) {
    %c0_i32 = arith.constant 0 : i32
    %c0_i32_0 = arith.constant 0 : i32
    return %arg0, %c0_i32 : i32, i32
  }
}

module attributes {stable_mosaic.version = 11 : i64} {
  func.func @_fused_net_kernel(%arg0: i32, %arg1: memref<16x768xbf16, #tpu.memory_space<vmem>>, %arg2: memref<768x512xbf16, #tpu.memory_space<vmem>>, %arg3: memref<512x256xbf16, #tpu.memory_space<vmem>>, %arg4: memref<256x128xbf16, #tpu.memory_space<vmem>>, %arg5: memref<128x256xbf16, #tpu.memory_space<vmem>>, %arg6: memref<256x512xbf16, #tpu.memory_space<vmem>>, %arg7: memref<512x768xbf16, #tpu.memory_space<vmem>>, %arg8: memref<1x512xf32, #tpu.memory_space<vmem>>, %arg9: memref<1x256xf32, #tpu.memory_space<vmem>>, %arg10: memref<1x128xf32, #tpu.memory_space<vmem>>, %arg11: memref<16x768xf32, #tpu.memory_space<vmem>>) attributes {dimension_semantics = [#tpu.dimension_semantics<parallel>], iteration_bounds = array<i64: 1>, scalar_prefetch = 0 : i64, scratch_operands = 0 : i64, tpu.core_type = #tpu.core_type<tc>, window_params = [{transform_indices = @transform_0, window_bounds = array<i64: 16, 768>}, {pipeline_mode = #tpu.pipeline_mode<synchronous>, transform_indices = @transform_1, window_bounds = array<i64: 768, 512>}, {pipeline_mode = #tpu.pipeline_mode<synchronous>, transform_indices = @transform_2, window_bounds = array<i64: 512, 256>}, {pipeline_mode = #tpu.pipeline_mode<synchronous>, transform_indices = @transform_3, window_bounds = array<i64: 256, 128>}, {pipeline_mode = #tpu.pipeline_mode<synchronous>, transform_indices = @transform_4, window_bounds = array<i64: 128, 256>}, {pipeline_mode = #tpu.pipeline_mode<synchronous>, transform_indices = @transform_5, window_bounds = array<i64: 256, 512>}, {pipeline_mode = #tpu.pipeline_mode<synchronous>, transform_indices = @transform_6, window_bounds = array<i64: 512, 768>}, {pipeline_mode = #tpu.pipeline_mode<synchronous>, transform_indices = @transform_7, window_bounds = array<i64: 1, 512>}, {pipeline_mode = #tpu.pipeline_mode<synchronous>, transform_indices = @transform_8, window_bounds = array<i64: 1, 256>}, {pipeline_mode = #tpu.pipeline_mode<synchronous>, transform_indices = @transform_9, window_bounds = array<i64: 1, 128>}, {transform_indices = @transform_10, window_bounds = array<i64: 16, 768>}]} {
    %c0 = arith.constant 0 : index
    %c0_0 = arith.constant 0 : index
    %0 = vector.load %arg1[%c0, %c0_0] : memref<16x768xbf16, #tpu.memory_space<vmem>>, vector<16x768xbf16>
    %c0_1 = arith.constant 0 : index
    %c0_2 = arith.constant 0 : index
    %1 = vector.load %arg2[%c0_1, %c0_2] : memref<768x512xbf16, #tpu.memory_space<vmem>>, vector<768x512xbf16>
    %cst = arith.constant dense<0.000000e+00> : vector<16x512xf32>
    %2 = tpu.matmul %0, %1, %cst {dimension_numbers = #tpu.dot_dimension_numbers<[1], [0], [0], [1], [0, 0, 1, 1], [], []>} : vector<16x768xbf16>, vector<768x512xbf16>, vector<16x512xf32> -> vector<16x512xf32>
    %c0_3 = arith.constant 0 : index
    %c0_4 = arith.constant 0 : index
    %3 = vector.load %arg8[%c0_3, %c0_4] : memref<1x512xf32, #tpu.memory_space<vmem>>, vector<1x512xf32>
    %4 = vector.broadcast %3 : vector<1x512xf32> to vector<16x512xf32>
    %5 = arith.addf %2, %4 : vector<16x512xf32>
    %cst_5 = arith.constant 0.000000e+00 : f32
    %6 = vector.broadcast %cst_5 : f32 to vector<16x512xf32>
    %7 = arith.maximumf %5, %6 : vector<16x512xf32>
    %8 = arith.truncf %7 : vector<16x512xf32> to vector<16x512xbf16>
    %c0_6 = arith.constant 0 : index
    %c0_7 = arith.constant 0 : index
    %9 = vector.load %arg3[%c0_6, %c0_7] : memref<512x256xbf16, #tpu.memory_space<vmem>>, vector<512x256xbf16>
    %cst_8 = arith.constant dense<0.000000e+00> : vector<16x256xf32>
    %10 = tpu.matmul %8, %9, %cst_8 {dimension_numbers = #tpu.dot_dimension_numbers<[1], [0], [0], [1], [0, 0, 1, 1], [], []>} : vector<16x512xbf16>, vector<512x256xbf16>, vector<16x256xf32> -> vector<16x256xf32>
    %c0_9 = arith.constant 0 : index
    %c0_10 = arith.constant 0 : index
    %11 = vector.load %arg9[%c0_9, %c0_10] : memref<1x256xf32, #tpu.memory_space<vmem>>, vector<1x256xf32>
    %12 = vector.broadcast %11 : vector<1x256xf32> to vector<16x256xf32>
    %13 = arith.addf %10, %12 : vector<16x256xf32>
    %cst_11 = arith.constant 0.000000e+00 : f32
    %14 = vector.broadcast %cst_11 : f32 to vector<16x256xf32>
    %15 = arith.maximumf %13, %14 : vector<16x256xf32>
    %16 = arith.truncf %15 : vector<16x256xf32> to vector<16x256xbf16>
    %c0_12 = arith.constant 0 : index
    %c0_13 = arith.constant 0 : index
    %17 = vector.load %arg4[%c0_12, %c0_13] : memref<256x128xbf16, #tpu.memory_space<vmem>>, vector<256x128xbf16>
    %cst_14 = arith.constant dense<0.000000e+00> : vector<16x128xf32>
    %18 = tpu.matmul %16, %17, %cst_14 {dimension_numbers = #tpu.dot_dimension_numbers<[1], [0], [0], [1], [0, 0, 1, 1], [], []>} : vector<16x256xbf16>, vector<256x128xbf16>, vector<16x128xf32> -> vector<16x128xf32>
    %c0_15 = arith.constant 0 : index
    %c0_16 = arith.constant 0 : index
    %19 = vector.load %arg10[%c0_15, %c0_16] : memref<1x128xf32, #tpu.memory_space<vmem>>, vector<1x128xf32>
    %20 = vector.broadcast %19 : vector<1x128xf32> to vector<16x128xf32>
    %21 = arith.addf %18, %20 : vector<16x128xf32>
    %cst_17 = arith.constant 0.000000e+00 : f32
    %22 = vector.broadcast %cst_17 : f32 to vector<16x128xf32>
    %23 = arith.maximumf %21, %22 : vector<16x128xf32>
    %24 = arith.truncf %23 : vector<16x128xf32> to vector<16x128xbf16>
    %c0_18 = arith.constant 0 : index
    %c0_19 = arith.constant 0 : index
    %25 = vector.load %arg5[%c0_18, %c0_19] : memref<128x256xbf16, #tpu.memory_space<vmem>>, vector<128x256xbf16>
    %cst_20 = arith.constant dense<0.000000e+00> : vector<16x256xf32>
    %26 = tpu.matmul %24, %25, %cst_20 {dimension_numbers = #tpu.dot_dimension_numbers<[1], [0], [0], [1], [0, 0, 1, 1], [], []>} : vector<16x128xbf16>, vector<128x256xbf16>, vector<16x256xf32> -> vector<16x256xf32>
    %cst_21 = arith.constant 0.000000e+00 : f32
    %27 = vector.broadcast %cst_21 : f32 to vector<16x256xf32>
    %28 = arith.maximumf %26, %27 : vector<16x256xf32>
    %29 = arith.truncf %28 : vector<16x256xf32> to vector<16x256xbf16>
    %c0_22 = arith.constant 0 : index
    %c0_23 = arith.constant 0 : index
    %30 = vector.load %arg6[%c0_22, %c0_23] : memref<256x512xbf16, #tpu.memory_space<vmem>>, vector<256x512xbf16>
    %cst_24 = arith.constant dense<0.000000e+00> : vector<16x512xf32>
    %31 = tpu.matmul %29, %30, %cst_24 {dimension_numbers = #tpu.dot_dimension_numbers<[1], [0], [0], [1], [0, 0, 1, 1], [], []>} : vector<16x256xbf16>, vector<256x512xbf16>, vector<16x512xf32> -> vector<16x512xf32>
    %cst_25 = arith.constant 0.000000e+00 : f32
    %32 = vector.broadcast %cst_25 : f32 to vector<16x512xf32>
    %33 = arith.maximumf %31, %32 : vector<16x512xf32>
    %34 = arith.truncf %33 : vector<16x512xf32> to vector<16x512xbf16>
    %c0_26 = arith.constant 0 : index
    %c0_27 = arith.constant 0 : index
    %35 = vector.load %arg7[%c0_26, %c0_27] : memref<512x768xbf16, #tpu.memory_space<vmem>>, vector<512x768xbf16>
    %cst_28 = arith.constant dense<0.000000e+00> : vector<16x768xf32>
    %36 = tpu.matmul %34, %35, %cst_28 {dimension_numbers = #tpu.dot_dimension_numbers<[1], [0], [0], [1], [0, 0, 1, 1], [], []>} : vector<16x512xbf16>, vector<512x768xbf16>, vector<16x768xf32> -> vector<16x768xf32>
    %cst_29 = arith.constant 0.000000e+00 : f32
    %37 = vector.broadcast %cst_29 : f32 to vector<16x768xf32>
    %38 = arith.maximumf %36, %37 : vector<16x768xf32>
    %39 = math.tanh %38 : vector<16x768xf32>
    %40 = arith.mulf %39, %39 : vector<16x768xf32>
    %c0_30 = arith.constant 0 : index
    %c0_31 = arith.constant 0 : index
    %41 = vector.load %arg11[%c0_30, %c0_31] : memref<16x768xf32, #tpu.memory_space<vmem>>, vector<16x768xf32>
    tpu.vector_store %arg11[%c0_30, %c0_31], %40 {strides = array<i32>} : memref<16x768xf32, #tpu.memory_space<vmem>>, vector<16x768xf32>,
    return
  }
  func.func @transform_0(%arg0: i32) -> (i32, i32) {
    %c0_i32 = arith.constant 0 : i32
    %c0_i32_0 = arith.constant 0 : i32
    return %arg0, %c0_i32 : i32, i32
  }
  func.func @transform_1(%arg0: i32) -> (i32, i32) {
    %c0_i32 = arith.constant 0 : i32
    %c0_i32_0 = arith.constant 0 : i32
    %c0_i32_1 = arith.constant 0 : i32
    return %c0_i32, %c0_i32_0 : i32, i32
  }
  func.func @transform_2(%arg0: i32) -> (i32, i32) {
    %c0_i32 = arith.constant 0 : i32
    %c0_i32_0 = arith.constant 0 : i32
    %c0_i32_1 = arith.constant 0 : i32
    return %c0_i32, %c0_i32_0 : i32, i32
  }
  func.func @transform_3(%arg0: i32) -> (i32, i32) {
    %c0_i32 = arith.constant 0 : i32
    %c0_i32_0 = arith.constant 0 : i32
    %c0_i32_1 = arith.constant 0 : i32
    return %c0_i32, %c0_i32_0 : i32, i32
  }
  func.func @transform_4(%arg0: i32) -> (i32, i32) {
    %c0_i32 = arith.constant 0 : i32
    %c0_i32_0 = arith.constant 0 : i32
    %c0_i32_1 = arith.constant 0 : i32
    return %c0_i32, %c0_i32_0 : i32, i32
  }
  func.func @transform_5(%arg0: i32) -> (i32, i32) {
    %c0_i32 = arith.constant 0 : i32
    %c0_i32_0 = arith.constant 0 : i32
    %c0_i32_1 = arith.constant 0 : i32
    return %c0_i32, %c0_i32_0 : i32, i32
  }
  func.func @transform_6(%arg0: i32) -> (i32, i32) {
    %c0_i32 = arith.constant 0 : i32
    %c0_i32_0 = arith.constant 0 : i32
    %c0_i32_1 = arith.constant 0 : i32
    return %c0_i32, %c0_i32_0 : i32, i32
  }
  func.func @transform_7(%arg0: i32) -> (i32, i32) {
    %c0_i32 = arith.constant 0 : i32
    %c0_i32_0 = arith.constant 0 : i32
    %c0_i32_1 = arith.constant 0 : i32
    return %c0_i32, %c0_i32_0 : i32, i32
  }
  func.func @transform_8(%arg0: i32) -> (i32, i32) {
    %c0_i32 = arith.constant 0 : i32
    %c0_i32_0 = arith.constant 0 : i32
    %c0_i32_1 = arith.constant 0 : i32
    return %c0_i32, %c0_i32_0 : i32, i32
  }
  func.func @transform_9(%arg0: i32) -> (i32, i32) {
    %c0_i32 = arith.constant 0 : i32
    %c0_i32_0 = arith.constant 0 : i32
    %c0_i32_1 = arith.constant 0 : i32
    return %c0_i32, %c0_i32_0 : i32, i32
  }
  func.func @transform_10(%arg0: i32) -> (i32, i32) {
    %c0_i32 = arith.constant 0 : i32
    %c0_i32_0 = arith.constant 0 : i32
    return %arg0, %c0_i32 : i32, i32
  }
}

</mosaic_0001>

<llo_original>
// kernel: tpu_custom_call.1
$region0: #{tpu_custom_call.1}
  #allocation0 [shape = 'u32[]', space=smem, size = 0x4, offset = 0x4, fixed_abs, tag = 'smem constant byte address 0x4 - core index']
  #allocation1 [shape = 'u32[144,128]{1,0:T(1,128)}', space=vmem, size = 0x12000, scoped, tag = 'internal scratch']
  %s0 = inlined_call_operand.hbm [shape: bf16[16,768], index: 0, kind: input, shape index: {}]
  %s1 = inlined_call_operand.hbm [shape: bf16[768,512], index: 1, kind: input, shape index: {}]
  %s2 = inlined_call_operand.hbm [shape: bf16[512,256], index: 2, kind: input, shape index: {}]
  %s3 = inlined_call_operand.hbm [shape: bf16[256,128], index: 3, kind: input, shape index: {}]
  %s4 = inlined_call_operand.hbm [shape: bf16[128,256], index: 4, kind: input, shape index: {}]
  %s5 = inlined_call_operand.hbm [shape: bf16[256,512], index: 5, kind: input, shape index: {}]
  %s6 = inlined_call_operand.hbm [shape: bf16[512,768], index: 6, kind: input, shape index: {}]
  %s7 = inlined_call_operand.vmem [shape: f32[1,512], index: 7, kind: input, shape index: {}]
  %s8 = inlined_call_operand.vmem [shape: f32[1,256], index: 8, kind: input, shape index: {}]
  %s9 = inlined_call_operand.vmem [shape: f32[1,128], index: 9, kind: input, shape index: {}]
  %s10 = inlined_call_operand.hbm [shape: f32[16,768], index: 10, kind: output, shape index: {}]
  %s11 = sld [smem:[#allocation0]]
  $region78: #{tpu_custom_call.1} parent=0
    _
  %s13 = ssub.s32 1, %s11
  %s14 = scalar_select 0, %s13, %s11
  $region1: #{tpu_custom_call.1} parent=0
    #allocation2 [shape = 'u8[24576]{0}', space=vmem, size = 0x6000, scoped, tag = 'input window, operand 0, single buffered']
    #allocation3 [shape = 's32[1]{0}', space=sflag, size = 0x4, scoped, tag = 'scoped memory for tpu_custom_call.1']
    #allocation4 [shape = 's32[1]{0}', space=sflag, size = 0x4, scoped, tag = 'scoped memory for tpu_custom_call.1']
    #allocation5 [shape = 'u8[786432]{0}', space=vmem, size = 0xc0000, scoped, tag = 'input window, operand 1, single buffered']
    #allocation6 [shape = 's32[1]{0}', space=sflag, size = 0x4, scoped, tag = 'scoped memory for tpu_custom_call.1']
    #allocation7 [shape = 'u8[262144]{0}', space=vmem, size = 0x40000, scoped, tag = 'input window, operand 2, single buffered']
    #allocation8 [shape = 'u8[65536]{0}', space=vmem, size = 0x10000, scoped, tag = 'input window, operand 3, single buffered']
    #allocation9 [shape = 's32[1]{0}', space=sflag, size = 0x4, scoped, tag = 'scoped memory for tpu_custom_call.1']
    #allocation10 [shape = 'u8[65536]{0}', space=vmem, size = 0x10000, scoped, tag = 'input window, operand 4, single buffered']
    #allocation11 [shape = 'u8[262144]{0}', space=vmem, size = 0x40000, scoped, tag = 'input window, operand 5, single buffered']
    #allocation12 [shape = 's32[1]{0}', space=sflag, size = 0x4, scoped, tag = 'scoped memory for tpu_custom_call.1']
    #allocation13 [shape = 'u8[786432]{0}', space=vmem, size = 0xc0000, scoped, tag = 'input window, operand 6, single buffered']
    #allocation14 [shape = 'u8[49152]{0}', space=vmem, size = 0xc000, scoped, tag = 'output window, operand 0, single buffered']
    %15 = vsyncpa [#allocation3], 0
    %16 = vsyncpa [#allocation6], 0
    %17 = vsyncpa [#allocation9], 0
    %18 = vsyncpa [#allocation12], 0
    %19 = vsyncpa [#allocation4], 0
    // Predicated region
    $region2: #{tpu_custom_call.1} parent=1 // pred_check
      _
    $region3: #{tpu_custom_call.1} parent=1 // pred_check_branch
      %21 = sbr.rel (0) target = $region5
    $region4: #{tpu_custom_call.1} parent=1 // pred_region
      %s23 = ssub.s32 768, 768
      %24 = vsyncadd [#allocation3], %s23
      %s25 = sshll.u32 [#allocation2], 4
      %s26 = int_to_ptr.vmem [resolvable:$true] %s25
      %31 = dma.hbm_to_vmem [thread:$0]  %s0, 768, %s26, [#allocation3], 384, 384, 24
    $region5: #{tpu_custom_call.1} parent=1 // pred_fallthru
      _
    // Predicated region
    $region6: #{tpu_custom_call.1} parent=1 // pred_check
      _
    $region7: #{tpu_custom_call.1} parent=1 // pred_check_branch
      %33 = sbr.rel (0) target = $region9
    $region8: #{tpu_custom_call.1} parent=1 // pred_region
      %s35 = ssub.s32 24576, 24576
      %36 = vsyncadd [#allocation6], %s35
      %s37 = sshll.u32 [#allocation5], 4
      %s38 = int_to_ptr.vmem [resolvable:$true] %s37
      %43 = dma.hbm_to_vmem [thread:$0]  %s1, 24576, %s38, [#allocation6], 256, 256, 16
    $region9: #{tpu_custom_call.1} parent=1 // pred_fallthru
      _
    // Predicated region
    $region10: #{tpu_custom_call.1} parent=1 // pred_check
      _
    $region11: #{tpu_custom_call.1} parent=1 // pred_check_branch
      %45 = sbr.rel (0) target = $region13
    $region12: #{tpu_custom_call.1} parent=1 // pred_region
      %s47 = ssub.s32 8192, 8192
      %48 = vsyncadd [#allocation6], %s47
      %s49 = sshll.u32 [#allocation7], 4
      %s50 = int_to_ptr.vmem [resolvable:$true] %s49
      %55 = dma.hbm_to_vmem [thread:$0]  %s2, 8192, %s50, [#allocation6], 128, 128, 8
    $region13: #{tpu_custom_call.1} parent=1 // pred_fallthru
      _
    // Predicated region
    $region14: #{tpu_custom_call.1} parent=1 // pred_check
      _
    $region15: #{tpu_custom_call.1} parent=1 // pred_check_branch
      %57 = sbr.rel (0) target = $region17
    $region16: #{tpu_custom_call.1} parent=1 // pred_region
      %s59 = ssub.s32 2048, 2048
      %60 = vsyncadd [#allocation9], %s59
      %s61 = sshll.u32 [#allocation8], 4
      %s62 = int_to_ptr.vmem [resolvable:$true] %s61
      %67 = dma.hbm_to_vmem [thread:$0]  %s3, 2048, %s62, [#allocation9], 64, 64, 4
    $region17: #{tpu_custom_call.1} parent=1 // pred_fallthru
      _
    // Predicated region
    $region18: #{tpu_custom_call.1} parent=1 // pred_check
      _
    $region19: #{tpu_custom_call.1} parent=1 // pred_check_branch
      %69 = sbr.rel (0) target = $region21
    $region20: #{tpu_custom_call.1} parent=1 // pred_region
      %s71 = ssub.s32 2048, 2048
      %72 = vsyncadd [#allocation9], %s71
      %s73 = sshll.u32 [#allocation10], 4
      %s74 = int_to_ptr.vmem [resolvable:$true] %s73
      %79 = dma.hbm_to_vmem [thread:$0]  %s4, 2048, %s74, [#allocation9], 128, 128, 8
    $region21: #{tpu_custom_call.1} parent=1 // pred_fallthru
      _
    // Predicated region
    $region22: #{tpu_custom_call.1} parent=1 // pred_check
      _
    $region23: #{tpu_custom_call.1} parent=1 // pred_check_branch
      %81 = sbr.rel (0) target = $region25
    $region24: #{tpu_custom_call.1} parent=1 // pred_region
      %s83 = ssub.s32 8192, 8192
      %84 = vsyncadd [#allocation12], %s83
      %s85 = sshll.u32 [#allocation11], 4
      %s86 = int_to_ptr.vmem [resolvable:$true] %s85
      %91 = dma.hbm_to_vmem [thread:$0]  %s5, 8192, %s86, [#allocation12], 256, 256, 16
    $region25: #{tpu_custom_call.1} parent=1 // pred_fallthru
      _
    // Predicated region
    $region26: #{tpu_custom_call.1} parent=1 // pred_check
      _
    $region27: #{tpu_custom_call.1} parent=1 // pred_check_branch
      %93 = sbr.rel (0) target = $region29
    $region28: #{tpu_custom_call.1} parent=1 // pred_region
      %s95 = ssub.s32 24576, 24576
      %96 = vsyncadd [#allocation12], %s95
      %s97 = sshll.u32 [#allocation13], 4
      %s98 = int_to_ptr.vmem [resolvable:$true] %s97
      %103 = dma.hbm_to_vmem [thread:$0]  %s6, 24576, %s98, [#allocation12], 384, 384, 24
    $region29: #{tpu_custom_call.1} parent=1 // pred_fallthru
      _
    // Predicated region
    $region30: #{tpu_custom_call.1} parent=1 // pred_check
      _
    $region31: #{tpu_custom_call.1} parent=1 // pred_check_branch
      %105 = sbr.rel (0) target = $region33
    $region32: #{tpu_custom_call.1} parent=1 // pred_region
      _
    $region33: #{tpu_custom_call.1} parent=1 // pred_fallthru
      _
    // Predicated region
    $region34: #{tpu_custom_call.1} parent=1 // pred_check
      _
    $region35: #{tpu_custom_call.1} parent=1 // pred_check_branch
      %107 = sbr.rel (0) target = $region37
    $region36: #{tpu_custom_call.1} parent=1 // pred_region
      _
    $region37: #{tpu_custom_call.1} parent=1 // pred_fallthru
      _
    // Predicated region
    $region38: #{tpu_custom_call.1} parent=1 // pred_check
      _
    $region39: #{tpu_custom_call.1} parent=1 // pred_check_branch
      %109 = sbr.rel (0) target = $region41
    $region40: #{tpu_custom_call.1} parent=1 // pred_region
      _
    $region41: #{tpu_custom_call.1} parent=1 // pred_fallthru
      _
    // Predicated region
    $region42: #{tpu_custom_call.1} parent=1 // pred_check
      _
    $region43: #{tpu_custom_call.1} parent=1 // pred_check_branch
      %111 = sbr.rel (0) target = $region45
    $region44: #{tpu_custom_call.1} parent=1 // pred_region
      %112 = dma.done [#allocation3], 768
    $region45: #{tpu_custom_call.1} parent=1 // pred_fallthru
      _
    // Predicated region
    $region46: #{tpu_custom_call.1} parent=1 // pred_check
      _
    $region47: #{tpu_custom_call.1} parent=1 // pred_check_branch
      %114 = sbr.rel (0) target = $region49
    $region48: #{tpu_custom_call.1} parent=1 // pred_region
      %115 = dma.done [#allocation6], 24576
    $region49: #{tpu_custom_call.1} parent=1 // pred_fallthru
      _
    // Predicated region
    $region50: #{tpu_custom_call.1} parent=1 // pred_check
      _
    $region51: #{tpu_custom_call.1} parent=1 // pred_check_branch
      %117 = sbr.rel (0) target = $region53
    $region52: #{tpu_custom_call.1} parent=1 // pred_region
      %118 = dma.done [#allocation6], 8192
    $region53: #{tpu_custom_call.1} parent=1 // pred_fallthru
      _
    // Predicated region
    $region54: #{tpu_custom_call.1} parent=1 // pred_check
      _
    $region55: #{tpu_custom_call.1} parent=1 // pred_check_branch
      %120 = sbr.rel (0) target = $region57
    $region56: #{tpu_custom_call.1} parent=1 // pred_region
      %121 = dma.done [#allocation9], 2048
    $region57: #{tpu_custom_call.1} parent=1 // pred_fallthru
      _
    // Predicated region
    $region58: #{tpu_custom_call.1} parent=1 // pred_check
      _
    $region59: #{tpu_custom_call.1} parent=1 // pred_check_branch
      %123 = sbr.rel (0) target = $region61
    $region60: #{tpu_custom_call.1} parent=1 // pred_region
      %124 = dma.done [#allocation9], 2048
    $region61: #{tpu_custom_call.1} parent=1 // pred_fallthru
      _
    // Predicated region
    $region62: #{tpu_custom_call.1} parent=1 // pred_check
      _
    $region63: #{tpu_custom_call.1} parent=1 // pred_check_branch
      %126 = sbr.rel (0) target = $region65
    $region64: #{tpu_custom_call.1} parent=1 // pred_region
      %127 = dma.done [#allocation12], 8192
    $region65: #{tpu_custom_call.1} parent=1 // pred_fallthru
      _
    // Predicated region
    $region66: #{tpu_custom_call.1} parent=1 // pred_check
      _
    $region67: #{tpu_custom_call.1} parent=1 // pred_check_branch
      %129 = sbr.rel (0) target = $region69
    $region68: #{tpu_custom_call.1} parent=1 // pred_region
      %130 = dma.done [#allocation12], 24576
    $region69: #{tpu_custom_call.1} parent=1 // pred_fallthru
      _
    %v132 = vld [vmem:[#allocation2] sm:$0xff]
    %v133 = vld [vmem:[#allocation2 + $0x8] sm:$0xff]
    %v134 = vld [vmem:[#allocation2 + $0x10] sm:$0xff]
    %v135 = vld [vmem:[#allocation2 + $0x18] sm:$0xff]
    %v136 = vld [vmem:[#allocation2 + $0x20] sm:$0xff]
    %v137 = vld [vmem:[#allocation2 + $0x28] sm:$0xff]
    %v138 = vld [vmem:[#allocation5] sm:$0xff]
    %v139 = vld [vmem:[#allocation5 + $0x8] sm:$0xff]
    %v140 = vld [vmem:[#allocation5 + $0x10] sm:$0xff]
    %v141 = vld [vmem:[#allocation5 + $0x18] sm:$0xff]
    %v142 = vld [vmem:[#allocation5 + $0x20] sm:$0xff]
    %v143 = vld [vmem:[#allocation5 + $0x28] sm:$0xff]
    %v144 = vld [vmem:[#allocation5 + $0x30] sm:$0xff]
    %v145 = vld [vmem:[#allocation5 + $0x38] sm:$0xff]
    %v146 = vld [vmem:[#allocation5 + $0x40] sm:$0xff]
    %v147 = vld [vmem:[#allocation5 + $0x48] sm:$0xff]
    %v148 = vld [vmem:[#allocation5 + $0x50] sm:$0xff]
    %v149 = vld [vmem:[#allocation5 + $0x58] sm:$0xff]
    %v150 = vld [vmem:[#allocation5 + $0x60] sm:$0xff]
    %v151 = vld [vmem:[#allocation5 + $0x68] sm:$0xff]
    %v152 = vld [vmem:[#allocation5 + $0x70] sm:$0xff]
    %v153 = vld [vmem:[#allocation5 + $0x78] sm:$0xff]
    %v154 = vld [vmem:[#allocation5 + $0x80] sm:$0xff]
    %v155 = vld [vmem:[#allocation5 + $0x88] sm:$0xff]
    %v156 = vld [vmem:[#allocation5 + $0x90] sm:$0xff]
    %v157 = vld [vmem:[#allocation5 + $0x98] sm:$0xff]
    %v158 = vld [vmem:[#allocation5 + $0xa0] sm:$0xff]
    %v159 = vld [vmem:[#allocation5 + $0xa8] sm:$0xff]
    %v160 = vld [vmem:[#allocation5 + $0xb0] sm:$0xff]
    %v161 = vld [vmem:[#allocation5 + $0xb8] sm:$0xff]
    %v162 = vld [vmem:[#allocation5 + $0xc0] sm:$0xff]
    %v163 = vld [vmem:[#allocation5 + $0xc8] sm:$0xff]
    %v164 = vld [vmem:[#allocation5 + $0xd0] sm:$0xff]
    %v165 = vld [vmem:[#allocation5 + $0xd8] sm:$0xff]
    %v166 = vld [vmem:[#allocation5 + $0xe0] sm:$0xff]
    %v167 = vld [vmem:[#allocation5 + $0xe8] sm:$0xff]
    %v168 = vld [vmem:[#allocation5 + $0xf0] sm:$0xff]
    %v169 = vld [vmem:[#allocation5 + $0xf8] sm:$0xff]
    %v170 = vld [vmem:[#allocation5 + $0x100] sm:$0xff]
    %v171 = vld [vmem:[#allocation5 + $0x108] sm:$0xff]
    %v172 = vld [vmem:[#allocation5 + $0x110] sm:$0xff]
    %v173 = vld [vmem:[#allocation5 + $0x118] sm:$0xff]
    %v174 = vld [vmem:[#allocation5 + $0x120] sm:$0xff]
    %v175 = vld [vmem:[#allocation5 + $0x128] sm:$0xff]
    %v176 = vld [vmem:[#allocation5 + $0x130] sm:$0xff]
    %v177 = vld [vmem:[#allocation5 + $0x138] sm:$0xff]
    %v178 = vld [vmem:[#allocation5 + $0x140] sm:$0xff]
    %v179 = vld [vmem:[#allocation5 + $0x148] sm:$0xff]
    %v180 = vld [vmem:[#allocation5 + $0x150] sm:$0xff]
    %v181 = vld [vmem:[#allocation5 + $0x158] sm:$0xff]
    %v182 = vld [vmem:[#allocation5 + $0x160] sm:$0xff]
    %v183 = vld [vmem:[#allocation5 + $0x168] sm:$0xff]
    %v184 = vld [vmem:[#allocation5 + $0x170] sm:$0xff]
    %v185 = vld [vmem:[#allocation5 + $0x178] sm:$0xff]
    %v186 = vld [vmem:[#allocation5 + $0x180] sm:$0xff]
    %v187 = vld [vmem:[#allocation5 + $0x188] sm:$0xff]
    %v188 = vld [vmem:[#allocation5 + $0x190] sm:$0xff]
    %v189 = vld [vmem:[#allocation5 + $0x198] sm:$0xff]
    %v190 = vld [vmem:[#allocation5 + $0x1a0] sm:$0xff]
    %v191 = vld [vmem:[#allocation5 + $0x1a8] sm:$0xff]
    %v192 = vld [vmem:[#allocation5 + $0x1b0] sm:$0xff]
    %v193 = vld [vmem:[#allocation5 + $0x1b8] sm:$0xff]
    %v194 = vld [vmem:[#allocation5 + $0x1c0] sm:$0xff]
    %v195 = vld [vmem:[#allocation5 + $0x1c8] sm:$0xff]
    %v196 = vld [vmem:[#allocation5 + $0x1d0] sm:$0xff]
    %v197 = vld [vmem:[#allocation5 + $0x1d8] sm:$0xff]
    %v198 = vld [vmem:[#allocation5 + $0x1e0] sm:$0xff]
    %v199 = vld [vmem:[#allocation5 + $0x1e8] sm:$0xff]
    %v200 = vld [vmem:[#allocation5 + $0x1f0] sm:$0xff]
    %v201 = vld [vmem:[#allocation5 + $0x1f8] sm:$0xff]
    %v202 = vld [vmem:[#allocation5 + $0x200] sm:$0xff]
    %v203 = vld [vmem:[#allocation5 + $0x208] sm:$0xff]
    %v204 = vld [vmem:[#allocation5 + $0x210] sm:$0xff]
    %v205 = vld [vmem:[#allocation5 + $0x218] sm:$0xff]
    %v206 = vld [vmem:[#allocation5 + $0x220] sm:$0xff]
    %v207 = vld [vmem:[#allocation5 + $0x228] sm:$0xff]
    %v208 = vld [vmem:[#allocation5 + $0x230] sm:$0xff]
    %v209 = vld [vmem:[#allocation5 + $0x238] sm:$0xff]
    %v210 = vld [vmem:[#allocation5 + $0x240] sm:$0xff]
    %v211 = vld [vmem:[#allocation5 + $0x248] sm:$0xff]
    %v212 = vld [vmem:[#allocation5 + $0x250] sm:$0xff]
    %v213 = vld [vmem:[#allocation5 + $0x258] sm:$0xff]
    %v214 = vld [vmem:[#allocation5 + $0x260] sm:$0xff]
    %v215 = vld [vmem:[#allocation5 + $0x268] sm:$0xff]
    %v216 = vld [vmem:[#allocation5 + $0x270] sm:$0xff]
    %v217 = vld [vmem:[#allocation5 + $0x278] sm:$0xff]
    %v218 = vld [vmem:[#allocation5 + $0x280] sm:$0xff]
    %v219 = vld [vmem:[#allocation5 + $0x288] sm:$0xff]
    %v220 = vld [vmem:[#allocation5 + $0x290] sm:$0xff]
    %v221 = vld [vmem:[#allocation5 + $0x298] sm:$0xff]
    %v222 = vld [vmem:[#allocation5 + $0x2a0] sm:$0xff]
    %v223 = vld [vmem:[#allocation5 + $0x2a8] sm:$0xff]
    %v224 = vld [vmem:[#allocation5 + $0x2b0] sm:$0xff]
    %v225 = vld [vmem:[#allocation5 + $0x2b8] sm:$0xff]
    %v226 = vld [vmem:[#allocation5 + $0x2c0] sm:$0xff]
    %v227 = vld [vmem:[#allocation5 + $0x2c8] sm:$0xff]
    %v228 = vld [vmem:[#allocation5 + $0x2d0] sm:$0xff]
    %v229 = vld [vmem:[#allocation5 + $0x2d8] sm:$0xff]
    %v230 = vld [vmem:[#allocation5 + $0x2e0] sm:$0xff]
    %v231 = vld [vmem:[#allocation5 + $0x2e8] sm:$0xff]
    %v232 = vld [vmem:[#allocation5 + $0x2f0] sm:$0xff]
    %v233 = vld [vmem:[#allocation5 + $0x2f8] sm:$0xff]
    %v234 = vld [vmem:[#allocation5 + $0x300] sm:$0xff]
    %v235 = vld [vmem:[#allocation5 + $0x308] sm:$0xff]
    %v236 = vld [vmem:[#allocation5 + $0x310] sm:$0xff]
    %v237 = vld [vmem:[#allocation5 + $0x318] sm:$0xff]
    %v238 = vld [vmem:[#allocation5 + $0x320] sm:$0xff]
    %v239 = vld [vmem:[#allocation5 + $0x328] sm:$0xff]
    %v240 = vld [vmem:[#allocation5 + $0x330] sm:$0xff]
    %v241 = vld [vmem:[#allocation5 + $0x338] sm:$0xff]
    %v242 = vld [vmem:[#allocation5 + $0x340] sm:$0xff]
    %v243 = vld [vmem:[#allocation5 + $0x348] sm:$0xff]
    %v244 = vld [vmem:[#allocation5 + $0x350] sm:$0xff]
    %v245 = vld [vmem:[#allocation5 + $0x358] sm:$0xff]
    %v246 = vld [vmem:[#allocation5 + $0x360] sm:$0xff]
    %v247 = vld [vmem:[#allocation5 + $0x368] sm:$0xff]
    %v248 = vld [vmem:[#allocation5 + $0x370] sm:$0xff]
    %v249 = vld [vmem:[#allocation5 + $0x378] sm:$0xff]
    %v250 = vld [vmem:[#allocation5 + $0x380] sm:$0xff]
    %v251 = vld [vmem:[#allocation5 + $0x388] sm:$0xff]
    %v252 = vld [vmem:[#allocation5 + $0x390] sm:$0xff]
    %v253 = vld [vmem:[#allocation5 + $0x398] sm:$0xff]
    %v254 = vld [vmem:[#allocation5 + $0x3a0] sm:$0xff]
    %v255 = vld [vmem:[#allocation5 + $0x3a8] sm:$0xff]
    %v256 = vld [vmem:[#allocation5 + $0x3b0] sm:$0xff]
    %v257 = vld [vmem:[#allocation5 + $0x3b8] sm:$0xff]
    %v258 = vld [vmem:[#allocation5 + $0x3c0] sm:$0xff]
    %v259 = vld [vmem:[#allocation5 + $0x3c8] sm:$0xff]
    %v260 = vld [vmem:[#allocation5 + $0x3d0] sm:$0xff]
    %v261 = vld [vmem:[#allocation5 + $0x3d8] sm:$0xff]
    %v262 = vld [vmem:[#allocation5 + $0x3e0] sm:$0xff]
    %v263 = vld [vmem:[#allocation5 + $0x3e8] sm:$0xff]
    %v264 = vld [vmem:[#allocation5 + $0x3f0] sm:$0xff]
    %v265 = vld [vmem:[#allocation5 + $0x3f8] sm:$0xff]
    %v266 = vld [vmem:[#allocation5 + $0x400] sm:$0xff]
    %v267 = vld [vmem:[#allocation5 + $0x408] sm:$0xff]
    %v268 = vld [vmem:[#allocation5 + $0x410] sm:$0xff]
    %v269 = vld [vmem:[#allocation5 + $0x418] sm:$0xff]
    %v270 = vld [vmem:[#allocation5 + $0x420] sm:$0xff]
    %v271 = vld [vmem:[#allocation5 + $0x428] sm:$0xff]
    %v272 = vld [vmem:[#allocation5 + $0x430] sm:$0xff]
    %v273 = vld [vmem:[#allocation5 + $0x438] sm:$0xff]
    %v274 = vld [vmem:[#allocation5 + $0x440] sm:$0xff]
    %v275 = vld [vmem:[#allocation5 + $0x448] sm:$0xff]
    %v276 = vld [vmem:[#allocation5 + $0x450] sm:$0xff]
    %v277 = vld [vmem:[#allocation5 + $0x458] sm:$0xff]
    %v278 = vld [vmem:[#allocation5 + $0x460] sm:$0xff]
    %v279 = vld [vmem:[#allocation5 + $0x468] sm:$0xff]
    %v280 = vld [vmem:[#allocation5 + $0x470] sm:$0xff]
    %v281 = vld [vmem:[#allocation5 + $0x478] sm:$0xff]
    %v282 = vld [vmem:[#allocation5 + $0x480] sm:$0xff]
    %v283 = vld [vmem:[#allocation5 + $0x488] sm:$0xff]
    %v284 = vld [vmem:[#allocation5 + $0x490] sm:$0xff]
    %v285 = vld [vmem:[#allocation5 + $0x498] sm:$0xff]
    %v286 = vld [vmem:[#allocation5 + $0x4a0] sm:$0xff]
    %v287 = vld [vmem:[#allocation5 + $0x4a8] sm:$0xff]
    %v288 = vld [vmem:[#allocation5 + $0x4b0] sm:$0xff]
    %v289 = vld [vmem:[#allocation5 + $0x4b8] sm:$0xff]
    %v290 = vld [vmem:[#allocation5 + $0x4c0] sm:$0xff]
    %v291 = vld [vmem:[#allocation5 + $0x4c8] sm:$0xff]
    %v292 = vld [vmem:[#allocation5 + $0x4d0] sm:$0xff]
    %v293 = vld [vmem:[#allocation5 + $0x4d8] sm:$0xff]
    %v294 = vld [vmem:[#allocation5 + $0x4e0] sm:$0xff]
    %v295 = vld [vmem:[#allocation5 + $0x4e8] sm:$0xff]
    %v296 = vld [vmem:[#allocation5 + $0x4f0] sm:$0xff]
    %v297 = vld [vmem:[#allocation5 + $0x4f8] sm:$0xff]
    %v298 = vld [vmem:[#allocation5 + $0x500] sm:$0xff]
    %v299 = vld [vmem:[#allocation5 + $0x508] sm:$0xff]
    %v300 = vld [vmem:[#allocation5 + $0x510] sm:$0xff]
    %v301 = vld [vmem:[#allocation5 + $0x518] sm:$0xff]
    %v302 = vld [vmem:[#allocation5 + $0x520] sm:$0xff]
    %v303 = vld [vmem:[#allocation5 + $0x528] sm:$0xff]
    %v304 = vld [vmem:[#allocation5 + $0x530] sm:$0xff]
    %v305 = vld [vmem:[#allocation5 + $0x538] sm:$0xff]
    %v306 = vld [vmem:[#allocation5 + $0x540] sm:$0xff]
    %v307 = vld [vmem:[#allocation5 + $0x548] sm:$0xff]
    %v308 = vld [vmem:[#allocation5 + $0x550] sm:$0xff]
    %v309 = vld [vmem:[#allocation5 + $0x558] sm:$0xff]
    %v310 = vld [vmem:[#allocation5 + $0x560] sm:$0xff]
    %v311 = vld [vmem:[#allocation5 + $0x568] sm:$0xff]
    %v312 = vld [vmem:[#allocation5 + $0x570] sm:$0xff]
    %v313 = vld [vmem:[#allocation5 + $0x578] sm:$0xff]
    %v314 = vld [vmem:[#allocation5 + $0x580] sm:$0xff]
    %v315 = vld [vmem:[#allocation5 + $0x588] sm:$0xff]
    %v316 = vld [vmem:[#allocation5 + $0x590] sm:$0xff]
    %v317 = vld [vmem:[#allocation5 + $0x598] sm:$0xff]
    %v318 = vld [vmem:[#allocation5 + $0x5a0] sm:$0xff]
    %v319 = vld [vmem:[#allocation5 + $0x5a8] sm:$0xff]
    %v320 = vld [vmem:[#allocation5 + $0x5b0] sm:$0xff]
    %v321 = vld [vmem:[#allocation5 + $0x5b8] sm:$0xff]
    %v322 = vld [vmem:[#allocation5 + $0x5c0] sm:$0xff]
    %v323 = vld [vmem:[#allocation5 + $0x5c8] sm:$0xff]
    %v324 = vld [vmem:[#allocation5 + $0x5d0] sm:$0xff]
    %v325 = vld [vmem:[#allocation5 + $0x5d8] sm:$0xff]
    %v326 = vld [vmem:[#allocation5 + $0x5e0] sm:$0xff]
    %v327 = vld [vmem:[#allocation5 + $0x5e8] sm:$0xff]
    %v328 = vld [vmem:[#allocation5 + $0x5f0] sm:$0xff]
    %v329 = vld [vmem:[#allocation5 + $0x5f8] sm:$0xff]
    %v330 = vld [vmem:[%s7] sm:$0xf]
    %v332 = vlaneseq
    %v333 = vshrl.u32 %v332, 7
    %v334 = vsub.s32 0, %v333
    %v335 = vrot.slane %v330, %v334
    %v336 = vlaneseq
    %v337 = vshrl.u32 %v336, 7
    %v338 = vsub.s32 1, %v337
    %v339 = vrot.slane %v330, %v338
    %v340 = vlaneseq
    %v341 = vshrl.u32 %v340, 7
    %v342 = vsub.s32 2, %v341
    %v343 = vrot.slane %v330, %v342
    %v344 = vlaneseq
    %v345 = vshrl.u32 %v344, 7
    %v346 = vsub.s32 3, %v345
    %v347 = vrot.slane %v330, %v346
    %v358 = vunpack.c.l.b16 %v132
    %v359 = vunpack.c.h.b16 %v132
    %v360 = vunpack.c.l.b16 %v133
    %v361 = vunpack.c.h.b16 %v133
    %v362 = vunpack.c.l.b16 %v134
    %v363 = vunpack.c.h.b16 %v134
    %v364 = vunpack.c.l.b16 %v135
    %v365 = vunpack.c.h.b16 %v135
    %v366 = vunpack.c.l.b16 %v136
    %v367 = vunpack.c.h.b16 %v136
    %v368 = vunpack.c.l.b16 %v137
    %v369 = vunpack.c.h.b16 %v137
    %v370 = vpack.c.b16 %v364, %v358
    %v371 = vpack.c.b16 %v365, %v359
    %v372 = vpack.c.b16 %v366, %v360
    %v373 = vpack.c.b16 %v367, %v361
    %v374 = vpack.c.b16 %v368, %v362
    %v375 = vpack.c.b16 %v369, %v363
    %v574 = vunpack.c.l.b16 %v138
    %v575 = vunpack.c.h.b16 %v138
    %v576 = vunpack.c.l.b16 %v139
    %v577 = vunpack.c.h.b16 %v139
    %v578 = vunpack.c.l.b16 %v140
    %v579 = vunpack.c.h.b16 %v140
    %v580 = vunpack.c.l.b16 %v141
    %v581 = vunpack.c.h.b16 %v141
    %v582 = vunpack.c.l.b16 %v142
    %v583 = vunpack.c.h.b16 %v142
    %v584 = vunpack.c.l.b16 %v143
    %v585 = vunpack.c.h.b16 %v143
    %v586 = vunpack.c.l.b16 %v144
    %v587 = vunpack.c.h.b16 %v144
    %v588 = vunpack.c.l.b16 %v145
    %v589 = vunpack.c.h.b16 %v145
    %v590 = vunpack.c.l.b16 %v146
    %v591 = vunpack.c.h.b16 %v146
    %v592 = vunpack.c.l.b16 %v147
    %v593 = vunpack.c.h.b16 %v147
    %v594 = vunpack.c.l.b16 %v148
    %v595 = vunpack.c.h.b16 %v148
    %v596 = vunpack.c.l.b16 %v149
    %v597 = vunpack.c.h.b16 %v149
    %v598 = vunpack.c.l.b16 %v150
    %v599 = vunpack.c.h.b16 %v150
    %v600 = vunpack.c.l.b16 %v151
    %v601 = vunpack.c.h.b16 %v151
    %v602 = vunpack.c.l.b16 %v152
    %v603 = vunpack.c.h.b16 %v152
    %v604 = vunpack.c.l.b16 %v153
    %v605 = vunpack.c.h.b16 %v153
    %v606 = vunpack.c.l.b16 %v154
    %v607 = vunpack.c.h.b16 %v154
    %v608 = vunpack.c.l.b16 %v155
    %v609 = vunpack.c.h.b16 %v155
    %v610 = vunpack.c.l.b16 %v156
    %v611 = vunpack.c.h.b16 %v156
    %v612 = vunpack.c.l.b16 %v157
    %v613 = vunpack.c.h.b16 %v157
    %v614 = vunpack.c.l.b16 %v158
    %v615 = vunpack.c.h.b16 %v158
    %v616 = vunpack.c.l.b16 %v159
    %v617 = vunpack.c.h.b16 %v159
    %v618 = vunpack.c.l.b16 %v160
    %v619 = vunpack.c.h.b16 %v160
    %v620 = vunpack.c.l.b16 %v161
    %v621 = vunpack.c.h.b16 %v161
    %v622 = vunpack.c.l.b16 %v162
    %v623 = vunpack.c.h.b16 %v162
    %v624 = vunpack.c.l.b16 %v163
    %v625 = vunpack.c.h.b16 %v163
    %v626 = vunpack.c.l.b16 %v164
    %v627 = vunpack.c.h.b16 %v164
    %v628 = vunpack.c.l.b16 %v165
    %v629 = vunpack.c.h.b16 %v165
    %v630 = vunpack.c.l.b16 %v166
    %v631 = vunpack.c.h.b16 %v166
    %v632 = vunpack.c.l.b16 %v167
    %v633 = vunpack.c.h.b16 %v167
    %v634 = vunpack.c.l.b16 %v168
    %v635 = vunpack.c.h.b16 %v168
    %v636 = vunpack.c.l.b16 %v169
    %v637 = vunpack.c.h.b16 %v169
    %v638 = vunpack.c.l.b16 %v170
    %v639 = vunpack.c.h.b16 %v170
    %v640 = vunpack.c.l.b16 %v171
    %v641 = vunpack.c.h.b16 %v171
    %v642 = vunpack.c.l.b16 %v172
    %v643 = vunpack.c.h.b16 %v172
    %v644 = vunpack.c.l.b16 %v173
    %v645 = vunpack.c.h.b16 %v173
    %v646 = vunpack.c.l.b16 %v174
    %v647 = vunpack.c.h.b16 %v174
    %v648 = vunpack.c.l.b16 %v175
    %v649 = vunpack.c.h.b16 %v175
    %v650 = vunpack.c.l.b16 %v176
    %v651 = vunpack.c.h.b16 %v176
    %v652 = vunpack.c.l.b16 %v177
    %v653 = vunpack.c.h.b16 %v177
    %v654 = vunpack.c.l.b16 %v178
    %v655 = vunpack.c.h.b16 %v178
    %v656 = vunpack.c.l.b16 %v179
    %v657 = vunpack.c.h.b16 %v179
    %v658 = vunpack.c.l.b16 %v180
    %v659 = vunpack.c.h.b16 %v180
    %v660 = vunpack.c.l.b16 %v181
    %v661 = vunpack.c.h.b16 %v181
    %v662 = vunpack.c.l.b16 %v182
    %v663 = vunpack.c.h.b16 %v182
    %v664 = vunpack.c.l.b16 %v183
    %v665 = vunpack.c.h.b16 %v183
    %v666 = vunpack.c.l.b16 %v184
    %v667 = vunpack.c.h.b16 %v184
    %v668 = vunpack.c.l.b16 %v185
    %v669 = vunpack.c.h.b16 %v185
    %v670 = vunpack.c.l.b16 %v186
    %v671 = vunpack.c.h.b16 %v186
    %v672 = vunpack.c.l.b16 %v187
    %v673 = vunpack.c.h.b16 %v187
    %v674 = vunpack.c.l.b16 %v188
    %v675 = vunpack.c.h.b16 %v188
    %v676 = vunpack.c.l.b16 %v189
    %v677 = vunpack.c.h.b16 %v189
    %v678 = vunpack.c.l.b16 %v190
    %v679 = vunpack.c.h.b16 %v190
    %v680 = vunpack.c.l.b16 %v191
    %v681 = vunpack.c.h.b16 %v191
    %v682 = vunpack.c.l.b16 %v192
    %v683 = vunpack.c.h.b16 %v192
    %v684 = vunpack.c.l.b16 %v193
    %v685 = vunpack.c.h.b16 %v193
    %v686 = vunpack.c.l.b16 %v194
    %v687 = vunpack.c.h.b16 %v194
    %v688 = vunpack.c.l.b16 %v195
    %v689 = vunpack.c.h.b16 %v195
    %v690 = vunpack.c.l.b16 %v196
    %v691 = vunpack.c.h.b16 %v196
    %v692 = vunpack.c.l.b16 %v197
    %v693 = vunpack.c.h.b16 %v197
    %v694 = vunpack.c.l.b16 %v198
    %v695 = vunpack.c.h.b16 %v198
    %v696 = vunpack.c.l.b16 %v199
    %v697 = vunpack.c.h.b16 %v199
    %v698 = vunpack.c.l.b16 %v200
    %v699 = vunpack.c.h.b16 %v200
    %v700 = vunpack.c.l.b16 %v201
    %v701 = vunpack.c.h.b16 %v201
    %v702 = vunpack.c.l.b16 %v202
    %v703 = vunpack.c.h.b16 %v202
    %v704 = vunpack.c.l.b16 %v203
    %v705 = vunpack.c.h.b16 %v203
    %v706 = vunpack.c.l.b16 %v204
    %v707 = vunpack.c.h.b16 %v204
    %v708 = vunpack.c.l.b16 %v205
    %v709 = vunpack.c.h.b16 %v205
    %v710 = vunpack.c.l.b16 %v206
    %v711 = vunpack.c.h.b16 %v206
    %v712 = vunpack.c.l.b16 %v207
    %v713 = vunpack.c.h.b16 %v207
    %v714 = vunpack.c.l.b16 %v208
    %v715 = vunpack.c.h.b16 %v208
    %v716 = vunpack.c.l.b16 %v209
    %v717 = vunpack.c.h.b16 %v209
    %v718 = vunpack.c.l.b16 %v210
    %v719 = vunpack.c.h.b16 %v210
    %v720 = vunpack.c.l.b16 %v211
    %v721 = vunpack.c.h.b16 %v211
    %v722 = vunpack.c.l.b16 %v212
    %v723 = vunpack.c.h.b16 %v212
    %v724 = vunpack.c.l.b16 %v213
    %v725 = vunpack.c.h.b16 %v213
    %v726 = vunpack.c.l.b16 %v214
    %v727 = vunpack.c.h.b16 %v214
    %v728 = vunpack.c.l.b16 %v215
    %v729 = vunpack.c.h.b16 %v215
    %v730 = vunpack.c.l.b16 %v216
    %v731 = vunpack.c.h.b16 %v216
    %v732 = vunpack.c.l.b16 %v217
    %v733 = vunpack.c.h.b16 %v217
    %v734 = vunpack.c.l.b16 %v218
    %v735 = vunpack.c.h.b16 %v218
    %v736 = vunpack.c.l.b16 %v219
    %v737 = vunpack.c.h.b16 %v219
    %v738 = vunpack.c.l.b16 %v220
    %v739 = vunpack.c.h.b16 %v220
    %v740 = vunpack.c.l.b16 %v221
    %v741 = vunpack.c.h.b16 %v221
    %v742 = vunpack.c.l.b16 %v222
    %v743 = vunpack.c.h.b16 %v222
    %v744 = vunpack.c.l.b16 %v223
    %v745 = vunpack.c.h.b16 %v223
    %v746 = vunpack.c.l.b16 %v224
    %v747 = vunpack.c.h.b16 %v224
    %v748 = vunpack.c.l.b16 %v225
    %v749 = vunpack.c.h.b16 %v225
    %v750 = vunpack.c.l.b16 %v226
    %v751 = vunpack.c.h.b16 %v226
    %v752 = vunpack.c.l.b16 %v227
    %v753 = vunpack.c.h.b16 %v227
    %v754 = vunpack.c.l.b16 %v228
    %v755 = vunpack.c.h.b16 %v228
    %v756 = vunpack.c.l.b16 %v229
    %v757 = vunpack.c.h.b16 %v229
    %v758 = vunpack.c.l.b16 %v230
    %v759 = vunpack.c.h.b16 %v230
    %v760 = vunpack.c.l.b16 %v231
    %v761 = vunpack.c.h.b16 %v231
    %v762 = vunpack.c.l.b16 %v232
    %v763 = vunpack.c.h.b16 %v232
    %v764 = vunpack.c.l.b16 %v233
    %v765 = vunpack.c.h.b16 %v233
    %v766 = vunpack.c.l.b16 %v234
    %v767 = vunpack.c.h.b16 %v234
    %v768 = vunpack.c.l.b16 %v235
    %v769 = vunpack.c.h.b16 %v235
    %v770 = vunpack.c.l.b16 %v236
    %v771 = vunpack.c.h.b16 %v236
    %v772 = vunpack.c.l.b16 %v237
    %v773 = vunpack.c.h.b16 %v237
    %v774 = vunpack.c.l.b16 %v238
    %v775 = vunpack.c.h.b16 %v238
    %v776 = vunpack.c.l.b16 %v239
    %v777 = vunpack.c.h.b16 %v239
    %v778 = vunpack.c.l.b16 %v240
    %v779 = vunpack.c.h.b16 %v240
    %v780 = vunpack.c.l.b16 %v241
    %v781 = vunpack.c.h.b16 %v241
    %v782 = vunpack.c.l.b16 %v242
    %v783 = vunpack.c.h.b16 %v242
    %v784 = vunpack.c.l.b16 %v243
    %v785 = vunpack.c.h.b16 %v243
    %v786 = vunpack.c.l.b16 %v244
    %v787 = vunpack.c.h.b16 %v244
    %v788 = vunpack.c.l.b16 %v245
    %v789 = vunpack.c.h.b16 %v245
    %v790 = vunpack.c.l.b16 %v246
    %v791 = vunpack.c.h.b16 %v246
    %v792 = vunpack.c.l.b16 %v247
    %v793 = vunpack.c.h.b16 %v247
    %v794 = vunpack.c.l.b16 %v248
    %v795 = vunpack.c.h.b16 %v248
    %v796 = vunpack.c.l.b16 %v249
    %v797 = vunpack.c.h.b16 %v249
    %v798 = vunpack.c.l.b16 %v250
    %v799 = vunpack.c.h.b16 %v250
    %v800 = vunpack.c.l.b16 %v251
    %v801 = vunpack.c.h.b16 %v251
    %v802 = vunpack.c.l.b16 %v252
    %v803 = vunpack.c.h.b16 %v252
    %v804 = vunpack.c.l.b16 %v253
    %v805 = vunpack.c.h.b16 %v253
    %v806 = vunpack.c.l.b16 %v254
    %v807 = vunpack.c.h.b16 %v254
    %v808 = vunpack.c.l.b16 %v255
    %v809 = vunpack.c.h.b16 %v255
    %v810 = vunpack.c.l.b16 %v256
    %v811 = vunpack.c.h.b16 %v256
    %v812 = vunpack.c.l.b16 %v257
    %v813 = vunpack.c.h.b16 %v257
    %v814 = vunpack.c.l.b16 %v258
    %v815 = vunpack.c.h.b16 %v258
    %v816 = vunpack.c.l.b16 %v259
    %v817 = vunpack.c.h.b16 %v259
    %v818 = vunpack.c.l.b16 %v260
    %v819 = vunpack.c.h.b16 %v260
    %v820 = vunpack.c.l.b16 %v261
    %v821 = vunpack.c.h.b16 %v261
    %v822 = vunpack.c.l.b16 %v262
    %v823 = vunpack.c.h.b16 %v262
    %v824 = vunpack.c.l.b16 %v263
    %v825 = vunpack.c.h.b16 %v263
    %v826 = vunpack.c.l.b16 %v264
    %v827 = vunpack.c.h.b16 %v264
    %v828 = vunpack.c.l.b16 %v265
    %v829 = vunpack.c.h.b16 %v265
    %v830 = vunpack.c.l.b16 %v266
    %v831 = vunpack.c.h.b16 %v266
    %v832 = vunpack.c.l.b16 %v267
    %v833 = vunpack.c.h.b16 %v267
    %v834 = vunpack.c.l.b16 %v268
    %v835 = vunpack.c.h.b16 %v268
    %v836 = vunpack.c.l.b16 %v269
    %v837 = vunpack.c.h.b16 %v269
    %v838 = vunpack.c.l.b16 %v270
    %v839 = vunpack.c.h.b16 %v270
    %v840 = vunpack.c.l.b16 %v271
    %v841 = vunpack.c.h.b16 %v271
    %v842 = vunpack.c.l.b16 %v272
    %v843 = vunpack.c.h.b16 %v272
    %v844 = vunpack.c.l.b16 %v273
    %v845 = vunpack.c.h.b16 %v273
    %v846 = vunpack.c.l.b16 %v274
    %v847 = vunpack.c.h.b16 %v274
    %v848 = vunpack.c.l.b16 %v275
    %v849 = vunpack.c.h.b16 %v275
    %v850 = vunpack.c.l.b16 %v276
    %v851 = vunpack.c.h.b16 %v276
    %v852 = vunpack.c.l.b16 %v277
    %v853 = vunpack.c.h.b16 %v277
    %v854 = vunpack.c.l.b16 %v278
    %v855 = vunpack.c.h.b16 %v278
    %v856 = vunpack.c.l.b16 %v279
    %v857 = vunpack.c.h.b16 %v279
    %v858 = vunpack.c.l.b16 %v280
    %v859 = vunpack.c.h.b16 %v280
    %v860 = vunpack.c.l.b16 %v281
    %v861 = vunpack.c.h.b16 %v281
    %v862 = vunpack.c.l.b16 %v282
    %v863 = vunpack.c.h.b16 %v282
    %v864 = vunpack.c.l.b16 %v283
    %v865 = vunpack.c.h.b16 %v283
    %v866 = vunpack.c.l.b16 %v284
    %v867 = vunpack.c.h.b16 %v284
    %v868 = vunpack.c.l.b16 %v285
    %v869 = vunpack.c.h.b16 %v285
    %v870 = vunpack.c.l.b16 %v286
    %v871 = vunpack.c.h.b16 %v286
    %v872 = vunpack.c.l.b16 %v287
    %v873 = vunpack.c.h.b16 %v287
    %v874 = vunpack.c.l.b16 %v288
    %v875 = vunpack.c.h.b16 %v288
    %v876 = vunpack.c.l.b16 %v289
    %v877 = vunpack.c.h.b16 %v289
    %v878 = vunpack.c.l.b16 %v290
    %v879 = vunpack.c.h.b16 %v290
    %v880 = vunpack.c.l.b16 %v291
    %v881 = vunpack.c.h.b16 %v291
    %v882 = vunpack.c.l.b16 %v292
    %v883 = vunpack.c.h.b16 %v292
    %v884 = vunpack.c.l.b16 %v293
    %v885 = vunpack.c.h.b16 %v293
    %v886 = vunpack.c.l.b16 %v294
    %v887 = vunpack.c.h.b16 %v294
    %v888 = vunpack.c.l.b16 %v295
    %v889 = vunpack.c.h.b16 %v295
    %v890 = vunpack.c.l.b16 %v296
    %v891 = vunpack.c.h.b16 %v296
    %v892 = vunpack.c.l.b16 %v297
    %v893 = vunpack.c.h.b16 %v297
    %v894 = vunpack.c.l.b16 %v298
    %v895 = vunpack.c.h.b16 %v298
    %v896 = vunpack.c.l.b16 %v299
    %v897 = vunpack.c.h.b16 %v299
    %v898 = vunpack.c.l.b16 %v300
    %v899 = vunpack.c.h.b16 %v300
    %v900 = vunpack.c.l.b16 %v301
    %v901 = vunpack.c.h.b16 %v301
    %v902 = vunpack.c.l.b16 %v302
    %v903 = vunpack.c.h.b16 %v302
    %v904 = vunpack.c.l.b16 %v303
    %v905 = vunpack.c.h.b16 %v303
    %v906 = vunpack.c.l.b16 %v304
    %v907 = vunpack.c.h.b16 %v304
    %v908 = vunpack.c.l.b16 %v305
    %v909 = vunpack.c.h.b16 %v305
    %v910 = vunpack.c.l.b16 %v306
    %v911 = vunpack.c.h.b16 %v306
    %v912 = vunpack.c.l.b16 %v307
    %v913 = vunpack.c.h.b16 %v307
    %v914 = vunpack.c.l.b16 %v308
    %v915 = vunpack.c.h.b16 %v308
    %v916 = vunpack.c.l.b16 %v309
    %v917 = vunpack.c.h.b16 %v309
    %v918 = vunpack.c.l.b16 %v310
    %v919 = vunpack.c.h.b16 %v310
    %v920 = vunpack.c.l.b16 %v311
    %v921 = vunpack.c.h.b16 %v311
    %v922 = vunpack.c.l.b16 %v312
    %v923 = vunpack.c.h.b16 %v312
    %v924 = vunpack.c.l.b16 %v313
    %v925 = vunpack.c.h.b16 %v313
    %v926 = vunpack.c.l.b16 %v314
    %v927 = vunpack.c.h.b16 %v314
    %v928 = vunpack.c.l.b16 %v315
    %v929 = vunpack.c.h.b16 %v315
    %v930 = vunpack.c.l.b16 %v316
    %v931 = vunpack.c.h.b16 %v316
    %v932 = vunpack.c.l.b16 %v317
    %v933 = vunpack.c.h.b16 %v317
    %v934 = vunpack.c.l.b16 %v318
    %v935 = vunpack.c.h.b16 %v318
    %v936 = vunpack.c.l.b16 %v319
    %v937 = vunpack.c.h.b16 %v319
    %v938 = vunpack.c.l.b16 %v320
    %v939 = vunpack.c.h.b16 %v320
    %v940 = vunpack.c.l.b16 %v321
    %v941 = vunpack.c.h.b16 %v321
    %v942 = vunpack.c.l.b16 %v322
    %v943 = vunpack.c.h.b16 %v322
    %v944 = vunpack.c.l.b16 %v323
    %v945 = vunpack.c.h.b16 %v323
    %v946 = vunpack.c.l.b16 %v324
    %v947 = vunpack.c.h.b16 %v324
    %v948 = vunpack.c.l.b16 %v325
    %v949 = vunpack.c.h.b16 %v325
    %v950 = vunpack.c.l.b16 %v326
    %v951 = vunpack.c.h.b16 %v326
    %v952 = vunpack.c.l.b16 %v327
    %v953 = vunpack.c.h.b16 %v327
    %v954 = vunpack.c.l.b16 %v328
    %v955 = vunpack.c.h.b16 %v328
    %v956 = vunpack.c.l.b16 %v329
    %v957 = vunpack.c.h.b16 %v329
    %v958 = vpack.c.b16 %v578, %v574
    %v959 = vpack.c.b16 %v579, %v575
    %v960 = vpack.c.b16 %v580, %v576
    %v961 = vpack.c.b16 %v581, %v577
    %v962 = vpack.c.b16 %v586, %v582
    %v963 = vpack.c.b16 %v587, %v583
    %v964 = vpack.c.b16 %v588, %v584
    %v965 = vpack.c.b16 %v589, %v585
    %v966 = vpack.c.b16 %v594, %v590
    %v967 = vpack.c.b16 %v595, %v591
    %v968 = vpack.c.b16 %v596, %v592
    %v969 = vpack.c.b16 %v597, %v593
    %v970 = vpack.c.b16 %v602, %v598
    %v971 = vpack.c.b16 %v603, %v599
    %v972 = vpack.c.b16 %v604, %v600
    %v973 = vpack.c.b16 %v605, %v601
    %v974 = vpack.c.b16 %v610, %v606
    %v975 = vpack.c.b16 %v611, %v607
    %v976 = vpack.c.b16 %v612, %v608
    %v977 = vpack.c.b16 %v613, %v609
    %v978 = vpack.c.b16 %v618, %v614
    %v979 = vpack.c.b16 %v619, %v615
    %v980 = vpack.c.b16 %v620, %v616
    %v981 = vpack.c.b16 %v621, %v617
    %v982 = vpack.c.b16 %v626, %v622
    %v983 = vpack.c.b16 %v627, %v623
    %v984 = vpack.c.b16 %v628, %v624
    %v985 = vpack.c.b16 %v629, %v625
    %v986 = vpack.c.b16 %v634, %v630
    %v987 = vpack.c.b16 %v635, %v631
    %v988 = vpack.c.b16 %v636, %v632
    %v989 = vpack.c.b16 %v637, %v633
    %v990 = vpack.c.b16 %v642, %v638
    %v991 = vpack.c.b16 %v643, %v639
    %v992 = vpack.c.b16 %v644, %v640
    %v993 = vpack.c.b16 %v645, %v641
    %v994 = vpack.c.b16 %v650, %v646
    %v995 = vpack.c.b16 %v651, %v647
    %v996 = vpack.c.b16 %v652, %v648
    %v997 = vpack.c.b16 %v653, %v649
    %v998 = vpack.c.b16 %v658, %v654
    %v999 = vpack.c.b16 %v659, %v655
    %v1000 = vpack.c.b16 %v660, %v656
    %v1001 = vpack.c.b16 %v661, %v657
    %v1002 = vpack.c.b16 %v666, %v662
    %v1003 = vpack.c.b16 %v667, %v663
    %v1004 = vpack.c.b16 %v668, %v664
    %v1005 = vpack.c.b16 %v669, %v665
    %v1006 = vpack.c.b16 %v674, %v670
    %v1007 = vpack.c.b16 %v675, %v671
    %v1008 = vpack.c.b16 %v676, %v672
    %v1009 = vpack.c.b16 %v677, %v673
    %v1010 = vpack.c.b16 %v682, %v678
    %v1011 = vpack.c.b16 %v683, %v679
    %v1012 = vpack.c.b16 %v684, %v680
    %v1013 = vpack.c.b16 %v685, %v681
    %v1014 = vpack.c.b16 %v690, %v686
    %v1015 = vpack.c.b16 %v691, %v687
    %v1016 = vpack.c.b16 %v692, %v688
    %v1017 = vpack.c.b16 %v693, %v689
    %v1018 = vpack.c.b16 %v698, %v694
    %v1019 = vpack.c.b16 %v699, %v695
    %v1020 = vpack.c.b16 %v700, %v696
    %v1021 = vpack.c.b16 %v701, %v697
    %v1022 = vpack.c.b16 %v706, %v702
    %v1023 = vpack.c.b16 %v707, %v703
    %v1024 = vpack.c.b16 %v708, %v704
    %v1025 = vpack.c.b16 %v709, %v705
    %v1026 = vpack.c.b16 %v714, %v710
    %v1027 = vpack.c.b16 %v715, %v711
    %v1028 = vpack.c.b16 %v716, %v712
    %v1029 = vpack.c.b16 %v717, %v713
    %v1030 = vpack.c.b16 %v722, %v718
    %v1031 = vpack.c.b16 %v723, %v719
    %v1032 = vpack.c.b16 %v724, %v720
    %v1033 = vpack.c.b16 %v725, %v721
    %v1034 = vpack.c.b16 %v730, %v726
    %v1035 = vpack.c.b16 %v731, %v727
    %v1036 = vpack.c.b16 %v732, %v728
    %v1037 = vpack.c.b16 %v733, %v729
    %v1038 = vpack.c.b16 %v738, %v734
    %v1039 = vpack.c.b16 %v739, %v735
    %v1040 = vpack.c.b16 %v740, %v736
    %v1041 = vpack.c.b16 %v741, %v737
    %v1042 = vpack.c.b16 %v746, %v742
    %v1043 = vpack.c.b16 %v747, %v743
    %v1044 = vpack.c.b16 %v748, %v744
    %v1045 = vpack.c.b16 %v749, %v745
    %v1046 = vpack.c.b16 %v754, %v750
    %v1047 = vpack.c.b16 %v755, %v751
    %v1048 = vpack.c.b16 %v756, %v752
    %v1049 = vpack.c.b16 %v757, %v753
    %v1050 = vpack.c.b16 %v762, %v758
    %v1051 = vpack.c.b16 %v763, %v759
    %v1052 = vpack.c.b16 %v764, %v760
    %v1053 = vpack.c.b16 %v765, %v761
    %v1054 = vpack.c.b16 %v770, %v766
    %v1055 = vpack.c.b16 %v771, %v767
    %v1056 = vpack.c.b16 %v772, %v768
    %v1057 = vpack.c.b16 %v773, %v769
    %v1058 = vpack.c.b16 %v778, %v774
    %v1059 = vpack.c.b16 %v779, %v775
    %v1060 = vpack.c.b16 %v780, %v776
    %v1061 = vpack.c.b16 %v781, %v777
    %v1062 = vpack.c.b16 %v786, %v782
    %v1063 = vpack.c.b16 %v787, %v783
    %v1064 = vpack.c.b16 %v788, %v784
    %v1065 = vpack.c.b16 %v789, %v785
    %v1066 = vpack.c.b16 %v794, %v790
    %v1067 = vpack.c.b16 %v795, %v791
    %v1068 = vpack.c.b16 %v796, %v792
    %v1069 = vpack.c.b16 %v797, %v793
    %v1070 = vpack.c.b16 %v802, %v798
    %v1071 = vpack.c.b16 %v803, %v799
    %v1072 = vpack.c.b16 %v804, %v800
    %v1073 = vpack.c.b16 %v805, %v801
    %v1074 = vpack.c.b16 %v810, %v806
    %v1075 = vpack.c.b16 %v811, %v807
    %v1076 = vpack.c.b16 %v812, %v808
    %v1077 = vpack.c.b16 %v813, %v809
    %v1078 = vpack.c.b16 %v818, %v814
    %v1079 = vpack.c.b16 %v819, %v815
    %v1080 = vpack.c.b16 %v820, %v816
    %v1081 = vpack.c.b16 %v821, %v817
    %v1082 = vpack.c.b16 %v826, %v822
    %v1083 = vpack.c.b16 %v827, %v823
    %v1084 = vpack.c.b16 %v828, %v824
    %v1085 = vpack.c.b16 %v829, %v825
    %v1086 = vpack.c.b16 %v834, %v830
    %v1087 = vpack.c.b16 %v835, %v831
    %v1088 = vpack.c.b16 %v836, %v832
    %v1089 = vpack.c.b16 %v837, %v833
    %v1090 = vpack.c.b16 %v842, %v838
    %v1091 = vpack.c.b16 %v843, %v839
    %v1092 = vpack.c.b16 %v844, %v840
    %v1093 = vpack.c.b16 %v845, %v841
    %v1094 = vpack.c.b16 %v850, %v846
    %v1095 = vpack.c.b16 %v851, %v847
    %v1096 = vpack.c.b16 %v852, %v848
    %v1097 = vpack.c.b16 %v853, %v849
    %v1098 = vpack.c.b16 %v858, %v854
    %v1099 = vpack.c.b16 %v859, %v855
    %v1100 = vpack.c.b16 %v860, %v856
    %v1101 = vpack.c.b16 %v861, %v857
    %v1102 = vpack.c.b16 %v866, %v862
    %v1103 = vpack.c.b16 %v867, %v863
    %v1104 = vpack.c.b16 %v868, %v864
    %v1105 = vpack.c.b16 %v869, %v865
    %v1106 = vpack.c.b16 %v874, %v870
    %v1107 = vpack.c.b16 %v875, %v871
    %v1108 = vpack.c.b16 %v876, %v872
    %v1109 = vpack.c.b16 %v877, %v873
    %v1110 = vpack.c.b16 %v882, %v878
    %v1111 = vpack.c.b16 %v883, %v879
    %v1112 = vpack.c.b16 %v884, %v880
    %v1113 = vpack.c.b16 %v885, %v881
    %v1114 = vpack.c.b16 %v890, %v886
    %v1115 = vpack.c.b16 %v891, %v887
    %v1116 = vpack.c.b16 %v892, %v888
    %v1117 = vpack.c.b16 %v893, %v889
    %v1118 = vpack.c.b16 %v898, %v894
    %v1119 = vpack.c.b16 %v899, %v895
    %v1120 = vpack.c.b16 %v900, %v896
    %v1121 = vpack.c.b16 %v901, %v897
    %v1122 = vpack.c.b16 %v906, %v902
    %v1123 = vpack.c.b16 %v907, %v903
    %v1124 = vpack.c.b16 %v908, %v904
    %v1125 = vpack.c.b16 %v909, %v905
    %v1126 = vpack.c.b16 %v914, %v910
    %v1127 = vpack.c.b16 %v915, %v911
    %v1128 = vpack.c.b16 %v916, %v912
    %v1129 = vpack.c.b16 %v917, %v913
    %v1130 = vpack.c.b16 %v922, %v918
    %v1131 = vpack.c.b16 %v923, %v919
    %v1132 = vpack.c.b16 %v924, %v920
    %v1133 = vpack.c.b16 %v925, %v921
    %v1134 = vpack.c.b16 %v930, %v926
    %v1135 = vpack.c.b16 %v931, %v927
    %v1136 = vpack.c.b16 %v932, %v928
    %v1137 = vpack.c.b16 %v933, %v929
    %v1138 = vpack.c.b16 %v938, %v934
    %v1139 = vpack.c.b16 %v939, %v935
    %v1140 = vpack.c.b16 %v940, %v936
    %v1141 = vpack.c.b16 %v941, %v937
    %v1142 = vpack.c.b16 %v946, %v942
    %v1143 = vpack.c.b16 %v947, %v943
    %v1144 = vpack.c.b16 %v948, %v944
    %v1145 = vpack.c.b16 %v949, %v945
    %v1146 = vpack.c.b16 %v954, %v950
    %v1147 = vpack.c.b16 %v955, %v951
    %v1148 = vpack.c.b16 %v956, %v952
    %v1149 = vpack.c.b16 %v957, %v953
    %1342 = vmatprep.subr.bf16.mxu0 %v987
    %1343 = vmatpush1.bf16.msra.mxu0 %v986
    %1344 = vmatprep.subr.bf16.mxu0 %v983
    %1345 = vmatpush1.bf16.msra.mxu0 %v982
    %1346 = vmatprep.subr.bf16.mxu0 %v979
    %1347 = vmatpush1.bf16.msra.mxu0 %v978
    %1348 = vmatprep.subr.bf16.mxu0 %v975
    %1349 = vmatpush1.bf16.msra.mxu0 %v974
    %1350 = vmatprep.subr.bf16.mxu0 %v971
    %1351 = vmatpush1.bf16.msra.mxu0 %v970
    %1352 = vmatprep.subr.bf16.mxu0 %v967
    %1353 = vmatpush1.bf16.msra.mxu0 %v966
    %1354 = vmatprep.subr.bf16.mxu0 %v963
    %1355 = vmatpush1.bf16.msra.mxu0 %v962
    %1356 = vmatprep.subr.bf16.mxu0 %v959
    %1357 = vmatpush1.bf16.msra.mxu0 %v958
    %1358 = vmatprep.subr.bf16.mxu0 %v1019
    %1359 = vmatpush2.bf16.msra.mxu0 %v1018
    %1360 = vmatprep.subr.bf16.mxu0 %v1015
    %1361 = vmatpush2.bf16.msra.mxu0 %v1014
    %1362 = vmatprep.subr.bf16.mxu0 %v1011
    %1363 = vmatpush2.bf16.msra.mxu0 %v1010
    %1364 = vmatprep.subr.bf16.mxu0 %v1007
    %1365 = vmatpush2.bf16.msra.mxu0 %v1006
    %1366 = vmatprep.subr.bf16.mxu0 %v1003
    %1367 = vmatpush2.bf16.msra.mxu0 %v1002
    %1368 = vmatprep.subr.bf16.mxu0 %v999
    %1369 = vmatpush2.bf16.msra.mxu0 %v998
    %1370 = vmatprep.subr.bf16.mxu0 %v995
    %1371 = vmatpush2.bf16.msra.mxu0 %v994
    %1372 = vmatprep.subr.bf16.mxu0 %v991
    %1373 = vmatpush2.bf16.msra.mxu0 %v990
    %1374 = vmatprep.mubr.bf16.mxu0 %v371
    %1375 = vmatmul.mubr.bf16.gmra.mxu0 %v370
    %v1376 = vpop.f32.mrf.mxu0
    %v1377 = vadd.f32 %v335, %v1376
    %v1378 = vpop.f32.mrf.mxu0
    %v1379 = vadd.f32 %v339, %v1378
    %v1380 = vpop.f32.mrf.mxu0
    %v1381 = vadd.f32 %v335, %v1380
    %v1382 = vpop.f32.mrf.mxu0
    %v1383 = vadd.f32 %v339, %v1382
    %1384 = vdwg.mxu0
    %1385 = vmatprep.subr.bf16.mxu0 %v1051
    %1386 = vmatpush1.bf16.msra.mxu0 %v1050
    %1387 = vmatprep.subr.bf16.mxu0 %v1047
    %1388 = vmatpush1.bf16.msra.mxu0 %v1046
    %1389 = vmatprep.subr.bf16.mxu0 %v1043
    %1390 = vmatpush1.bf16.msra.mxu0 %v1042
    %1391 = vmatprep.subr.bf16.mxu0 %v1039
    %1392 = vmatpush1.bf16.msra.mxu0 %v1038
    %1393 = vmatprep.subr.bf16.mxu0 %v1035
    %1394 = vmatpush1.bf16.msra.mxu0 %v1034
    %1395 = vmatprep.subr.bf16.mxu0 %v1031
    %1396 = vmatpush1.bf16.msra.mxu0 %v1030
    %1397 = vmatprep.subr.bf16.mxu0 %v1027
    %1398 = vmatpush1.bf16.msra.mxu0 %v1026
    %1399 = vmatprep.subr.bf16.mxu0 %v1023
    %1400 = vmatpush1.bf16.msra.mxu0 %v1022
    %1401 = vmatprep.subr.bf16.mxu0 %v1083
    %1402 = vmatpush2.bf16.msra.mxu0 %v1082
    %1403 = vmatprep.subr.bf16.mxu0 %v1079
    %1404 = vmatpush2.bf16.msra.mxu0 %v1078
    %1405 = vmatprep.subr.bf16.mxu0 %v1075
    %1406 = vmatpush2.bf16.msra.mxu0 %v1074
    %1407 = vmatprep.subr.bf16.mxu0 %v1071
    %1408 = vmatpush2.bf16.msra.mxu0 %v1070
    %1409 = vmatprep.subr.bf16.mxu0 %v1067
    %1410 = vmatpush2.bf16.msra.mxu0 %v1066
    %1411 = vmatprep.subr.bf16.mxu0 %v1063
    %1412 = vmatpush2.bf16.msra.mxu0 %v1062
    %1413 = vmatprep.subr.bf16.mxu0 %v1059
    %1414 = vmatpush2.bf16.msra.mxu0 %v1058
    %1415 = vmatprep.subr.bf16.mxu0 %v1055
    %1416 = vmatpush2.bf16.msra.mxu0 %v1054
    %1417 = vmatprep.mubr.bf16.mxu0 %v373
    %1418 = vmatmul.mubr.bf16.gmra.mxu0 %v372
    %v1419 = vpop.f32.mrf.mxu0
    %v1420 = vadd.f32 %v1377, %v1419
    %v1421 = vpop.f32.mrf.mxu0
    %v1422 = vadd.f32 %v1379, %v1421
    %v1423 = vpop.f32.mrf.mxu0
    %v1424 = vadd.f32 %v1381, %v1423
    %v1425 = vpop.f32.mrf.mxu0
    %v1426 = vadd.f32 %v1383, %v1425
    %1427 = vdwg.mxu0
    %1428 = vmatprep.subr.bf16.mxu0 %v1115
    %1429 = vmatpush1.bf16.msra.mxu0 %v1114
    %1430 = vmatprep.subr.bf16.mxu0 %v1111
    %1431 = vmatpush1.bf16.msra.mxu0 %v1110
    %1432 = vmatprep.subr.bf16.mxu0 %v1107
    %1433 = vmatpush1.bf16.msra.mxu0 %v1106
    %1434 = vmatprep.subr.bf16.mxu0 %v1103
    %1435 = vmatpush1.bf16.msra.mxu0 %v1102
    %1436 = vmatprep.subr.bf16.mxu0 %v1099
    %1437 = vmatpush1.bf16.msra.mxu0 %v1098
    %1438 = vmatprep.subr.bf16.mxu0 %v1095
    %1439 = vmatpush1.bf16.msra.mxu0 %v1094
    %1440 = vmatprep.subr.bf16.mxu0 %v1091
    %1441 = vmatpush1.bf16.msra.mxu0 %v1090
    %1442 = vmatprep.subr.bf16.mxu0 %v1087
    %1443 = vmatpush1.bf16.msra.mxu0 %v1086
    %1444 = vmatprep.subr.bf16.mxu0 %v1147
    %1445 = vmatpush2.bf16.msra.mxu0 %v1146
    %1446 = vmatprep.subr.bf16.mxu0 %v1143
    %1447 = vmatpush2.bf16.msra.mxu0 %v1142
    %1448 = vmatprep.subr.bf16.mxu0 %v1139
    %1449 = vmatpush2.bf16.msra.mxu0 %v1138
    %1450 = vmatprep.subr.bf16.mxu0 %v1135
    %1451 = vmatpush2.bf16.msra.mxu0 %v1134
    %1452 = vmatprep.subr.bf16.mxu0 %v1131
    %1453 = vmatpush2.bf16.msra.mxu0 %v1130
    %1454 = vmatprep.subr.bf16.mxu0 %v1127
    %1455 = vmatpush2.bf16.msra.mxu0 %v1126
    %1456 = vmatprep.subr.bf16.mxu0 %v1123
    %1457 = vmatpush2.bf16.msra.mxu0 %v1122
    %1458 = vmatprep.subr.bf16.mxu0 %v1119
    %1459 = vmatpush2.bf16.msra.mxu0 %v1118
    %1460 = vmatprep.mubr.bf16.mxu0 %v375
    %1461 = vmatmul.mubr.bf16.gmra.mxu0 %v374
    %v1462 = vpop.f32.mrf.mxu0
    %v1463 = vadd.f32 %v1420, %v1462
    %v1464 = vpop.f32.mrf.mxu0
    %v1465 = vadd.f32 %v1422, %v1464
    %v1466 = vpop.f32.mrf.mxu0
    %v1467 = vadd.f32 %v1424, %v1466
    %v1468 = vpop.f32.mrf.mxu0
    %v1469 = vadd.f32 %v1426, %v1468
    %1470 = vdwg.mxu0
    %1471 = vmatprep.subr.bf16.mxu0 %v989
    %1472 = vmatpush1.bf16.msra.mxu0 %v988
    %1473 = vmatprep.subr.bf16.mxu0 %v985
    %1474 = vmatpush1.bf16.msra.mxu0 %v984
    %1475 = vmatprep.subr.bf16.mxu0 %v981
    %1476 = vmatpush1.bf16.msra.mxu0 %v980
    %1477 = vmatprep.subr.bf16.mxu0 %v977
    %1478 = vmatpush1.bf16.msra.mxu0 %v976
    %1479 = vmatprep.subr.bf16.mxu0 %v973
    %1480 = vmatpush1.bf16.msra.mxu0 %v972
    %1481 = vmatprep.subr.bf16.mxu0 %v969
    %1482 = vmatpush1.bf16.msra.mxu0 %v968
    %1483 = vmatprep.subr.bf16.mxu0 %v965
    %1484 = vmatpush1.bf16.msra.mxu0 %v964
    %1485 = vmatprep.subr.bf16.mxu0 %v961
    %1486 = vmatpush1.bf16.msra.mxu0 %v960
    %1487 = vmatprep.subr.bf16.mxu0 %v1021
    %1488 = vmatpush2.bf16.msra.mxu0 %v1020
    %1489 = vmatprep.subr.bf16.mxu0 %v1017
    %1490 = vmatpush2.bf16.msra.mxu0 %v1016
    %1491 = vmatprep.subr.bf16.mxu0 %v1013
    %1492 = vmatpush2.bf16.msra.mxu0 %v1012
    %1493 = vmatprep.subr.bf16.mxu0 %v1009
    %1494 = vmatpush2.bf16.msra.mxu0 %v1008
    %1495 = vmatprep.subr.bf16.mxu0 %v1005
    %1496 = vmatpush2.bf16.msra.mxu0 %v1004
    %1497 = vmatprep.subr.bf16.mxu0 %v1001
    %1498 = vmatpush2.bf16.msra.mxu0 %v1000
    %1499 = vmatprep.subr.bf16.mxu0 %v997
    %1500 = vmatpush2.bf16.msra.mxu0 %v996
    %1501 = vmatprep.subr.bf16.mxu0 %v993
    %1502 = vmatpush2.bf16.msra.mxu0 %v992
    %1503 = vmatprep.mubr.bf16.mxu0 %v371
    %1504 = vmatmul.mubr.bf16.gmra.mxu0 %v370
    %v1505 = vpop.f32.mrf.mxu0
    %v1506 = vadd.f32 %v343, %v1505
    %v1507 = vpop.f32.mrf.mxu0
    %v1508 = vadd.f32 %v347, %v1507
    %v1509 = vpop.f32.mrf.mxu0
    %v1510 = vadd.f32 %v343, %v1509
    %v1511 = vpop.f32.mrf.mxu0
    %v1512 = vadd.f32 %v347, %v1511
    %1513 = vdwg.mxu0
    %1514 = vmatprep.subr.bf16.mxu0 %v1053
    %1515 = vmatpush1.bf16.msra.mxu0 %v1052
    %1516 = vmatprep.subr.bf16.mxu0 %v1049
    %1517 = vmatpush1.bf16.msra.mxu0 %v1048
    %1518 = vmatprep.subr.bf16.mxu0 %v1045
    %1519 = vmatpush1.bf16.msra.mxu0 %v1044
    %1520 = vmatprep.subr.bf16.mxu0 %v1041
    %1521 = vmatpush1.bf16.msra.mxu0 %v1040
    %1522 = vmatprep.subr.bf16.mxu0 %v1037
    %1523 = vmatpush1.bf16.msra.mxu0 %v1036
    %1524 = vmatprep.subr.bf16.mxu0 %v1033
    %1525 = vmatpush1.bf16.msra.mxu0 %v1032
    %1526 = vmatprep.subr.bf16.mxu0 %v1029
    %1527 = vmatpush1.bf16.msra.mxu0 %v1028
    %1528 = vmatprep.subr.bf16.mxu0 %v1025
    %1529 = vmatpush1.bf16.msra.mxu0 %v1024
    %1530 = vmatprep.subr.bf16.mxu0 %v1085
    %1531 = vmatpush2.bf16.msra.mxu0 %v1084
    %1532 = vmatprep.subr.bf16.mxu0 %v1081
    %1533 = vmatpush2.bf16.msra.mxu0 %v1080
    %1534 = vmatprep.subr.bf16.mxu0 %v1077
    %1535 = vmatpush2.bf16.msra.mxu0 %v1076
    %1536 = vmatprep.subr.bf16.mxu0 %v1073
    %1537 = vmatpush2.bf16.msra.mxu0 %v1072
    %1538 = vmatprep.subr.bf16.mxu0 %v1069
    %1539 = vmatpush2.bf16.msra.mxu0 %v1068
    %1540 = vmatprep.subr.bf16.mxu0 %v1065
    %1541 = vmatpush2.bf16.msra.mxu0 %v1064
    %1542 = vmatprep.subr.bf16.mxu0 %v1061
    %1543 = vmatpush2.bf16.msra.mxu0 %v1060
    %1544 = vmatprep.subr.bf16.mxu0 %v1057
    %1545 = vmatpush2.bf16.msra.mxu0 %v1056
    %1546 = vmatprep.mubr.bf16.mxu0 %v373
    %1547 = vmatmul.mubr.bf16.gmra.mxu0 %v372
    %v1548 = vpop.f32.mrf.mxu0
    %v1549 = vadd.f32 %v1506, %v1548
    %v1550 = vpop.f32.mrf.mxu0
    %v1551 = vadd.f32 %v1508, %v1550
    %v1552 = vpop.f32.mrf.mxu0
    %v1553 = vadd.f32 %v1510, %v1552
    %v1554 = vpop.f32.mrf.mxu0
    %v1555 = vadd.f32 %v1512, %v1554
    %1556 = vdwg.mxu0
    %1557 = vmatprep.subr.bf16.mxu0 %v1117
    %1558 = vmatpush1.bf16.msra.mxu0 %v1116
    %1559 = vmatprep.subr.bf16.mxu0 %v1113
    %1560 = vmatpush1.bf16.msra.mxu0 %v1112
    %1561 = vmatprep.subr.bf16.mxu0 %v1109
    %1562 = vmatpush1.bf16.msra.mxu0 %v1108
    %1563 = vmatprep.subr.bf16.mxu0 %v1105
    %1564 = vmatpush1.bf16.msra.mxu0 %v1104
    %1565 = vmatprep.subr.bf16.mxu0 %v1101
    %1566 = vmatpush1.bf16.msra.mxu0 %v1100
    %1567 = vmatprep.subr.bf16.mxu0 %v1097
    %1568 = vmatpush1.bf16.msra.mxu0 %v1096
    %1569 = vmatprep.subr.bf16.mxu0 %v1093
    %1570 = vmatpush1.bf16.msra.mxu0 %v1092
    %1571 = vmatprep.subr.bf16.mxu0 %v1089
    %1572 = vmatpush1.bf16.msra.mxu0 %v1088
    %1573 = vmatprep.subr.bf16.mxu0 %v1149
    %1574 = vmatpush2.bf16.msra.mxu0 %v1148
    %1575 = vmatprep.subr.bf16.mxu0 %v1145
    %1576 = vmatpush2.bf16.msra.mxu0 %v1144
    %1577 = vmatprep.subr.bf16.mxu0 %v1141
    %1578 = vmatpush2.bf16.msra.mxu0 %v1140
    %1579 = vmatprep.subr.bf16.mxu0 %v1137
    %1580 = vmatpush2.bf16.msra.mxu0 %v1136
    %1581 = vmatprep.subr.bf16.mxu0 %v1133
    %1582 = vmatpush2.bf16.msra.mxu0 %v1132
    %1583 = vmatprep.subr.bf16.mxu0 %v1129
    %1584 = vmatpush2.bf16.msra.mxu0 %v1128
    %1585 = vmatprep.subr.bf16.mxu0 %v1125
    %1586 = vmatpush2.bf16.msra.mxu0 %v1124
    %1587 = vmatprep.subr.bf16.mxu0 %v1121
    %1588 = vmatpush2.bf16.msra.mxu0 %v1120
    %1589 = vmatprep.mubr.bf16.mxu0 %v375
    %1590 = vmatmul.mubr.bf16.gmra.mxu0 %v374
    %v1591 = vpop.f32.mrf.mxu0
    %v1592 = vadd.f32 %v1549, %v1591
    %v1593 = vpop.f32.mrf.mxu0
    %v1594 = vadd.f32 %v1551, %v1593
    %v1595 = vpop.f32.mrf.mxu0
    %v1596 = vadd.f32 %v1553, %v1595
    %v1597 = vpop.f32.mrf.mxu0
    %v1598 = vadd.f32 %v1555, %v1597
    %1599 = vdwg.mxu0
    %v1600 = vmax.f32 %v1463, 0.0
    %v1601 = vmax.f32 %v1465, 0.0
    %v1602 = vmax.f32 %v1592, 0.0
    %v1603 = vmax.f32 %v1594, 0.0
    %v1604 = vmax.f32 %v1467, 0.0
    %v1605 = vmax.f32 %v1469, 0.0
    %v1606 = vmax.f32 %v1596, 0.0
    %v1607 = vmax.f32 %v1598, 0.0
    %v1608 = vpack.c.bf16 %v1604, %v1600
    %v1609 = vpack.c.bf16 %v1605, %v1601
    %v1610 = vpack.c.bf16 %v1606, %v1602
    %v1611 = vpack.c.bf16 %v1607, %v1603
    %v1612 = vld [vmem:[#allocation7] sm:$0xff]
    %v1613 = vld [vmem:[#allocation7 + $0x8] sm:$0xff]
    %v1614 = vld [vmem:[#allocation7 + $0x10] sm:$0xff]
    %v1615 = vld [vmem:[#allocation7 + $0x18] sm:$0xff]
    %v1616 = vld [vmem:[#allocation7 + $0x20] sm:$0xff]
    %v1617 = vld [vmem:[#allocation7 + $0x28] sm:$0xff]
    %v1618 = vld [vmem:[#allocation7 + $0x30] sm:$0xff]
    %v1619 = vld [vmem:[#allocation7 + $0x38] sm:$0xff]
    %v1620 = vld [vmem:[#allocation7 + $0x40] sm:$0xff]
    %v1621 = vld [vmem:[#allocation7 + $0x48] sm:$0xff]
    %v1622 = vld [vmem:[#allocation7 + $0x50] sm:$0xff]
    %v1623 = vld [vmem:[#allocation7 + $0x58] sm:$0xff]
    %v1624 = vld [vmem:[#allocation7 + $0x60] sm:$0xff]
    %v1625 = vld [vmem:[#allocation7 + $0x68] sm:$0xff]
    %v1626 = vld [vmem:[#allocation7 + $0x70] sm:$0xff]
    %v1627 = vld [vmem:[#allocation7 + $0x78] sm:$0xff]
    %v1628 = vld [vmem:[#allocation7 + $0x80] sm:$0xff]
    %v1629 = vld [vmem:[#allocation7 + $0x88] sm:$0xff]
    %v1630 = vld [vmem:[#allocation7 + $0x90] sm:$0xff]
    %v1631 = vld [vmem:[#allocation7 + $0x98] sm:$0xff]
    %v1632 = vld [vmem:[#allocation7 + $0xa0] sm:$0xff]
    %v1633 = vld [vmem:[#allocation7 + $0xa8] sm:$0xff]
    %v1634 = vld [vmem:[#allocation7 + $0xb0] sm:$0xff]
    %v1635 = vld [vmem:[#allocation7 + $0xb8] sm:$0xff]
    %v1636 = vld [vmem:[#allocation7 + $0xc0] sm:$0xff]
    %v1637 = vld [vmem:[#allocation7 + $0xc8] sm:$0xff]
    %v1638 = vld [vmem:[#allocation7 + $0xd0] sm:$0xff]
    %v1639 = vld [vmem:[#allocation7 + $0xd8] sm:$0xff]
    %v1640 = vld [vmem:[#allocation7 + $0xe0] sm:$0xff]
    %v1641 = vld [vmem:[#allocation7 + $0xe8] sm:$0xff]
    %v1642 = vld [vmem:[#allocation7 + $0xf0] sm:$0xff]
    %v1643 = vld [vmem:[#allocation7 + $0xf8] sm:$0xff]
    %v1644 = vld [vmem:[#allocation7 + $0x100] sm:$0xff]
    %v1645 = vld [vmem:[#allocation7 + $0x108] sm:$0xff]
    %v1646 = vld [vmem:[#allocation7 + $0x110] sm:$0xff]
    %v1647 = vld [vmem:[#allocation7 + $0x118] sm:$0xff]
    %v1648 = vld [vmem:[#allocation7 + $0x120] sm:$0xff]
    %v1649 = vld [vmem:[#allocation7 + $0x128] sm:$0xff]
    %v1650 = vld [vmem:[#allocation7 + $0x130] sm:$0xff]
    %v1651 = vld [vmem:[#allocation7 + $0x138] sm:$0xff]
    %v1652 = vld [vmem:[#allocation7 + $0x140] sm:$0xff]
    %v1653 = vld [vmem:[#allocation7 + $0x148] sm:$0xff]
    %v1654 = vld [vmem:[#allocation7 + $0x150] sm:$0xff]
    %v1655 = vld [vmem:[#allocation7 + $0x158] sm:$0xff]
    %v1656 = vld [vmem:[#allocation7 + $0x160] sm:$0xff]
    %v1657 = vld [vmem:[#allocation7 + $0x168] sm:$0xff]
    %v1658 = vld [vmem:[#allocation7 + $0x170] sm:$0xff]
    %v1659 = vld [vmem:[#allocation7 + $0x178] sm:$0xff]
    %v1660 = vld [vmem:[#allocation7 + $0x180] sm:$0xff]
    %v1661 = vld [vmem:[#allocation7 + $0x188] sm:$0xff]
    %v1662 = vld [vmem:[#allocation7 + $0x190] sm:$0xff]
    %v1663 = vld [vmem:[#allocation7 + $0x198] sm:$0xff]
    %v1664 = vld [vmem:[#allocation7 + $0x1a0] sm:$0xff]
    %v1665 = vld [vmem:[#allocation7 + $0x1a8] sm:$0xff]
    %v1666 = vld [vmem:[#allocation7 + $0x1b0] sm:$0xff]
    %v1667 = vld [vmem:[#allocation7 + $0x1b8] sm:$0xff]
    %v1668 = vld [vmem:[#allocation7 + $0x1c0] sm:$0xff]
    %v1669 = vld [vmem:[#allocation7 + $0x1c8] sm:$0xff]
    %v1670 = vld [vmem:[#allocation7 + $0x1d0] sm:$0xff]
    %v1671 = vld [vmem:[#allocation7 + $0x1d8] sm:$0xff]
    %v1672 = vld [vmem:[#allocation7 + $0x1e0] sm:$0xff]
    %v1673 = vld [vmem:[#allocation7 + $0x1e8] sm:$0xff]
    %v1674 = vld [vmem:[#allocation7 + $0x1f0] sm:$0xff]
    %v1675 = vld [vmem:[#allocation7 + $0x1f8] sm:$0xff]
    %v1676 = vld [vmem:[%s8] sm:$0x3]
    %v1678 = vlaneseq
    %v1679 = vshrl.u32 %v1678, 7
    %v1680 = vsub.s32 0, %v1679
    %v1681 = vrot.slane %v1676, %v1680
    %v1682 = vlaneseq
    %v1683 = vshrl.u32 %v1682, 7
    %v1684 = vsub.s32 1, %v1683
    %v1685 = vrot.slane %v1676, %v1684
    %v1752 = vunpack.c.l.b16 %v1612
    %v1753 = vunpack.c.h.b16 %v1612
    %v1754 = vunpack.c.l.b16 %v1613
    %v1755 = vunpack.c.h.b16 %v1613
    %v1756 = vunpack.c.l.b16 %v1614
    %v1757 = vunpack.c.h.b16 %v1614
    %v1758 = vunpack.c.l.b16 %v1615
    %v1759 = vunpack.c.h.b16 %v1615
    %v1760 = vunpack.c.l.b16 %v1616
    %v1761 = vunpack.c.h.b16 %v1616
    %v1762 = vunpack.c.l.b16 %v1617
    %v1763 = vunpack.c.h.b16 %v1617
    %v1764 = vunpack.c.l.b16 %v1618
    %v1765 = vunpack.c.h.b16 %v1618
    %v1766 = vunpack.c.l.b16 %v1619
    %v1767 = vunpack.c.h.b16 %v1619
    %v1768 = vunpack.c.l.b16 %v1620
    %v1769 = vunpack.c.h.b16 %v1620
    %v1770 = vunpack.c.l.b16 %v1621
    %v1771 = vunpack.c.h.b16 %v1621
    %v1772 = vunpack.c.l.b16 %v1622
    %v1773 = vunpack.c.h.b16 %v1622
    %v1774 = vunpack.c.l.b16 %v1623
    %v1775 = vunpack.c.h.b16 %v1623
    %v1776 = vunpack.c.l.b16 %v1624
    %v1777 = vunpack.c.h.b16 %v1624
    %v1778 = vunpack.c.l.b16 %v1625
    %v1779 = vunpack.c.h.b16 %v1625
    %v1780 = vunpack.c.l.b16 %v1626
    %v1781 = vunpack.c.h.b16 %v1626
    %v1782 = vunpack.c.l.b16 %v1627
    %v1783 = vunpack.c.h.b16 %v1627
    %v1784 = vunpack.c.l.b16 %v1628
    %v1785 = vunpack.c.h.b16 %v1628
    %v1786 = vunpack.c.l.b16 %v1629
    %v1787 = vunpack.c.h.b16 %v1629
    %v1788 = vunpack.c.l.b16 %v1630
    %v1789 = vunpack.c.h.b16 %v1630
    %v1790 = vunpack.c.l.b16 %v1631
    %v1791 = vunpack.c.h.b16 %v1631
    %v1792 = vunpack.c.l.b16 %v1632
    %v1793 = vunpack.c.h.b16 %v1632
    %v1794 = vunpack.c.l.b16 %v1633
    %v1795 = vunpack.c.h.b16 %v1633
    %v1796 = vunpack.c.l.b16 %v1634
    %v1797 = vunpack.c.h.b16 %v1634
    %v1798 = vunpack.c.l.b16 %v1635
    %v1799 = vunpack.c.h.b16 %v1635
    %v1800 = vunpack.c.l.b16 %v1636
    %v1801 = vunpack.c.h.b16 %v1636
    %v1802 = vunpack.c.l.b16 %v1637
    %v1803 = vunpack.c.h.b16 %v1637
    %v1804 = vunpack.c.l.b16 %v1638
    %v1805 = vunpack.c.h.b16 %v1638
    %v1806 = vunpack.c.l.b16 %v1639
    %v1807 = vunpack.c.h.b16 %v1639
    %v1808 = vunpack.c.l.b16 %v1640
    %v1809 = vunpack.c.h.b16 %v1640
    %v1810 = vunpack.c.l.b16 %v1641
    %v1811 = vunpack.c.h.b16 %v1641
    %v1812 = vunpack.c.l.b16 %v1642
    %v1813 = vunpack.c.h.b16 %v1642
    %v1814 = vunpack.c.l.b16 %v1643
    %v1815 = vunpack.c.h.b16 %v1643
    %v1816 = vunpack.c.l.b16 %v1644
    %v1817 = vunpack.c.h.b16 %v1644
    %v1818 = vunpack.c.l.b16 %v1645
    %v1819 = vunpack.c.h.b16 %v1645
    %v1820 = vunpack.c.l.b16 %v1646
    %v1821 = vunpack.c.h.b16 %v1646
    %v1822 = vunpack.c.l.b16 %v1647
    %v1823 = vunpack.c.h.b16 %v1647
    %v1824 = vunpack.c.l.b16 %v1648
    %v1825 = vunpack.c.h.b16 %v1648
    %v1826 = vunpack.c.l.b16 %v1649
    %v1827 = vunpack.c.h.b16 %v1649
    %v1828 = vunpack.c.l.b16 %v1650
    %v1829 = vunpack.c.h.b16 %v1650
    %v1830 = vunpack.c.l.b16 %v1651
    %v1831 = vunpack.c.h.b16 %v1651
    %v1832 = vunpack.c.l.b16 %v1652
    %v1833 = vunpack.c.h.b16 %v1652
    %v1834 = vunpack.c.l.b16 %v1653
    %v1835 = vunpack.c.h.b16 %v1653
    %v1836 = vunpack.c.l.b16 %v1654
    %v1837 = vunpack.c.h.b16 %v1654
    %v1838 = vunpack.c.l.b16 %v1655
    %v1839 = vunpack.c.h.b16 %v1655
    %v1840 = vunpack.c.l.b16 %v1656
    %v1841 = vunpack.c.h.b16 %v1656
    %v1842 = vunpack.c.l.b16 %v1657
    %v1843 = vunpack.c.h.b16 %v1657
    %v1844 = vunpack.c.l.b16 %v1658
    %v1845 = vunpack.c.h.b16 %v1658
    %v1846 = vunpack.c.l.b16 %v1659
    %v1847 = vunpack.c.h.b16 %v1659
    %v1848 = vunpack.c.l.b16 %v1660
    %v1849 = vunpack.c.h.b16 %v1660
    %v1850 = vunpack.c.l.b16 %v1661
    %v1851 = vunpack.c.h.b16 %v1661
    %v1852 = vunpack.c.l.b16 %v1662
    %v1853 = vunpack.c.h.b16 %v1662
    %v1854 = vunpack.c.l.b16 %v1663
    %v1855 = vunpack.c.h.b16 %v1663
    %v1856 = vunpack.c.l.b16 %v1664
    %v1857 = vunpack.c.h.b16 %v1664
    %v1858 = vunpack.c.l.b16 %v1665
    %v1859 = vunpack.c.h.b16 %v1665
    %v1860 = vunpack.c.l.b16 %v1666
    %v1861 = vunpack.c.h.b16 %v1666
    %v1862 = vunpack.c.l.b16 %v1667
    %v1863 = vunpack.c.h.b16 %v1667
    %v1864 = vunpack.c.l.b16 %v1668
    %v1865 = vunpack.c.h.b16 %v1668
    %v1866 = vunpack.c.l.b16 %v1669
    %v1867 = vunpack.c.h.b16 %v1669
    %v1868 = vunpack.c.l.b16 %v1670
    %v1869 = vunpack.c.h.b16 %v1670
    %v1870 = vunpack.c.l.b16 %v1671
    %v1871 = vunpack.c.h.b16 %v1671
    %v1872 = vunpack.c.l.b16 %v1672
    %v1873 = vunpack.c.h.b16 %v1672
    %v1874 = vunpack.c.l.b16 %v1673
    %v1875 = vunpack.c.h.b16 %v1673
    %v1876 = vunpack.c.l.b16 %v1674
    %v1877 = vunpack.c.h.b16 %v1674
    %v1878 = vunpack.c.l.b16 %v1675
    %v1879 = vunpack.c.h.b16 %v1675
    %v1880 = vpack.c.b16 %v1754, %v1752
    %v1881 = vpack.c.b16 %v1755, %v1753
    %v1882 = vpack.c.b16 %v1758, %v1756
    %v1883 = vpack.c.b16 %v1759, %v1757
    %v1884 = vpack.c.b16 %v1762, %v1760
    %v1885 = vpack.c.b16 %v1763, %v1761
    %v1886 = vpack.c.b16 %v1766, %v1764
    %v1887 = vpack.c.b16 %v1767, %v1765
    %v1888 = vpack.c.b16 %v1770, %v1768
    %v1889 = vpack.c.b16 %v1771, %v1769
    %v1890 = vpack.c.b16 %v1774, %v1772
    %v1891 = vpack.c.b16 %v1775, %v1773
    %v1892 = vpack.c.b16 %v1778, %v1776
    %v1893 = vpack.c.b16 %v1779, %v1777
    %v1894 = vpack.c.b16 %v1782, %v1780
    %v1895 = vpack.c.b16 %v1783, %v1781
    %v1896 = vpack.c.b16 %v1786, %v1784
    %v1897 = vpack.c.b16 %v1787, %v1785
    %v1898 = vpack.c.b16 %v1790, %v1788
    %v1899 = vpack.c.b16 %v1791, %v1789
    %v1900 = vpack.c.b16 %v1794, %v1792
    %v1901 = vpack.c.b16 %v1795, %v1793
    %v1902 = vpack.c.b16 %v1798, %v1796
    %v1903 = vpack.c.b16 %v1799, %v1797
    %v1904 = vpack.c.b16 %v1802, %v1800
    %v1905 = vpack.c.b16 %v1803, %v1801
    %v1906 = vpack.c.b16 %v1806, %v1804
    %v1907 = vpack.c.b16 %v1807, %v1805
    %v1908 = vpack.c.b16 %v1810, %v1808
    %v1909 = vpack.c.b16 %v1811, %v1809
    %v1910 = vpack.c.b16 %v1814, %v1812
    %v1911 = vpack.c.b16 %v1815, %v1813
    %v1912 = vpack.c.b16 %v1818, %v1816
    %v1913 = vpack.c.b16 %v1819, %v1817
    %v1914 = vpack.c.b16 %v1822, %v1820
    %v1915 = vpack.c.b16 %v1823, %v1821
    %v1916 = vpack.c.b16 %v1826, %v1824
    %v1917 = vpack.c.b16 %v1827, %v1825
    %v1918 = vpack.c.b16 %v1830, %v1828
    %v1919 = vpack.c.b16 %v1831, %v1829
    %v1920 = vpack.c.b16 %v1834, %v1832
    %v1921 = vpack.c.b16 %v1835, %v1833
    %v1922 = vpack.c.b16 %v1838, %v1836
    %v1923 = vpack.c.b16 %v1839, %v1837
    %v1924 = vpack.c.b16 %v1842, %v1840
    %v1925 = vpack.c.b16 %v1843, %v1841
    %v1926 = vpack.c.b16 %v1846, %v1844
    %v1927 = vpack.c.b16 %v1847, %v1845
    %v1928 = vpack.c.b16 %v1850, %v1848
    %v1929 = vpack.c.b16 %v1851, %v1849
    %v1930 = vpack.c.b16 %v1854, %v1852
    %v1931 = vpack.c.b16 %v1855, %v1853
    %v1932 = vpack.c.b16 %v1858, %v1856
    %v1933 = vpack.c.b16 %v1859, %v1857
    %v1934 = vpack.c.b16 %v1862, %v1860
    %v1935 = vpack.c.b16 %v1863, %v1861
    %v1936 = vpack.c.b16 %v1866, %v1864
    %v1937 = vpack.c.b16 %v1867, %v1865
    %v1938 = vpack.c.b16 %v1870, %v1868
    %v1939 = vpack.c.b16 %v1871, %v1869
    %v1940 = vpack.c.b16 %v1874, %v1872
    %v1941 = vpack.c.b16 %v1875, %v1873
    %v1942 = vpack.c.b16 %v1878, %v1876
    %v1943 = vpack.c.b16 %v1879, %v1877
    %2008 = vmatprep.subr.bf16.mxu0 %v1895
    %2009 = vmatpush1.bf16.msra.mxu0 %v1894
    %2010 = vmatprep.subr.bf16.mxu0 %v1893
    %2011 = vmatpush1.bf16.msra.mxu0 %v1892
    %2012 = vmatprep.subr.bf16.mxu0 %v1891
    %2013 = vmatpush1.bf16.msra.mxu0 %v1890
    %2014 = vmatprep.subr.bf16.mxu0 %v1889
    %2015 = vmatpush1.bf16.msra.mxu0 %v1888
    %2016 = vmatprep.subr.bf16.mxu0 %v1887
    %2017 = vmatpush1.bf16.msra.mxu0 %v1886
    %2018 = vmatprep.subr.bf16.mxu0 %v1885
    %2019 = vmatpush1.bf16.msra.mxu0 %v1884
    %2020 = vmatprep.subr.bf16.mxu0 %v1883
    %2021 = vmatpush1.bf16.msra.mxu0 %v1882
    %2022 = vmatprep.subr.bf16.mxu0 %v1881
    %2023 = vmatpush1.bf16.msra.mxu0 %v1880
    %2024 = vmatprep.subr.bf16.mxu0 %v1911
    %2025 = vmatpush2.bf16.msra.mxu0 %v1910
    %2026 = vmatprep.subr.bf16.mxu0 %v1909
    %2027 = vmatpush2.bf16.msra.mxu0 %v1908
    %2028 = vmatprep.subr.bf16.mxu0 %v1907
    %2029 = vmatpush2.bf16.msra.mxu0 %v1906
    %2030 = vmatprep.subr.bf16.mxu0 %v1905
    %2031 = vmatpush2.bf16.msra.mxu0 %v1904
    %2032 = vmatprep.subr.bf16.mxu0 %v1903
    %2033 = vmatpush2.bf16.msra.mxu0 %v1902
    %2034 = vmatprep.subr.bf16.mxu0 %v1901
    %2035 = vmatpush2.bf16.msra.mxu0 %v1900
    %2036 = vmatprep.subr.bf16.mxu0 %v1899
    %2037 = vmatpush2.bf16.msra.mxu0 %v1898
    %2038 = vmatprep.subr.bf16.mxu0 %v1897
    %2039 = vmatpush2.bf16.msra.mxu0 %v1896
    %2040 = vmatprep.mubr.bf16.mxu0 %v1609
    %2041 = vmatmul.mubr.bf16.gmra.mxu0 %v1608
    %v2042 = vpop.f32.mrf.mxu0
    %v2043 = vadd.f32 %v1681, %v2042
    %v2044 = vpop.f32.mrf.mxu0
    %v2045 = vadd.f32 %v1685, %v2044
    %v2046 = vpop.f32.mrf.mxu0
    %v2047 = vadd.f32 %v1681, %v2046
    %v2048 = vpop.f32.mrf.mxu0
    %v2049 = vadd.f32 %v1685, %v2048
    %2050 = vdwg.mxu0
    %2051 = vmatprep.subr.bf16.mxu0 %v1927
    %2052 = vmatpush1.bf16.msra.mxu0 %v1926
    %2053 = vmatprep.subr.bf16.mxu0 %v1925
    %2054 = vmatpush1.bf16.msra.mxu0 %v1924
    %2055 = vmatprep.subr.bf16.mxu0 %v1923
    %2056 = vmatpush1.bf16.msra.mxu0 %v1922
    %2057 = vmatprep.subr.bf16.mxu0 %v1921
    %2058 = vmatpush1.bf16.msra.mxu0 %v1920
    %2059 = vmatprep.subr.bf16.mxu0 %v1919
    %2060 = vmatpush1.bf16.msra.mxu0 %v1918
    %2061 = vmatprep.subr.bf16.mxu0 %v1917
    %2062 = vmatpush1.bf16.msra.mxu0 %v1916
    %2063 = vmatprep.subr.bf16.mxu0 %v1915
    %2064 = vmatpush1.bf16.msra.mxu0 %v1914
    %2065 = vmatprep.subr.bf16.mxu0 %v1913
    %2066 = vmatpush1.bf16.msra.mxu0 %v1912
    %2067 = vmatprep.subr.bf16.mxu0 %v1943
    %2068 = vmatpush2.bf16.msra.mxu0 %v1942
    %2069 = vmatprep.subr.bf16.mxu0 %v1941
    %2070 = vmatpush2.bf16.msra.mxu0 %v1940
    %2071 = vmatprep.subr.bf16.mxu0 %v1939
    %2072 = vmatpush2.bf16.msra.mxu0 %v1938
    %2073 = vmatprep.subr.bf16.mxu0 %v1937
    %2074 = vmatpush2.bf16.msra.mxu0 %v1936
    %2075 = vmatprep.subr.bf16.mxu0 %v1935
    %2076 = vmatpush2.bf16.msra.mxu0 %v1934
    %2077 = vmatprep.subr.bf16.mxu0 %v1933
    %2078 = vmatpush2.bf16.msra.mxu0 %v1932
    %2079 = vmatprep.subr.bf16.mxu0 %v1931
    %2080 = vmatpush2.bf16.msra.mxu0 %v1930
    %2081 = vmatprep.subr.bf16.mxu0 %v1929
    %2082 = vmatpush2.bf16.msra.mxu0 %v1928
    %2083 = vmatprep.mubr.bf16.mxu0 %v1611
    %2084 = vmatmul.mubr.bf16.gmra.mxu0 %v1610
    %v2085 = vpop.f32.mrf.mxu0
    %v2086 = vadd.f32 %v2043, %v2085
    %v2087 = vpop.f32.mrf.mxu0
    %v2088 = vadd.f32 %v2045, %v2087
    %v2089 = vpop.f32.mrf.mxu0
    %v2090 = vadd.f32 %v2047, %v2089
    %v2091 = vpop.f32.mrf.mxu0
    %v2092 = vadd.f32 %v2049, %v2091
    %2093 = vdwg.mxu0
    %v2094 = vmax.f32 %v2086, 0.0
    %v2095 = vmax.f32 %v2088, 0.0
    %v2096 = vmax.f32 %v2090, 0.0
    %v2097 = vmax.f32 %v2092, 0.0
    %v2098 = vpack.c.bf16 %v2096, %v2094
    %v2099 = vpack.c.bf16 %v2097, %v2095
    %v2100 = vld [vmem:[#allocation8] sm:$0xf]
    %v2101 = vld [vmem:[#allocation8 + $0x4] sm:$0xf]
    %v2102 = vld [vmem:[#allocation8 + $0x8] sm:$0xf]
    %v2103 = vld [vmem:[#allocation8 + $0xc] sm:$0xf]
    %v2104 = vld [vmem:[#allocation8 + $0x10] sm:$0xf]
    %v2105 = vld [vmem:[#allocation8 + $0x14] sm:$0xf]
    %v2106 = vld [vmem:[#allocation8 + $0x18] sm:$0xf]
    %v2107 = vld [vmem:[#allocation8 + $0x1c] sm:$0xf]
    %v2108 = vld [vmem:[#allocation8 + $0x20] sm:$0xf]
    %v2109 = vld [vmem:[#allocation8 + $0x24] sm:$0xf]
    %v2110 = vld [vmem:[#allocation8 + $0x28] sm:$0xf]
    %v2111 = vld [vmem:[#allocation8 + $0x2c] sm:$0xf]
    %v2112 = vld [vmem:[#allocation8 + $0x30] sm:$0xf]
    %v2113 = vld [vmem:[#allocation8 + $0x34] sm:$0xf]
    %v2114 = vld [vmem:[#allocation8 + $0x38] sm:$0xf]
    %v2115 = vld [vmem:[#allocation8 + $0x3c] sm:$0xf]
    %v2116 = vld [vmem:[#allocation8 + $0x40] sm:$0xf]
    %v2117 = vld [vmem:[#allocation8 + $0x44] sm:$0xf]
    %v2118 = vld [vmem:[#allocation8 + $0x48] sm:$0xf]
    %v2119 = vld [vmem:[#allocation8 + $0x4c] sm:$0xf]
    %v2120 = vld [vmem:[#allocation8 + $0x50] sm:$0xf]
    %v2121 = vld [vmem:[#allocation8 + $0x54] sm:$0xf]
    %v2122 = vld [vmem:[#allocation8 + $0x58] sm:$0xf]
    %v2123 = vld [vmem:[#allocation8 + $0x5c] sm:$0xf]
    %v2124 = vld [vmem:[#allocation8 + $0x60] sm:$0xf]
    %v2125 = vld [vmem:[#allocation8 + $0x64] sm:$0xf]
    %v2126 = vld [vmem:[#allocation8 + $0x68] sm:$0xf]
    %v2127 = vld [vmem:[#allocation8 + $0x6c] sm:$0xf]
    %v2128 = vld [vmem:[#allocation8 + $0x70] sm:$0xf]
    %v2129 = vld [vmem:[#allocation8 + $0x74] sm:$0xf]
    %v2130 = vld [vmem:[#allocation8 + $0x78] sm:$0xf]
    %v2131 = vld [vmem:[#allocation8 + $0x7c] sm:$0xf]
    %v2132 = vld [vmem:[%s9] sm:$0x1]
    %v2134 = vlaneseq
    %v2135 = vshrl.u32 %v2134, 7
    %v2136 = vsub.s32 0, %v2135
    %v2137 = vrot.slane %v2132, %v2136
    %v2171 = vunpack.c.l.b16 %v2100
    %v2172 = vunpack.c.l.b16 %v2101
    %v2173 = vunpack.c.l.b16 %v2102
    %v2174 = vunpack.c.l.b16 %v2103
    %v2175 = vunpack.c.l.b16 %v2104
    %v2176 = vunpack.c.l.b16 %v2105
    %v2177 = vunpack.c.l.b16 %v2106
    %v2178 = vunpack.c.l.b16 %v2107
    %v2179 = vunpack.c.l.b16 %v2108
    %v2180 = vunpack.c.l.b16 %v2109
    %v2181 = vunpack.c.l.b16 %v2110
    %v2182 = vunpack.c.l.b16 %v2111
    %v2183 = vunpack.c.l.b16 %v2112
    %v2184 = vunpack.c.l.b16 %v2113
    %v2185 = vunpack.c.l.b16 %v2114
    %v2186 = vunpack.c.l.b16 %v2115
    %v2187 = vunpack.c.l.b16 %v2116
    %v2188 = vunpack.c.l.b16 %v2117
    %v2189 = vunpack.c.l.b16 %v2118
    %v2190 = vunpack.c.l.b16 %v2119
    %v2191 = vunpack.c.l.b16 %v2120
    %v2192 = vunpack.c.l.b16 %v2121
    %v2193 = vunpack.c.l.b16 %v2122
    %v2194 = vunpack.c.l.b16 %v2123
    %v2195 = vunpack.c.l.b16 %v2124
    %v2196 = vunpack.c.l.b16 %v2125
    %v2197 = vunpack.c.l.b16 %v2126
    %v2198 = vunpack.c.l.b16 %v2127
    %v2199 = vunpack.c.l.b16 %v2128
    %v2200 = vunpack.c.l.b16 %v2129
    %v2201 = vunpack.c.l.b16 %v2130
    %v2202 = vunpack.c.l.b16 %v2131
    %v2203 = vpack.c.b16 %v2172, %v2171
    %v2204 = vpack.c.b16 %v2174, %v2173
    %v2205 = vpack.c.b16 %v2176, %v2175
    %v2206 = vpack.c.b16 %v2178, %v2177
    %v2207 = vpack.c.b16 %v2180, %v2179
    %v2208 = vpack.c.b16 %v2182, %v2181
    %v2209 = vpack.c.b16 %v2184, %v2183
    %v2210 = vpack.c.b16 %v2186, %v2185
    %v2211 = vpack.c.b16 %v2188, %v2187
    %v2212 = vpack.c.b16 %v2190, %v2189
    %v2213 = vpack.c.b16 %v2192, %v2191
    %v2214 = vpack.c.b16 %v2194, %v2193
    %v2215 = vpack.c.b16 %v2196, %v2195
    %v2216 = vpack.c.b16 %v2198, %v2197
    %v2217 = vpack.c.b16 %v2200, %v2199
    %v2218 = vpack.c.b16 %v2202, %v2201
    %2235 = vmatprep.subr.bf16.mxu0 0
    %2236 = vmatpush1.bf16.msra.mxu0 %v2210
    %2237 = vmatprep.subr.bf16.mxu0 0
    %2238 = vmatpush1.bf16.msra.mxu0 %v2209
    %2239 = vmatprep.subr.bf16.mxu0 0
    %2240 = vmatpush1.bf16.msra.mxu0 %v2208
    %2241 = vmatprep.subr.bf16.mxu0 0
    %2242 = vmatpush1.bf16.msra.mxu0 %v2207
    %2243 = vmatprep.subr.bf16.mxu0 0
    %2244 = vmatpush1.bf16.msra.mxu0 %v2206
    %2245 = vmatprep.subr.bf16.mxu0 0
    %2246 = vmatpush1.bf16.msra.mxu0 %v2205
    %2247 = vmatprep.subr.bf16.mxu0 0
    %2248 = vmatpush1.bf16.msra.mxu0 %v2204
    %2249 = vmatprep.subr.bf16.mxu0 0
    %2250 = vmatpush1.bf16.msra.mxu0 %v2203
    %2251 = vmatprep.subr.bf16.mxu0 0
    %2252 = vmatpush2.bf16.msra.mxu0 %v2218
    %2253 = vmatprep.subr.bf16.mxu0 0
    %2254 = vmatpush2.bf16.msra.mxu0 %v2217
    %2255 = vmatprep.subr.bf16.mxu0 0
    %2256 = vmatpush2.bf16.msra.mxu0 %v2216
    %2257 = vmatprep.subr.bf16.mxu0 0
    %2258 = vmatpush2.bf16.msra.mxu0 %v2215
    %2259 = vmatprep.subr.bf16.mxu0 0
    %2260 = vmatpush2.bf16.msra.mxu0 %v2214
    %2261 = vmatprep.subr.bf16.mxu0 0
    %2262 = vmatpush2.bf16.msra.mxu0 %v2213
    %2263 = vmatprep.subr.bf16.mxu0 0
    %2264 = vmatpush2.bf16.msra.mxu0 %v2212
    %2265 = vmatprep.subr.bf16.mxu0 0
    %2266 = vmatpush2.bf16.msra.mxu0 %v2211
    %2267 = vmatprep.mubr.bf16.mxu0 %v2099
    %2268 = vmatmul.mubr.bf16.gmra.mxu0 %v2098
    %v2269 = vpop.f32.mrf.mxu0
    %v2270 = vadd.f32 %v2137, %v2269
    %v2271 = vpop.f32.mrf.mxu0
    %v2272 = vpop.f32.mrf.mxu0
    %v2273 = vadd.f32 %v2137, %v2272
    %v2274 = vpop.f32.mrf.mxu0
    %2275 = vdwg.mxu0
    %v2276 = vmax.f32 %v2270, 0.0
    %v2277 = vmax.f32 %v2273, 0.0
    %v2278 = vpack.c.bf16 %v2277, %v2276
    %v2279 = vld [vmem:[#allocation10] sm:$0xff]
    %v2280 = vld [vmem:[#allocation10 + $0x8] sm:$0xff]
    %v2281 = vld [vmem:[#allocation10 + $0x10] sm:$0xff]
    %v2282 = vld [vmem:[#allocation10 + $0x18] sm:$0xff]
    %v2283 = vld [vmem:[#allocation10 + $0x20] sm:$0xff]
    %v2284 = vld [vmem:[#allocation10 + $0x28] sm:$0xff]
    %v2285 = vld [vmem:[#allocation10 + $0x30] sm:$0xff]
    %v2286 = vld [vmem:[#allocation10 + $0x38] sm:$0xff]
    %v2287 = vld [vmem:[#allocation10 + $0x40] sm:$0xff]
    %v2288 = vld [vmem:[#allocation10 + $0x48] sm:$0xff]
    %v2289 = vld [vmem:[#allocation10 + $0x50] sm:$0xff]
    %v2290 = vld [vmem:[#allocation10 + $0x58] sm:$0xff]
    %v2291 = vld [vmem:[#allocation10 + $0x60] sm:$0xff]
    %v2292 = vld [vmem:[#allocation10 + $0x68] sm:$0xff]
    %v2293 = vld [vmem:[#allocation10 + $0x70] sm:$0xff]
    %v2294 = vld [vmem:[#allocation10 + $0x78] sm:$0xff]
    %v2311 = vunpack.c.l.b16 %v2279
    %v2312 = vunpack.c.h.b16 %v2279
    %v2313 = vunpack.c.l.b16 %v2280
    %v2314 = vunpack.c.h.b16 %v2280
    %v2315 = vunpack.c.l.b16 %v2281
    %v2316 = vunpack.c.h.b16 %v2281
    %v2317 = vunpack.c.l.b16 %v2282
    %v2318 = vunpack.c.h.b16 %v2282
    %v2319 = vunpack.c.l.b16 %v2283
    %v2320 = vunpack.c.h.b16 %v2283
    %v2321 = vunpack.c.l.b16 %v2284
    %v2322 = vunpack.c.h.b16 %v2284
    %v2323 = vunpack.c.l.b16 %v2285
    %v2324 = vunpack.c.h.b16 %v2285
    %v2325 = vunpack.c.l.b16 %v2286
    %v2326 = vunpack.c.h.b16 %v2286
    %v2327 = vunpack.c.l.b16 %v2287
    %v2328 = vunpack.c.h.b16 %v2287
    %v2329 = vunpack.c.l.b16 %v2288
    %v2330 = vunpack.c.h.b16 %v2288
    %v2331 = vunpack.c.l.b16 %v2289
    %v2332 = vunpack.c.h.b16 %v2289
    %v2333 = vunpack.c.l.b16 %v2290
    %v2334 = vunpack.c.h.b16 %v2290
    %v2335 = vunpack.c.l.b16 %v2291
    %v2336 = vunpack.c.h.b16 %v2291
    %v2337 = vunpack.c.l.b16 %v2292
    %v2338 = vunpack.c.h.b16 %v2292
    %v2339 = vunpack.c.l.b16 %v2293
    %v2340 = vunpack.c.h.b16 %v2293
    %v2341 = vunpack.c.l.b16 %v2294
    %v2342 = vunpack.c.h.b16 %v2294
    %v2343 = vpack.c.b16 %v2313, %v2311
    %v2344 = vpack.c.b16 %v2314, %v2312
    %v2345 = vpack.c.b16 %v2317, %v2315
    %v2346 = vpack.c.b16 %v2318, %v2316
    %v2347 = vpack.c.b16 %v2321, %v2319
    %v2348 = vpack.c.b16 %v2322, %v2320
    %v2349 = vpack.c.b16 %v2325, %v2323
    %v2350 = vpack.c.b16 %v2326, %v2324
    %v2351 = vpack.c.b16 %v2329, %v2327
    %v2352 = vpack.c.b16 %v2330, %v2328
    %v2353 = vpack.c.b16 %v2333, %v2331
    %v2354 = vpack.c.b16 %v2334, %v2332
    %v2355 = vpack.c.b16 %v2337, %v2335
    %v2356 = vpack.c.b16 %v2338, %v2336
    %v2357 = vpack.c.b16 %v2341, %v2339
    %v2358 = vpack.c.b16 %v2342, %v2340
    %2375 = vmatprep.subr.bf16.mxu0 %v2358
    %2376 = vmatpush1.bf16.msra.mxu0 %v2357
    %2377 = vmatprep.subr.bf16.mxu0 %v2356
    %2378 = vmatpush1.bf16.msra.mxu0 %v2355
    %2379 = vmatprep.subr.bf16.mxu0 %v2354
    %2380 = vmatpush1.bf16.msra.mxu0 %v2353
    %2381 = vmatprep.subr.bf16.mxu0 %v2352
    %2382 = vmatpush1.bf16.msra.mxu0 %v2351
    %2383 = vmatprep.subr.bf16.mxu0 %v2350
    %2384 = vmatpush1.bf16.msra.mxu0 %v2349
    %2385 = vmatprep.subr.bf16.mxu0 %v2348
    %2386 = vmatpush1.bf16.msra.mxu0 %v2347
    %2387 = vmatprep.subr.bf16.mxu0 %v2346
    %2388 = vmatpush1.bf16.msra.mxu0 %v2345
    %2389 = vmatprep.subr.bf16.mxu0 %v2344
    %2390 = vmatpush1.bf16.msra.mxu0 %v2343
    %2391 = vmatprep.subr.bf16.mxu0 0
    %2392 = vmatpush2.bf16.msra.mxu0 0
    %2393 = vmatprep.subr.bf16.mxu0 0
    %2394 = vmatpush2.bf16.msra.mxu0 0
    %2395 = vmatprep.subr.bf16.mxu0 0
    %2396 = vmatpush2.bf16.msra.mxu0 0
    %2397 = vmatprep.subr.bf16.mxu0 0
    %2398 = vmatpush2.bf16.msra.mxu0 0
    %2399 = vmatprep.subr.bf16.mxu0 0
    %2400 = vmatpush2.bf16.msra.mxu0 0
    %2401 = vmatprep.subr.bf16.mxu0 0
    %2402 = vmatpush2.bf16.msra.mxu0 0
    %2403 = vmatprep.subr.bf16.mxu0 0
    %2404 = vmatpush2.bf16.msra.mxu0 0
    %2405 = vmatprep.subr.bf16.mxu0 0
    %2406 = vmatpush2.bf16.msra.mxu0 0
    %2407 = vmatprep.mubr.bf16.mxu0 0
    %2408 = vmatmul.mubr.bf16.gmra.mxu0 %v2278
    %v2409 = vpop.f32.mrf.mxu0
    %v2410 = vadd.f32 0.0, %v2409
    %v2411 = vpop.f32.mrf.mxu0
    %v2412 = vadd.f32 0.0, %v2411
    %v2413 = vpop.f32.mrf.mxu0
    %v2414 = vadd.f32 0.0, %v2413
    %v2415 = vpop.f32.mrf.mxu0
    %v2416 = vadd.f32 0.0, %v2415
    %2417 = vdwg.mxu0
    %v2418 = vmax.f32 %v2410, 0.0
    %v2419 = vmax.f32 %v2412, 0.0
    %v2420 = vmax.f32 %v2414, 0.0
    %v2421 = vmax.f32 %v2416, 0.0
    %v2422 = vpack.c.bf16 %v2420, %v2418
    %v2423 = vpack.c.bf16 %v2421, %v2419
    %v2424 = vld [vmem:[#allocation11] sm:$0xff]
    %v2425 = vld [vmem:[#allocation11 + $0x8] sm:$0xff]
    %v2426 = vld [vmem:[#allocation11 + $0x10] sm:$0xff]
    %v2427 = vld [vmem:[#allocation11 + $0x18] sm:$0xff]
    %v2428 = vld [vmem:[#allocation11 + $0x20] sm:$0xff]
    %v2429 = vld [vmem:[#allocation11 + $0x28] sm:$0xff]
    %v2430 = vld [vmem:[#allocation11 + $0x30] sm:$0xff]
    %v2431 = vld [vmem:[#allocation11 + $0x38] sm:$0xff]
    %v2432 = vld [vmem:[#allocation11 + $0x40] sm:$0xff]
    %v2433 = vld [vmem:[#allocation11 + $0x48] sm:$0xff]
    %v2434 = vld [vmem:[#allocation11 + $0x50] sm:$0xff]
    %v2435 = vld [vmem:[#allocation11 + $0x58] sm:$0xff]
    %v2436 = vld [vmem:[#allocation11 + $0x60] sm:$0xff]
    %v2437 = vld [vmem:[#allocation11 + $0x68] sm:$0xff]
    %v2438 = vld [vmem:[#allocation11 + $0x70] sm:$0xff]
    %v2439 = vld [vmem:[#allocation11 + $0x78] sm:$0xff]
    %v2440 = vld [vmem:[#allocation11 + $0x80] sm:$0xff]
    %v2441 = vld [vmem:[#allocation11 + $0x88] sm:$0xff]
    %v2442 = vld [vmem:[#allocation11 + $0x90] sm:$0xff]
    %v2443 = vld [vmem:[#allocation11 + $0x98] sm:$0xff]
    %v2444 = vld [vmem:[#allocation11 + $0xa0] sm:$0xff]
    %v2445 = vld [vmem:[#allocation11 + $0xa8] sm:$0xff]
    %v2446 = vld [vmem:[#allocation11 + $0xb0] sm:$0xff]
    %v2447 = vld [vmem:[#allocation11 + $0xb8] sm:$0xff]
    %v2448 = vld [vmem:[#allocation11 + $0xc0] sm:$0xff]
    %v2449 = vld [vmem:[#allocation11 + $0xc8] sm:$0xff]
    %v2450 = vld [vmem:[#allocation11 + $0xd0] sm:$0xff]
    %v2451 = vld [vmem:[#allocation11 + $0xd8] sm:$0xff]
    %v2452 = vld [vmem:[#allocation11 + $0xe0] sm:$0xff]
    %v2453 = vld [vmem:[#allocation11 + $0xe8] sm:$0xff]
    %v2454 = vld [vmem:[#allocation11 + $0xf0] sm:$0xff]
    %v2455 = vld [vmem:[#allocation11 + $0xf8] sm:$0xff]
    %v2456 = vld [vmem:[#allocation11 + $0x100] sm:$0xff]
    %v2457 = vld [vmem:[#allocation11 + $0x108] sm:$0xff]
    %v2458 = vld [vmem:[#allocation11 + $0x110] sm:$0xff]
    %v2459 = vld [vmem:[#allocation11 + $0x118] sm:$0xff]
    %v2460 = vld [vmem:[#allocation11 + $0x120] sm:$0xff]
    %v2461 = vld [vmem:[#allocation11 + $0x128] sm:$0xff]
    %v2462 = vld [vmem:[#allocation11 + $0x130] sm:$0xff]
    %v2463 = vld [vmem:[#allocation11 + $0x138] sm:$0xff]
    %v2464 = vld [vmem:[#allocation11 + $0x140] sm:$0xff]
    %v2465 = vld [vmem:[#allocation11 + $0x148] sm:$0xff]
    %v2466 = vld [vmem:[#allocation11 + $0x150] sm:$0xff]
    %v2467 = vld [vmem:[#allocation11 + $0x158] sm:$0xff]
    %v2468 = vld [vmem:[#allocation11 + $0x160] sm:$0xff]
    %v2469 = vld [vmem:[#allocation11 + $0x168] sm:$0xff]
    %v2470 = vld [vmem:[#allocation11 + $0x170] sm:$0xff]
    %v2471 = vld [vmem:[#allocation11 + $0x178] sm:$0xff]
    %v2472 = vld [vmem:[#allocation11 + $0x180] sm:$0xff]
    %v2473 = vld [vmem:[#allocation11 + $0x188] sm:$0xff]
    %v2474 = vld [vmem:[#allocation11 + $0x190] sm:$0xff]
    %v2475 = vld [vmem:[#allocation11 + $0x198] sm:$0xff]
    %v2476 = vld [vmem:[#allocation11 + $0x1a0] sm:$0xff]
    %v2477 = vld [vmem:[#allocation11 + $0x1a8] sm:$0xff]
    %v2478 = vld [vmem:[#allocation11 + $0x1b0] sm:$0xff]
    %v2479 = vld [vmem:[#allocation11 + $0x1b8] sm:$0xff]
    %v2480 = vld [vmem:[#allocation11 + $0x1c0] sm:$0xff]
    %v2481 = vld [vmem:[#allocation11 + $0x1c8] sm:$0xff]
    %v2482 = vld [vmem:[#allocation11 + $0x1d0] sm:$0xff]
    %v2483 = vld [vmem:[#allocation11 + $0x1d8] sm:$0xff]
    %v2484 = vld [vmem:[#allocation11 + $0x1e0] sm:$0xff]
    %v2485 = vld [vmem:[#allocation11 + $0x1e8] sm:$0xff]
    %v2486 = vld [vmem:[#allocation11 + $0x1f0] sm:$0xff]
    %v2487 = vld [vmem:[#allocation11 + $0x1f8] sm:$0xff]
    %v2552 = vunpack.c.l.b16 %v2424
    %v2553 = vunpack.c.h.b16 %v2424
    %v2554 = vunpack.c.l.b16 %v2425
    %v2555 = vunpack.c.h.b16 %v2425
    %v2556 = vunpack.c.l.b16 %v2426
    %v2557 = vunpack.c.h.b16 %v2426
    %v2558 = vunpack.c.l.b16 %v2427
    %v2559 = vunpack.c.h.b16 %v2427
    %v2560 = vunpack.c.l.b16 %v2428
    %v2561 = vunpack.c.h.b16 %v2428
    %v2562 = vunpack.c.l.b16 %v2429
    %v2563 = vunpack.c.h.b16 %v2429
    %v2564 = vunpack.c.l.b16 %v2430
    %v2565 = vunpack.c.h.b16 %v2430
    %v2566 = vunpack.c.l.b16 %v2431
    %v2567 = vunpack.c.h.b16 %v2431
    %v2568 = vunpack.c.l.b16 %v2432
    %v2569 = vunpack.c.h.b16 %v2432
    %v2570 = vunpack.c.l.b16 %v2433
    %v2571 = vunpack.c.h.b16 %v2433
    %v2572 = vunpack.c.l.b16 %v2434
    %v2573 = vunpack.c.h.b16 %v2434
    %v2574 = vunpack.c.l.b16 %v2435
    %v2575 = vunpack.c.h.b16 %v2435
    %v2576 = vunpack.c.l.b16 %v2436
    %v2577 = vunpack.c.h.b16 %v2436
    %v2578 = vunpack.c.l.b16 %v2437
    %v2579 = vunpack.c.h.b16 %v2437
    %v2580 = vunpack.c.l.b16 %v2438
    %v2581 = vunpack.c.h.b16 %v2438
    %v2582 = vunpack.c.l.b16 %v2439
    %v2583 = vunpack.c.h.b16 %v2439
    %v2584 = vunpack.c.l.b16 %v2440
    %v2585 = vunpack.c.h.b16 %v2440
    %v2586 = vunpack.c.l.b16 %v2441
    %v2587 = vunpack.c.h.b16 %v2441
    %v2588 = vunpack.c.l.b16 %v2442
    %v2589 = vunpack.c.h.b16 %v2442
    %v2590 = vunpack.c.l.b16 %v2443
    %v2591 = vunpack.c.h.b16 %v2443
    %v2592 = vunpack.c.l.b16 %v2444
    %v2593 = vunpack.c.h.b16 %v2444
    %v2594 = vunpack.c.l.b16 %v2445
    %v2595 = vunpack.c.h.b16 %v2445
    %v2596 = vunpack.c.l.b16 %v2446
    %v2597 = vunpack.c.h.b16 %v2446
    %v2598 = vunpack.c.l.b16 %v2447
    %v2599 = vunpack.c.h.b16 %v2447
    %v2600 = vunpack.c.l.b16 %v2448
    %v2601 = vunpack.c.h.b16 %v2448
    %v2602 = vunpack.c.l.b16 %v2449
    %v2603 = vunpack.c.h.b16 %v2449
    %v2604 = vunpack.c.l.b16 %v2450
    %v2605 = vunpack.c.h.b16 %v2450
    %v2606 = vunpack.c.l.b16 %v2451
    %v2607 = vunpack.c.h.b16 %v2451
    %v2608 = vunpack.c.l.b16 %v2452
    %v2609 = vunpack.c.h.b16 %v2452
    %v2610 = vunpack.c.l.b16 %v2453
    %v2611 = vunpack.c.h.b16 %v2453
    %v2612 = vunpack.c.l.b16 %v2454
    %v2613 = vunpack.c.h.b16 %v2454
    %v2614 = vunpack.c.l.b16 %v2455
    %v2615 = vunpack.c.h.b16 %v2455
    %v2616 = vunpack.c.l.b16 %v2456
    %v2617 = vunpack.c.h.b16 %v2456
    %v2618 = vunpack.c.l.b16 %v2457
    %v2619 = vunpack.c.h.b16 %v2457
    %v2620 = vunpack.c.l.b16 %v2458
    %v2621 = vunpack.c.h.b16 %v2458
    %v2622 = vunpack.c.l.b16 %v2459
    %v2623 = vunpack.c.h.b16 %v2459
    %v2624 = vunpack.c.l.b16 %v2460
    %v2625 = vunpack.c.h.b16 %v2460
    %v2626 = vunpack.c.l.b16 %v2461
    %v2627 = vunpack.c.h.b16 %v2461
    %v2628 = vunpack.c.l.b16 %v2462
    %v2629 = vunpack.c.h.b16 %v2462
    %v2630 = vunpack.c.l.b16 %v2463
    %v2631 = vunpack.c.h.b16 %v2463
    %v2632 = vunpack.c.l.b16 %v2464
    %v2633 = vunpack.c.h.b16 %v2464
    %v2634 = vunpack.c.l.b16 %v2465
    %v2635 = vunpack.c.h.b16 %v2465
    %v2636 = vunpack.c.l.b16 %v2466
    %v2637 = vunpack.c.h.b16 %v2466
    %v2638 = vunpack.c.l.b16 %v2467
    %v2639 = vunpack.c.h.b16 %v2467
    %v2640 = vunpack.c.l.b16 %v2468
    %v2641 = vunpack.c.h.b16 %v2468
    %v2642 = vunpack.c.l.b16 %v2469
    %v2643 = vunpack.c.h.b16 %v2469
    %v2644 = vunpack.c.l.b16 %v2470
    %v2645 = vunpack.c.h.b16 %v2470
    %v2646 = vunpack.c.l.b16 %v2471
    %v2647 = vunpack.c.h.b16 %v2471
    %v2648 = vunpack.c.l.b16 %v2472
    %v2649 = vunpack.c.h.b16 %v2472
    %v2650 = vunpack.c.l.b16 %v2473
    %v2651 = vunpack.c.h.b16 %v2473
    %v2652 = vunpack.c.l.b16 %v2474
    %v2653 = vunpack.c.h.b16 %v2474
    %v2654 = vunpack.c.l.b16 %v2475
    %v2655 = vunpack.c.h.b16 %v2475
    %v2656 = vunpack.c.l.b16 %v2476
    %v2657 = vunpack.c.h.b16 %v2476
    %v2658 = vunpack.c.l.b16 %v2477
    %v2659 = vunpack.c.h.b16 %v2477
    %v2660 = vunpack.c.l.b16 %v2478
    %v2661 = vunpack.c.h.b16 %v2478
    %v2662 = vunpack.c.l.b16 %v2479
    %v2663 = vunpack.c.h.b16 %v2479
    %v2664 = vunpack.c.l.b16 %v2480
    %v2665 = vunpack.c.h.b16 %v2480
    %v2666 = vunpack.c.l.b16 %v2481
    %v2667 = vunpack.c.h.b16 %v2481
    %v2668 = vunpack.c.l.b16 %v2482
    %v2669 = vunpack.c.h.b16 %v2482
    %v2670 = vunpack.c.l.b16 %v2483
    %v2671 = vunpack.c.h.b16 %v2483
    %v2672 = vunpack.c.l.b16 %v2484
    %v2673 = vunpack.c.h.b16 %v2484
    %v2674 = vunpack.c.l.b16 %v2485
    %v2675 = vunpack.c.h.b16 %v2485
    %v2676 = vunpack.c.l.b16 %v2486
    %v2677 = vunpack.c.h.b16 %v2486
    %v2678 = vunpack.c.l.b16 %v2487
    %v2679 = vunpack.c.h.b16 %v2487
    %v2680 = vpack.c.b16 %v2556, %v2552
    %v2681 = vpack.c.b16 %v2557, %v2553
    %v2682 = vpack.c.b16 %v2558, %v2554
    %v2683 = vpack.c.b16 %v2559, %v2555
    %v2684 = vpack.c.b16 %v2564, %v2560
    %v2685 = vpack.c.b16 %v2565, %v2561
    %v2686 = vpack.c.b16 %v2566, %v2562
    %v2687 = vpack.c.b16 %v2567, %v2563
    %v2688 = vpack.c.b16 %v2572, %v2568
    %v2689 = vpack.c.b16 %v2573, %v2569
    %v2690 = vpack.c.b16 %v2574, %v2570
    %v2691 = vpack.c.b16 %v2575, %v2571
    %v2692 = vpack.c.b16 %v2580, %v2576
    %v2693 = vpack.c.b16 %v2581, %v2577
    %v2694 = vpack.c.b16 %v2582, %v2578
    %v2695 = vpack.c.b16 %v2583, %v2579
    %v2696 = vpack.c.b16 %v2588, %v2584
    %v2697 = vpack.c.b16 %v2589, %v2585
    %v2698 = vpack.c.b16 %v2590, %v2586
    %v2699 = vpack.c.b16 %v2591, %v2587
    %v2700 = vpack.c.b16 %v2596, %v2592
    %v2701 = vpack.c.b16 %v2597, %v2593
    %v2702 = vpack.c.b16 %v2598, %v2594
    %v2703 = vpack.c.b16 %v2599, %v2595
    %v2704 = vpack.c.b16 %v2604, %v2600
    %v2705 = vpack.c.b16 %v2605, %v2601
    %v2706 = vpack.c.b16 %v2606, %v2602
    %v2707 = vpack.c.b16 %v2607, %v2603
    %v2708 = vpack.c.b16 %v2612, %v2608
    %v2709 = vpack.c.b16 %v2613, %v2609
    %v2710 = vpack.c.b16 %v2614, %v2610
    %v2711 = vpack.c.b16 %v2615, %v2611
    %v2712 = vpack.c.b16 %v2620, %v2616
    %v2713 = vpack.c.b16 %v2621, %v2617
    %v2714 = vpack.c.b16 %v2622, %v2618
    %v2715 = vpack.c.b16 %v2623, %v2619
    %v2716 = vpack.c.b16 %v2628, %v2624
    %v2717 = vpack.c.b16 %v2629, %v2625
    %v2718 = vpack.c.b16 %v2630, %v2626
    %v2719 = vpack.c.b16 %v2631, %v2627
    %v2720 = vpack.c.b16 %v2636, %v2632
    %v2721 = vpack.c.b16 %v2637, %v2633
    %v2722 = vpack.c.b16 %v2638, %v2634
    %v2723 = vpack.c.b16 %v2639, %v2635
    %v2724 = vpack.c.b16 %v2644, %v2640
    %v2725 = vpack.c.b16 %v2645, %v2641
    %v2726 = vpack.c.b16 %v2646, %v2642
    %v2727 = vpack.c.b16 %v2647, %v2643
    %v2728 = vpack.c.b16 %v2652, %v2648
    %v2729 = vpack.c.b16 %v2653, %v2649
    %v2730 = vpack.c.b16 %v2654, %v2650
    %v2731 = vpack.c.b16 %v2655, %v2651
    %v2732 = vpack.c.b16 %v2660, %v2656
    %v2733 = vpack.c.b16 %v2661, %v2657
    %v2734 = vpack.c.b16 %v2662, %v2658
    %v2735 = vpack.c.b16 %v2663, %v2659
    %v2736 = vpack.c.b16 %v2668, %v2664
    %v2737 = vpack.c.b16 %v2669, %v2665
    %v2738 = vpack.c.b16 %v2670, %v2666
    %v2739 = vpack.c.b16 %v2671, %v2667
    %v2740 = vpack.c.b16 %v2676, %v2672
    %v2741 = vpack.c.b16 %v2677, %v2673
    %v2742 = vpack.c.b16 %v2678, %v2674
    %v2743 = vpack.c.b16 %v2679, %v2675
    %2808 = vmatprep.subr.bf16.mxu0 %v2709
    %2809 = vmatpush1.bf16.msra.mxu0 %v2708
    %2810 = vmatprep.subr.bf16.mxu0 %v2705
    %2811 = vmatpush1.bf16.msra.mxu0 %v2704
    %2812 = vmatprep.subr.bf16.mxu0 %v2701
    %2813 = vmatpush1.bf16.msra.mxu0 %v2700
    %2814 = vmatprep.subr.bf16.mxu0 %v2697
    %2815 = vmatpush1.bf16.msra.mxu0 %v2696
    %2816 = vmatprep.subr.bf16.mxu0 %v2693
    %2817 = vmatpush1.bf16.msra.mxu0 %v2692
    %2818 = vmatprep.subr.bf16.mxu0 %v2689
    %2819 = vmatpush1.bf16.msra.mxu0 %v2688
    %2820 = vmatprep.subr.bf16.mxu0 %v2685
    %2821 = vmatpush1.bf16.msra.mxu0 %v2684
    %2822 = vmatprep.subr.bf16.mxu0 %v2681
    %2823 = vmatpush1.bf16.msra.mxu0 %v2680
    %2824 = vmatprep.subr.bf16.mxu0 %v2741
    %2825 = vmatpush2.bf16.msra.mxu0 %v2740
    %2826 = vmatprep.subr.bf16.mxu0 %v2737
    %2827 = vmatpush2.bf16.msra.mxu0 %v2736
    %2828 = vmatprep.subr.bf16.mxu0 %v2733
    %2829 = vmatpush2.bf16.msra.mxu0 %v2732
    %2830 = vmatprep.subr.bf16.mxu0 %v2729
    %2831 = vmatpush2.bf16.msra.mxu0 %v2728
    %2832 = vmatprep.subr.bf16.mxu0 %v2725
    %2833 = vmatpush2.bf16.msra.mxu0 %v2724
    %2834 = vmatprep.subr.bf16.mxu0 %v2721
    %2835 = vmatpush2.bf16.msra.mxu0 %v2720
    %2836 = vmatprep.subr.bf16.mxu0 %v2717
    %2837 = vmatpush2.bf16.msra.mxu0 %v2716
    %2838 = vmatprep.subr.bf16.mxu0 %v2713
    %2839 = vmatpush2.bf16.msra.mxu0 %v2712
    %2840 = vmatprep.mubr.bf16.mxu0 %v2423
    %2841 = vmatmul.mubr.bf16.gmra.mxu0 %v2422
    %v2842 = vpop.f32.mrf.mxu0
    %v2843 = vadd.f32 0.0, %v2842
    %v2844 = vpop.f32.mrf.mxu0
    %v2845 = vadd.f32 0.0, %v2844
    %v2846 = vpop.f32.mrf.mxu0
    %v2847 = vadd.f32 0.0, %v2846
    %v2848 = vpop.f32.mrf.mxu0
    %v2849 = vadd.f32 0.0, %v2848
    %2850 = vdwg.mxu0
    %2851 = vmatprep.subr.bf16.mxu0 %v2711
    %2852 = vmatpush1.bf16.msra.mxu0 %v2710
    %2853 = vmatprep.subr.bf16.mxu0 %v2707
    %2854 = vmatpush1.bf16.msra.mxu0 %v2706
    %2855 = vmatprep.subr.bf16.mxu0 %v2703
    %2856 = vmatpush1.bf16.msra.mxu0 %v2702
    %2857 = vmatprep.subr.bf16.mxu0 %v2699
    %2858 = vmatpush1.bf16.msra.mxu0 %v2698
    %2859 = vmatprep.subr.bf16.mxu0 %v2695
    %2860 = vmatpush1.bf16.msra.mxu0 %v2694
    %2861 = vmatprep.subr.bf16.mxu0 %v2691
    %2862 = vmatpush1.bf16.msra.mxu0 %v2690
    %2863 = vmatprep.subr.bf16.mxu0 %v2687
    %2864 = vmatpush1.bf16.msra.mxu0 %v2686
    %2865 = vmatprep.subr.bf16.mxu0 %v2683
    %2866 = vmatpush1.bf16.msra.mxu0 %v2682
    %2867 = vmatprep.subr.bf16.mxu0 %v2743
    %2868 = vmatpush2.bf16.msra.mxu0 %v2742
    %2869 = vmatprep.subr.bf16.mxu0 %v2739
    %2870 = vmatpush2.bf16.msra.mxu0 %v2738
    %2871 = vmatprep.subr.bf16.mxu0 %v2735
    %2872 = vmatpush2.bf16.msra.mxu0 %v2734
    %2873 = vmatprep.subr.bf16.mxu0 %v2731
    %2874 = vmatpush2.bf16.msra.mxu0 %v2730
    %2875 = vmatprep.subr.bf16.mxu0 %v2727
    %2876 = vmatpush2.bf16.msra.mxu0 %v2726
    %2877 = vmatprep.subr.bf16.mxu0 %v2723
    %2878 = vmatpush2.bf16.msra.mxu0 %v2722
    %2879 = vmatprep.subr.bf16.mxu0 %v2719
    %2880 = vmatpush2.bf16.msra.mxu0 %v2718
    %2881 = vmatprep.subr.bf16.mxu0 %v2715
    %2882 = vmatpush2.bf16.msra.mxu0 %v2714
    %2883 = vmatprep.mubr.bf16.mxu0 %v2423
    %2884 = vmatmul.mubr.bf16.gmra.mxu0 %v2422
    %v2885 = vpop.f32.mrf.mxu0
    %v2886 = vadd.f32 0.0, %v2885
    %v2887 = vpop.f32.mrf.mxu0
    %v2888 = vadd.f32 0.0, %v2887
    %v2889 = vpop.f32.mrf.mxu0
    %v2890 = vadd.f32 0.0, %v2889
    %v2891 = vpop.f32.mrf.mxu0
    %v2892 = vadd.f32 0.0, %v2891
    %2893 = vdwg.mxu0
    %v2894 = vmax.f32 %v2843, 0.0
    %v2895 = vmax.f32 %v2845, 0.0
    %v2896 = vmax.f32 %v2886, 0.0
    %v2897 = vmax.f32 %v2888, 0.0
    %v2898 = vmax.f32 %v2847, 0.0
    %v2899 = vmax.f32 %v2849, 0.0
    %v2900 = vmax.f32 %v2890, 0.0
    %v2901 = vmax.f32 %v2892, 0.0
    %v2902 = vpack.c.bf16 %v2898, %v2894
    %v2903 = vpack.c.bf16 %v2899, %v2895
    %v2904 = vpack.c.bf16 %v2900, %v2896
    %v2905 = vpack.c.bf16 %v2901, %v2897
    %v2906 = vld [vmem:[#allocation13] sm:$0xff]
    %v2907 = vld [vmem:[#allocation13 + $0x8] sm:$0xff]
    %v2908 = vld [vmem:[#allocation13 + $0x10] sm:$0xff]
    %v2909 = vld [vmem:[#allocation13 + $0x18] sm:$0xff]
    %v2910 = vld [vmem:[#allocation13 + $0x20] sm:$0xff]
    %v2911 = vld [vmem:[#allocation13 + $0x28] sm:$0xff]
    %v2912 = vld [vmem:[#allocation13 + $0x30] sm:$0xff]
    %v2913 = vld [vmem:[#allocation13 + $0x38] sm:$0xff]
    %v2914 = vld [vmem:[#allocation13 + $0x40] sm:$0xff]
    %v2915 = vld [vmem:[#allocation13 + $0x48] sm:$0xff]
    %v2916 = vld [vmem:[#allocation13 + $0x50] sm:$0xff]
    %v2917 = vld [vmem:[#allocation13 + $0x58] sm:$0xff]
    %v2918 = vld [vmem:[#allocation13 + $0x60] sm:$0xff]
    %v2919 = vld [vmem:[#allocation13 + $0x68] sm:$0xff]
    %v2920 = vld [vmem:[#allocation13 + $0x70] sm:$0xff]
    %v2921 = vld [vmem:[#allocation13 + $0x78] sm:$0xff]
    %v2922 = vld [vmem:[#allocation13 + $0x80] sm:$0xff]
    %v2923 = vld [vmem:[#allocation13 + $0x88] sm:$0xff]
    %v2924 = vld [vmem:[#allocation13 + $0x90] sm:$0xff]
    %v2925 = vld [vmem:[#allocation13 + $0x98] sm:$0xff]
    %v2926 = vld [vmem:[#allocation13 + $0xa0] sm:$0xff]
    %v2927 = vld [vmem:[#allocation13 + $0xa8] sm:$0xff]
    %v2928 = vld [vmem:[#allocation13 + $0xb0] sm:$0xff]
    %v2929 = vld [vmem:[#allocation13 + $0xb8] sm:$0xff]
    %v2930 = vld [vmem:[#allocation13 + $0xc0] sm:$0xff]
    %v2931 = vld [vmem:[#allocation13 + $0xc8] sm:$0xff]
    %v2932 = vld [vmem:[#allocation13 + $0xd0] sm:$0xff]
    %v2933 = vld [vmem:[#allocation13 + $0xd8] sm:$0xff]
    %v2934 = vld [vmem:[#allocation13 + $0xe0] sm:$0xff]
    %v2935 = vld [vmem:[#allocation13 + $0xe8] sm:$0xff]
    %v2936 = vld [vmem:[#allocation13 + $0xf0] sm:$0xff]
    %v2937 = vld [vmem:[#allocation13 + $0xf8] sm:$0xff]
    %v2938 = vld [vmem:[#allocation13 + $0x100] sm:$0xff]
    %v2939 = vld [vmem:[#allocation13 + $0x108] sm:$0xff]
    %v2940 = vld [vmem:[#allocation13 + $0x110] sm:$0xff]
    %v2941 = vld [vmem:[#allocation13 + $0x118] sm:$0xff]
    %v2942 = vld [vmem:[#allocation13 + $0x120] sm:$0xff]
    %v2943 = vld [vmem:[#allocation13 + $0x128] sm:$0xff]
    %v2944 = vld [vmem:[#allocation13 + $0x130] sm:$0xff]
    %v2945 = vld [vmem:[#allocation13 + $0x138] sm:$0xff]
    %v2946 = vld [vmem:[#allocation13 + $0x140] sm:$0xff]
    %v2947 = vld [vmem:[#allocation13 + $0x148] sm:$0xff]
    %v2948 = vld [vmem:[#allocation13 + $0x150] sm:$0xff]
    %v2949 = vld [vmem:[#allocation13 + $0x158] sm:$0xff]
    %v2950 = vld [vmem:[#allocation13 + $0x160] sm:$0xff]
    %v2951 = vld [vmem:[#allocation13 + $0x168] sm:$0xff]
    %v2952 = vld [vmem:[#allocation13 + $0x170] sm:$0xff]
    %v2953 = vld [vmem:[#allocation13 + $0x178] sm:$0xff]
    %v2954 = vld [vmem:[#allocation13 + $0x180] sm:$0xff]
    %v2955 = vld [vmem:[#allocation13 + $0x188] sm:$0xff]
    %v2956 = vld [vmem:[#allocation13 + $0x190] sm:$0xff]
    %v2957 = vld [vmem:[#allocation13 + $0x198] sm:$0xff]
    %v2958 = vld [vmem:[#allocation13 + $0x1a0] sm:$0xff]
    %v2959 = vld [vmem:[#allocation13 + $0x1a8] sm:$0xff]
    %v2960 = vld [vmem:[#allocation13 + $0x1b0] sm:$0xff]
    %v2961 = vld [vmem:[#allocation13 + $0x1b8] sm:$0xff]
    %v2962 = vld [vmem:[#allocation13 + $0x1c0] sm:$0xff]
    %v2963 = vld [vmem:[#allocation13 + $0x1c8] sm:$0xff]
    %v2964 = vld [vmem:[#allocation13 + $0x1d0] sm:$0xff]
    %v2965 = vld [vmem:[#allocation13 + $0x1d8] sm:$0xff]
    %v2966 = vld [vmem:[#allocation13 + $0x1e0] sm:$0xff]
    %v2967 = vld [vmem:[#allocation13 + $0x1e8] sm:$0xff]
    %v2968 = vld [vmem:[#allocation13 + $0x1f0] sm:$0xff]
    %v2969 = vld [vmem:[#allocation13 + $0x1f8] sm:$0xff]
    %v2970 = vld [vmem:[#allocation13 + $0x200] sm:$0xff]
    %v2971 = vld [vmem:[#allocation13 + $0x208] sm:$0xff]
    %v2972 = vld [vmem:[#allocation13 + $0x210] sm:$0xff]
    %v2973 = vld [vmem:[#allocation13 + $0x218] sm:$0xff]
    %v2974 = vld [vmem:[#allocation13 + $0x220] sm:$0xff]
    %v2975 = vld [vmem:[#allocation13 + $0x228] sm:$0xff]
    %v2976 = vld [vmem:[#allocation13 + $0x230] sm:$0xff]
    %v2977 = vld [vmem:[#allocation13 + $0x238] sm:$0xff]
    %v2978 = vld [vmem:[#allocation13 + $0x240] sm:$0xff]
    %v2979 = vld [vmem:[#allocation13 + $0x248] sm:$0xff]
    %v2980 = vld [vmem:[#allocation13 + $0x250] sm:$0xff]
    %v2981 = vld [vmem:[#allocation13 + $0x258] sm:$0xff]
    %v2982 = vld [vmem:[#allocation13 + $0x260] sm:$0xff]
    %v2983 = vld [vmem:[#allocation13 + $0x268] sm:$0xff]
    %v2984 = vld [vmem:[#allocation13 + $0x270] sm:$0xff]
    %v2985 = vld [vmem:[#allocation13 + $0x278] sm:$0xff]
    %v2986 = vld [vmem:[#allocation13 + $0x280] sm:$0xff]
    %v2987 = vld [vmem:[#allocation13 + $0x288] sm:$0xff]
    %v2988 = vld [vmem:[#allocation13 + $0x290] sm:$0xff]
    %v2989 = vld [vmem:[#allocation13 + $0x298] sm:$0xff]
    %v2990 = vld [vmem:[#allocation13 + $0x2a0] sm:$0xff]
    %v2991 = vld [vmem:[#allocation13 + $0x2a8] sm:$0xff]
    %v2992 = vld [vmem:[#allocation13 + $0x2b0] sm:$0xff]
    %v2993 = vld [vmem:[#allocation13 + $0x2b8] sm:$0xff]
    %v2994 = vld [vmem:[#allocation13 + $0x2c0] sm:$0xff]
    %v2995 = vld [vmem:[#allocation13 + $0x2c8] sm:$0xff]
    %v2996 = vld [vmem:[#allocation13 + $0x2d0] sm:$0xff]
    %v2997 = vld [vmem:[#allocation13 + $0x2d8] sm:$0xff]
    %v2998 = vld [vmem:[#allocation13 + $0x2e0] sm:$0xff]
    %v2999 = vld [vmem:[#allocation13 + $0x2e8] sm:$0xff]
    %v3000 = vld [vmem:[#allocation13 + $0x2f0] sm:$0xff]
    %v3001 = vld [vmem:[#allocation13 + $0x2f8] sm:$0xff]
    %v3002 = vld [vmem:[#allocation13 + $0x300] sm:$0xff]
    %v3003 = vld [vmem:[#allocation13 + $0x308] sm:$0xff]
    %v3004 = vld [vmem:[#allocation13 + $0x310] sm:$0xff]
    %v3005 = vld [vmem:[#allocation13 + $0x318] sm:$0xff]
    %v3006 = vld [vmem:[#allocation13 + $0x320] sm:$0xff]
    %v3007 = vld [vmem:[#allocation13 + $0x328] sm:$0xff]
    %v3008 = vld [vmem:[#allocation13 + $0x330] sm:$0xff]
    %v3009 = vld [vmem:[#allocation13 + $0x338] sm:$0xff]
    %v3010 = vld [vmem:[#allocation13 + $0x340] sm:$0xff]
    %v3011 = vld [vmem:[#allocation13 + $0x348] sm:$0xff]
    %v3012 = vld [vmem:[#allocation13 + $0x350] sm:$0xff]
    %v3013 = vld [vmem:[#allocation13 + $0x358] sm:$0xff]
    %v3014 = vld [vmem:[#allocation13 + $0x360] sm:$0xff]
    %v3015 = vld [vmem:[#allocation13 + $0x368] sm:$0xff]
    %v3016 = vld [vmem:[#allocation13 + $0x370] sm:$0xff]
    %v3017 = vld [vmem:[#allocation13 + $0x378] sm:$0xff]
    %v3018 = vld [vmem:[#allocation13 + $0x380] sm:$0xff]
    %v3019 = vld [vmem:[#allocation13 + $0x388] sm:$0xff]
    %v3020 = vld [vmem:[#allocation13 + $0x390] sm:$0xff]
    %v3021 = vld [vmem:[#allocation13 + $0x398] sm:$0xff]
    %v3022 = vld [vmem:[#allocation13 + $0x3a0] sm:$0xff]
    %v3023 = vld [vmem:[#allocation13 + $0x3a8] sm:$0xff]
    %v3024 = vld [vmem:[#allocation13 + $0x3b0] sm:$0xff]
    %v3025 = vld [vmem:[#allocation13 + $0x3b8] sm:$0xff]
    %v3026 = vld [vmem:[#allocation13 + $0x3c0] sm:$0xff]
    %v3027 = vld [vmem:[#allocation13 + $0x3c8] sm:$0xff]
    %v3028 = vld [vmem:[#allocation13 + $0x3d0] sm:$0xff]
    %v3029 = vld [vmem:[#allocation13 + $0x3d8] sm:$0xff]
    %v3030 = vld [vmem:[#allocation13 + $0x3e0] sm:$0xff]
    %v3031 = vld [vmem:[#allocation13 + $0x3e8] sm:$0xff]
    %v3032 = vld [vmem:[#allocation13 + $0x3f0] sm:$0xff]
    %v3033 = vld [vmem:[#allocation13 + $0x3f8] sm:$0xff]
    %v3034 = vld [vmem:[#allocation13 + $0x400] sm:$0xff]
    %v3035 = vld [vmem:[#allocation13 + $0x408] sm:$0xff]
    %v3036 = vld [vmem:[#allocation13 + $0x410] sm:$0xff]
    %v3037 = vld [vmem:[#allocation13 + $0x418] sm:$0xff]
    %v3038 = vld [vmem:[#allocation13 + $0x420] sm:$0xff]
    %v3039 = vld [vmem:[#allocation13 + $0x428] sm:$0xff]
    %v3040 = vld [vmem:[#allocation13 + $0x430] sm:$0xff]
    %v3041 = vld [vmem:[#allocation13 + $0x438] sm:$0xff]
    %v3042 = vld [vmem:[#allocation13 + $0x440] sm:$0xff]
    %v3043 = vld [vmem:[#allocation13 + $0x448] sm:$0xff]
    %v3044 = vld [vmem:[#allocation13 + $0x450] sm:$0xff]
    %v3045 = vld [vmem:[#allocation13 + $0x458] sm:$0xff]
    %v3046 = vld [vmem:[#allocation13 + $0x460] sm:$0xff]
    %v3047 = vld [vmem:[#allocation13 + $0x468] sm:$0xff]
    %v3048 = vld [vmem:[#allocation13 + $0x470] sm:$0xff]
    %v3049 = vld [vmem:[#allocation13 + $0x478] sm:$0xff]
    %v3050 = vld [vmem:[#allocation13 + $0x480] sm:$0xff]
    %v3051 = vld [vmem:[#allocation13 + $0x488] sm:$0xff]
    %v3052 = vld [vmem:[#allocation13 + $0x490] sm:$0xff]
    %v3053 = vld [vmem:[#allocation13 + $0x498] sm:$0xff]
    %v3054 = vld [vmem:[#allocation13 + $0x4a0] sm:$0xff]
    %v3055 = vld [vmem:[#allocation13 + $0x4a8] sm:$0xff]
    %v3056 = vld [vmem:[#allocation13 + $0x4b0] sm:$0xff]
    %v3057 = vld [vmem:[#allocation13 + $0x4b8] sm:$0xff]
    %v3058 = vld [vmem:[#allocation13 + $0x4c0] sm:$0xff]
    %v3059 = vld [vmem:[#allocation13 + $0x4c8] sm:$0xff]
    %v3060 = vld [vmem:[#allocation13 + $0x4d0] sm:$0xff]
    %v3061 = vld [vmem:[#allocation13 + $0x4d8] sm:$0xff]
    %v3062 = vld [vmem:[#allocation13 + $0x4e0] sm:$0xff]
    %v3063 = vld [vmem:[#allocation13 + $0x4e8] sm:$0xff]
    %v3064 = vld [vmem:[#allocation13 + $0x4f0] sm:$0xff]
    %v3065 = vld [vmem:[#allocation13 + $0x4f8] sm:$0xff]
    %v3066 = vld [vmem:[#allocation13 + $0x500] sm:$0xff]
    %v3067 = vld [vmem:[#allocation13 + $0x508] sm:$0xff]
    %v3068 = vld [vmem:[#allocation13 + $0x510] sm:$0xff]
    %v3069 = vld [vmem:[#allocation13 + $0x518] sm:$0xff]
    %v3070 = vld [vmem:[#allocation13 + $0x520] sm:$0xff]
    %v3071 = vld [vmem:[#allocation13 + $0x528] sm:$0xff]
    %v3072 = vld [vmem:[#allocation13 + $0x530] sm:$0xff]
    %v3073 = vld [vmem:[#allocation13 + $0x538] sm:$0xff]
    %v3074 = vld [vmem:[#allocation13 + $0x540] sm:$0xff]
    %v3075 = vld [vmem:[#allocation13 + $0x548] sm:$0xff]
    %v3076 = vld [vmem:[#allocation13 + $0x550] sm:$0xff]
    %v3077 = vld [vmem:[#allocation13 + $0x558] sm:$0xff]
    %v3078 = vld [vmem:[#allocation13 + $0x560] sm:$0xff]
    %v3079 = vld [vmem:[#allocation13 + $0x568] sm:$0xff]
    %v3080 = vld [vmem:[#allocation13 + $0x570] sm:$0xff]
    %v3081 = vld [vmem:[#allocation13 + $0x578] sm:$0xff]
    %v3082 = vld [vmem:[#allocation13 + $0x580] sm:$0xff]
    %v3083 = vld [vmem:[#allocation13 + $0x588] sm:$0xff]
    %v3084 = vld [vmem:[#allocation13 + $0x590] sm:$0xff]
    %v3085 = vld [vmem:[#allocation13 + $0x598] sm:$0xff]
    %v3086 = vld [vmem:[#allocation13 + $0x5a0] sm:$0xff]
    %v3087 = vld [vmem:[#allocation13 + $0x5a8] sm:$0xff]
    %v3088 = vld [vmem:[#allocation13 + $0x5b0] sm:$0xff]
    %v3089 = vld [vmem:[#allocation13 + $0x5b8] sm:$0xff]
    %v3090 = vld [vmem:[#allocation13 + $0x5c0] sm:$0xff]
    %v3091 = vld [vmem:[#allocation13 + $0x5c8] sm:$0xff]
    %v3092 = vld [vmem:[#allocation13 + $0x5d0] sm:$0xff]
    %v3093 = vld [vmem:[#allocation13 + $0x5d8] sm:$0xff]
    %v3094 = vld [vmem:[#allocation13 + $0x5e0] sm:$0xff]
    %v3095 = vld [vmem:[#allocation13 + $0x5e8] sm:$0xff]
    %v3096 = vld [vmem:[#allocation13 + $0x5f0] sm:$0xff]
    %v3097 = vld [vmem:[#allocation13 + $0x5f8] sm:$0xff]
    %v3290 = vunpack.c.l.b16 %v2906
    %v3291 = vunpack.c.h.b16 %v2906
    %v3292 = vunpack.c.l.b16 %v2907
    %v3293 = vunpack.c.h.b16 %v2907
    %v3294 = vunpack.c.l.b16 %v2908
    %v3295 = vunpack.c.h.b16 %v2908
    %v3296 = vunpack.c.l.b16 %v2909
    %v3297 = vunpack.c.h.b16 %v2909
    %v3298 = vunpack.c.l.b16 %v2910
    %v3299 = vunpack.c.h.b16 %v2910
    %v3300 = vunpack.c.l.b16 %v2911
    %v3301 = vunpack.c.h.b16 %v2911
    %v3302 = vunpack.c.l.b16 %v2912
    %v3303 = vunpack.c.h.b16 %v2912
    %v3304 = vunpack.c.l.b16 %v2913
    %v3305 = vunpack.c.h.b16 %v2913
    %v3306 = vunpack.c.l.b16 %v2914
    %v3307 = vunpack.c.h.b16 %v2914
    %v3308 = vunpack.c.l.b16 %v2915
    %v3309 = vunpack.c.h.b16 %v2915
    %v3310 = vunpack.c.l.b16 %v2916
    %v3311 = vunpack.c.h.b16 %v2916
    %v3312 = vunpack.c.l.b16 %v2917
    %v3313 = vunpack.c.h.b16 %v2917
    %v3314 = vunpack.c.l.b16 %v2918
    %v3315 = vunpack.c.h.b16 %v2918
    %v3316 = vunpack.c.l.b16 %v2919
    %v3317 = vunpack.c.h.b16 %v2919
    %v3318 = vunpack.c.l.b16 %v2920
    %v3319 = vunpack.c.h.b16 %v2920
    %v3320 = vunpack.c.l.b16 %v2921
    %v3321 = vunpack.c.h.b16 %v2921
    %v3322 = vunpack.c.l.b16 %v2922
    %v3323 = vunpack.c.h.b16 %v2922
    %v3324 = vunpack.c.l.b16 %v2923
    %v3325 = vunpack.c.h.b16 %v2923
    %v3326 = vunpack.c.l.b16 %v2924
    %v3327 = vunpack.c.h.b16 %v2924
    %v3328 = vunpack.c.l.b16 %v2925
    %v3329 = vunpack.c.h.b16 %v2925
    %v3330 = vunpack.c.l.b16 %v2926
    %v3331 = vunpack.c.h.b16 %v2926
    %v3332 = vunpack.c.l.b16 %v2927
    %v3333 = vunpack.c.h.b16 %v2927
    %v3334 = vunpack.c.l.b16 %v2928
    %v3335 = vunpack.c.h.b16 %v2928
    %v3336 = vunpack.c.l.b16 %v2929
    %v3337 = vunpack.c.h.b16 %v2929
    %v3338 = vunpack.c.l.b16 %v2930
    %v3339 = vunpack.c.h.b16 %v2930
    %v3340 = vunpack.c.l.b16 %v2931
    %v3341 = vunpack.c.h.b16 %v2931
    %v3342 = vunpack.c.l.b16 %v2932
    %v3343 = vunpack.c.h.b16 %v2932
    %v3344 = vunpack.c.l.b16 %v2933
    %v3345 = vunpack.c.h.b16 %v2933
    %v3346 = vunpack.c.l.b16 %v2934
    %v3347 = vunpack.c.h.b16 %v2934
    %v3348 = vunpack.c.l.b16 %v2935
    %v3349 = vunpack.c.h.b16 %v2935
    %v3350 = vunpack.c.l.b16 %v2936
    %v3351 = vunpack.c.h.b16 %v2936
    %v3352 = vunpack.c.l.b16 %v2937
    %v3353 = vunpack.c.h.b16 %v2937
    %v3354 = vunpack.c.l.b16 %v2938
    %v3355 = vunpack.c.h.b16 %v2938
    %v3356 = vunpack.c.l.b16 %v2939
    %v3357 = vunpack.c.h.b16 %v2939
    %v3358 = vunpack.c.l.b16 %v2940
    %v3359 = vunpack.c.h.b16 %v2940
    %v3360 = vunpack.c.l.b16 %v2941
    %v3361 = vunpack.c.h.b16 %v2941
    %v3362 = vunpack.c.l.b16 %v2942
    %v3363 = vunpack.c.h.b16 %v2942
    %v3364 = vunpack.c.l.b16 %v2943
    %v3365 = vunpack.c.h.b16 %v2943
    %v3366 = vunpack.c.l.b16 %v2944
    %v3367 = vunpack.c.h.b16 %v2944
    %v3368 = vunpack.c.l.b16 %v2945
    %v3369 = vunpack.c.h.b16 %v2945
    %v3370 = vunpack.c.l.b16 %v2946
    %v3371 = vunpack.c.h.b16 %v2946
    %v3372 = vunpack.c.l.b16 %v2947
    %v3373 = vunpack.c.h.b16 %v2947
    %v3374 = vunpack.c.l.b16 %v2948
    %v3375 = vunpack.c.h.b16 %v2948
    %v3376 = vunpack.c.l.b16 %v2949
    %v3377 = vunpack.c.h.b16 %v2949
    %v3378 = vunpack.c.l.b16 %v2950
    %v3379 = vunpack.c.h.b16 %v2950
    %v3380 = vunpack.c.l.b16 %v2951
    %v3381 = vunpack.c.h.b16 %v2951
    %v3382 = vunpack.c.l.b16 %v2952
    %v3383 = vunpack.c.h.b16 %v2952
    %v3384 = vunpack.c.l.b16 %v2953
    %v3385 = vunpack.c.h.b16 %v2953
    %v3386 = vunpack.c.l.b16 %v2954
    %v3387 = vunpack.c.h.b16 %v2954
    %v3388 = vunpack.c.l.b16 %v2955
    %v3389 = vunpack.c.h.b16 %v2955
    %v3390 = vunpack.c.l.b16 %v2956
    %v3391 = vunpack.c.h.b16 %v2956
    %v3392 = vunpack.c.l.b16 %v2957
    %v3393 = vunpack.c.h.b16 %v2957
    %v3394 = vunpack.c.l.b16 %v2958
    %v3395 = vunpack.c.h.b16 %v2958
    %v3396 = vunpack.c.l.b16 %v2959
    %v3397 = vunpack.c.h.b16 %v2959
    %v3398 = vunpack.c.l.b16 %v2960
    %v3399 = vunpack.c.h.b16 %v2960
    %v3400 = vunpack.c.l.b16 %v2961
    %v3401 = vunpack.c.h.b16 %v2961
    %v3402 = vunpack.c.l.b16 %v2962
    %v3403 = vunpack.c.h.b16 %v2962
    %v3404 = vunpack.c.l.b16 %v2963
    %v3405 = vunpack.c.h.b16 %v2963
    %v3406 = vunpack.c.l.b16 %v2964
    %v3407 = vunpack.c.h.b16 %v2964
    %v3408 = vunpack.c.l.b16 %v2965
    %v3409 = vunpack.c.h.b16 %v2965
    %v3410 = vunpack.c.l.b16 %v2966
    %v3411 = vunpack.c.h.b16 %v2966
    %v3412 = vunpack.c.l.b16 %v2967
    %v3413 = vunpack.c.h.b16 %v2967
    %v3414 = vunpack.c.l.b16 %v2968
    %v3415 = vunpack.c.h.b16 %v2968
    %v3416 = vunpack.c.l.b16 %v2969
    %v3417 = vunpack.c.h.b16 %v2969
    %v3418 = vunpack.c.l.b16 %v2970
    %v3419 = vunpack.c.h.b16 %v2970
    %v3420 = vunpack.c.l.b16 %v2971
    %v3421 = vunpack.c.h.b16 %v2971
    %v3422 = vunpack.c.l.b16 %v2972
    %v3423 = vunpack.c.h.b16 %v2972
    %v3424 = vunpack.c.l.b16 %v2973
    %v3425 = vunpack.c.h.b16 %v2973
    %v3426 = vunpack.c.l.b16 %v2974
    %v3427 = vunpack.c.h.b16 %v2974
    %v3428 = vunpack.c.l.b16 %v2975
    %v3429 = vunpack.c.h.b16 %v2975
    %v3430 = vunpack.c.l.b16 %v2976
    %v3431 = vunpack.c.h.b16 %v2976
    %v3432 = vunpack.c.l.b16 %v2977
    %v3433 = vunpack.c.h.b16 %v2977
    %v3434 = vunpack.c.l.b16 %v2978
    %v3435 = vunpack.c.h.b16 %v2978
    %v3436 = vunpack.c.l.b16 %v2979
    %v3437 = vunpack.c.h.b16 %v2979
    %v3438 = vunpack.c.l.b16 %v2980
    %v3439 = vunpack.c.h.b16 %v2980
    %v3440 = vunpack.c.l.b16 %v2981
    %v3441 = vunpack.c.h.b16 %v2981
    %v3442 = vunpack.c.l.b16 %v2982
    %v3443 = vunpack.c.h.b16 %v2982
    %v3444 = vunpack.c.l.b16 %v2983
    %v3445 = vunpack.c.h.b16 %v2983
    %v3446 = vunpack.c.l.b16 %v2984
    %v3447 = vunpack.c.h.b16 %v2984
    %v3448 = vunpack.c.l.b16 %v2985
    %v3449 = vunpack.c.h.b16 %v2985
    %v3450 = vunpack.c.l.b16 %v2986
    %v3451 = vunpack.c.h.b16 %v2986
    %v3452 = vunpack.c.l.b16 %v2987
    %v3453 = vunpack.c.h.b16 %v2987
    %v3454 = vunpack.c.l.b16 %v2988
    %v3455 = vunpack.c.h.b16 %v2988
    %v3456 = vunpack.c.l.b16 %v2989
    %v3457 = vunpack.c.h.b16 %v2989
    %v3458 = vunpack.c.l.b16 %v2990
    %v3459 = vunpack.c.h.b16 %v2990
    %v3460 = vunpack.c.l.b16 %v2991
    %v3461 = vunpack.c.h.b16 %v2991
    %v3462 = vunpack.c.l.b16 %v2992
    %v3463 = vunpack.c.h.b16 %v2992
    %v3464 = vunpack.c.l.b16 %v2993
    %v3465 = vunpack.c.h.b16 %v2993
    %v3466 = vunpack.c.l.b16 %v2994
    %v3467 = vunpack.c.h.b16 %v2994
    %v3468 = vunpack.c.l.b16 %v2995
    %v3469 = vunpack.c.h.b16 %v2995
    %v3470 = vunpack.c.l.b16 %v2996
    %v3471 = vunpack.c.h.b16 %v2996
    %v3472 = vunpack.c.l.b16 %v2997
    %v3473 = vunpack.c.h.b16 %v2997
    %v3474 = vunpack.c.l.b16 %v2998
    %v3475 = vunpack.c.h.b16 %v2998
    %v3476 = vunpack.c.l.b16 %v2999
    %v3477 = vunpack.c.h.b16 %v2999
    %v3478 = vunpack.c.l.b16 %v3000
    %v3479 = vunpack.c.h.b16 %v3000
    %v3480 = vunpack.c.l.b16 %v3001
    %v3481 = vunpack.c.h.b16 %v3001
    %v3482 = vunpack.c.l.b16 %v3002
    %v3483 = vunpack.c.h.b16 %v3002
    %v3484 = vunpack.c.l.b16 %v3003
    %v3485 = vunpack.c.h.b16 %v3003
    %v3486 = vunpack.c.l.b16 %v3004
    %v3487 = vunpack.c.h.b16 %v3004
    %v3488 = vunpack.c.l.b16 %v3005
    %v3489 = vunpack.c.h.b16 %v3005
    %v3490 = vunpack.c.l.b16 %v3006
    %v3491 = vunpack.c.h.b16 %v3006
    %v3492 = vunpack.c.l.b16 %v3007
    %v3493 = vunpack.c.h.b16 %v3007
    %v3494 = vunpack.c.l.b16 %v3008
    %v3495 = vunpack.c.h.b16 %v3008
    %v3496 = vunpack.c.l.b16 %v3009
    %v3497 = vunpack.c.h.b16 %v3009
    %v3498 = vunpack.c.l.b16 %v3010
    %v3499 = vunpack.c.h.b16 %v3010
    %v3500 = vunpack.c.l.b16 %v3011
    %v3501 = vunpack.c.h.b16 %v3011
    %v3502 = vunpack.c.l.b16 %v3012
    %v3503 = vunpack.c.h.b16 %v3012
    %v3504 = vunpack.c.l.b16 %v3013
    %v3505 = vunpack.c.h.b16 %v3013
    %v3506 = vunpack.c.l.b16 %v3014
    %v3507 = vunpack.c.h.b16 %v3014
    %v3508 = vunpack.c.l.b16 %v3015
    %v3509 = vunpack.c.h.b16 %v3015
    %v3510 = vunpack.c.l.b16 %v3016
    %v3511 = vunpack.c.h.b16 %v3016
    %v3512 = vunpack.c.l.b16 %v3017
    %v3513 = vunpack.c.h.b16 %v3017
    %v3514 = vunpack.c.l.b16 %v3018
    %v3515 = vunpack.c.h.b16 %v3018
    %v3516 = vunpack.c.l.b16 %v3019
    %v3517 = vunpack.c.h.b16 %v3019
    %v3518 = vunpack.c.l.b16 %v3020
    %v3519 = vunpack.c.h.b16 %v3020
    %v3520 = vunpack.c.l.b16 %v3021
    %v3521 = vunpack.c.h.b16 %v3021
    %v3522 = vunpack.c.l.b16 %v3022
    %v3523 = vunpack.c.h.b16 %v3022
    %v3524 = vunpack.c.l.b16 %v3023
    %v3525 = vunpack.c.h.b16 %v3023
    %v3526 = vunpack.c.l.b16 %v3024
    %v3527 = vunpack.c.h.b16 %v3024
    %v3528 = vunpack.c.l.b16 %v3025
    %v3529 = vunpack.c.h.b16 %v3025
    %v3530 = vunpack.c.l.b16 %v3026
    %v3531 = vunpack.c.h.b16 %v3026
    %v3532 = vunpack.c.l.b16 %v3027
    %v3533 = vunpack.c.h.b16 %v3027
    %v3534 = vunpack.c.l.b16 %v3028
    %v3535 = vunpack.c.h.b16 %v3028
    %v3536 = vunpack.c.l.b16 %v3029
    %v3537 = vunpack.c.h.b16 %v3029
    %v3538 = vunpack.c.l.b16 %v3030
    %v3539 = vunpack.c.h.b16 %v3030
    %v3540 = vunpack.c.l.b16 %v3031
    %v3541 = vunpack.c.h.b16 %v3031
    %v3542 = vunpack.c.l.b16 %v3032
    %v3543 = vunpack.c.h.b16 %v3032
    %v3544 = vunpack.c.l.b16 %v3033
    %v3545 = vunpack.c.h.b16 %v3033
    %v3546 = vunpack.c.l.b16 %v3034
    %v3547 = vunpack.c.h.b16 %v3034
    %v3548 = vunpack.c.l.b16 %v3035
    %v3549 = vunpack.c.h.b16 %v3035
    %v3550 = vunpack.c.l.b16 %v3036
    %v3551 = vunpack.c.h.b16 %v3036
    %v3552 = vunpack.c.l.b16 %v3037
    %v3553 = vunpack.c.h.b16 %v3037
    %v3554 = vunpack.c.l.b16 %v3038
    %v3555 = vunpack.c.h.b16 %v3038
    %v3556 = vunpack.c.l.b16 %v3039
    %v3557 = vunpack.c.h.b16 %v3039
    %v3558 = vunpack.c.l.b16 %v3040
    %v3559 = vunpack.c.h.b16 %v3040
    %v3560 = vunpack.c.l.b16 %v3041
    %v3561 = vunpack.c.h.b16 %v3041
    %v3562 = vunpack.c.l.b16 %v3042
    %v3563 = vunpack.c.h.b16 %v3042
    %v3564 = vunpack.c.l.b16 %v3043
    %v3565 = vunpack.c.h.b16 %v3043
    %v3566 = vunpack.c.l.b16 %v3044
    %v3567 = vunpack.c.h.b16 %v3044
    %v3568 = vunpack.c.l.b16 %v3045
    %v3569 = vunpack.c.h.b16 %v3045
    %v3570 = vunpack.c.l.b16 %v3046
    %v3571 = vunpack.c.h.b16 %v3046
    %v3572 = vunpack.c.l.b16 %v3047
    %v3573 = vunpack.c.h.b16 %v3047
    %v3574 = vunpack.c.l.b16 %v3048
    %v3575 = vunpack.c.h.b16 %v3048
    %v3576 = vunpack.c.l.b16 %v3049
    %v3577 = vunpack.c.h.b16 %v3049
    %v3578 = vunpack.c.l.b16 %v3050
    %v3579 = vunpack.c.h.b16 %v3050
    %v3580 = vunpack.c.l.b16 %v3051
    %v3581 = vunpack.c.h.b16 %v3051
    %v3582 = vunpack.c.l.b16 %v3052
    %v3583 = vunpack.c.h.b16 %v3052
    %v3584 = vunpack.c.l.b16 %v3053
    %v3585 = vunpack.c.h.b16 %v3053
    %v3586 = vunpack.c.l.b16 %v3054
    %v3587 = vunpack.c.h.b16 %v3054
    %v3588 = vunpack.c.l.b16 %v3055
    %v3589 = vunpack.c.h.b16 %v3055
    %v3590 = vunpack.c.l.b16 %v3056
    %v3591 = vunpack.c.h.b16 %v3056
    %v3592 = vunpack.c.l.b16 %v3057
    %v3593 = vunpack.c.h.b16 %v3057
    %v3594 = vunpack.c.l.b16 %v3058
    %v3595 = vunpack.c.h.b16 %v3058
    %v3596 = vunpack.c.l.b16 %v3059
    %v3597 = vunpack.c.h.b16 %v3059
    %v3598 = vunpack.c.l.b16 %v3060
    %v3599 = vunpack.c.h.b16 %v3060
    %v3600 = vunpack.c.l.b16 %v3061
    %v3601 = vunpack.c.h.b16 %v3061
    %v3602 = vunpack.c.l.b16 %v3062
    %v3603 = vunpack.c.h.b16 %v3062
    %v3604 = vunpack.c.l.b16 %v3063
    %v3605 = vunpack.c.h.b16 %v3063
    %v3606 = vunpack.c.l.b16 %v3064
    %v3607 = vunpack.c.h.b16 %v3064
    %v3608 = vunpack.c.l.b16 %v3065
    %v3609 = vunpack.c.h.b16 %v3065
    %v3610 = vunpack.c.l.b16 %v3066
    %v3611 = vunpack.c.h.b16 %v3066
    %v3612 = vunpack.c.l.b16 %v3067
    %v3613 = vunpack.c.h.b16 %v3067
    %v3614 = vunpack.c.l.b16 %v3068
    %v3615 = vunpack.c.h.b16 %v3068
    %v3616 = vunpack.c.l.b16 %v3069
    %v3617 = vunpack.c.h.b16 %v3069
    %v3618 = vunpack.c.l.b16 %v3070
    %v3619 = vunpack.c.h.b16 %v3070
    %v3620 = vunpack.c.l.b16 %v3071
    %v3621 = vunpack.c.h.b16 %v3071
    %v3622 = vunpack.c.l.b16 %v3072
    %v3623 = vunpack.c.h.b16 %v3072
    %v3624 = vunpack.c.l.b16 %v3073
    %v3625 = vunpack.c.h.b16 %v3073
    %v3626 = vunpack.c.l.b16 %v3074
    %v3627 = vunpack.c.h.b16 %v3074
    %v3628 = vunpack.c.l.b16 %v3075
    %v3629 = vunpack.c.h.b16 %v3075
    %v3630 = vunpack.c.l.b16 %v3076
    %v3631 = vunpack.c.h.b16 %v3076
    %v3632 = vunpack.c.l.b16 %v3077
    %v3633 = vunpack.c.h.b16 %v3077
    %v3634 = vunpack.c.l.b16 %v3078
    %v3635 = vunpack.c.h.b16 %v3078
    %v3636 = vunpack.c.l.b16 %v3079
    %v3637 = vunpack.c.h.b16 %v3079
    %v3638 = vunpack.c.l.b16 %v3080
    %v3639 = vunpack.c.h.b16 %v3080
    %v3640 = vunpack.c.l.b16 %v3081
    %v3641 = vunpack.c.h.b16 %v3081
    %v3642 = vunpack.c.l.b16 %v3082
    %v3643 = vunpack.c.h.b16 %v3082
    %v3644 = vunpack.c.l.b16 %v3083
    %v3645 = vunpack.c.h.b16 %v3083
    %v3646 = vunpack.c.l.b16 %v3084
    %v3647 = vunpack.c.h.b16 %v3084
    %v3648 = vunpack.c.l.b16 %v3085
    %v3649 = vunpack.c.h.b16 %v3085
    %v3650 = vunpack.c.l.b16 %v3086
    %v3651 = vunpack.c.h.b16 %v3086
    %v3652 = vunpack.c.l.b16 %v3087
    %v3653 = vunpack.c.h.b16 %v3087
    %v3654 = vunpack.c.l.b16 %v3088
    %v3655 = vunpack.c.h.b16 %v3088
    %v3656 = vunpack.c.l.b16 %v3089
    %v3657 = vunpack.c.h.b16 %v3089
    %v3658 = vunpack.c.l.b16 %v3090
    %v3659 = vunpack.c.h.b16 %v3090
    %v3660 = vunpack.c.l.b16 %v3091
    %v3661 = vunpack.c.h.b16 %v3091
    %v3662 = vunpack.c.l.b16 %v3092
    %v3663 = vunpack.c.h.b16 %v3092
    %v3664 = vunpack.c.l.b16 %v3093
    %v3665 = vunpack.c.h.b16 %v3093
    %v3666 = vunpack.c.l.b16 %v3094
    %v3667 = vunpack.c.h.b16 %v3094
    %v3668 = vunpack.c.l.b16 %v3095
    %v3669 = vunpack.c.h.b16 %v3095
    %v3670 = vunpack.c.l.b16 %v3096
    %v3671 = vunpack.c.h.b16 %v3096
    %v3672 = vunpack.c.l.b16 %v3097
    %v3673 = vunpack.c.h.b16 %v3097
    %v3674 = vpack.c.b16 %v3296, %v3290
    %v3675 = vpack.c.b16 %v3297, %v3291
    %v3676 = vpack.c.b16 %v3298, %v3292
    %v3677 = vpack.c.b16 %v3299, %v3293
    %v3678 = vpack.c.b16 %v3300, %v3294
    %v3679 = vpack.c.b16 %v3301, %v3295
    %v3680 = vpack.c.b16 %v3308, %v3302
    %v3681 = vpack.c.b16 %v3309, %v3303
    %v3682 = vpack.c.b16 %v3310, %v3304
    %v3683 = vpack.c.b16 %v3311, %v3305
    %v3684 = vpack.c.b16 %v3312, %v3306
    %v3685 = vpack.c.b16 %v3313, %v3307
    %v3686 = vpack.c.b16 %v3320, %v3314
    %v3687 = vpack.c.b16 %v3321, %v3315
    %v3688 = vpack.c.b16 %v3322, %v3316
    %v3689 = vpack.c.b16 %v3323, %v3317
    %v3690 = vpack.c.b16 %v3324, %v3318
    %v3691 = vpack.c.b16 %v3325, %v3319
    %v3692 = vpack.c.b16 %v3332, %v3326
    %v3693 = vpack.c.b16 %v3333, %v3327
    %v3694 = vpack.c.b16 %v3334, %v3328
    %v3695 = vpack.c.b16 %v3335, %v3329
    %v3696 = vpack.c.b16 %v3336, %v3330
    %v3697 = vpack.c.b16 %v3337, %v3331
    %v3698 = vpack.c.b16 %v3344, %v3338
    %v3699 = vpack.c.b16 %v3345, %v3339
    %v3700 = vpack.c.b16 %v3346, %v3340
    %v3701 = vpack.c.b16 %v3347, %v3341
    %v3702 = vpack.c.b16 %v3348, %v3342
    %v3703 = vpack.c.b16 %v3349, %v3343
    %v3704 = vpack.c.b16 %v3356, %v3350
    %v3705 = vpack.c.b16 %v3357, %v3351
    %v3706 = vpack.c.b16 %v3358, %v3352
    %v3707 = vpack.c.b16 %v3359, %v3353
    %v3708 = vpack.c.b16 %v3360, %v3354
    %v3709 = vpack.c.b16 %v3361, %v3355
    %v3710 = vpack.c.b16 %v3368, %v3362
    %v3711 = vpack.c.b16 %v3369, %v3363
    %v3712 = vpack.c.b16 %v3370, %v3364
    %v3713 = vpack.c.b16 %v3371, %v3365
    %v3714 = vpack.c.b16 %v3372, %v3366
    %v3715 = vpack.c.b16 %v3373, %v3367
    %v3716 = vpack.c.b16 %v3380, %v3374
    %v3717 = vpack.c.b16 %v3381, %v3375
    %v3718 = vpack.c.b16 %v3382, %v3376
    %v3719 = vpack.c.b16 %v3383, %v3377
    %v3720 = vpack.c.b16 %v3384, %v3378
    %v3721 = vpack.c.b16 %v3385, %v3379
    %v3722 = vpack.c.b16 %v3392, %v3386
    %v3723 = vpack.c.b16 %v3393, %v3387
    %v3724 = vpack.c.b16 %v3394, %v3388
    %v3725 = vpack.c.b16 %v3395, %v3389
    %v3726 = vpack.c.b16 %v3396, %v3390
    %v3727 = vpack.c.b16 %v3397, %v3391
    %v3728 = vpack.c.b16 %v3404, %v3398
    %v3729 = vpack.c.b16 %v3405, %v3399
    %v3730 = vpack.c.b16 %v3406, %v3400
    %v3731 = vpack.c.b16 %v3407, %v3401
    %v3732 = vpack.c.b16 %v3408, %v3402
    %v3733 = vpack.c.b16 %v3409, %v3403
    %v3734 = vpack.c.b16 %v3416, %v3410
    %v3735 = vpack.c.b16 %v3417, %v3411
    %v3736 = vpack.c.b16 %v3418, %v3412
    %v3737 = vpack.c.b16 %v3419, %v3413
    %v3738 = vpack.c.b16 %v3420, %v3414
    %v3739 = vpack.c.b16 %v3421, %v3415
    %v3740 = vpack.c.b16 %v3428, %v3422
    %v3741 = vpack.c.b16 %v3429, %v3423
    %v3742 = vpack.c.b16 %v3430, %v3424
    %v3743 = vpack.c.b16 %v3431, %v3425
    %v3744 = vpack.c.b16 %v3432, %v3426
    %v3745 = vpack.c.b16 %v3433, %v3427
    %v3746 = vpack.c.b16 %v3440, %v3434
    %v3747 = vpack.c.b16 %v3441, %v3435
    %v3748 = vpack.c.b16 %v3442, %v3436
    %v3749 = vpack.c.b16 %v3443, %v3437
    %v3750 = vpack.c.b16 %v3444, %v3438
    %v3751 = vpack.c.b16 %v3445, %v3439
    %v3752 = vpack.c.b16 %v3452, %v3446
    %v3753 = vpack.c.b16 %v3453, %v3447
    %v3754 = vpack.c.b16 %v3454, %v3448
    %v3755 = vpack.c.b16 %v3455, %v3449
    %v3756 = vpack.c.b16 %v3456, %v3450
    %v3757 = vpack.c.b16 %v3457, %v3451
    %v3758 = vpack.c.b16 %v3464, %v3458
    %v3759 = vpack.c.b16 %v3465, %v3459
    %v3760 = vpack.c.b16 %v3466, %v3460
    %v3761 = vpack.c.b16 %v3467, %v3461
    %v3762 = vpack.c.b16 %v3468, %v3462
    %v3763 = vpack.c.b16 %v3469, %v3463
    %v3764 = vpack.c.b16 %v3476, %v3470
    %v3765 = vpack.c.b16 %v3477, %v3471
    %v3766 = vpack.c.b16 %v3478, %v3472
    %v3767 = vpack.c.b16 %v3479, %v3473
    %v3768 = vpack.c.b16 %v3480, %v3474
    %v3769 = vpack.c.b16 %v3481, %v3475
    %v3770 = vpack.c.b16 %v3488, %v3482
    %v3771 = vpack.c.b16 %v3489, %v3483
    %v3772 = vpack.c.b16 %v3490, %v3484
    %v3773 = vpack.c.b16 %v3491, %v3485
    %v3774 = vpack.c.b16 %v3492, %v3486
    %v3775 = vpack.c.b16 %v3493, %v3487
    %v3776 = vpack.c.b16 %v3500, %v3494
    %v3777 = vpack.c.b16 %v3501, %v3495
    %v3778 = vpack.c.b16 %v3502, %v3496
    %v3779 = vpack.c.b16 %v3503, %v3497
    %v3780 = vpack.c.b16 %v3504, %v3498
    %v3781 = vpack.c.b16 %v3505, %v3499
    %v3782 = vpack.c.b16 %v3512, %v3506
    %v3783 = vpack.c.b16 %v3513, %v3507
    %v3784 = vpack.c.b16 %v3514, %v3508
    %v3785 = vpack.c.b16 %v3515, %v3509
    %v3786 = vpack.c.b16 %v3516, %v3510
    %v3787 = vpack.c.b16 %v3517, %v3511
    %v3788 = vpack.c.b16 %v3524, %v3518
    %v3789 = vpack.c.b16 %v3525, %v3519
    %v3790 = vpack.c.b16 %v3526, %v3520
    %v3791 = vpack.c.b16 %v3527, %v3521
    %v3792 = vpack.c.b16 %v3528, %v3522
    %v3793 = vpack.c.b16 %v3529, %v3523
    %v3794 = vpack.c.b16 %v3536, %v3530
    %v3795 = vpack.c.b16 %v3537, %v3531
    %v3796 = vpack.c.b16 %v3538, %v3532
    %v3797 = vpack.c.b16 %v3539, %v3533
    %v3798 = vpack.c.b16 %v3540, %v3534
    %v3799 = vpack.c.b16 %v3541, %v3535
    %v3800 = vpack.c.b16 %v3548, %v3542
    %v3801 = vpack.c.b16 %v3549, %v3543
    %v3802 = vpack.c.b16 %v3550, %v3544
    %v3803 = vpack.c.b16 %v3551, %v3545
    %v3804 = vpack.c.b16 %v3552, %v3546
    %v3805 = vpack.c.b16 %v3553, %v3547
    %v3806 = vpack.c.b16 %v3560, %v3554
    %v3807 = vpack.c.b16 %v3561, %v3555
    %v3808 = vpack.c.b16 %v3562, %v3556
    %v3809 = vpack.c.b16 %v3563, %v3557
    %v3810 = vpack.c.b16 %v3564, %v3558
    %v3811 = vpack.c.b16 %v3565, %v3559
    %v3812 = vpack.c.b16 %v3572, %v3566
    %v3813 = vpack.c.b16 %v3573, %v3567
    %v3814 = vpack.c.b16 %v3574, %v3568
    %v3815 = vpack.c.b16 %v3575, %v3569
    %v3816 = vpack.c.b16 %v3576, %v3570
    %v3817 = vpack.c.b16 %v3577, %v3571
    %v3818 = vpack.c.b16 %v3584, %v3578
    %v3819 = vpack.c.b16 %v3585, %v3579
    %v3820 = vpack.c.b16 %v3586, %v3580
    %v3821 = vpack.c.b16 %v3587, %v3581
    %v3822 = vpack.c.b16 %v3588, %v3582
    %v3823 = vpack.c.b16 %v3589, %v3583
    %v3824 = vpack.c.b16 %v3596, %v3590
    %v3825 = vpack.c.b16 %v3597, %v3591
    %v3826 = vpack.c.b16 %v3598, %v3592
    %v3827 = vpack.c.b16 %v3599, %v3593
    %v3828 = vpack.c.b16 %v3600, %v3594
    %v3829 = vpack.c.b16 %v3601, %v3595
    %v3830 = vpack.c.b16 %v3608, %v3602
    %v3831 = vpack.c.b16 %v3609, %v3603
    %v3832 = vpack.c.b16 %v3610, %v3604
    %v3833 = vpack.c.b16 %v3611, %v3605
    %v3834 = vpack.c.b16 %v3612, %v3606
    %v3835 = vpack.c.b16 %v3613, %v3607
    %v3836 = vpack.c.b16 %v3620, %v3614
    %v3837 = vpack.c.b16 %v3621, %v3615
    %v3838 = vpack.c.b16 %v3622, %v3616
    %v3839 = vpack.c.b16 %v3623, %v3617
    %v3840 = vpack.c.b16 %v3624, %v3618
    %v3841 = vpack.c.b16 %v3625, %v3619
    %v3842 = vpack.c.b16 %v3632, %v3626
    %v3843 = vpack.c.b16 %v3633, %v3627
    %v3844 = vpack.c.b16 %v3634, %v3628
    %v3845 = vpack.c.b16 %v3635, %v3629
    %v3846 = vpack.c.b16 %v3636, %v3630
    %v3847 = vpack.c.b16 %v3637, %v3631
    %v3848 = vpack.c.b16 %v3644, %v3638
    %v3849 = vpack.c.b16 %v3645, %v3639
    %v3850 = vpack.c.b16 %v3646, %v3640
    %v3851 = vpack.c.b16 %v3647, %v3641
    %v3852 = vpack.c.b16 %v3648, %v3642
    %v3853 = vpack.c.b16 %v3649, %v3643
    %v3854 = vpack.c.b16 %v3656, %v3650
    %v3855 = vpack.c.b16 %v3657, %v3651
    %v3856 = vpack.c.b16 %v3658, %v3652
    %v3857 = vpack.c.b16 %v3659, %v3653
    %v3858 = vpack.c.b16 %v3660, %v3654
    %v3859 = vpack.c.b16 %v3661, %v3655
    %v3860 = vpack.c.b16 %v3668, %v3662
    %v3861 = vpack.c.b16 %v3669, %v3663
    %v3862 = vpack.c.b16 %v3670, %v3664
    %v3863 = vpack.c.b16 %v3671, %v3665
    %v3864 = vpack.c.b16 %v3672, %v3666
    %v3865 = vpack.c.b16 %v3673, %v3667
    %4058 = vmatprep.subr.bf16.mxu0 %v3717
    %4059 = vmatpush1.bf16.msra.mxu0 %v3716
    %4060 = vmatprep.subr.bf16.mxu0 %v3711
    %4061 = vmatpush1.bf16.msra.mxu0 %v3710
    %4062 = vmatprep.subr.bf16.mxu0 %v3705
    %4063 = vmatpush1.bf16.msra.mxu0 %v3704
    %4064 = vmatprep.subr.bf16.mxu0 %v3699
    %4065 = vmatpush1.bf16.msra.mxu0 %v3698
    %4066 = vmatprep.subr.bf16.mxu0 %v3693
    %4067 = vmatpush1.bf16.msra.mxu0 %v3692
    %4068 = vmatprep.subr.bf16.mxu0 %v3687
    %4069 = vmatpush1.bf16.msra.mxu0 %v3686
    %4070 = vmatprep.subr.bf16.mxu0 %v3681
    %4071 = vmatpush1.bf16.msra.mxu0 %v3680
    %4072 = vmatprep.subr.bf16.mxu0 %v3675
    %4073 = vmatpush1.bf16.msra.mxu0 %v3674
    %4074 = vmatprep.subr.bf16.mxu0 %v3765
    %4075 = vmatpush2.bf16.msra.mxu0 %v3764
    %4076 = vmatprep.subr.bf16.mxu0 %v3759
    %4077 = vmatpush2.bf16.msra.mxu0 %v3758
    %4078 = vmatprep.subr.bf16.mxu0 %v3753
    %4079 = vmatpush2.bf16.msra.mxu0 %v3752
    %4080 = vmatprep.subr.bf16.mxu0 %v3747
    %4081 = vmatpush2.bf16.msra.mxu0 %v3746
    %4082 = vmatprep.subr.bf16.mxu0 %v3741
    %4083 = vmatpush2.bf16.msra.mxu0 %v3740
    %4084 = vmatprep.subr.bf16.mxu0 %v3735
    %4085 = vmatpush2.bf16.msra.mxu0 %v3734
    %4086 = vmatprep.subr.bf16.mxu0 %v3729
    %4087 = vmatpush2.bf16.msra.mxu0 %v3728
    %4088 = vmatprep.subr.bf16.mxu0 %v3723
    %4089 = vmatpush2.bf16.msra.mxu0 %v3722
    %4090 = vmatprep.mubr.bf16.mxu0 %v2903
    %4091 = vmatmul.mubr.bf16.gmra.mxu0 %v2902
    %v4092 = vpop.f32.mrf.mxu0
    %v4093 = vadd.f32 0.0, %v4092
    %v4094 = vpop.f32.mrf.mxu0
    %v4095 = vadd.f32 0.0, %v4094
    %v4096 = vpop.f32.mrf.mxu0
    %v4097 = vadd.f32 0.0, %v4096
    %v4098 = vpop.f32.mrf.mxu0
    %v4099 = vadd.f32 0.0, %v4098
    %4100 = vdwg.mxu0
    %4101 = vmatprep.subr.bf16.mxu0 %v3813
    %4102 = vmatpush1.bf16.msra.mxu0 %v3812
    %4103 = vmatprep.subr.bf16.mxu0 %v3807
    %4104 = vmatpush1.bf16.msra.mxu0 %v3806
    %4105 = vmatprep.subr.bf16.mxu0 %v3801
    %4106 = vmatpush1.bf16.msra.mxu0 %v3800
    %4107 = vmatprep.subr.bf16.mxu0 %v3795
    %4108 = vmatpush1.bf16.msra.mxu0 %v3794
    %4109 = vmatprep.subr.bf16.mxu0 %v3789
    %4110 = vmatpush1.bf16.msra.mxu0 %v3788
    %4111 = vmatprep.subr.bf16.mxu0 %v3783
    %4112 = vmatpush1.bf16.msra.mxu0 %v3782
    %4113 = vmatprep.subr.bf16.mxu0 %v3777
    %4114 = vmatpush1.bf16.msra.mxu0 %v3776
    %4115 = vmatprep.subr.bf16.mxu0 %v3771
    %4116 = vmatpush1.bf16.msra.mxu0 %v3770
    %4117 = vmatprep.subr.bf16.mxu0 %v3861
    %4118 = vmatpush2.bf16.msra.mxu0 %v3860
    %4119 = vmatprep.subr.bf16.mxu0 %v3855
    %4120 = vmatpush2.bf16.msra.mxu0 %v3854
    %4121 = vmatprep.subr.bf16.mxu0 %v3849
    %4122 = vmatpush2.bf16.msra.mxu0 %v3848
    %4123 = vmatprep.subr.bf16.mxu0 %v3843
    %4124 = vmatpush2.bf16.msra.mxu0 %v3842
    %4125 = vmatprep.subr.bf16.mxu0 %v3837
    %4126 = vmatpush2.bf16.msra.mxu0 %v3836
    %4127 = vmatprep.subr.bf16.mxu0 %v3831
    %4128 = vmatpush2.bf16.msra.mxu0 %v3830
    %4129 = vmatprep.subr.bf16.mxu0 %v3825
    %4130 = vmatpush2.bf16.msra.mxu0 %v3824
    %4131 = vmatprep.subr.bf16.mxu0 %v3819
    %4132 = vmatpush2.bf16.msra.mxu0 %v3818
    %4133 = vmatprep.mubr.bf16.mxu0 %v2905
    %4134 = vmatmul.mubr.bf16.gmra.mxu0 %v2904
    %v4135 = vpop.f32.mrf.mxu0
    %v4136 = vadd.f32 %v4093, %v4135
    %v4137 = vpop.f32.mrf.mxu0
    %v4138 = vadd.f32 %v4095, %v4137
    %v4139 = vpop.f32.mrf.mxu0
    %v4140 = vadd.f32 %v4097, %v4139
    %v4141 = vpop.f32.mrf.mxu0
    %v4142 = vadd.f32 %v4099, %v4141
    %4143 = vdwg.mxu0
    %4144 = vmatprep.subr.bf16.mxu0 %v3719
    %4145 = vmatpush1.bf16.msra.mxu0 %v3718
    %4146 = vmatprep.subr.bf16.mxu0 %v3713
    %4147 = vmatpush1.bf16.msra.mxu0 %v3712
    %4148 = vmatprep.subr.bf16.mxu0 %v3707
    %4149 = vmatpush1.bf16.msra.mxu0 %v3706
    %4150 = vmatprep.subr.bf16.mxu0 %v3701
    %4151 = vmatpush1.bf16.msra.mxu0 %v3700
    %4152 = vmatprep.subr.bf16.mxu0 %v3695
    %4153 = vmatpush1.bf16.msra.mxu0 %v3694
    %4154 = vmatprep.subr.bf16.mxu0 %v3689
    %4155 = vmatpush1.bf16.msra.mxu0 %v3688
    %4156 = vmatprep.subr.bf16.mxu0 %v3683
    %4157 = vmatpush1.bf16.msra.mxu0 %v3682
    %4158 = vmatprep.subr.bf16.mxu0 %v3677
    %4159 = vmatpush1.bf16.msra.mxu0 %v3676
    %4160 = vmatprep.subr.bf16.mxu0 %v3767
    %4161 = vmatpush2.bf16.msra.mxu0 %v3766
    %4162 = vmatprep.subr.bf16.mxu0 %v3761
    %4163 = vmatpush2.bf16.msra.mxu0 %v3760
    %4164 = vmatprep.subr.bf16.mxu0 %v3755
    %4165 = vmatpush2.bf16.msra.mxu0 %v3754
    %4166 = vmatprep.subr.bf16.mxu0 %v3749
    %4167 = vmatpush2.bf16.msra.mxu0 %v3748
    %4168 = vmatprep.subr.bf16.mxu0 %v3743
    %4169 = vmatpush2.bf16.msra.mxu0 %v3742
    %4170 = vmatprep.subr.bf16.mxu0 %v3737
    %4171 = vmatpush2.bf16.msra.mxu0 %v3736
    %4172 = vmatprep.subr.bf16.mxu0 %v3731
    %4173 = vmatpush2.bf16.msra.mxu0 %v3730
    %4174 = vmatprep.subr.bf16.mxu0 %v3725
    %4175 = vmatpush2.bf16.msra.mxu0 %v3724
    %4176 = vmatprep.mubr.bf16.mxu0 %v2903
    %4177 = vmatmul.mubr.bf16.gmra.mxu0 %v2902
    %v4178 = vpop.f32.mrf.mxu0
    %v4179 = vadd.f32 0.0, %v4178
    %v4180 = vpop.f32.mrf.mxu0
    %v4181 = vadd.f32 0.0, %v4180
    %v4182 = vpop.f32.mrf.mxu0
    %v4183 = vadd.f32 0.0, %v4182
    %v4184 = vpop.f32.mrf.mxu0
    %v4185 = vadd.f32 0.0, %v4184
    %4186 = vdwg.mxu0
    %4187 = vmatprep.subr.bf16.mxu0 %v3815
    %4188 = vmatpush1.bf16.msra.mxu0 %v3814
    %4189 = vmatprep.subr.bf16.mxu0 %v3809
    %4190 = vmatpush1.bf16.msra.mxu0 %v3808
    %4191 = vmatprep.subr.bf16.mxu0 %v3803
    %4192 = vmatpush1.bf16.msra.mxu0 %v3802
    %4193 = vmatprep.subr.bf16.mxu0 %v3797
    %4194 = vmatpush1.bf16.msra.mxu0 %v3796
    %4195 = vmatprep.subr.bf16.mxu0 %v3791
    %4196 = vmatpush1.bf16.msra.mxu0 %v3790
    %4197 = vmatprep.subr.bf16.mxu0 %v3785
    %4198 = vmatpush1.bf16.msra.mxu0 %v3784
    %4199 = vmatprep.subr.bf16.mxu0 %v3779
    %4200 = vmatpush1.bf16.msra.mxu0 %v3778
    %4201 = vmatprep.subr.bf16.mxu0 %v3773
    %4202 = vmatpush1.bf16.msra.mxu0 %v3772
    %4203 = vmatprep.subr.bf16.mxu0 %v3863
    %4204 = vmatpush2.bf16.msra.mxu0 %v3862
    %4205 = vmatprep.subr.bf16.mxu0 %v3857
    %4206 = vmatpush2.bf16.msra.mxu0 %v3856
    %4207 = vmatprep.subr.bf16.mxu0 %v3851
    %4208 = vmatpush2.bf16.msra.mxu0 %v3850
    %4209 = vmatprep.subr.bf16.mxu0 %v3845
    %4210 = vmatpush2.bf16.msra.mxu0 %v3844
    %4211 = vmatprep.subr.bf16.mxu0 %v3839
    %4212 = vmatpush2.bf16.msra.mxu0 %v3838
    %4213 = vmatprep.subr.bf16.mxu0 %v3833
    %4214 = vmatpush2.bf16.msra.mxu0 %v3832
    %4215 = vmatprep.subr.bf16.mxu0 %v3827
    %4216 = vmatpush2.bf16.msra.mxu0 %v3826
    %4217 = vmatprep.subr.bf16.mxu0 %v3821
    %4218 = vmatpush2.bf16.msra.mxu0 %v3820
    %4219 = vmatprep.mubr.bf16.mxu0 %v2905
    %4220 = vmatmul.mubr.bf16.gmra.mxu0 %v2904
    %v4221 = vpop.f32.mrf.mxu0
    %v4222 = vadd.f32 %v4179, %v4221
    %v4223 = vpop.f32.mrf.mxu0
    %v4224 = vadd.f32 %v4181, %v4223
    %v4225 = vpop.f32.mrf.mxu0
    %v4226 = vadd.f32 %v4183, %v4225
    %v4227 = vpop.f32.mrf.mxu0
    %v4228 = vadd.f32 %v4185, %v4227
    %4229 = vdwg.mxu0
    %4230 = vmatprep.subr.bf16.mxu0 %v3721
    %4231 = vmatpush1.bf16.msra.mxu0 %v3720
    %4232 = vmatprep.subr.bf16.mxu0 %v3715
    %4233 = vmatpush1.bf16.msra.mxu0 %v3714
    %4234 = vmatprep.subr.bf16.mxu0 %v3709
    %4235 = vmatpush1.bf16.msra.mxu0 %v3708
    %4236 = vmatprep.subr.bf16.mxu0 %v3703
    %4237 = vmatpush1.bf16.msra.mxu0 %v3702
    %4238 = vmatprep.subr.bf16.mxu0 %v3697
    %4239 = vmatpush1.bf16.msra.mxu0 %v3696
    %4240 = vmatprep.subr.bf16.mxu0 %v3691
    %4241 = vmatpush1.bf16.msra.mxu0 %v3690
    %4242 = vmatprep.subr.bf16.mxu0 %v3685
    %4243 = vmatpush1.bf16.msra.mxu0 %v3684
    %4244 = vmatprep.subr.bf16.mxu0 %v3679
    %4245 = vmatpush1.bf16.msra.mxu0 %v3678
    %4246 = vmatprep.subr.bf16.mxu0 %v3769
    %4247 = vmatpush2.bf16.msra.mxu0 %v3768
    %4248 = vmatprep.subr.bf16.mxu0 %v3763
    %4249 = vmatpush2.bf16.msra.mxu0 %v3762
    %4250 = vmatprep.subr.bf16.mxu0 %v3757
    %4251 = vmatpush2.bf16.msra.mxu0 %v3756
    %4252 = vmatprep.subr.bf16.mxu0 %v3751
    %4253 = vmatpush2.bf16.msra.mxu0 %v3750
    %4254 = vmatprep.subr.bf16.mxu0 %v3745
    %4255 = vmatpush2.bf16.msra.mxu0 %v3744
    %4256 = vmatprep.subr.bf16.mxu0 %v3739
    %4257 = vmatpush2.bf16.msra.mxu0 %v3738
    %4258 = vmatprep.subr.bf16.mxu0 %v3733
    %4259 = vmatpush2.bf16.msra.mxu0 %v3732
    %4260 = vmatprep.subr.bf16.mxu0 %v3727
    %4261 = vmatpush2.bf16.msra.mxu0 %v3726
    %4262 = vmatprep.mubr.bf16.mxu0 %v2903
    %4263 = vmatmul.mubr.bf16.gmra.mxu0 %v2902
    %v4264 = vpop.f32.mrf.mxu0
    %v4265 = vadd.f32 0.0, %v4264
    %v4266 = vpop.f32.mrf.mxu0
    %v4267 = vadd.f32 0.0, %v4266
    %v4268 = vpop.f32.mrf.mxu0
    %v4269 = vadd.f32 0.0, %v4268
    %v4270 = vpop.f32.mrf.mxu0
    %v4271 = vadd.f32 0.0, %v4270
    %4272 = vdwg.mxu0
    %4273 = vmatprep.subr.bf16.mxu0 %v3817
    %4274 = vmatpush1.bf16.msra.mxu0 %v3816
    %4275 = vmatprep.subr.bf16.mxu0 %v3811
    %4276 = vmatpush1.bf16.msra.mxu0 %v3810
    %4277 = vmatprep.subr.bf16.mxu0 %v3805
    %4278 = vmatpush1.bf16.msra.mxu0 %v3804
    %4279 = vmatprep.subr.bf16.mxu0 %v3799
    %4280 = vmatpush1.bf16.msra.mxu0 %v3798
    %4281 = vmatprep.subr.bf16.mxu0 %v3793
    %4282 = vmatpush1.bf16.msra.mxu0 %v3792
    %4283 = vmatprep.subr.bf16.mxu0 %v3787
    %4284 = vmatpush1.bf16.msra.mxu0 %v3786
    %4285 = vmatprep.subr.bf16.mxu0 %v3781
    %4286 = vmatpush1.bf16.msra.mxu0 %v3780
    %4287 = vmatprep.subr.bf16.mxu0 %v3775
    %4288 = vmatpush1.bf16.msra.mxu0 %v3774
    %4289 = vmatprep.subr.bf16.mxu0 %v3865
    %4290 = vmatpush2.bf16.msra.mxu0 %v3864
    %4291 = vmatprep.subr.bf16.mxu0 %v3859
    %4292 = vmatpush2.bf16.msra.mxu0 %v3858
    %4293 = vmatprep.subr.bf16.mxu0 %v3853
    %4294 = vmatpush2.bf16.msra.mxu0 %v3852
    %4295 = vmatprep.subr.bf16.mxu0 %v3847
    %4296 = vmatpush2.bf16.msra.mxu0 %v3846
    %4297 = vmatprep.subr.bf16.mxu0 %v3841
    %4298 = vmatpush2.bf16.msra.mxu0 %v3840
    %4299 = vmatprep.subr.bf16.mxu0 %v3835
    %4300 = vmatpush2.bf16.msra.mxu0 %v3834
    %4301 = vmatprep.subr.bf16.mxu0 %v3829
    %4302 = vmatpush2.bf16.msra.mxu0 %v3828
    %4303 = vmatprep.subr.bf16.mxu0 %v3823
    %4304 = vmatpush2.bf16.msra.mxu0 %v3822
    %4305 = vmatprep.mubr.bf16.mxu0 %v2905
    %4306 = vmatmul.mubr.bf16.gmra.mxu0 %v2904
    %v4307 = vpop.f32.mrf.mxu0
    %v4308 = vadd.f32 %v4265, %v4307
    %v4309 = vpop.f32.mrf.mxu0
    %v4310 = vadd.f32 %v4267, %v4309
    %v4311 = vpop.f32.mrf.mxu0
    %v4312 = vadd.f32 %v4269, %v4311
    %v4313 = vpop.f32.mrf.mxu0
    %v4314 = vadd.f32 %v4271, %v4313
    %4315 = vdwg.mxu0
    %v4316 = vmax.f32 %v4136, 0.0
    %v4317 = vmax.f32 %v4138, 0.0
    %v4318 = vmax.f32 %v4222, 0.0
    %v4319 = vmax.f32 %v4224, 0.0
    %v4320 = vmax.f32 %v4308, 0.0
    %v4321 = vmax.f32 %v4310, 0.0
    %v4322 = vmax.f32 %v4140, 0.0
    %v4323 = vmax.f32 %v4142, 0.0
    %v4324 = vmax.f32 %v4226, 0.0
    %v4325 = vmax.f32 %v4228, 0.0
    %v4326 = vmax.f32 %v4312, 0.0
    %v4327 = vmax.f32 %v4314, 0.0
    %v4328 = vtanh.pop %v4316
    %v4329 = vtanh.pop %v4317
    %v4330 = vtanh.pop %v4318
    %v4331 = vtanh.pop %v4319
    %v4332 = vtanh.pop %v4320
    %v4333 = vtanh.pop %v4321
    %v4334 = vtanh.pop %v4322
    %v4335 = vtanh.pop %v4323
    %v4336 = vtanh.pop %v4324
    %v4337 = vtanh.pop %v4325
    %v4338 = vtanh.pop %v4326
    %v4339 = vtanh.pop %v4327
    %v4340 = vmul.f32 %v4328, %v4328
    %v4341 = vmul.f32 %v4329, %v4329
    %v4342 = vmul.f32 %v4330, %v4330
    %v4343 = vmul.f32 %v4331, %v4331
    %v4344 = vmul.f32 %v4332, %v4332
    %v4345 = vmul.f32 %v4333, %v4333
    %v4346 = vmul.f32 %v4334, %v4334
    %v4347 = vmul.f32 %v4335, %v4335
    %v4348 = vmul.f32 %v4336, %v4336
    %v4349 = vmul.f32 %v4337, %v4337
    %v4350 = vmul.f32 %v4338, %v4338
    %v4351 = vmul.f32 %v4339, %v4339
    %4352 = vst [vmem:[#allocation14] sm:$0xff] %v4340
    %4353 = vst [vmem:[#allocation14 + $0x8] sm:$0xff] %v4341
    %4354 = vst [vmem:[#allocation14 + $0x10] sm:$0xff] %v4342
    %4355 = vst [vmem:[#allocation14 + $0x18] sm:$0xff] %v4343
    %4356 = vst [vmem:[#allocation14 + $0x20] sm:$0xff] %v4344
    %4357 = vst [vmem:[#allocation14 + $0x28] sm:$0xff] %v4345
    %4358 = vst [vmem:[#allocation14 + $0x30] sm:$0xff] %v4346
    %4359 = vst [vmem:[#allocation14 + $0x38] sm:$0xff] %v4347
    %4360 = vst [vmem:[#allocation14 + $0x40] sm:$0xff] %v4348
    %4361 = vst [vmem:[#allocation14 + $0x48] sm:$0xff] %v4349
    %4362 = vst [vmem:[#allocation14 + $0x50] sm:$0xff] %v4350
    %4363 = vst [vmem:[#allocation14 + $0x58] sm:$0xff] %v4351
    // Predicated region
    $region70: #{tpu_custom_call.1} parent=1 // pred_check
      _
    $region71: #{tpu_custom_call.1} parent=1 // pred_check_branch
      %4365 = sbr.rel (0) target = $region73
    $region72: #{tpu_custom_call.1} parent=1 // pred_region
      %s4367 = ssub.s32 1536, 1536
      %4368 = vsyncadd [#allocation4], %s4367
      %s4369 = sshll.u32 [#allocation14], 4
      %s4370 = int_to_ptr.vmem [resolvable:$true] %s4369
      %4375 = dma.vmem_to_hbm [thread:$0]  %s4370, 1536, %s10, [#allocation4], 768, 768, 48
    $region73: #{tpu_custom_call.1} parent=1 // pred_fallthru
      _
    // Predicated region
    $region74: #{tpu_custom_call.1} parent=1 // pred_check
      _
    $region75: #{tpu_custom_call.1} parent=1 // pred_check_branch
      %4377 = sbr.rel (0) target = $region77
    $region76: #{tpu_custom_call.1} parent=1 // pred_region
      %4378 = dma.done [#allocation4], 1536
    $region77: #{tpu_custom_call.1} parent=1 // pred_fallthru
      _
    %4379 = vsyncpa [#allocation3], 1
    %4380 = vsyncpa [#allocation6], 1
    %4381 = vsyncpa [#allocation9], 1
    %4382 = vsyncpa [#allocation12], 1
    %4383 = vsyncpa [#allocation4], 1

// kernel: tpu_custom_call.1
$region0: #{tpu_custom_call.1}
  #allocation0 [shape = 'u32[]', space=smem, size = 0x4, offset = 0x4, fixed_abs, tag = 'smem constant byte address 0x4 - core index']
  #allocation1 [shape = 'u32[144,128]{1,0:T(1,128)}', space=vmem, size = 0x12000, scoped, tag = 'internal scratch']
  %s0 = inlined_call_operand.hbm [shape: bf16[16,768], index: 0, kind: input, shape index: {}]
  %s1 = inlined_call_operand.hbm [shape: bf16[768,512], index: 1, kind: input, shape index: {}]
  %s2 = inlined_call_operand.hbm [shape: bf16[512,256], index: 2, kind: input, shape index: {}]
  %s3 = inlined_call_operand.hbm [shape: bf16[256,128], index: 3, kind: input, shape index: {}]
  %s4 = inlined_call_operand.hbm [shape: bf16[128,256], index: 4, kind: input, shape index: {}]
  %s5 = inlined_call_operand.hbm [shape: bf16[256,512], index: 5, kind: input, shape index: {}]
  %s6 = inlined_call_operand.hbm [shape: bf16[512,768], index: 6, kind: input, shape index: {}]
  %s7 = inlined_call_operand.vmem [shape: f32[1,512], index: 7, kind: input, shape index: {}]
  %s8 = inlined_call_operand.vmem [shape: f32[1,256], index: 8, kind: input, shape index: {}]
  %s9 = inlined_call_operand.vmem [shape: f32[1,128], index: 9, kind: input, shape index: {}]
  %s10 = inlined_call_operand.hbm [shape: f32[16,768], index: 10, kind: output, shape index: {}]
  %s11 = sld [smem:[#allocation0]]
  $region78: #{tpu_custom_call.1} parent=0
    _
  %s13 = ssub.s32 1, %s11
  %s14 = scalar_select 0, %s13, %s11
  $region1: #{tpu_custom_call.1} parent=0
    #allocation2 [shape = 'u8[24576]{0}', space=vmem, size = 0x6000, scoped, tag = 'input window, operand 0, single buffered']
    #allocation3 [shape = 's32[1]{0}', space=sflag, size = 0x4, scoped, tag = 'scoped memory for tpu_custom_call.1']
    #allocation4 [shape = 's32[1]{0}', space=sflag, size = 0x4, scoped, tag = 'scoped memory for tpu_custom_call.1']
    #allocation5 [shape = 'u8[786432]{0}', space=vmem, size = 0xc0000, scoped, tag = 'input window, operand 1, single buffered']
    #allocation6 [shape = 's32[1]{0}', space=sflag, size = 0x4, scoped, tag = 'scoped memory for tpu_custom_call.1']
    #allocation7 [shape = 'u8[262144]{0}', space=vmem, size = 0x40000, scoped, tag = 'input window, operand 2, single buffered']
    #allocation8 [shape = 'u8[65536]{0}', space=vmem, size = 0x10000, scoped, tag = 'input window, operand 3, single buffered']
    #allocation9 [shape = 's32[1]{0}', space=sflag, size = 0x4, scoped, tag = 'scoped memory for tpu_custom_call.1']
    #allocation10 [shape = 'u8[65536]{0}', space=vmem, size = 0x10000, scoped, tag = 'input window, operand 4, single buffered']
    #allocation11 [shape = 'u8[262144]{0}', space=vmem, size = 0x40000, scoped, tag = 'input window, operand 5, single buffered']
    #allocation12 [shape = 's32[1]{0}', space=sflag, size = 0x4, scoped, tag = 'scoped memory for tpu_custom_call.1']
    #allocation13 [shape = 'u8[786432]{0}', space=vmem, size = 0xc0000, scoped, tag = 'input window, operand 6, single buffered']
    #allocation14 [shape = 'u8[49152]{0}', space=vmem, size = 0xc000, scoped, tag = 'output window, operand 0, single buffered']
    %15 = vsyncpa [#allocation3], 0
    %16 = vsyncpa [#allocation6], 0
    %17 = vsyncpa [#allocation9], 0
    %18 = vsyncpa [#allocation12], 0
    %19 = vsyncpa [#allocation4], 0
    // Predicated region
    $region2: #{tpu_custom_call.1} parent=1 // pred_check
      _
    $region3: #{tpu_custom_call.1} parent=1 // pred_check_branch
      %21 = sbr.rel (0) target = $region5
    $region4: #{tpu_custom_call.1} parent=1 // pred_region
      %s23 = ssub.s32 768, 768
      %24 = vsyncadd [#allocation3], %s23
      %s25 = sshll.u32 [#allocation2], 4
      %s26 = int_to_ptr.vmem [resolvable:$true] %s25
      %31 = dma.hbm_to_vmem [thread:$0]  %s0, 768, %s26, [#allocation3], 384, 384, 24
    $region5: #{tpu_custom_call.1} parent=1 // pred_fallthru
      _
    // Predicated region
    $region6: #{tpu_custom_call.1} parent=1 // pred_check
      _
    $region7: #{tpu_custom_call.1} parent=1 // pred_check_branch
      %33 = sbr.rel (0) target = $region9
    $region8: #{tpu_custom_call.1} parent=1 // pred_region
      %s35 = ssub.s32 24576, 24576
      %36 = vsyncadd [#allocation6], %s35
      %s37 = sshll.u32 [#allocation5], 4
      %s38 = int_to_ptr.vmem [resolvable:$true] %s37
      %43 = dma.hbm_to_vmem [thread:$0]  %s1, 24576, %s38, [#allocation6], 256, 256, 16
    $region9: #{tpu_custom_call.1} parent=1 // pred_fallthru
      _
    // Predicated region
    $region10: #{tpu_custom_call.1} parent=1 // pred_check
      _
    $region11: #{tpu_custom_call.1} parent=1 // pred_check_branch
      %45 = sbr.rel (0) target = $region13
    $region12: #{tpu_custom_call.1} parent=1 // pred_region
      %s47 = ssub.s32 8192, 8192
      %48 = vsyncadd [#allocation6], %s47
      %s49 = sshll.u32 [#allocation7], 4
      %s50 = int_to_ptr.vmem [resolvable:$true] %s49
      %55 = dma.hbm_to_vmem [thread:$0]  %s2, 8192, %s50, [#allocation6], 128, 128, 8
    $region13: #{tpu_custom_call.1} parent=1 // pred_fallthru
      _
    // Predicated region
    $region14: #{tpu_custom_call.1} parent=1 // pred_check
      _
    $region15: #{tpu_custom_call.1} parent=1 // pred_check_branch
      %57 = sbr.rel (0) target = $region17
    $region16: #{tpu_custom_call.1} parent=1 // pred_region
      %s59 = ssub.s32 2048, 2048
      %60 = vsyncadd [#allocation9], %s59
      %s61 = sshll.u32 [#allocation8], 4
      %s62 = int_to_ptr.vmem [resolvable:$true] %s61
      %67 = dma.hbm_to_vmem [thread:$0]  %s3, 2048, %s62, [#allocation9], 64, 64, 4
    $region17: #{tpu_custom_call.1} parent=1 // pred_fallthru
      _
    // Predicated region
    $region18: #{tpu_custom_call.1} parent=1 // pred_check
      _
    $region19: #{tpu_custom_call.1} parent=1 // pred_check_branch
      %69 = sbr.rel (0) target = $region21
    $region20: #{tpu_custom_call.1} parent=1 // pred_region
      %s71 = ssub.s32 2048, 2048
      %72 = vsyncadd [#allocation9], %s71
      %s73 = sshll.u32 [#allocation10], 4
      %s74 = int_to_ptr.vmem [resolvable:$true] %s73
      %79 = dma.hbm_to_vmem [thread:$0]  %s4, 2048, %s74, [#allocation9], 128, 128, 8
    $region21: #{tpu_custom_call.1} parent=1 // pred_fallthru
      _
    // Predicated region
    $region22: #{tpu_custom_call.1} parent=1 // pred_check
      _
    $region23: #{tpu_custom_call.1} parent=1 // pred_check_branch
      %81 = sbr.rel (0) target = $region25
    $region24: #{tpu_custom_call.1} parent=1 // pred_region
      %s83 = ssub.s32 8192, 8192
      %84 = vsyncadd [#allocation12], %s83
      %s85 = sshll.u32 [#allocation11], 4
      %s86 = int_to_ptr.vmem [resolvable:$true] %s85
      %91 = dma.hbm_to_vmem [thread:$0]  %s5, 8192, %s86, [#allocation12], 256, 256, 16
    $region25: #{tpu_custom_call.1} parent=1 // pred_fallthru
      _
    // Predicated region
    $region26: #{tpu_custom_call.1} parent=1 // pred_check
      _
    $region27: #{tpu_custom_call.1} parent=1 // pred_check_branch
      %93 = sbr.rel (0) target = $region29
    $region28: #{tpu_custom_call.1} parent=1 // pred_region
      %s95 = ssub.s32 24576, 24576
      %96 = vsyncadd [#allocation12], %s95
      %s97 = sshll.u32 [#allocation13], 4
      %s98 = int_to_ptr.vmem [resolvable:$true] %s97
      %103 = dma.hbm_to_vmem [thread:$0]  %s6, 24576, %s98, [#allocation12], 384, 384, 24
    $region29: #{tpu_custom_call.1} parent=1 // pred_fallthru
      _
    // Predicated region
    $region30: #{tpu_custom_call.1} parent=1 // pred_check
      _
    $region31: #{tpu_custom_call.1} parent=1 // pred_check_branch
      %105 = sbr.rel (0) target = $region33
    $region32: #{tpu_custom_call.1} parent=1 // pred_region
      _
    $region33: #{tpu_custom_call.1} parent=1 // pred_fallthru
      _
    // Predicated region
    $region34: #{tpu_custom_call.1} parent=1 // pred_check
      _
    $region35: #{tpu_custom_call.1} parent=1 // pred_check_branch
      %107 = sbr.rel (0) target = $region37
    $region36: #{tpu_custom_call.1} parent=1 // pred_region
      _
    $region37: #{tpu_custom_call.1} parent=1 // pred_fallthru
      _
    // Predicated region
    $region38: #{tpu_custom_call.1} parent=1 // pred_check
      _
    $region39: #{tpu_custom_call.1} parent=1 // pred_check_branch
      %109 = sbr.rel (0) target = $region41
    $region40: #{tpu_custom_call.1} parent=1 // pred_region
      _
    $region41: #{tpu_custom_call.1} parent=1 // pred_fallthru
      _
    // Predicated region
    $region42: #{tpu_custom_call.1} parent=1 // pred_check
      _
    $region43: #{tpu_custom_call.1} parent=1 // pred_check_branch
      %111 = sbr.rel (0) target = $region45
    $region44: #{tpu_custom_call.1} parent=1 // pred_region
      %112 = dma.done [#allocation3], 768
    $region45: #{tpu_custom_call.1} parent=1 // pred_fallthru
      _
    // Predicated region
    $region46: #{tpu_custom_call.1} parent=1 // pred_check
      _
    $region47: #{tpu_custom_call.1} parent=1 // pred_check_branch
      %114 = sbr.rel (0) target = $region49
    $region48: #{tpu_custom_call.1} parent=1 // pred_region
      %115 = dma.done [#allocation6], 24576
    $region49: #{tpu_custom_call.1} parent=1 // pred_fallthru
      _
    // Predicated region
    $region50: #{tpu_custom_call.1} parent=1 // pred_check
      _
    $region51: #{tpu_custom_call.1} parent=1 // pred_check_branch
      %117 = sbr.rel (0) target = $region53
    $region52: #{tpu_custom_call.1} parent=1 // pred_region
      %118 = dma.done [#allocation6], 8192
    $region53: #{tpu_custom_call.1} parent=1 // pred_fallthru
      _
    // Predicated region
    $region54: #{tpu_custom_call.1} parent=1 // pred_check
      _
    $region55: #{tpu_custom_call.1} parent=1 // pred_check_branch
      %120 = sbr.rel (0) target = $region57
    $region56: #{tpu_custom_call.1} parent=1 // pred_region
      %121 = dma.done [#allocation9], 2048
    $region57: #{tpu_custom_call.1} parent=1 // pred_fallthru
      _
    // Predicated region
    $region58: #{tpu_custom_call.1} parent=1 // pred_check
      _
    $region59: #{tpu_custom_call.1} parent=1 // pred_check_branch
      %123 = sbr.rel (0) target = $region61
    $region60: #{tpu_custom_call.1} parent=1 // pred_region
      %124 = dma.done [#allocation9], 2048
    $region61: #{tpu_custom_call.1} parent=1 // pred_fallthru
      _
    // Predicated region
    $region62: #{tpu_custom_call.1} parent=1 // pred_check
      _
    $region63: #{tpu_custom_call.1} parent=1 // pred_check_branch
      %126 = sbr.rel (0) target = $region65
    $region64: #{tpu_custom_call.1} parent=1 // pred_region
      %127 = dma.done [#allocation12], 8192
    $region65: #{tpu_custom_call.1} parent=1 // pred_fallthru
      _
    // Predicated region
    $region66: #{tpu_custom_call.1} parent=1 // pred_check
      _
    $region67: #{tpu_custom_call.1} parent=1 // pred_check_branch
      %129 = sbr.rel (0) target = $region69
    $region68: #{tpu_custom_call.1} parent=1 // pred_region
      %130 = dma.done [#allocation12], 24576
    $region69: #{tpu_custom_call.1} parent=1 // pred_fallthru
      _
    %v132 = vld [vmem:[#allocation2] sm:$0xff]
    %v133 = vld [vmem:[#allocation2 + $0x8] sm:$0xff]
    %v134 = vld [vmem:[#allocation2 + $0x10] sm:$0xff]
    %v135 = vld [vmem:[#allocation2 + $0x18] sm:$0xff]
    %v136 = vld [vmem:[#allocation2 + $0x20] sm:$0xff]
    %v137 = vld [vmem:[#allocation2 + $0x28] sm:$0xff]
    %v138 = vld [vmem:[#allocation5] sm:$0xff]
    %v139 = vld [vmem:[#allocation5 + $0x8] sm:$0xff]
    %v140 = vld [vmem:[#allocation5 + $0x10] sm:$0xff]
    %v141 = vld [vmem:[#allocation5 + $0x18] sm:$0xff]
    %v142 = vld [vmem:[#allocation5 + $0x20] sm:$0xff]
    %v143 = vld [vmem:[#allocation5 + $0x28] sm:$0xff]
    %v144 = vld [vmem:[#allocation5 + $0x30] sm:$0xff]
    %v145 = vld [vmem:[#allocation5 + $0x38] sm:$0xff]
    %v146 = vld [vmem:[#allocation5 + $0x40] sm:$0xff]
    %v147 = vld [vmem:[#allocation5 + $0x48] sm:$0xff]
    %v148 = vld [vmem:[#allocation5 + $0x50] sm:$0xff]
    %v149 = vld [vmem:[#allocation5 + $0x58] sm:$0xff]
    %v150 = vld [vmem:[#allocation5 + $0x60] sm:$0xff]
    %v151 = vld [vmem:[#allocation5 + $0x68] sm:$0xff]
    %v152 = vld [vmem:[#allocation5 + $0x70] sm:$0xff]
    %v153 = vld [vmem:[#allocation5 + $0x78] sm:$0xff]
    %v154 = vld [vmem:[#allocation5 + $0x80] sm:$0xff]
    %v155 = vld [vmem:[#allocation5 + $0x88] sm:$0xff]
    %v156 = vld [vmem:[#allocation5 + $0x90] sm:$0xff]
    %v157 = vld [vmem:[#allocation5 + $0x98] sm:$0xff]
    %v158 = vld [vmem:[#allocation5 + $0xa0] sm:$0xff]
    %v159 = vld [vmem:[#allocation5 + $0xa8] sm:$0xff]
    %v160 = vld [vmem:[#allocation5 + $0xb0] sm:$0xff]
    %v161 = vld [vmem:[#allocation5 + $0xb8] sm:$0xff]
    %v162 = vld [vmem:[#allocation5 + $0xc0] sm:$0xff]
    %v163 = vld [vmem:[#allocation5 + $0xc8] sm:$0xff]
    %v164 = vld [vmem:[#allocation5 + $0xd0] sm:$0xff]
    %v165 = vld [vmem:[#allocation5 + $0xd8] sm:$0xff]
    %v166 = vld [vmem:[#allocation5 + $0xe0] sm:$0xff]
    %v167 = vld [vmem:[#allocation5 + $0xe8] sm:$0xff]
    %v168 = vld [vmem:[#allocation5 + $0xf0] sm:$0xff]
    %v169 = vld [vmem:[#allocation5 + $0xf8] sm:$0xff]
    %v170 = vld [vmem:[#allocation5 + $0x100] sm:$0xff]
    %v171 = vld [vmem:[#allocation5 + $0x108] sm:$0xff]
    %v172 = vld [vmem:[#allocation5 + $0x110] sm:$0xff]
    %v173 = vld [vmem:[#allocation5 + $0x118] sm:$0xff]
    %v174 = vld [vmem:[#allocation5 + $0x120] sm:$0xff]
    %v175 = vld [vmem:[#allocation5 + $0x128] sm:$0xff]
    %v176 = vld [vmem:[#allocation5 + $0x130] sm:$0xff]
    %v177 = vld [vmem:[#allocation5 + $0x138] sm:$0xff]
    %v178 = vld [vmem:[#allocation5 + $0x140] sm:$0xff]
    %v179 = vld [vmem:[#allocation5 + $0x148] sm:$0xff]
    %v180 = vld [vmem:[#allocation5 + $0x150] sm:$0xff]
    %v181 = vld [vmem:[#allocation5 + $0x158] sm:$0xff]
    %v182 = vld [vmem:[#allocation5 + $0x160] sm:$0xff]
    %v183 = vld [vmem:[#allocation5 + $0x168] sm:$0xff]
    %v184 = vld [vmem:[#allocation5 + $0x170] sm:$0xff]
    %v185 = vld [vmem:[#allocation5 + $0x178] sm:$0xff]
    %v186 = vld [vmem:[#allocation5 + $0x180] sm:$0xff]
    %v187 = vld [vmem:[#allocation5 + $0x188] sm:$0xff]
    %v188 = vld [vmem:[#allocation5 + $0x190] sm:$0xff]
    %v189 = vld [vmem:[#allocation5 + $0x198] sm:$0xff]
    %v190 = vld [vmem:[#allocation5 + $0x1a0] sm:$0xff]
    %v191 = vld [vmem:[#allocation5 + $0x1a8] sm:$0xff]
    %v192 = vld [vmem:[#allocation5 + $0x1b0] sm:$0xff]
    %v193 = vld [vmem:[#allocation5 + $0x1b8] sm:$0xff]
    %v194 = vld [vmem:[#allocation5 + $0x1c0] sm:$0xff]
    %v195 = vld [vmem:[#allocation5 + $0x1c8] sm:$0xff]
    %v196 = vld [vmem:[#allocation5 + $0x1d0] sm:$0xff]
    %v197 = vld [vmem:[#allocation5 + $0x1d8] sm:$0xff]
    %v198 = vld [vmem:[#allocation5 + $0x1e0] sm:$0xff]
    %v199 = vld [vmem:[#allocation5 + $0x1e8] sm:$0xff]
    %v200 = vld [vmem:[#allocation5 + $0x1f0] sm:$0xff]
    %v201 = vld [vmem:[#allocation5 + $0x1f8] sm:$0xff]
    %v202 = vld [vmem:[#allocation5 + $0x200] sm:$0xff]
    %v203 = vld [vmem:[#allocation5 + $0x208] sm:$0xff]
    %v204 = vld [vmem:[#allocation5 + $0x210] sm:$0xff]
    %v205 = vld [vmem:[#allocation5 + $0x218] sm:$0xff]
    %v206 = vld [vmem:[#allocation5 + $0x220] sm:$0xff]
    %v207 = vld [vmem:[#allocation5 + $0x228] sm:$0xff]
    %v208 = vld [vmem:[#allocation5 + $0x230] sm:$0xff]
    %v209 = vld [vmem:[#allocation5 + $0x238] sm:$0xff]
    %v210 = vld [vmem:[#allocation5 + $0x240] sm:$0xff]
    %v211 = vld [vmem:[#allocation5 + $0x248] sm:$0xff]
    %v212 = vld [vmem:[#allocation5 + $0x250] sm:$0xff]
    %v213 = vld [vmem:[#allocation5 + $0x258] sm:$0xff]
    %v214 = vld [vmem:[#allocation5 + $0x260] sm:$0xff]
    %v215 = vld [vmem:[#allocation5 + $0x268] sm:$0xff]
    %v216 = vld [vmem:[#allocation5 + $0x270] sm:$0xff]
    %v217 = vld [vmem:[#allocation5 + $0x278] sm:$0xff]
    %v218 = vld [vmem:[#allocation5 + $0x280] sm:$0xff]
    %v219 = vld [vmem:[#allocation5 + $0x288] sm:$0xff]
    %v220 = vld [vmem:[#allocation5 + $0x290] sm:$0xff]
    %v221 = vld [vmem:[#allocation5 + $0x298] sm:$0xff]
    %v222 = vld [vmem:[#allocation5 + $0x2a0] sm:$0xff]
    %v223 = vld [vmem:[#allocation5 + $0x2a8] sm:$0xff]
    %v224 = vld [vmem:[#allocation5 + $0x2b0] sm:$0xff]
    %v225 = vld [vmem:[#allocation5 + $0x2b8] sm:$0xff]
    %v226 = vld [vmem:[#allocation5 + $0x2c0] sm:$0xff]
    %v227 = vld [vmem:[#allocation5 + $0x2c8] sm:$0xff]
    %v228 = vld [vmem:[#allocation5 + $0x2d0] sm:$0xff]
    %v229 = vld [vmem:[#allocation5 + $0x2d8] sm:$0xff]
    %v230 = vld [vmem:[#allocation5 + $0x2e0] sm:$0xff]
    %v231 = vld [vmem:[#allocation5 + $0x2e8] sm:$0xff]
    %v232 = vld [vmem:[#allocation5 + $0x2f0] sm:$0xff]
    %v233 = vld [vmem:[#allocation5 + $0x2f8] sm:$0xff]
    %v234 = vld [vmem:[#allocation5 + $0x300] sm:$0xff]
    %v235 = vld [vmem:[#allocation5 + $0x308] sm:$0xff]
    %v236 = vld [vmem:[#allocation5 + $0x310] sm:$0xff]
    %v237 = vld [vmem:[#allocation5 + $0x318] sm:$0xff]
    %v238 = vld [vmem:[#allocation5 + $0x320] sm:$0xff]
    %v239 = vld [vmem:[#allocation5 + $0x328] sm:$0xff]
    %v240 = vld [vmem:[#allocation5 + $0x330] sm:$0xff]
    %v241 = vld [vmem:[#allocation5 + $0x338] sm:$0xff]
    %v242 = vld [vmem:[#allocation5 + $0x340] sm:$0xff]
    %v243 = vld [vmem:[#allocation5 + $0x348] sm:$0xff]
    %v244 = vld [vmem:[#allocation5 + $0x350] sm:$0xff]
    %v245 = vld [vmem:[#allocation5 + $0x358] sm:$0xff]
    %v246 = vld [vmem:[#allocation5 + $0x360] sm:$0xff]
    %v247 = vld [vmem:[#allocation5 + $0x368] sm:$0xff]
    %v248 = vld [vmem:[#allocation5 + $0x370] sm:$0xff]
    %v249 = vld [vmem:[#allocation5 + $0x378] sm:$0xff]
    %v250 = vld [vmem:[#allocation5 + $0x380] sm:$0xff]
    %v251 = vld [vmem:[#allocation5 + $0x388] sm:$0xff]
    %v252 = vld [vmem:[#allocation5 + $0x390] sm:$0xff]
    %v253 = vld [vmem:[#allocation5 + $0x398] sm:$0xff]
    %v254 = vld [vmem:[#allocation5 + $0x3a0] sm:$0xff]
    %v255 = vld [vmem:[#allocation5 + $0x3a8] sm:$0xff]
    %v256 = vld [vmem:[#allocation5 + $0x3b0] sm:$0xff]
    %v257 = vld [vmem:[#allocation5 + $0x3b8] sm:$0xff]
    %v258 = vld [vmem:[#allocation5 + $0x3c0] sm:$0xff]
    %v259 = vld [vmem:[#allocation5 + $0x3c8] sm:$0xff]
    %v260 = vld [vmem:[#allocation5 + $0x3d0] sm:$0xff]
    %v261 = vld [vmem:[#allocation5 + $0x3d8] sm:$0xff]
    %v262 = vld [vmem:[#allocation5 + $0x3e0] sm:$0xff]
    %v263 = vld [vmem:[#allocation5 + $0x3e8] sm:$0xff]
    %v264 = vld [vmem:[#allocation5 + $0x3f0] sm:$0xff]
    %v265 = vld [vmem:[#allocation5 + $0x3f8] sm:$0xff]
    %v266 = vld [vmem:[#allocation5 + $0x400] sm:$0xff]
    %v267 = vld [vmem:[#allocation5 + $0x408] sm:$0xff]
    %v268 = vld [vmem:[#allocation5 + $0x410] sm:$0xff]
    %v269 = vld [vmem:[#allocation5 + $0x418] sm:$0xff]
    %v270 = vld [vmem:[#allocation5 + $0x420] sm:$0xff]
    %v271 = vld [vmem:[#allocation5 + $0x428] sm:$0xff]
    %v272 = vld [vmem:[#allocation5 + $0x430] sm:$0xff]
    %v273 = vld [vmem:[#allocation5 + $0x438] sm:$0xff]
    %v274 = vld [vmem:[#allocation5 + $0x440] sm:$0xff]
    %v275 = vld [vmem:[#allocation5 + $0x448] sm:$0xff]
    %v276 = vld [vmem:[#allocation5 + $0x450] sm:$0xff]
    %v277 = vld [vmem:[#allocation5 + $0x458] sm:$0xff]
    %v278 = vld [vmem:[#allocation5 + $0x460] sm:$0xff]
    %v279 = vld [vmem:[#allocation5 + $0x468] sm:$0xff]
    %v280 = vld [vmem:[#allocation5 + $0x470] sm:$0xff]
    %v281 = vld [vmem:[#allocation5 + $0x478] sm:$0xff]
    %v282 = vld [vmem:[#allocation5 + $0x480] sm:$0xff]
    %v283 = vld [vmem:[#allocation5 + $0x488] sm:$0xff]
    %v284 = vld [vmem:[#allocation5 + $0x490] sm:$0xff]
    %v285 = vld [vmem:[#allocation5 + $0x498] sm:$0xff]
    %v286 = vld [vmem:[#allocation5 + $0x4a0] sm:$0xff]
    %v287 = vld [vmem:[#allocation5 + $0x4a8] sm:$0xff]
    %v288 = vld [vmem:[#allocation5 + $0x4b0] sm:$0xff]
    %v289 = vld [vmem:[#allocation5 + $0x4b8] sm:$0xff]
    %v290 = vld [vmem:[#allocation5 + $0x4c0] sm:$0xff]
    %v291 = vld [vmem:[#allocation5 + $0x4c8] sm:$0xff]
    %v292 = vld [vmem:[#allocation5 + $0x4d0] sm:$0xff]
    %v293 = vld [vmem:[#allocation5 + $0x4d8] sm:$0xff]
    %v294 = vld [vmem:[#allocation5 + $0x4e0] sm:$0xff]
    %v295 = vld [vmem:[#allocation5 + $0x4e8] sm:$0xff]
    %v296 = vld [vmem:[#allocation5 + $0x4f0] sm:$0xff]
    %v297 = vld [vmem:[#allocation5 + $0x4f8] sm:$0xff]
    %v298 = vld [vmem:[#allocation5 + $0x500] sm:$0xff]
    %v299 = vld [vmem:[#allocation5 + $0x508] sm:$0xff]
    %v300 = vld [vmem:[#allocation5 + $0x510] sm:$0xff]
    %v301 = vld [vmem:[#allocation5 + $0x518] sm:$0xff]
    %v302 = vld [vmem:[#allocation5 + $0x520] sm:$0xff]
    %v303 = vld [vmem:[#allocation5 + $0x528] sm:$0xff]
    %v304 = vld [vmem:[#allocation5 + $0x530] sm:$0xff]
    %v305 = vld [vmem:[#allocation5 + $0x538] sm:$0xff]
    %v306 = vld [vmem:[#allocation5 + $0x540] sm:$0xff]
    %v307 = vld [vmem:[#allocation5 + $0x548] sm:$0xff]
    %v308 = vld [vmem:[#allocation5 + $0x550] sm:$0xff]
    %v309 = vld [vmem:[#allocation5 + $0x558] sm:$0xff]
    %v310 = vld [vmem:[#allocation5 + $0x560] sm:$0xff]
    %v311 = vld [vmem:[#allocation5 + $0x568] sm:$0xff]
    %v312 = vld [vmem:[#allocation5 + $0x570] sm:$0xff]
    %v313 = vld [vmem:[#allocation5 + $0x578] sm:$0xff]
    %v314 = vld [vmem:[#allocation5 + $0x580] sm:$0xff]
    %v315 = vld [vmem:[#allocation5 + $0x588] sm:$0xff]
    %v316 = vld [vmem:[#allocation5 + $0x590] sm:$0xff]
    %v317 = vld [vmem:[#allocation5 + $0x598] sm:$0xff]
    %v318 = vld [vmem:[#allocation5 + $0x5a0] sm:$0xff]
    %v319 = vld [vmem:[#allocation5 + $0x5a8] sm:$0xff]
    %v320 = vld [vmem:[#allocation5 + $0x5b0] sm:$0xff]
    %v321 = vld [vmem:[#allocation5 + $0x5b8] sm:$0xff]
    %v322 = vld [vmem:[#allocation5 + $0x5c0] sm:$0xff]
    %v323 = vld [vmem:[#allocation5 + $0x5c8] sm:$0xff]
    %v324 = vld [vmem:[#allocation5 + $0x5d0] sm:$0xff]
    %v325 = vld [vmem:[#allocation5 + $0x5d8] sm:$0xff]
    %v326 = vld [vmem:[#allocation5 + $0x5e0] sm:$0xff]
    %v327 = vld [vmem:[#allocation5 + $0x5e8] sm:$0xff]
    %v328 = vld [vmem:[#allocation5 + $0x5f0] sm:$0xff]
    %v329 = vld [vmem:[#allocation5 + $0x5f8] sm:$0xff]
    %v330 = vld [vmem:[%s7] sm:$0xf]
    %v332 = vlaneseq
    %v333 = vshrl.u32 %v332, 7
    %v334 = vsub.s32 0, %v333
    %v335 = vrot.slane %v330, %v334
    %v336 = vlaneseq
    %v337 = vshrl.u32 %v336, 7
    %v338 = vsub.s32 1, %v337
    %v339 = vrot.slane %v330, %v338
    %v340 = vlaneseq
    %v341 = vshrl.u32 %v340, 7
    %v342 = vsub.s32 2, %v341
    %v343 = vrot.slane %v330, %v342
    %v344 = vlaneseq
    %v345 = vshrl.u32 %v344, 7
    %v346 = vsub.s32 3, %v345
    %v347 = vrot.slane %v330, %v346
    %v358 = vunpack.c.l.b16 %v132
    %v359 = vunpack.c.h.b16 %v132
    %v360 = vunpack.c.l.b16 %v133
    %v361 = vunpack.c.h.b16 %v133
    %v362 = vunpack.c.l.b16 %v134
    %v363 = vunpack.c.h.b16 %v134
    %v364 = vunpack.c.l.b16 %v135
    %v365 = vunpack.c.h.b16 %v135
    %v366 = vunpack.c.l.b16 %v136
    %v367 = vunpack.c.h.b16 %v136
    %v368 = vunpack.c.l.b16 %v137
    %v369 = vunpack.c.h.b16 %v137
    %v370 = vpack.c.b16 %v364, %v358
    %v371 = vpack.c.b16 %v365, %v359
    %v372 = vpack.c.b16 %v366, %v360
    %v373 = vpack.c.b16 %v367, %v361
    %v374 = vpack.c.b16 %v368, %v362
    %v375 = vpack.c.b16 %v369, %v363
    %v574 = vunpack.c.l.b16 %v138
    %v575 = vunpack.c.h.b16 %v138
    %v576 = vunpack.c.l.b16 %v139
    %v577 = vunpack.c.h.b16 %v139
    %v578 = vunpack.c.l.b16 %v140
    %v579 = vunpack.c.h.b16 %v140
    %v580 = vunpack.c.l.b16 %v141
    %v581 = vunpack.c.h.b16 %v141
    %v582 = vunpack.c.l.b16 %v142
    %v583 = vunpack.c.h.b16 %v142
    %v584 = vunpack.c.l.b16 %v143
    %v585 = vunpack.c.h.b16 %v143
    %v586 = vunpack.c.l.b16 %v144
    %v587 = vunpack.c.h.b16 %v144
    %v588 = vunpack.c.l.b16 %v145
    %v589 = vunpack.c.h.b16 %v145
    %v590 = vunpack.c.l.b16 %v146
    %v591 = vunpack.c.h.b16 %v146
    %v592 = vunpack.c.l.b16 %v147
    %v593 = vunpack.c.h.b16 %v147
    %v594 = vunpack.c.l.b16 %v148
    %v595 = vunpack.c.h.b16 %v148
    %v596 = vunpack.c.l.b16 %v149
    %v597 = vunpack.c.h.b16 %v149
    %v598 = vunpack.c.l.b16 %v150
    %v599 = vunpack.c.h.b16 %v150
    %v600 = vunpack.c.l.b16 %v151
    %v601 = vunpack.c.h.b16 %v151
    %v602 = vunpack.c.l.b16 %v152
    %v603 = vunpack.c.h.b16 %v152
    %v604 = vunpack.c.l.b16 %v153
    %v605 = vunpack.c.h.b16 %v153
    %v606 = vunpack.c.l.b16 %v154
    %v607 = vunpack.c.h.b16 %v154
    %v608 = vunpack.c.l.b16 %v155
    %v609 = vunpack.c.h.b16 %v155
    %v610 = vunpack.c.l.b16 %v156
    %v611 = vunpack.c.h.b16 %v156
    %v612 = vunpack.c.l.b16 %v157
    %v613 = vunpack.c.h.b16 %v157
    %v614 = vunpack.c.l.b16 %v158
    %v615 = vunpack.c.h.b16 %v158
    %v616 = vunpack.c.l.b16 %v159
    %v617 = vunpack.c.h.b16 %v159
    %v618 = vunpack.c.l.b16 %v160
    %v619 = vunpack.c.h.b16 %v160
    %v620 = vunpack.c.l.b16 %v161
    %v621 = vunpack.c.h.b16 %v161
    %v622 = vunpack.c.l.b16 %v162
    %v623 = vunpack.c.h.b16 %v162
    %v624 = vunpack.c.l.b16 %v163
    %v625 = vunpack.c.h.b16 %v163
    %v626 = vunpack.c.l.b16 %v164
    %v627 = vunpack.c.h.b16 %v164
    %v628 = vunpack.c.l.b16 %v165
    %v629 = vunpack.c.h.b16 %v165
    %v630 = vunpack.c.l.b16 %v166
    %v631 = vunpack.c.h.b16 %v166
    %v632 = vunpack.c.l.b16 %v167
    %v633 = vunpack.c.h.b16 %v167
    %v634 = vunpack.c.l.b16 %v168
    %v635 = vunpack.c.h.b16 %v168
    %v636 = vunpack.c.l.b16 %v169
    %v637 = vunpack.c.h.b16 %v169
    %v638 = vunpack.c.l.b16 %v170
    %v639 = vunpack.c.h.b16 %v170
    %v640 = vunpack.c.l.b16 %v171
    %v641 = vunpack.c.h.b16 %v171
    %v642 = vunpack.c.l.b16 %v172
    %v643 = vunpack.c.h.b16 %v172
    %v644 = vunpack.c.l.b16 %v173
    %v645 = vunpack.c.h.b16 %v173
    %v646 = vunpack.c.l.b16 %v174
    %v647 = vunpack.c.h.b16 %v174
    %v648 = vunpack.c.l.b16 %v175
    %v649 = vunpack.c.h.b16 %v175
    %v650 = vunpack.c.l.b16 %v176
    %v651 = vunpack.c.h.b16 %v176
    %v652 = vunpack.c.l.b16 %v177
    %v653 = vunpack.c.h.b16 %v177
    %v654 = vunpack.c.l.b16 %v178
    %v655 = vunpack.c.h.b16 %v178
    %v656 = vunpack.c.l.b16 %v179
    %v657 = vunpack.c.h.b16 %v179
    %v658 = vunpack.c.l.b16 %v180
    %v659 = vunpack.c.h.b16 %v180
    %v660 = vunpack.c.l.b16 %v181
    %v661 = vunpack.c.h.b16 %v181
    %v662 = vunpack.c.l.b16 %v182
    %v663 = vunpack.c.h.b16 %v182
    %v664 = vunpack.c.l.b16 %v183
    %v665 = vunpack.c.h.b16 %v183
    %v666 = vunpack.c.l.b16 %v184
    %v667 = vunpack.c.h.b16 %v184
    %v668 = vunpack.c.l.b16 %v185
    %v669 = vunpack.c.h.b16 %v185
    %v670 = vunpack.c.l.b16 %v186
    %v671 = vunpack.c.h.b16 %v186
    %v672 = vunpack.c.l.b16 %v187
    %v673 = vunpack.c.h.b16 %v187
    %v674 = vunpack.c.l.b16 %v188
    %v675 = vunpack.c.h.b16 %v188
    %v676 = vunpack.c.l.b16 %v189
    %v677 = vunpack.c.h.b16 %v189
    %v678 = vunpack.c.l.b16 %v190
    %v679 = vunpack.c.h.b16 %v190
    %v680 = vunpack.c.l.b16 %v191
    %v681 = vunpack.c.h.b16 %v191
    %v682 = vunpack.c.l.b16 %v192
    %v683 = vunpack.c.h.b16 %v192
    %v684 = vunpack.c.l.b16 %v193
    %v685 = vunpack.c.h.b16 %v193
    %v686 = vunpack.c.l.b16 %v194
    %v687 = vunpack.c.h.b16 %v194
    %v688 = vunpack.c.l.b16 %v195
    %v689 = vunpack.c.h.b16 %v195
    %v690 = vunpack.c.l.b16 %v196
    %v691 = vunpack.c.h.b16 %v196
    %v692 = vunpack.c.l.b16 %v197
    %v693 = vunpack.c.h.b16 %v197
    %v694 = vunpack.c.l.b16 %v198
    %v695 = vunpack.c.h.b16 %v198
    %v696 = vunpack.c.l.b16 %v199
    %v697 = vunpack.c.h.b16 %v199
    %v698 = vunpack.c.l.b16 %v200
    %v699 = vunpack.c.h.b16 %v200
    %v700 = vunpack.c.l.b16 %v201
    %v701 = vunpack.c.h.b16 %v201
    %v702 = vunpack.c.l.b16 %v202
    %v703 = vunpack.c.h.b16 %v202
    %v704 = vunpack.c.l.b16 %v203
    %v705 = vunpack.c.h.b16 %v203
    %v706 = vunpack.c.l.b16 %v204
    %v707 = vunpack.c.h.b16 %v204
    %v708 = vunpack.c.l.b16 %v205
    %v709 = vunpack.c.h.b16 %v205
    %v710 = vunpack.c.l.b16 %v206
    %v711 = vunpack.c.h.b16 %v206
    %v712 = vunpack.c.l.b16 %v207
    %v713 = vunpack.c.h.b16 %v207
    %v714 = vunpack.c.l.b16 %v208
    %v715 = vunpack.c.h.b16 %v208
    %v716 = vunpack.c.l.b16 %v209
    %v717 = vunpack.c.h.b16 %v209
    %v718 = vunpack.c.l.b16 %v210
    %v719 = vunpack.c.h.b16 %v210
    %v720 = vunpack.c.l.b16 %v211
    %v721 = vunpack.c.h.b16 %v211
    %v722 = vunpack.c.l.b16 %v212
    %v723 = vunpack.c.h.b16 %v212
    %v724 = vunpack.c.l.b16 %v213
    %v725 = vunpack.c.h.b16 %v213
    %v726 = vunpack.c.l.b16 %v214
    %v727 = vunpack.c.h.b16 %v214
    %v728 = vunpack.c.l.b16 %v215
    %v729 = vunpack.c.h.b16 %v215
    %v730 = vunpack.c.l.b16 %v216
    %v731 = vunpack.c.h.b16 %v216
    %v732 = vunpack.c.l.b16 %v217
    %v733 = vunpack.c.h.b16 %v217
    %v734 = vunpack.c.l.b16 %v218
    %v735 = vunpack.c.h.b16 %v218
    %v736 = vunpack.c.l.b16 %v219
    %v737 = vunpack.c.h.b16 %v219
    %v738 = vunpack.c.l.b16 %v220
    %v739 = vunpack.c.h.b16 %v220
    %v740 = vunpack.c.l.b16 %v221
    %v741 = vunpack.c.h.b16 %v221
    %v742 = vunpack.c.l.b16 %v222
    %v743 = vunpack.c.h.b16 %v222
    %v744 = vunpack.c.l.b16 %v223
    %v745 = vunpack.c.h.b16 %v223
    %v746 = vunpack.c.l.b16 %v224
    %v747 = vunpack.c.h.b16 %v224
    %v748 = vunpack.c.l.b16 %v225
    %v749 = vunpack.c.h.b16 %v225
    %v750 = vunpack.c.l.b16 %v226
    %v751 = vunpack.c.h.b16 %v226
    %v752 = vunpack.c.l.b16 %v227
    %v753 = vunpack.c.h.b16 %v227
    %v754 = vunpack.c.l.b16 %v228
    %v755 = vunpack.c.h.b16 %v228
    %v756 = vunpack.c.l.b16 %v229
    %v757 = vunpack.c.h.b16 %v229
    %v758 = vunpack.c.l.b16 %v230
    %v759 = vunpack.c.h.b16 %v230
    %v760 = vunpack.c.l.b16 %v231
    %v761 = vunpack.c.h.b16 %v231
    %v762 = vunpack.c.l.b16 %v232
    %v763 = vunpack.c.h.b16 %v232
    %v764 = vunpack.c.l.b16 %v233
    %v765 = vunpack.c.h.b16 %v233
    %v766 = vunpack.c.l.b16 %v234
    %v767 = vunpack.c.h.b16 %v234
    %v768 = vunpack.c.l.b16 %v235
    %v769 = vunpack.c.h.b16 %v235
    %v770 = vunpack.c.l.b16 %v236
    %v771 = vunpack.c.h.b16 %v236
    %v772 = vunpack.c.l.b16 %v237
    %v773 = vunpack.c.h.b16 %v237
    %v774 = vunpack.c.l.b16 %v238
    %v775 = vunpack.c.h.b16 %v238
    %v776 = vunpack.c.l.b16 %v239
    %v777 = vunpack.c.h.b16 %v239
    %v778 = vunpack.c.l.b16 %v240
    %v779 = vunpack.c.h.b16 %v240
    %v780 = vunpack.c.l.b16 %v241
    %v781 = vunpack.c.h.b16 %v241
    %v782 = vunpack.c.l.b16 %v242
    %v783 = vunpack.c.h.b16 %v242
    %v784 = vunpack.c.l.b16 %v243
    %v785 = vunpack.c.h.b16 %v243
    %v786 = vunpack.c.l.b16 %v244
    %v787 = vunpack.c.h.b16 %v244
    %v788 = vunpack.c.l.b16 %v245
    %v789 = vunpack.c.h.b16 %v245
    %v790 = vunpack.c.l.b16 %v246
    %v791 = vunpack.c.h.b16 %v246
    %v792 = vunpack.c.l.b16 %v247
    %v793 = vunpack.c.h.b16 %v247
    %v794 = vunpack.c.l.b16 %v248
    %v795 = vunpack.c.h.b16 %v248
    %v796 = vunpack.c.l.b16 %v249
    %v797 = vunpack.c.h.b16 %v249
    %v798 = vunpack.c.l.b16 %v250
    %v799 = vunpack.c.h.b16 %v250
    %v800 = vunpack.c.l.b16 %v251
    %v801 = vunpack.c.h.b16 %v251
    %v802 = vunpack.c.l.b16 %v252
    %v803 = vunpack.c.h.b16 %v252
    %v804 = vunpack.c.l.b16 %v253
    %v805 = vunpack.c.h.b16 %v253
    %v806 = vunpack.c.l.b16 %v254
    %v807 = vunpack.c.h.b16 %v254
    %v808 = vunpack.c.l.b16 %v255
    %v809 = vunpack.c.h.b16 %v255
    %v810 = vunpack.c.l.b16 %v256
    %v811 = vunpack.c.h.b16 %v256
    %v812 = vunpack.c.l.b16 %v257
    %v813 = vunpack.c.h.b16 %v257
    %v814 = vunpack.c.l.b16 %v258
    %v815 = vunpack.c.h.b16 %v258
    %v816 = vunpack.c.l.b16 %v259
    %v817 = vunpack.c.h.b16 %v259
    %v818 = vunpack.c.l.b16 %v260
    %v819 = vunpack.c.h.b16 %v260
    %v820 = vunpack.c.l.b16 %v261
    %v821 = vunpack.c.h.b16 %v261
    %v822 = vunpack.c.l.b16 %v262
    %v823 = vunpack.c.h.b16 %v262
    %v824 = vunpack.c.l.b16 %v263
    %v825 = vunpack.c.h.b16 %v263
    %v826 = vunpack.c.l.b16 %v264
    %v827 = vunpack.c.h.b16 %v264
    %v828 = vunpack.c.l.b16 %v265
    %v829 = vunpack.c.h.b16 %v265
    %v830 = vunpack.c.l.b16 %v266
    %v831 = vunpack.c.h.b16 %v266
    %v832 = vunpack.c.l.b16 %v267
    %v833 = vunpack.c.h.b16 %v267
    %v834 = vunpack.c.l.b16 %v268
    %v835 = vunpack.c.h.b16 %v268
    %v836 = vunpack.c.l.b16 %v269
    %v837 = vunpack.c.h.b16 %v269
    %v838 = vunpack.c.l.b16 %v270
    %v839 = vunpack.c.h.b16 %v270
    %v840 = vunpack.c.l.b16 %v271
    %v841 = vunpack.c.h.b16 %v271
    %v842 = vunpack.c.l.b16 %v272
    %v843 = vunpack.c.h.b16 %v272
    %v844 = vunpack.c.l.b16 %v273
    %v845 = vunpack.c.h.b16 %v273
    %v846 = vunpack.c.l.b16 %v274
    %v847 = vunpack.c.h.b16 %v274
    %v848 = vunpack.c.l.b16 %v275
    %v849 = vunpack.c.h.b16 %v275
    %v850 = vunpack.c.l.b16 %v276
    %v851 = vunpack.c.h.b16 %v276
    %v852 = vunpack.c.l.b16 %v277
    %v853 = vunpack.c.h.b16 %v277
    %v854 = vunpack.c.l.b16 %v278
    %v855 = vunpack.c.h.b16 %v278
    %v856 = vunpack.c.l.b16 %v279
    %v857 = vunpack.c.h.b16 %v279
    %v858 = vunpack.c.l.b16 %v280
    %v859 = vunpack.c.h.b16 %v280
    %v860 = vunpack.c.l.b16 %v281
    %v861 = vunpack.c.h.b16 %v281
    %v862 = vunpack.c.l.b16 %v282
    %v863 = vunpack.c.h.b16 %v282
    %v864 = vunpack.c.l.b16 %v283
    %v865 = vunpack.c.h.b16 %v283
    %v866 = vunpack.c.l.b16 %v284
    %v867 = vunpack.c.h.b16 %v284
    %v868 = vunpack.c.l.b16 %v285
    %v869 = vunpack.c.h.b16 %v285
    %v870 = vunpack.c.l.b16 %v286
    %v871 = vunpack.c.h.b16 %v286
    %v872 = vunpack.c.l.b16 %v287
    %v873 = vunpack.c.h.b16 %v287
    %v874 = vunpack.c.l.b16 %v288
    %v875 = vunpack.c.h.b16 %v288
    %v876 = vunpack.c.l.b16 %v289
    %v877 = vunpack.c.h.b16 %v289
    %v878 = vunpack.c.l.b16 %v290
    %v879 = vunpack.c.h.b16 %v290
    %v880 = vunpack.c.l.b16 %v291
    %v881 = vunpack.c.h.b16 %v291
    %v882 = vunpack.c.l.b16 %v292
    %v883 = vunpack.c.h.b16 %v292
    %v884 = vunpack.c.l.b16 %v293
    %v885 = vunpack.c.h.b16 %v293
    %v886 = vunpack.c.l.b16 %v294
    %v887 = vunpack.c.h.b16 %v294
    %v888 = vunpack.c.l.b16 %v295
    %v889 = vunpack.c.h.b16 %v295
    %v890 = vunpack.c.l.b16 %v296
    %v891 = vunpack.c.h.b16 %v296
    %v892 = vunpack.c.l.b16 %v297
    %v893 = vunpack.c.h.b16 %v297
    %v894 = vunpack.c.l.b16 %v298
    %v895 = vunpack.c.h.b16 %v298
    %v896 = vunpack.c.l.b16 %v299
    %v897 = vunpack.c.h.b16 %v299
    %v898 = vunpack.c.l.b16 %v300
    %v899 = vunpack.c.h.b16 %v300
    %v900 = vunpack.c.l.b16 %v301
    %v901 = vunpack.c.h.b16 %v301
    %v902 = vunpack.c.l.b16 %v302
    %v903 = vunpack.c.h.b16 %v302
    %v904 = vunpack.c.l.b16 %v303
    %v905 = vunpack.c.h.b16 %v303
    %v906 = vunpack.c.l.b16 %v304
    %v907 = vunpack.c.h.b16 %v304
    %v908 = vunpack.c.l.b16 %v305
    %v909 = vunpack.c.h.b16 %v305
    %v910 = vunpack.c.l.b16 %v306
    %v911 = vunpack.c.h.b16 %v306
    %v912 = vunpack.c.l.b16 %v307
    %v913 = vunpack.c.h.b16 %v307
    %v914 = vunpack.c.l.b16 %v308
    %v915 = vunpack.c.h.b16 %v308
    %v916 = vunpack.c.l.b16 %v309
    %v917 = vunpack.c.h.b16 %v309
    %v918 = vunpack.c.l.b16 %v310
    %v919 = vunpack.c.h.b16 %v310
    %v920 = vunpack.c.l.b16 %v311
    %v921 = vunpack.c.h.b16 %v311
    %v922 = vunpack.c.l.b16 %v312
    %v923 = vunpack.c.h.b16 %v312
    %v924 = vunpack.c.l.b16 %v313
    %v925 = vunpack.c.h.b16 %v313
    %v926 = vunpack.c.l.b16 %v314
    %v927 = vunpack.c.h.b16 %v314
    %v928 = vunpack.c.l.b16 %v315
    %v929 = vunpack.c.h.b16 %v315
    %v930 = vunpack.c.l.b16 %v316
    %v931 = vunpack.c.h.b16 %v316
    %v932 = vunpack.c.l.b16 %v317
    %v933 = vunpack.c.h.b16 %v317
    %v934 = vunpack.c.l.b16 %v318
    %v935 = vunpack.c.h.b16 %v318
    %v936 = vunpack.c.l.b16 %v319
    %v937 = vunpack.c.h.b16 %v319
    %v938 = vunpack.c.l.b16 %v320
    %v939 = vunpack.c.h.b16 %v320
    %v940 = vunpack.c.l.b16 %v321
    %v941 = vunpack.c.h.b16 %v321
    %v942 = vunpack.c.l.b16 %v322
    %v943 = vunpack.c.h.b16 %v322
    %v944 = vunpack.c.l.b16 %v323
    %v945 = vunpack.c.h.b16 %v323
    %v946 = vunpack.c.l.b16 %v324
    %v947 = vunpack.c.h.b16 %v324
    %v948 = vunpack.c.l.b16 %v325
    %v949 = vunpack.c.h.b16 %v325
    %v950 = vunpack.c.l.b16 %v326
    %v951 = vunpack.c.h.b16 %v326
    %v952 = vunpack.c.l.b16 %v327
    %v953 = vunpack.c.h.b16 %v327
    %v954 = vunpack.c.l.b16 %v328
    %v955 = vunpack.c.h.b16 %v328
    %v956 = vunpack.c.l.b16 %v329
    %v957 = vunpack.c.h.b16 %v329
    %v958 = vpack.c.b16 %v578, %v574
    %v959 = vpack.c.b16 %v579, %v575
    %v960 = vpack.c.b16 %v580, %v576
    %v961 = vpack.c.b16 %v581, %v577
    %v962 = vpack.c.b16 %v586, %v582
    %v963 = vpack.c.b16 %v587, %v583
    %v964 = vpack.c.b16 %v588, %v584
    %v965 = vpack.c.b16 %v589, %v585
    %v966 = vpack.c.b16 %v594, %v590
    %v967 = vpack.c.b16 %v595, %v591
    %v968 = vpack.c.b16 %v596, %v592
    %v969 = vpack.c.b16 %v597, %v593
    %v970 = vpack.c.b16 %v602, %v598
    %v971 = vpack.c.b16 %v603, %v599
    %v972 = vpack.c.b16 %v604, %v600
    %v973 = vpack.c.b16 %v605, %v601
    %v974 = vpack.c.b16 %v610, %v606
    %v975 = vpack.c.b16 %v611, %v607
    %v976 = vpack.c.b16 %v612, %v608
    %v977 = vpack.c.b16 %v613, %v609
    %v978 = vpack.c.b16 %v618, %v614
    %v979 = vpack.c.b16 %v619, %v615
    %v980 = vpack.c.b16 %v620, %v616
    %v981 = vpack.c.b16 %v621, %v617
    %v982 = vpack.c.b16 %v626, %v622
    %v983 = vpack.c.b16 %v627, %v623
    %v984 = vpack.c.b16 %v628, %v624
    %v985 = vpack.c.b16 %v629, %v625
    %v986 = vpack.c.b16 %v634, %v630
    %v987 = vpack.c.b16 %v635, %v631
    %v988 = vpack.c.b16 %v636, %v632
    %v989 = vpack.c.b16 %v637, %v633
    %v990 = vpack.c.b16 %v642, %v638
    %v991 = vpack.c.b16 %v643, %v639
    %v992 = vpack.c.b16 %v644, %v640
    %v993 = vpack.c.b16 %v645, %v641
    %v994 = vpack.c.b16 %v650, %v646
    %v995 = vpack.c.b16 %v651, %v647
    %v996 = vpack.c.b16 %v652, %v648
    %v997 = vpack.c.b16 %v653, %v649
    %v998 = vpack.c.b16 %v658, %v654
    %v999 = vpack.c.b16 %v659, %v655
    %v1000 = vpack.c.b16 %v660, %v656
    %v1001 = vpack.c.b16 %v661, %v657
    %v1002 = vpack.c.b16 %v666, %v662
    %v1003 = vpack.c.b16 %v667, %v663
    %v1004 = vpack.c.b16 %v668, %v664
    %v1005 = vpack.c.b16 %v669, %v665
    %v1006 = vpack.c.b16 %v674, %v670
    %v1007 = vpack.c.b16 %v675, %v671
    %v1008 = vpack.c.b16 %v676, %v672
    %v1009 = vpack.c.b16 %v677, %v673
    %v1010 = vpack.c.b16 %v682, %v678
    %v1011 = vpack.c.b16 %v683, %v679
    %v1012 = vpack.c.b16 %v684, %v680
    %v1013 = vpack.c.b16 %v685, %v681
    %v1014 = vpack.c.b16 %v690, %v686
    %v1015 = vpack.c.b16 %v691, %v687
    %v1016 = vpack.c.b16 %v692, %v688
    %v1017 = vpack.c.b16 %v693, %v689
    %v1018 = vpack.c.b16 %v698, %v694
    %v1019 = vpack.c.b16 %v699, %v695
    %v1020 = vpack.c.b16 %v700, %v696
    %v1021 = vpack.c.b16 %v701, %v697
    %v1022 = vpack.c.b16 %v706, %v702
    %v1023 = vpack.c.b16 %v707, %v703
    %v1024 = vpack.c.b16 %v708, %v704
    %v1025 = vpack.c.b16 %v709, %v705
    %v1026 = vpack.c.b16 %v714, %v710
    %v1027 = vpack.c.b16 %v715, %v711
    %v1028 = vpack.c.b16 %v716, %v712
    %v1029 = vpack.c.b16 %v717, %v713
    %v1030 = vpack.c.b16 %v722, %v718
    %v1031 = vpack.c.b16 %v723, %v719
    %v1032 = vpack.c.b16 %v724, %v720
    %v1033 = vpack.c.b16 %v725, %v721
    %v1034 = vpack.c.b16 %v730, %v726
    %v1035 = vpack.c.b16 %v731, %v727
    %v1036 = vpack.c.b16 %v732, %v728
    %v1037 = vpack.c.b16 %v733, %v729
    %v1038 = vpack.c.b16 %v738, %v734
    %v1039 = vpack.c.b16 %v739, %v735
    %v1040 = vpack.c.b16 %v740, %v736
    %v1041 = vpack.c.b16 %v741, %v737
    %v1042 = vpack.c.b16 %v746, %v742
    %v1043 = vpack.c.b16 %v747, %v743
    %v1044 = vpack.c.b16 %v748, %v744
    %v1045 = vpack.c.b16 %v749, %v745
    %v1046 = vpack.c.b16 %v754, %v750
    %v1047 = vpack.c.b16 %v755, %v751
    %v1048 = vpack.c.b16 %v756, %v752
    %v1049 = vpack.c.b16 %v757, %v753
    %v1050 = vpack.c.b16 %v762, %v758
    %v1051 = vpack.c.b16 %v763, %v759
    %v1052 = vpack.c.b16 %v764, %v760
    %v1053 = vpack.c.b16 %v765, %v761
    %v1054 = vpack.c.b16 %v770, %v766
    %v1055 = vpack.c.b16 %v771, %v767
    %v1056 = vpack.c.b16 %v772, %v768
    %v1057 = vpack.c.b16 %v773, %v769
    %v1058 = vpack.c.b16 %v778, %v774
    %v1059 = vpack.c.b16 %v779, %v775
    %v1060 = vpack.c.b16 %v780, %v776
    %v1061 = vpack.c.b16 %v781, %v777
    %v1062 = vpack.c.b16 %v786, %v782
    %v1063 = vpack.c.b16 %v787, %v783
    %v1064 = vpack.c.b16 %v788, %v784
    %v1065 = vpack.c.b16 %v789, %v785
    %v1066 = vpack.c.b16 %v794, %v790
    %v1067 = vpack.c.b16 %v795, %v791
    %v1068 = vpack.c.b16 %v796, %v792
    %v1069 = vpack.c.b16 %v797, %v793
    %v1070 = vpack.c.b16 %v802, %v798
    %v1071 = vpack.c.b16 %v803, %v799
    %v1072 = vpack.c.b16 %v804, %v800
    %v1073 = vpack.c.b16 %v805, %v801
    %v1074 = vpack.c.b16 %v810, %v806
    %v1075 = vpack.c.b16 %v811, %v807
    %v1076 = vpack.c.b16 %v812, %v808
    %v1077 = vpack.c.b16 %v813, %v809
    %v1078 = vpack.c.b16 %v818, %v814
    %v1079 = vpack.c.b16 %v819, %v815
    %v1080 = vpack.c.b16 %v820, %v816
    %v1081 = vpack.c.b16 %v821, %v817
    %v1082 = vpack.c.b16 %v826, %v822
    %v1083 = vpack.c.b16 %v827, %v823
    %v1084 = vpack.c.b16 %v828, %v824
    %v1085 = vpack.c.b16 %v829, %v825
    %v1086 = vpack.c.b16 %v834, %v830
    %v1087 = vpack.c.b16 %v835, %v831
    %v1088 = vpack.c.b16 %v836, %v832
    %v1089 = vpack.c.b16 %v837, %v833
    %v1090 = vpack.c.b16 %v842, %v838
    %v1091 = vpack.c.b16 %v843, %v839
    %v1092 = vpack.c.b16 %v844, %v840
    %v1093 = vpack.c.b16 %v845, %v841
    %v1094 = vpack.c.b16 %v850, %v846
    %v1095 = vpack.c.b16 %v851, %v847
    %v1096 = vpack.c.b16 %v852, %v848
    %v1097 = vpack.c.b16 %v853, %v849
    %v1098 = vpack.c.b16 %v858, %v854
    %v1099 = vpack.c.b16 %v859, %v855
    %v1100 = vpack.c.b16 %v860, %v856
    %v1101 = vpack.c.b16 %v861, %v857
    %v1102 = vpack.c.b16 %v866, %v862
    %v1103 = vpack.c.b16 %v867, %v863
    %v1104 = vpack.c.b16 %v868, %v864
    %v1105 = vpack.c.b16 %v869, %v865
    %v1106 = vpack.c.b16 %v874, %v870
    %v1107 = vpack.c.b16 %v875, %v871
    %v1108 = vpack.c.b16 %v876, %v872
    %v1109 = vpack.c.b16 %v877, %v873
    %v1110 = vpack.c.b16 %v882, %v878
    %v1111 = vpack.c.b16 %v883, %v879
    %v1112 = vpack.c.b16 %v884, %v880
    %v1113 = vpack.c.b16 %v885, %v881
    %v1114 = vpack.c.b16 %v890, %v886
    %v1115 = vpack.c.b16 %v891, %v887
    %v1116 = vpack.c.b16 %v892, %v888
    %v1117 = vpack.c.b16 %v893, %v889
    %v1118 = vpack.c.b16 %v898, %v894
    %v1119 = vpack.c.b16 %v899, %v895
    %v1120 = vpack.c.b16 %v900, %v896
    %v1121 = vpack.c.b16 %v901, %v897
    %v1122 = vpack.c.b16 %v906, %v902
    %v1123 = vpack.c.b16 %v907, %v903
    %v1124 = vpack.c.b16 %v908, %v904
    %v1125 = vpack.c.b16 %v909, %v905
    %v1126 = vpack.c.b16 %v914, %v910
    %v1127 = vpack.c.b16 %v915, %v911
    %v1128 = vpack.c.b16 %v916, %v912
    %v1129 = vpack.c.b16 %v917, %v913
    %v1130 = vpack.c.b16 %v922, %v918
    %v1131 = vpack.c.b16 %v923, %v919
    %v1132 = vpack.c.b16 %v924, %v920
    %v1133 = vpack.c.b16 %v925, %v921
    %v1134 = vpack.c.b16 %v930, %v926
    %v1135 = vpack.c.b16 %v931, %v927
    %v1136 = vpack.c.b16 %v932, %v928
    %v1137 = vpack.c.b16 %v933, %v929
    %v1138 = vpack.c.b16 %v938, %v934
    %v1139 = vpack.c.b16 %v939, %v935
    %v1140 = vpack.c.b16 %v940, %v936
    %v1141 = vpack.c.b16 %v941, %v937
    %v1142 = vpack.c.b16 %v946, %v942
    %v1143 = vpack.c.b16 %v947, %v943
    %v1144 = vpack.c.b16 %v948, %v944
    %v1145 = vpack.c.b16 %v949, %v945
    %v1146 = vpack.c.b16 %v954, %v950
    %v1147 = vpack.c.b16 %v955, %v951
    %v1148 = vpack.c.b16 %v956, %v952
    %v1149 = vpack.c.b16 %v957, %v953
    %1342 = vmatprep.subr.bf16.mxu0 %v987
    %1343 = vmatpush1.bf16.msra.mxu0 %v986
    %1344 = vmatprep.subr.bf16.mxu0 %v983
    %1345 = vmatpush1.bf16.msra.mxu0 %v982
    %1346 = vmatprep.subr.bf16.mxu0 %v979
    %1347 = vmatpush1.bf16.msra.mxu0 %v978
    %1348 = vmatprep.subr.bf16.mxu0 %v975
    %1349 = vmatpush1.bf16.msra.mxu0 %v974
    %1350 = vmatprep.subr.bf16.mxu0 %v971
    %1351 = vmatpush1.bf16.msra.mxu0 %v970
    %1352 = vmatprep.subr.bf16.mxu0 %v967
    %1353 = vmatpush1.bf16.msra.mxu0 %v966
    %1354 = vmatprep.subr.bf16.mxu0 %v963
    %1355 = vmatpush1.bf16.msra.mxu0 %v962
    %1356 = vmatprep.subr.bf16.mxu0 %v959
    %1357 = vmatpush1.bf16.msra.mxu0 %v958
    %1358 = vmatprep.subr.bf16.mxu0 %v1019
    %1359 = vmatpush2.bf16.msra.mxu0 %v1018
    %1360 = vmatprep.subr.bf16.mxu0 %v1015
    %1361 = vmatpush2.bf16.msra.mxu0 %v1014
    %1362 = vmatprep.subr.bf16.mxu0 %v1011
    %1363 = vmatpush2.bf16.msra.mxu0 %v1010
    %1364 = vmatprep.subr.bf16.mxu0 %v1007
    %1365 = vmatpush2.bf16.msra.mxu0 %v1006
    %1366 = vmatprep.subr.bf16.mxu0 %v1003
    %1367 = vmatpush2.bf16.msra.mxu0 %v1002
    %1368 = vmatprep.subr.bf16.mxu0 %v999
    %1369 = vmatpush2.bf16.msra.mxu0 %v998
    %1370 = vmatprep.subr.bf16.mxu0 %v995
    %1371 = vmatpush2.bf16.msra.mxu0 %v994
    %1372 = vmatprep.subr.bf16.mxu0 %v991
    %1373 = vmatpush2.bf16.msra.mxu0 %v990
    %1374 = vmatprep.mubr.bf16.mxu0 %v371
    %1375 = vmatmul.mubr.bf16.gmra.mxu0 %v370
    %v1376 = vpop.f32.mrf.mxu0
    %v1377 = vadd.f32 %v335, %v1376
    %v1378 = vpop.f32.mrf.mxu0
    %v1379 = vadd.f32 %v339, %v1378
    %v1380 = vpop.f32.mrf.mxu0
    %v1381 = vadd.f32 %v335, %v1380
    %v1382 = vpop.f32.mrf.mxu0
    %v1383 = vadd.f32 %v339, %v1382
    %1384 = vdwg.mxu0
    %1385 = vmatprep.subr.bf16.mxu0 %v1051
    %1386 = vmatpush1.bf16.msra.mxu0 %v1050
    %1387 = vmatprep.subr.bf16.mxu0 %v1047
    %1388 = vmatpush1.bf16.msra.mxu0 %v1046
    %1389 = vmatprep.subr.bf16.mxu0 %v1043
    %1390 = vmatpush1.bf16.msra.mxu0 %v1042
    %1391 = vmatprep.subr.bf16.mxu0 %v1039
    %1392 = vmatpush1.bf16.msra.mxu0 %v1038
    %1393 = vmatprep.subr.bf16.mxu0 %v1035
    %1394 = vmatpush1.bf16.msra.mxu0 %v1034
    %1395 = vmatprep.subr.bf16.mxu0 %v1031
    %1396 = vmatpush1.bf16.msra.mxu0 %v1030
    %1397 = vmatprep.subr.bf16.mxu0 %v1027
    %1398 = vmatpush1.bf16.msra.mxu0 %v1026
    %1399 = vmatprep.subr.bf16.mxu0 %v1023
    %1400 = vmatpush1.bf16.msra.mxu0 %v1022
    %1401 = vmatprep.subr.bf16.mxu0 %v1083
    %1402 = vmatpush2.bf16.msra.mxu0 %v1082
    %1403 = vmatprep.subr.bf16.mxu0 %v1079
    %1404 = vmatpush2.bf16.msra.mxu0 %v1078
    %1405 = vmatprep.subr.bf16.mxu0 %v1075
    %1406 = vmatpush2.bf16.msra.mxu0 %v1074
    %1407 = vmatprep.subr.bf16.mxu0 %v1071
    %1408 = vmatpush2.bf16.msra.mxu0 %v1070
    %1409 = vmatprep.subr.bf16.mxu0 %v1067
    %1410 = vmatpush2.bf16.msra.mxu0 %v1066
    %1411 = vmatprep.subr.bf16.mxu0 %v1063
    %1412 = vmatpush2.bf16.msra.mxu0 %v1062
    %1413 = vmatprep.subr.bf16.mxu0 %v1059
    %1414 = vmatpush2.bf16.msra.mxu0 %v1058
    %1415 = vmatprep.subr.bf16.mxu0 %v1055
    %1416 = vmatpush2.bf16.msra.mxu0 %v1054
    %1417 = vmatprep.mubr.bf16.mxu0 %v373
    %1418 = vmatmul.mubr.bf16.gmra.mxu0 %v372
    %v1419 = vpop.f32.mrf.mxu0
    %v1420 = vadd.f32 %v1377, %v1419
    %v1421 = vpop.f32.mrf.mxu0
    %v1422 = vadd.f32 %v1379, %v1421
    %v1423 = vpop.f32.mrf.mxu0
    %v1424 = vadd.f32 %v1381, %v1423
    %v1425 = vpop.f32.mrf.mxu0
    %v1426 = vadd.f32 %v1383, %v1425
    %1427 = vdwg.mxu0
    %1428 = vmatprep.subr.bf16.mxu0 %v1115
    %1429 = vmatpush1.bf16.msra.mxu0 %v1114
    %1430 = vmatprep.subr.bf16.mxu0 %v1111
    %1431 = vmatpush1.bf16.msra.mxu0 %v1110
    %1432 = vmatprep.subr.bf16.mxu0 %v1107
    %1433 = vmatpush1.bf16.msra.mxu0 %v1106
    %1434 = vmatprep.subr.bf16.mxu0 %v1103
    %1435 = vmatpush1.bf16.msra.mxu0 %v1102
    %1436 = vmatprep.subr.bf16.mxu0 %v1099
    %1437 = vmatpush1.bf16.msra.mxu0 %v1098
    %1438 = vmatprep.subr.bf16.mxu0 %v1095
    %1439 = vmatpush1.bf16.msra.mxu0 %v1094
    %1440 = vmatprep.subr.bf16.mxu0 %v1091
    %1441 = vmatpush1.bf16.msra.mxu0 %v1090
    %1442 = vmatprep.subr.bf16.mxu0 %v1087
    %1443 = vmatpush1.bf16.msra.mxu0 %v1086
    %1444 = vmatprep.subr.bf16.mxu0 %v1147
    %1445 = vmatpush2.bf16.msra.mxu0 %v1146
    %1446 = vmatprep.subr.bf16.mxu0 %v1143
    %1447 = vmatpush2.bf16.msra.mxu0 %v1142
    %1448 = vmatprep.subr.bf16.mxu0 %v1139
    %1449 = vmatpush2.bf16.msra.mxu0 %v1138
    %1450 = vmatprep.subr.bf16.mxu0 %v1135
    %1451 = vmatpush2.bf16.msra.mxu0 %v1134
    %1452 = vmatprep.subr.bf16.mxu0 %v1131
    %1453 = vmatpush2.bf16.msra.mxu0 %v1130
    %1454 = vmatprep.subr.bf16.mxu0 %v1127
    %1455 = vmatpush2.bf16.msra.mxu0 %v1126
    %1456 = vmatprep.subr.bf16.mxu0 %v1123
    %1457 = vmatpush2.bf16.msra.mxu0 %v1122
    %1458 = vmatprep.subr.bf16.mxu0 %v1119
    %1459 = vmatpush2.bf16.msra.mxu0 %v1118
    %1460 = vmatprep.mubr.bf16.mxu0 %v375
    %1461 = vmatmul.mubr.bf16.gmra.mxu0 %v374
    %v1462 = vpop.f32.mrf.mxu0
    %v1463 = vadd.f32 %v1420, %v1462
    %v1464 = vpop.f32.mrf.mxu0
    %v1465 = vadd.f32 %v1422, %v1464
    %v1466 = vpop.f32.mrf.mxu0
    %v1467 = vadd.f32 %v1424, %v1466
    %v1468 = vpop.f32.mrf.mxu0
    %v1469 = vadd.f32 %v1426, %v1468
    %1470 = vdwg.mxu0
    %1471 = vmatprep.subr.bf16.mxu0 %v989
    %1472 = vmatpush1.bf16.msra.mxu0 %v988
    %1473 = vmatprep.subr.bf16.mxu0 %v985
    %1474 = vmatpush1.bf16.msra.mxu0 %v984
    %1475 = vmatprep.subr.bf16.mxu0 %v981
    %1476 = vmatpush1.bf16.msra.mxu0 %v980
    %1477 = vmatprep.subr.bf16.mxu0 %v977
    %1478 = vmatpush1.bf16.msra.mxu0 %v976
    %1479 = vmatprep.subr.bf16.mxu0 %v973
    %1480 = vmatpush1.bf16.msra.mxu0 %v972
    %1481 = vmatprep.subr.bf16.mxu0 %v969
    %1482 = vmatpush1.bf16.msra.mxu0 %v968
    %1483 = vmatprep.subr.bf16.mxu0 %v965
    %1484 = vmatpush1.bf16.msra.mxu0 %v964
    %1485 = vmatprep.subr.bf16.mxu0 %v961
    %1486 = vmatpush1.bf16.msra.mxu0 %v960
    %1487 = vmatprep.subr.bf16.mxu0 %v1021
    %1488 = vmatpush2.bf16.msra.mxu0 %v1020
    %1489 = vmatprep.subr.bf16.mxu0 %v1017
    %1490 = vmatpush2.bf16.msra.mxu0 %v1016
    %1491 = vmatprep.subr.bf16.mxu0 %v1013
    %1492 = vmatpush2.bf16.msra.mxu0 %v1012
    %1493 = vmatprep.subr.bf16.mxu0 %v1009
    %1494 = vmatpush2.bf16.msra.mxu0 %v1008
    %1495 = vmatprep.subr.bf16.mxu0 %v1005
    %1496 = vmatpush2.bf16.msra.mxu0 %v1004
    %1497 = vmatprep.subr.bf16.mxu0 %v1001
    %1498 = vmatpush2.bf16.msra.mxu0 %v1000
    %1499 = vmatprep.subr.bf16.mxu0 %v997
    %1500 = vmatpush2.bf16.msra.mxu0 %v996
    %1501 = vmatprep.subr.bf16.mxu0 %v993
    %1502 = vmatpush2.bf16.msra.mxu0 %v992
    %1503 = vmatprep.mubr.bf16.mxu0 %v371
    %1504 = vmatmul.mubr.bf16.gmra.mxu0 %v370
    %v1505 = vpop.f32.mrf.mxu0
    %v1506 = vadd.f32 %v343, %v1505
    %v1507 = vpop.f32.mrf.mxu0
    %v1508 = vadd.f32 %v347, %v1507
    %v1509 = vpop.f32.mrf.mxu0
    %v1510 = vadd.f32 %v343, %v1509
    %v1511 = vpop.f32.mrf.mxu0
    %v1512 = vadd.f32 %v347, %v1511
    %1513 = vdwg.mxu0
    %1514 = vmatprep.subr.bf16.mxu0 %v1053
    %1515 = vmatpush1.bf16.msra.mxu0 %v1052
    %1516 = vmatprep.subr.bf16.mxu0 %v1049
    %1517 = vmatpush1.bf16.msra.mxu0 %v1048
    %1518 = vmatprep.subr.bf16.mxu0 %v1045
    %1519 = vmatpush1.bf16.msra.mxu0 %v1044
    %1520 = vmatprep.subr.bf16.mxu0 %v1041
    %1521 = vmatpush1.bf16.msra.mxu0 %v1040
    %1522 = vmatprep.subr.bf16.mxu0 %v1037
    %1523 = vmatpush1.bf16.msra.mxu0 %v1036
    %1524 = vmatprep.subr.bf16.mxu0 %v1033
    %1525 = vmatpush1.bf16.msra.mxu0 %v1032
    %1526 = vmatprep.subr.bf16.mxu0 %v1029
    %1527 = vmatpush1.bf16.msra.mxu0 %v1028
    %1528 = vmatprep.subr.bf16.mxu0 %v1025
    %1529 = vmatpush1.bf16.msra.mxu0 %v1024
    %1530 = vmatprep.subr.bf16.mxu0 %v1085
    %1531 = vmatpush2.bf16.msra.mxu0 %v1084
    %1532 = vmatprep.subr.bf16.mxu0 %v1081
    %1533 = vmatpush2.bf16.msra.mxu0 %v1080
    %1534 = vmatprep.subr.bf16.mxu0 %v1077
    %1535 = vmatpush2.bf16.msra.mxu0 %v1076
    %1536 = vmatprep.subr.bf16.mxu0 %v1073
    %1537 = vmatpush2.bf16.msra.mxu0 %v1072
    %1538 = vmatprep.subr.bf16.mxu0 %v1069
    %1539 = vmatpush2.bf16.msra.mxu0 %v1068
    %1540 = vmatprep.subr.bf16.mxu0 %v1065
    %1541 = vmatpush2.bf16.msra.mxu0 %v1064
    %1542 = vmatprep.subr.bf16.mxu0 %v1061
    %1543 = vmatpush2.bf16.msra.mxu0 %v1060
    %1544 = vmatprep.subr.bf16.mxu0 %v1057
    %1545 = vmatpush2.bf16.msra.mxu0 %v1056
    %1546 = vmatprep.mubr.bf16.mxu0 %v373
    %1547 = vmatmul.mubr.bf16.gmra.mxu0 %v372
    %v1548 = vpop.f32.mrf.mxu0
    %v1549 = vadd.f32 %v1506, %v1548
    %v1550 = vpop.f32.mrf.mxu0
    %v1551 = vadd.f32 %v1508, %v1550
    %v1552 = vpop.f32.mrf.mxu0
    %v1553 = vadd.f32 %v1510, %v1552
    %v1554 = vpop.f32.mrf.mxu0
    %v1555 = vadd.f32 %v1512, %v1554
    %1556 = vdwg.mxu0
    %1557 = vmatprep.subr.bf16.mxu0 %v1117
    %1558 = vmatpush1.bf16.msra.mxu0 %v1116
    %1559 = vmatprep.subr.bf16.mxu0 %v1113
    %1560 = vmatpush1.bf16.msra.mxu0 %v1112
    %1561 = vmatprep.subr.bf16.mxu0 %v1109
    %1562 = vmatpush1.bf16.msra.mxu0 %v1108
    %1563 = vmatprep.subr.bf16.mxu0 %v1105
    %1564 = vmatpush1.bf16.msra.mxu0 %v1104
    %1565 = vmatprep.subr.bf16.mxu0 %v1101
    %1566 = vmatpush1.bf16.msra.mxu0 %v1100
    %1567 = vmatprep.subr.bf16.mxu0 %v1097
    %1568 = vmatpush1.bf16.msra.mxu0 %v1096
    %1569 = vmatprep.subr.bf16.mxu0 %v1093
    %1570 = vmatpush1.bf16.msra.mxu0 %v1092
    %1571 = vmatprep.subr.bf16.mxu0 %v1089
    %1572 = vmatpush1.bf16.msra.mxu0 %v1088
    %1573 = vmatprep.subr.bf16.mxu0 %v1149
    %1574 = vmatpush2.bf16.msra.mxu0 %v1148
    %1575 = vmatprep.subr.bf16.mxu0 %v1145
    %1576 = vmatpush2.bf16.msra.mxu0 %v1144
    %1577 = vmatprep.subr.bf16.mxu0 %v1141
    %1578 = vmatpush2.bf16.msra.mxu0 %v1140
    %1579 = vmatprep.subr.bf16.mxu0 %v1137
    %1580 = vmatpush2.bf16.msra.mxu0 %v1136
    %1581 = vmatprep.subr.bf16.mxu0 %v1133
    %1582 = vmatpush2.bf16.msra.mxu0 %v1132
    %1583 = vmatprep.subr.bf16.mxu0 %v1129
    %1584 = vmatpush2.bf16.msra.mxu0 %v1128
    %1585 = vmatprep.subr.bf16.mxu0 %v1125
    %1586 = vmatpush2.bf16.msra.mxu0 %v1124
    %1587 = vmatprep.subr.bf16.mxu0 %v1121
    %1588 = vmatpush2.bf16.msra.mxu0 %v1120
    %1589 = vmatprep.mubr.bf16.mxu0 %v375
    %1590 = vmatmul.mubr.bf16.gmra.mxu0 %v374
    %v1591 = vpop.f32.mrf.mxu0
    %v1592 = vadd.f32 %v1549, %v1591
    %v1593 = vpop.f32.mrf.mxu0
    %v1594 = vadd.f32 %v1551, %v1593
    %v1595 = vpop.f32.mrf.mxu0
    %v1596 = vadd.f32 %v1553, %v1595
    %v1597 = vpop.f32.mrf.mxu0
    %v1598 = vadd.f32 %v1555, %v1597
    %1599 = vdwg.mxu0
    %v1600 = vmax.f32 %v1463, 0.0
    %v1601 = vmax.f32 %v1465, 0.0
    %v1602 = vmax.f32 %v1592, 0.0
    %v1603 = vmax.f32 %v1594, 0.0
    %v1604 = vmax.f32 %v1467, 0.0
    %v1605 = vmax.f32 %v1469, 0.0
    %v1606 = vmax.f32 %v1596, 0.0
    %v1607 = vmax.f32 %v1598, 0.0
    %v1608 = vpack.c.bf16 %v1604, %v1600
    %v1609 = vpack.c.bf16 %v1605, %v1601
    %v1610 = vpack.c.bf16 %v1606, %v1602
    %v1611 = vpack.c.bf16 %v1607, %v1603
    %v1612 = vld [vmem:[#allocation7] sm:$0xff]
    %v1613 = vld [vmem:[#allocation7 + $0x8] sm:$0xff]
    %v1614 = vld [vmem:[#allocation7 + $0x10] sm:$0xff]
    %v1615 = vld [vmem:[#allocation7 + $0x18] sm:$0xff]
    %v1616 = vld [vmem:[#allocation7 + $0x20] sm:$0xff]
    %v1617 = vld [vmem:[#allocation7 + $0x28] sm:$0xff]
    %v1618 = vld [vmem:[#allocation7 + $0x30] sm:$0xff]
    %v1619 = vld [vmem:[#allocation7 + $0x38] sm:$0xff]
    %v1620 = vld [vmem:[#allocation7 + $0x40] sm:$0xff]
    %v1621 = vld [vmem:[#allocation7 + $0x48] sm:$0xff]
    %v1622 = vld [vmem:[#allocation7 + $0x50] sm:$0xff]
    %v1623 = vld [vmem:[#allocation7 + $0x58] sm:$0xff]
    %v1624 = vld [vmem:[#allocation7 + $0x60] sm:$0xff]
    %v1625 = vld [vmem:[#allocation7 + $0x68] sm:$0xff]
    %v1626 = vld [vmem:[#allocation7 + $0x70] sm:$0xff]
    %v1627 = vld [vmem:[#allocation7 + $0x78] sm:$0xff]
    %v1628 = vld [vmem:[#allocation7 + $0x80] sm:$0xff]
    %v1629 = vld [vmem:[#allocation7 + $0x88] sm:$0xff]
    %v1630 = vld [vmem:[#allocation7 + $0x90] sm:$0xff]
    %v1631 = vld [vmem:[#allocation7 + $0x98] sm:$0xff]
    %v1632 = vld [vmem:[#allocation7 + $0xa0] sm:$0xff]
    %v1633 = vld [vmem:[#allocation7 + $0xa8] sm:$0xff]
    %v1634 = vld [vmem:[#allocation7 + $0xb0] sm:$0xff]
    %v1635 = vld [vmem:[#allocation7 + $0xb8] sm:$0xff]
    %v1636 = vld [vmem:[#allocation7 + $0xc0] sm:$0xff]
    %v1637 = vld [vmem:[#allocation7 + $0xc8] sm:$0xff]
    %v1638 = vld [vmem:[#allocation7 + $0xd0] sm:$0xff]
    %v1639 = vld [vmem:[#allocation7 + $0xd8] sm:$0xff]
    %v1640 = vld [vmem:[#allocation7 + $0xe0] sm:$0xff]
    %v1641 = vld [vmem:[#allocation7 + $0xe8] sm:$0xff]
    %v1642 = vld [vmem:[#allocation7 + $0xf0] sm:$0xff]
    %v1643 = vld [vmem:[#allocation7 + $0xf8] sm:$0xff]
    %v1644 = vld [vmem:[#allocation7 + $0x100] sm:$0xff]
    %v1645 = vld [vmem:[#allocation7 + $0x108] sm:$0xff]
    %v1646 = vld [vmem:[#allocation7 + $0x110] sm:$0xff]
    %v1647 = vld [vmem:[#allocation7 + $0x118] sm:$0xff]
    %v1648 = vld [vmem:[#allocation7 + $0x120] sm:$0xff]
    %v1649 = vld [vmem:[#allocation7 + $0x128] sm:$0xff]
    %v1650 = vld [vmem:[#allocation7 + $0x130] sm:$0xff]
    %v1651 = vld [vmem:[#allocation7 + $0x138] sm:$0xff]
    %v1652 = vld [vmem:[#allocation7 + $0x140] sm:$0xff]
    %v1653 = vld [vmem:[#allocation7 + $0x148] sm:$0xff]
    %v1654 = vld [vmem:[#allocation7 + $0x150] sm:$0xff]
    %v1655 = vld [vmem:[#allocation7 + $0x158] sm:$0xff]
    %v1656 = vld [vmem:[#allocation7 + $0x160] sm:$0xff]
    %v1657 = vld [vmem:[#allocation7 + $0x168] sm:$0xff]
    %v1658 = vld [vmem:[#allocation7 + $0x170] sm:$0xff]
    %v1659 = vld [vmem:[#allocation7 + $0x178] sm:$0xff]
    %v1660 = vld [vmem:[#allocation7 + $0x180] sm:$0xff]
    %v1661 = vld [vmem:[#allocation7 + $0x188] sm:$0xff]
    %v1662 = vld [vmem:[#allocation7 + $0x190] sm:$0xff]
    %v1663 = vld [vmem:[#allocation7 + $0x198] sm:$0xff]
    %v1664 = vld [vmem:[#allocation7 + $0x1a0] sm:$0xff]
    %v1665 = vld [vmem:[#allocation7 + $0x1a8] sm:$0xff]
    %v1666 = vld [vmem:[#allocation7 + $0x1b0] sm:$0xff]
    %v1667 = vld [vmem:[#allocation7 + $0x1b8] sm:$0xff]
    %v1668 = vld [vmem:[#allocation7 + $0x1c0] sm:$0xff]
    %v1669 = vld [vmem:[#allocation7 + $0x1c8] sm:$0xff]
    %v1670 = vld [vmem:[#allocation7 + $0x1d0] sm:$0xff]
    %v1671 = vld [vmem:[#allocation7 + $0x1d8] sm:$0xff]
    %v1672 = vld [vmem:[#allocation7 + $0x1e0] sm:$0xff]
    %v1673 = vld [vmem:[#allocation7 + $0x1e8] sm:$0xff]
    %v1674 = vld [vmem:[#allocation7 + $0x1f0] sm:$0xff]
    %v1675 = vld [vmem:[#allocation7 + $0x1f8] sm:$0xff]
    %v1676 = vld [vmem:[%s8] sm:$0x3]
    %v1678 = vlaneseq
    %v1679 = vshrl.u32 %v1678, 7
    %v1680 = vsub.s32 0, %v1679
    %v1681 = vrot.slane %v1676, %v1680
    %v1682 = vlaneseq
    %v1683 = vshrl.u32 %v1682, 7
    %v1684 = vsub.s32 1, %v1683
    %v1685 = vrot.slane %v1676, %v1684
    %v1752 = vunpack.c.l.b16 %v1612
    %v1753 = vunpack.c.h.b16 %v1612
    %v1754 = vunpack.c.l.b16 %v1613
    %v1755 = vunpack.c.h.b16 %v1613
    %v1756 = vunpack.c.l.b16 %v1614
    %v1757 = vunpack.c.h.b16 %v1614
    %v1758 = vunpack.c.l.b16 %v1615
    %v1759 = vunpack.c.h.b16 %v1615
    %v1760 = vunpack.c.l.b16 %v1616
    %v1761 = vunpack.c.h.b16 %v1616
    %v1762 = vunpack.c.l.b16 %v1617
    %v1763 = vunpack.c.h.b16 %v1617
    %v1764 = vunpack.c.l.b16 %v1618
    %v1765 = vunpack.c.h.b16 %v1618
    %v1766 = vunpack.c.l.b16 %v1619
    %v1767 = vunpack.c.h.b16 %v1619
    %v1768 = vunpack.c.l.b16 %v1620
    %v1769 = vunpack.c.h.b16 %v1620
    %v1770 = vunpack.c.l.b16 %v1621
    %v1771 = vunpack.c.h.b16 %v1621
    %v1772 = vunpack.c.l.b16 %v1622
    %v1773 = vunpack.c.h.b16 %v1622
    %v1774 = vunpack.c.l.b16 %v1623
    %v1775 = vunpack.c.h.b16 %v1623
    %v1776 = vunpack.c.l.b16 %v1624
    %v1777 = vunpack.c.h.b16 %v1624
    %v1778 = vunpack.c.l.b16 %v1625
    %v1779 = vunpack.c.h.b16 %v1625
    %v1780 = vunpack.c.l.b16 %v1626
    %v1781 = vunpack.c.h.b16 %v1626
    %v1782 = vunpack.c.l.b16 %v1627
    %v1783 = vunpack.c.h.b16 %v1627
    %v1784 = vunpack.c.l.b16 %v1628
    %v1785 = vunpack.c.h.b16 %v1628
    %v1786 = vunpack.c.l.b16 %v1629
    %v1787 = vunpack.c.h.b16 %v1629
    %v1788 = vunpack.c.l.b16 %v1630
    %v1789 = vunpack.c.h.b16 %v1630
    %v1790 = vunpack.c.l.b16 %v1631
    %v1791 = vunpack.c.h.b16 %v1631
    %v1792 = vunpack.c.l.b16 %v1632
    %v1793 = vunpack.c.h.b16 %v1632
    %v1794 = vunpack.c.l.b16 %v1633
    %v1795 = vunpack.c.h.b16 %v1633
    %v1796 = vunpack.c.l.b16 %v1634
    %v1797 = vunpack.c.h.b16 %v1634
    %v1798 = vunpack.c.l.b16 %v1635
    %v1799 = vunpack.c.h.b16 %v1635
    %v1800 = vunpack.c.l.b16 %v1636
    %v1801 = vunpack.c.h.b16 %v1636
    %v1802 = vunpack.c.l.b16 %v1637
    %v1803 = vunpack.c.h.b16 %v1637
    %v1804 = vunpack.c.l.b16 %v1638
    %v1805 = vunpack.c.h.b16 %v1638
    %v1806 = vunpack.c.l.b16 %v1639
    %v1807 = vunpack.c.h.b16 %v1639
    %v1808 = vunpack.c.l.b16 %v1640
    %v1809 = vunpack.c.h.b16 %v1640
    %v1810 = vunpack.c.l.b16 %v1641
    %v1811 = vunpack.c.h.b16 %v1641
    %v1812 = vunpack.c.l.b16 %v1642
    %v1813 = vunpack.c.h.b16 %v1642
    %v1814 = vunpack.c.l.b16 %v1643
    %v1815 = vunpack.c.h.b16 %v1643
    %v1816 = vunpack.c.l.b16 %v1644
    %v1817 = vunpack.c.h.b16 %v1644
    %v1818 = vunpack.c.l.b16 %v1645
    %v1819 = vunpack.c.h.b16 %v1645
    %v1820 = vunpack.c.l.b16 %v1646
    %v1821 = vunpack.c.h.b16 %v1646
    %v1822 = vunpack.c.l.b16 %v1647
    %v1823 = vunpack.c.h.b16 %v1647
    %v1824 = vunpack.c.l.b16 %v1648
    %v1825 = vunpack.c.h.b16 %v1648
    %v1826 = vunpack.c.l.b16 %v1649
    %v1827 = vunpack.c.h.b16 %v1649
    %v1828 = vunpack.c.l.b16 %v1650
    %v1829 = vunpack.c.h.b16 %v1650
    %v1830 = vunpack.c.l.b16 %v1651
    %v1831 = vunpack.c.h.b16 %v1651
    %v1832 = vunpack.c.l.b16 %v1652
    %v1833 = vunpack.c.h.b16 %v1652
    %v1834 = vunpack.c.l.b16 %v1653
    %v1835 = vunpack.c.h.b16 %v1653
    %v1836 = vunpack.c.l.b16 %v1654
    %v1837 = vunpack.c.h.b16 %v1654
    %v1838 = vunpack.c.l.b16 %v1655
    %v1839 = vunpack.c.h.b16 %v1655
    %v1840 = vunpack.c.l.b16 %v1656
    %v1841 = vunpack.c.h.b16 %v1656
    %v1842 = vunpack.c.l.b16 %v1657
    %v1843 = vunpack.c.h.b16 %v1657
    %v1844 = vunpack.c.l.b16 %v1658
    %v1845 = vunpack.c.h.b16 %v1658
    %v1846 = vunpack.c.l.b16 %v1659
    %v1847 = vunpack.c.h.b16 %v1659
    %v1848 = vunpack.c.l.b16 %v1660
    %v1849 = vunpack.c.h.b16 %v1660
    %v1850 = vunpack.c.l.b16 %v1661
    %v1851 = vunpack.c.h.b16 %v1661
    %v1852 = vunpack.c.l.b16 %v1662
    %v1853 = vunpack.c.h.b16 %v1662
    %v1854 = vunpack.c.l.b16 %v1663
    %v1855 = vunpack.c.h.b16 %v1663
    %v1856 = vunpack.c.l.b16 %v1664
    %v1857 = vunpack.c.h.b16 %v1664
    %v1858 = vunpack.c.l.b16 %v1665
    %v1859 = vunpack.c.h.b16 %v1665
    %v1860 = vunpack.c.l.b16 %v1666
    %v1861 = vunpack.c.h.b16 %v1666
    %v1862 = vunpack.c.l.b16 %v1667
    %v1863 = vunpack.c.h.b16 %v1667
    %v1864 = vunpack.c.l.b16 %v1668
    %v1865 = vunpack.c.h.b16 %v1668
    %v1866 = vunpack.c.l.b16 %v1669
    %v1867 = vunpack.c.h.b16 %v1669
    %v1868 = vunpack.c.l.b16 %v1670
    %v1869 = vunpack.c.h.b16 %v1670
    %v1870 = vunpack.c.l.b16 %v1671
    %v1871 = vunpack.c.h.b16 %v1671
    %v1872 = vunpack.c.l.b16 %v1672
    %v1873 = vunpack.c.h.b16 %v1672
    %v1874 = vunpack.c.l.b16 %v1673
    %v1875 = vunpack.c.h.b16 %v1673
    %v1876 = vunpack.c.l.b16 %v1674
    %v1877 = vunpack.c.h.b16 %v1674
    %v1878 = vunpack.c.l.b16 %v1675
    %v1879 = vunpack.c.h.b16 %v1675
    %v1880 = vpack.c.b16 %v1754, %v1752
    %v1881 = vpack.c.b16 %v1755, %v1753
    %v1882 = vpack.c.b16 %v1758, %v1756
    %v1883 = vpack.c.b16 %v1759, %v1757
    %v1884 = vpack.c.b16 %v1762, %v1760
    %v1885 = vpack.c.b16 %v1763, %v1761
    %v1886 = vpack.c.b16 %v1766, %v1764
    %v1887 = vpack.c.b16 %v1767, %v1765
    %v1888 = vpack.c.b16 %v1770, %v1768
    %v1889 = vpack.c.b16 %v1771, %v1769
    %v1890 = vpack.c.b16 %v1774, %v1772
    %v1891 = vpack.c.b16 %v1775, %v1773
    %v1892 = vpack.c.b16 %v1778, %v1776
    %v1893 = vpack.c.b16 %v1779, %v1777
    %v1894 = vpack.c.b16 %v1782, %v1780
    %v1895 = vpack.c.b16 %v1783, %v1781
    %v1896 = vpack.c.b16 %v1786, %v1784
    %v1897 = vpack.c.b16 %v1787, %v1785
    %v1898 = vpack.c.b16 %v1790, %v1788
    %v1899 = vpack.c.b16 %v1791, %v1789
    %v1900 = vpack.c.b16 %v1794, %v1792
    %v1901 = vpack.c.b16 %v1795, %v1793
    %v1902 = vpack.c.b16 %v1798, %v1796
    %v1903 = vpack.c.b16 %v1799, %v1797
    %v1904 = vpack.c.b16 %v1802, %v1800
    %v1905 = vpack.c.b16 %v1803, %v1801
    %v1906 = vpack.c.b16 %v1806, %v1804
    %v1907 = vpack.c.b16 %v1807, %v1805
    %v1908 = vpack.c.b16 %v1810, %v1808
    %v1909 = vpack.c.b16 %v1811, %v1809
    %v1910 = vpack.c.b16 %v1814, %v1812
    %v1911 = vpack.c.b16 %v1815, %v1813
    %v1912 = vpack.c.b16 %v1818, %v1816
    %v1913 = vpack.c.b16 %v1819, %v1817
    %v1914 = vpack.c.b16 %v1822, %v1820
    %v1915 = vpack.c.b16 %v1823, %v1821
    %v1916 = vpack.c.b16 %v1826, %v1824
    %v1917 = vpack.c.b16 %v1827, %v1825
    %v1918 = vpack.c.b16 %v1830, %v1828
    %v1919 = vpack.c.b16 %v1831, %v1829
    %v1920 = vpack.c.b16 %v1834, %v1832
    %v1921 = vpack.c.b16 %v1835, %v1833
    %v1922 = vpack.c.b16 %v1838, %v1836
    %v1923 = vpack.c.b16 %v1839, %v1837
    %v1924 = vpack.c.b16 %v1842, %v1840
    %v1925 = vpack.c.b16 %v1843, %v1841
    %v1926 = vpack.c.b16 %v1846, %v1844
    %v1927 = vpack.c.b16 %v1847, %v1845
    %v1928 = vpack.c.b16 %v1850, %v1848
    %v1929 = vpack.c.b16 %v1851, %v1849
    %v1930 = vpack.c.b16 %v1854, %v1852
    %v1931 = vpack.c.b16 %v1855, %v1853
    %v1932 = vpack.c.b16 %v1858, %v1856
    %v1933 = vpack.c.b16 %v1859, %v1857
    %v1934 = vpack.c.b16 %v1862, %v1860
    %v1935 = vpack.c.b16 %v1863, %v1861
    %v1936 = vpack.c.b16 %v1866, %v1864
    %v1937 = vpack.c.b16 %v1867, %v1865
    %v1938 = vpack.c.b16 %v1870, %v1868
    %v1939 = vpack.c.b16 %v1871, %v1869
    %v1940 = vpack.c.b16 %v1874, %v1872
    %v1941 = vpack.c.b16 %v1875, %v1873
    %v1942 = vpack.c.b16 %v1878, %v1876
    %v1943 = vpack.c.b16 %v1879, %v1877
    %2008 = vmatprep.subr.bf16.mxu0 %v1895
    %2009 = vmatpush1.bf16.msra.mxu0 %v1894
    %2010 = vmatprep.subr.bf16.mxu0 %v1893
    %2011 = vmatpush1.bf16.msra.mxu0 %v1892
    %2012 = vmatprep.subr.bf16.mxu0 %v1891
    %2013 = vmatpush1.bf16.msra.mxu0 %v1890
    %2014 = vmatprep.subr.bf16.mxu0 %v1889
    %2015 = vmatpush1.bf16.msra.mxu0 %v1888
    %2016 = vmatprep.subr.bf16.mxu0 %v1887
    %2017 = vmatpush1.bf16.msra.mxu0 %v1886
    %2018 = vmatprep.subr.bf16.mxu0 %v1885
    %2019 = vmatpush1.bf16.msra.mxu0 %v1884
    %2020 = vmatprep.subr.bf16.mxu0 %v1883
    %2021 = vmatpush1.bf16.msra.mxu0 %v1882
    %2022 = vmatprep.subr.bf16.mxu0 %v1881
    %2023 = vmatpush1.bf16.msra.mxu0 %v1880
    %2024 = vmatprep.subr.bf16.mxu0 %v1911
    %2025 = vmatpush2.bf16.msra.mxu0 %v1910
    %2026 = vmatprep.subr.bf16.mxu0 %v1909
    %2027 = vmatpush2.bf16.msra.mxu0 %v1908
    %2028 = vmatprep.subr.bf16.mxu0 %v1907
    %2029 = vmatpush2.bf16.msra.mxu0 %v1906
    %2030 = vmatprep.subr.bf16.mxu0 %v1905
    %2031 = vmatpush2.bf16.msra.mxu0 %v1904
    %2032 = vmatprep.subr.bf16.mxu0 %v1903
    %2033 = vmatpush2.bf16.msra.mxu0 %v1902
    %2034 = vmatprep.subr.bf16.mxu0 %v1901
    %2035 = vmatpush2.bf16.msra.mxu0 %v1900
    %2036 = vmatprep.subr.bf16.mxu0 %v1899
    %2037 = vmatpush2.bf16.msra.mxu0 %v1898
    %2038 = vmatprep.subr.bf16.mxu0 %v1897
    %2039 = vmatpush2.bf16.msra.mxu0 %v1896
    %2040 = vmatprep.mubr.bf16.mxu0 %v1609
    %2041 = vmatmul.mubr.bf16.gmra.mxu0 %v1608
    %v2042 = vpop.f32.mrf.mxu0
    %v2043 = vadd.f32 %v1681, %v2042
    %v2044 = vpop.f32.mrf.mxu0
    %v2045 = vadd.f32 %v1685, %v2044
    %v2046 = vpop.f32.mrf.mxu0
    %v2047 = vadd.f32 %v1681, %v2046
    %v2048 = vpop.f32.mrf.mxu0
    %v2049 = vadd.f32 %v1685, %v2048
    %2050 = vdwg.mxu0
    %2051 = vmatprep.subr.bf16.mxu0 %v1927
    %2052 = vmatpush1.bf16.msra.mxu0 %v1926
    %2053 = vmatprep.subr.bf16.mxu0 %v1925
    %2054 = vmatpush1.bf16.msra.mxu0 %v1924
    %2055 = vmatprep.subr.bf16.mxu0 %v1923
    %2056 = vmatpush1.bf16.msra.mxu0 %v1922
    %2057 = vmatprep.subr.bf16.mxu0 %v1921
    %2058 = vmatpush1.bf16.msra.mxu0 %v1920
    %2059 = vmatprep.subr.bf16.mxu0 %v1919
    %2060 = vmatpush1.bf16.msra.mxu0 %v1918
    %2061 = vmatprep.subr.bf16.mxu0 %v1917
    %2062 = vmatpush1.bf16.msra.mxu0 %v1916
    %2063 = vmatprep.subr.bf16.mxu0 %v1915
    %2064 = vmatpush1.bf16.msra.mxu0 %v1914
    %2065 = vmatprep.subr.bf16.mxu0 %v1913
    %2066 = vmatpush1.bf16.msra.mxu0 %v1912
    %2067 = vmatprep.subr.bf16.mxu0 %v1943
    %2068 = vmatpush2.bf16.msra.mxu0 %v1942
    %2069 = vmatprep.subr.bf16.mxu0 %v1941
    %2070 = vmatpush2.bf16.msra.mxu0 %v1940
    %2071 = vmatprep.subr.bf16.mxu0 %v1939
    %2072 = vmatpush2.bf16.msra.mxu0 %v1938
    %2073 = vmatprep.subr.bf16.mxu0 %v1937
    %2074 = vmatpush2.bf16.msra.mxu0 %v1936
    %2075 = vmatprep.subr.bf16.mxu0 %v1935
    %2076 = vmatpush2.bf16.msra.mxu0 %v1934
    %2077 = vmatprep.subr.bf16.mxu0 %v1933
    %2078 = vmatpush2.bf16.msra.mxu0 %v1932
    %2079 = vmatprep.subr.bf16.mxu0 %v1931
    %2080 = vmatpush2.bf16.msra.mxu0 %v1930
    %2081 = vmatprep.subr.bf16.mxu0 %v1929
    %2082 = vmatpush2.bf16.msra.mxu0 %v1928
    %2083 = vmatprep.mubr.bf16.mxu0 %v1611
    %2084 = vmatmul.mubr.bf16.gmra.mxu0 %v1610
    %v2085 = vpop.f32.mrf.mxu0
    %v2086 = vadd.f32 %v2043, %v2085
    %v2087 = vpop.f32.mrf.mxu0
    %v2088 = vadd.f32 %v2045, %v2087
    %v2089 = vpop.f32.mrf.mxu0
    %v2090 = vadd.f32 %v2047, %v2089
    %v2091 = vpop.f32.mrf.mxu0
    %v2092 = vadd.f32 %v2049, %v2091
    %2093 = vdwg.mxu0
    %v2094 = vmax.f32 %v2086, 0.0
    %v2095 = vmax.f32 %v2088, 0.0
    %v2096 = vmax.f32 %v2090, 0.0
    %v2097 = vmax.f32 %v2092, 0.0
    %v2098 = vpack.c.bf16 %v2096, %v2094
    %v2099 = vpack.c.bf16 %v2097, %v2095
    %v2100 = vld [vmem:[#allocation8] sm:$0xf]
    %v2101 = vld [vmem:[#allocation8 + $0x4] sm:$0xf]
    %v2102 = vld [vmem:[#allocation8 + $0x8] sm:$0xf]
    %v2103 = vld [vmem:[#allocation8 + $0xc] sm:$0xf]
    %v2104 = vld [vmem:[#allocation8 + $0x10] sm:$0xf]
    %v2105 = vld [vmem:[#allocation8 + $0x14] sm:$0xf]
    %v2106 = vld [vmem:[#allocation8 + $0x18] sm:$0xf]
    %v2107 = vld [vmem:[#allocation8 + $0x1c] sm:$0xf]
    %v2108 = vld [vmem:[#allocation8 + $0x20] sm:$0xf]
    %v2109 = vld [vmem:[#allocation8 + $0x24] sm:$0xf]
    %v2110 = vld [vmem:[#allocation8 + $0x28] sm:$0xf]
    %v2111 = vld [vmem:[#allocation8 + $0x2c] sm:$0xf]
    %v2112 = vld [vmem:[#allocation8 + $0x30] sm:$0xf]
    %v2113 = vld [vmem:[#allocation8 + $0x34] sm:$0xf]
    %v2114 = vld [vmem:[#allocation8 + $0x38] sm:$0xf]
    %v2115 = vld [vmem:[#allocation8 + $0x3c] sm:$0xf]
    %v2116 = vld [vmem:[#allocation8 + $0x40] sm:$0xf]
    %v2117 = vld [vmem:[#allocation8 + $0x44] sm:$0xf]
    %v2118 = vld [vmem:[#allocation8 + $0x48] sm:$0xf]
    %v2119 = vld [vmem:[#allocation8 + $0x4c] sm:$0xf]
    %v2120 = vld [vmem:[#allocation8 + $0x50] sm:$0xf]
    %v2121 = vld [vmem:[#allocation8 + $0x54] sm:$0xf]
    %v2122 = vld [vmem:[#allocation8 + $0x58] sm:$0xf]
    %v2123 = vld [vmem:[#allocation8 + $0x5c] sm:$0xf]
    %v2124 = vld [vmem:[#allocation8 + $0x60] sm:$0xf]
    %v2125 = vld [vmem:[#allocation8 + $0x64] sm:$0xf]
    %v2126 = vld [vmem:[#allocation8 + $0x68] sm:$0xf]
    %v2127 = vld [vmem:[#allocation8 + $0x6c] sm:$0xf]
    %v2128 = vld [vmem:[#allocation8 + $0x70] sm:$0xf]
    %v2129 = vld [vmem:[#allocation8 + $0x74] sm:$0xf]
    %v2130 = vld [vmem:[#allocation8 + $0x78] sm:$0xf]
    %v2131 = vld [vmem:[#allocation8 + $0x7c] sm:$0xf]
    %v2132 = vld [vmem:[%s9] sm:$0x1]
    %v2134 = vlaneseq
    %v2135 = vshrl.u32 %v2134, 7
    %v2136 = vsub.s32 0, %v2135
    %v2137 = vrot.slane %v2132, %v2136
    %v2171 = vunpack.c.l.b16 %v2100
    %v2172 = vunpack.c.l.b16 %v2101
    %v2173 = vunpack.c.l.b16 %v2102
    %v2174 = vunpack.c.l.b16 %v2103
    %v2175 = vunpack.c.l.b16 %v2104
    %v2176 = vunpack.c.l.b16 %v2105
    %v2177 = vunpack.c.l.b16 %v2106
    %v2178 = vunpack.c.l.b16 %v2107
    %v2179 = vunpack.c.l.b16 %v2108
    %v2180 = vunpack.c.l.b16 %v2109
    %v2181 = vunpack.c.l.b16 %v2110
    %v2182 = vunpack.c.l.b16 %v2111
    %v2183 = vunpack.c.l.b16 %v2112
    %v2184 = vunpack.c.l.b16 %v2113
    %v2185 = vunpack.c.l.b16 %v2114
    %v2186 = vunpack.c.l.b16 %v2115
    %v2187 = vunpack.c.l.b16 %v2116
    %v2188 = vunpack.c.l.b16 %v2117
    %v2189 = vunpack.c.l.b16 %v2118
    %v2190 = vunpack.c.l.b16 %v2119
    %v2191 = vunpack.c.l.b16 %v2120
    %v2192 = vunpack.c.l.b16 %v2121
    %v2193 = vunpack.c.l.b16 %v2122
    %v2194 = vunpack.c.l.b16 %v2123
    %v2195 = vunpack.c.l.b16 %v2124
    %v2196 = vunpack.c.l.b16 %v2125
    %v2197 = vunpack.c.l.b16 %v2126
    %v2198 = vunpack.c.l.b16 %v2127
    %v2199 = vunpack.c.l.b16 %v2128
    %v2200 = vunpack.c.l.b16 %v2129
    %v2201 = vunpack.c.l.b16 %v2130
    %v2202 = vunpack.c.l.b16 %v2131
    %v2203 = vpack.c.b16 %v2172, %v2171
    %v2204 = vpack.c.b16 %v2174, %v2173
    %v2205 = vpack.c.b16 %v2176, %v2175
    %v2206 = vpack.c.b16 %v2178, %v2177
    %v2207 = vpack.c.b16 %v2180, %v2179
    %v2208 = vpack.c.b16 %v2182, %v2181
    %v2209 = vpack.c.b16 %v2184, %v2183
    %v2210 = vpack.c.b16 %v2186, %v2185
    %v2211 = vpack.c.b16 %v2188, %v2187
    %v2212 = vpack.c.b16 %v2190, %v2189
    %v2213 = vpack.c.b16 %v2192, %v2191
    %v2214 = vpack.c.b16 %v2194, %v2193
    %v2215 = vpack.c.b16 %v2196, %v2195
    %v2216 = vpack.c.b16 %v2198, %v2197
    %v2217 = vpack.c.b16 %v2200, %v2199
    %v2218 = vpack.c.b16 %v2202, %v2201
    %2235 = vmatprep.subr.bf16.mxu0 0
    %2236 = vmatpush1.bf16.msra.mxu0 %v2210
    %2237 = vmatprep.subr.bf16.mxu0 0
    %2238 = vmatpush1.bf16.msra.mxu0 %v2209
    %2239 = vmatprep.subr.bf16.mxu0 0
    %2240 = vmatpush1.bf16.msra.mxu0 %v2208
    %2241 = vmatprep.subr.bf16.mxu0 0
    %2242 = vmatpush1.bf16.msra.mxu0 %v2207
    %2243 = vmatprep.subr.bf16.mxu0 0
    %2244 = vmatpush1.bf16.msra.mxu0 %v2206
    %2245 = vmatprep.subr.bf16.mxu0 0
    %2246 = vmatpush1.bf16.msra.mxu0 %v2205
    %2247 = vmatprep.subr.bf16.mxu0 0
    %2248 = vmatpush1.bf16.msra.mxu0 %v2204
    %2249 = vmatprep.subr.bf16.mxu0 0
    %2250 = vmatpush1.bf16.msra.mxu0 %v2203
    %2251 = vmatprep.subr.bf16.mxu0 0
    %2252 = vmatpush2.bf16.msra.mxu0 %v2218
    %2253 = vmatprep.subr.bf16.mxu0 0
    %2254 = vmatpush2.bf16.msra.mxu0 %v2217
    %2255 = vmatprep.subr.bf16.mxu0 0
    %2256 = vmatpush2.bf16.msra.mxu0 %v2216
    %2257 = vmatprep.subr.bf16.mxu0 0
    %2258 = vmatpush2.bf16.msra.mxu0 %v2215
    %2259 = vmatprep.subr.bf16.mxu0 0
    %2260 = vmatpush2.bf16.msra.mxu0 %v2214
    %2261 = vmatprep.subr.bf16.mxu0 0
    %2262 = vmatpush2.bf16.msra.mxu0 %v2213
    %2263 = vmatprep.subr.bf16.mxu0 0
    %2264 = vmatpush2.bf16.msra.mxu0 %v2212
    %2265 = vmatprep.subr.bf16.mxu0 0
    %2266 = vmatpush2.bf16.msra.mxu0 %v2211
    %2267 = vmatprep.mubr.bf16.mxu0 %v2099
    %2268 = vmatmul.mubr.bf16.gmra.mxu0 %v2098
    %v2269 = vpop.f32.mrf.mxu0
    %v2270 = vadd.f32 %v2137, %v2269
    %v2271 = vpop.f32.mrf.mxu0
    %v2272 = vpop.f32.mrf.mxu0
    %v2273 = vadd.f32 %v2137, %v2272
    %v2274 = vpop.f32.mrf.mxu0
    %2275 = vdwg.mxu0
    %v2276 = vmax.f32 %v2270, 0.0
    %v2277 = vmax.f32 %v2273, 0.0
    %v2278 = vpack.c.bf16 %v2277, %v2276
    %v2279 = vld [vmem:[#allocation10] sm:$0xff]
    %v2280 = vld [vmem:[#allocation10 + $0x8] sm:$0xff]
    %v2281 = vld [vmem:[#allocation10 + $0x10] sm:$0xff]
    %v2282 = vld [vmem:[#allocation10 + $0x18] sm:$0xff]
    %v2283 = vld [vmem:[#allocation10 + $0x20] sm:$0xff]
    %v2284 = vld [vmem:[#allocation10 + $0x28] sm:$0xff]
    %v2285 = vld [vmem:[#allocation10 + $0x30] sm:$0xff]
    %v2286 = vld [vmem:[#allocation10 + $0x38] sm:$0xff]
    %v2287 = vld [vmem:[#allocation10 + $0x40] sm:$0xff]
    %v2288 = vld [vmem:[#allocation10 + $0x48] sm:$0xff]
    %v2289 = vld [vmem:[#allocation10 + $0x50] sm:$0xff]
    %v2290 = vld [vmem:[#allocation10 + $0x58] sm:$0xff]
    %v2291 = vld [vmem:[#allocation10 + $0x60] sm:$0xff]
    %v2292 = vld [vmem:[#allocation10 + $0x68] sm:$0xff]
    %v2293 = vld [vmem:[#allocation10 + $0x70] sm:$0xff]
    %v2294 = vld [vmem:[#allocation10 + $0x78] sm:$0xff]
    %v2311 = vunpack.c.l.b16 %v2279
    %v2312 = vunpack.c.h.b16 %v2279
    %v2313 = vunpack.c.l.b16 %v2280
    %v2314 = vunpack.c.h.b16 %v2280
    %v2315 = vunpack.c.l.b16 %v2281
    %v2316 = vunpack.c.h.b16 %v2281
    %v2317 = vunpack.c.l.b16 %v2282
    %v2318 = vunpack.c.h.b16 %v2282
    %v2319 = vunpack.c.l.b16 %v2283
    %v2320 = vunpack.c.h.b16 %v2283
    %v2321 = vunpack.c.l.b16 %v2284
    %v2322 = vunpack.c.h.b16 %v2284
    %v2323 = vunpack.c.l.b16 %v2285
    %v2324 = vunpack.c.h.b16 %v2285
    %v2325 = vunpack.c.l.b16 %v2286
    %v2326 = vunpack.c.h.b16 %v2286
    %v2327 = vunpack.c.l.b16 %v2287
    %v2328 = vunpack.c.h.b16 %v2287
    %v2329 = vunpack.c.l.b16 %v2288
    %v2330 = vunpack.c.h.b16 %v2288
    %v2331 = vunpack.c.l.b16 %v2289
    %v2332 = vunpack.c.h.b16 %v2289
    %v2333 = vunpack.c.l.b16 %v2290
    %v2334 = vunpack.c.h.b16 %v2290
    %v2335 = vunpack.c.l.b16 %v2291
    %v2336 = vunpack.c.h.b16 %v2291
    %v2337 = vunpack.c.l.b16 %v2292
    %v2338 = vunpack.c.h.b16 %v2292
    %v2339 = vunpack.c.l.b16 %v2293
    %v2340 = vunpack.c.h.b16 %v2293
    %v2341 = vunpack.c.l.b16 %v2294
    %v2342 = vunpack.c.h.b16 %v2294
    %v2343 = vpack.c.b16 %v2313, %v2311
    %v2344 = vpack.c.b16 %v2314, %v2312
    %v2345 = vpack.c.b16 %v2317, %v2315
    %v2346 = vpack.c.b16 %v2318, %v2316
    %v2347 = vpack.c.b16 %v2321, %v2319
    %v2348 = vpack.c.b16 %v2322, %v2320
    %v2349 = vpack.c.b16 %v2325, %v2323
    %v2350 = vpack.c.b16 %v2326, %v2324
    %v2351 = vpack.c.b16 %v2329, %v2327
    %v2352 = vpack.c.b16 %v2330, %v2328
    %v2353 = vpack.c.b16 %v2333, %v2331
    %v2354 = vpack.c.b16 %v2334, %v2332
    %v2355 = vpack.c.b16 %v2337, %v2335
    %v2356 = vpack.c.b16 %v2338, %v2336
    %v2357 = vpack.c.b16 %v2341, %v2339
    %v2358 = vpack.c.b16 %v2342, %v2340
    %2375 = vmatprep.subr.bf16.mxu0 %v2358
    %2376 = vmatpush1.bf16.msra.mxu0 %v2357
    %2377 = vmatprep.subr.bf16.mxu0 %v2356
    %2378 = vmatpush1.bf16.msra.mxu0 %v2355
    %2379 = vmatprep.subr.bf16.mxu0 %v2354
    %2380 = vmatpush1.bf16.msra.mxu0 %v2353
    %2381 = vmatprep.subr.bf16.mxu0 %v2352
    %2382 = vmatpush1.bf16.msra.mxu0 %v2351
    %2383 = vmatprep.subr.bf16.mxu0 %v2350
    %2384 = vmatpush1.bf16.msra.mxu0 %v2349
    %2385 = vmatprep.subr.bf16.mxu0 %v2348
    %2386 = vmatpush1.bf16.msra.mxu0 %v2347
    %2387 = vmatprep.subr.bf16.mxu0 %v2346
    %2388 = vmatpush1.bf16.msra.mxu0 %v2345
    %2389 = vmatprep.subr.bf16.mxu0 %v2344
    %2390 = vmatpush1.bf16.msra.mxu0 %v2343
    %2391 = vmatprep.subr.bf16.mxu0 0
    %2392 = vmatpush2.bf16.msra.mxu0 0
    %2393 = vmatprep.subr.bf16.mxu0 0
    %2394 = vmatpush2.bf16.msra.mxu0 0
    %2395 = vmatprep.subr.bf16.mxu0 0
    %2396 = vmatpush2.bf16.msra.mxu0 0
    %2397 = vmatprep.subr.bf16.mxu0 0
    %2398 = vmatpush2.bf16.msra.mxu0 0
    %2399 = vmatprep.subr.bf16.mxu0 0
    %2400 = vmatpush2.bf16.msra.mxu0 0
    %2401 = vmatprep.subr.bf16.mxu0 0
    %2402 = vmatpush2.bf16.msra.mxu0 0
    %2403 = vmatprep.subr.bf16.mxu0 0
    %2404 = vmatpush2.bf16.msra.mxu0 0
    %2405 = vmatprep.subr.bf16.mxu0 0
    %2406 = vmatpush2.bf16.msra.mxu0 0
    %2407 = vmatprep.mubr.bf16.mxu0 0
    %2408 = vmatmul.mubr.bf16.gmra.mxu0 %v2278
    %v2409 = vpop.f32.mrf.mxu0
    %v2410 = vadd.f32 0.0, %v2409
    %v2411 = vpop.f32.mrf.mxu0
    %v2412 = vadd.f32 0.0, %v2411
    %v2413 = vpop.f32.mrf.mxu0
    %v2414 = vadd.f32 0.0, %v2413
    %v2415 = vpop.f32.mrf.mxu0
    %v2416 = vadd.f32 0.0, %v2415
    %2417 = vdwg.mxu0
    %v2418 = vmax.f32 %v2410, 0.0
    %v2419 = vmax.f32 %v2412, 0.0
    %v2420 = vmax.f32 %v2414, 0.0
    %v2421 = vmax.f32 %v2416, 0.0
    %v2422 = vpack.c.bf16 %v2420, %v2418
    %v2423 = vpack.c.bf16 %v2421, %v2419
    %v2424 = vld [vmem:[#allocation11] sm:$0xff]
    %v2425 = vld [vmem:[#allocation11 + $0x8] sm:$0xff]
    %v2426 = vld [vmem:[#allocation11 + $0x10] sm:$0xff]
    %v2427 = vld [vmem:[#allocation11 + $0x18] sm:$0xff]
    %v2428 = vld [vmem:[#allocation11 + $0x20] sm:$0xff]
    %v2429 = vld [vmem:[#allocation11 + $0x28] sm:$0xff]
    %v2430 = vld [vmem:[#allocation11 + $0x30] sm:$0xff]
    %v2431 = vld [vmem:[#allocation11 + $0x38] sm:$0xff]
    %v2432 = vld [vmem:[#allocation11 + $0x40] sm:$0xff]
    %v2433 = vld [vmem:[#allocation11 + $0x48] sm:$0xff]
    %v2434 = vld [vmem:[#allocation11 + $0x50] sm:$0xff]
    %v2435 = vld [vmem:[#allocation11 + $0x58] sm:$0xff]
    %v2436 = vld [vmem:[#allocation11 + $0x60] sm:$0xff]
    %v2437 = vld [vmem:[#allocation11 + $0x68] sm:$0xff]
    %v2438 = vld [vmem:[#allocation11 + $0x70] sm:$0xff]
    %v2439 = vld [vmem:[#allocation11 + $0x78] sm:$0xff]
    %v2440 = vld [vmem:[#allocation11 + $0x80] sm:$0xff]
    %v2441 = vld [vmem:[#allocation11 + $0x88] sm:$0xff]
    %v2442 = vld [vmem:[#allocation11 + $0x90] sm:$0xff]
    %v2443 = vld [vmem:[#allocation11 + $0x98] sm:$0xff]
    %v2444 = vld [vmem:[#allocation11 + $0xa0] sm:$0xff]
    %v2445 = vld [vmem:[#allocation11 + $0xa8] sm:$0xff]
    %v2446 = vld [vmem:[#allocation11 + $0xb0] sm:$0xff]
    %v2447 = vld [vmem:[#allocation11 + $0xb8] sm:$0xff]
    %v2448 = vld [vmem:[#allocation11 + $0xc0] sm:$0xff]
    %v2449 = vld [vmem:[#allocation11 + $0xc8] sm:$0xff]
    %v2450 = vld [vmem:[#allocation11 + $0xd0] sm:$0xff]
    %v2451 = vld [vmem:[#allocation11 + $0xd8] sm:$0xff]
    %v2452 = vld [vmem:[#allocation11 + $0xe0] sm:$0xff]
    %v2453 = vld [vmem:[#allocation11 + $0xe8] sm:$0xff]
    %v2454 = vld [vmem:[#allocation11 + $0xf0] sm:$0xff]
    %v2455 = vld [vmem:[#allocation11 + $0xf8] sm:$0xff]
    %v2456 = vld [vmem:[#allocation11 + $0x100] sm:$0xff]
    %v2457 = vld [vmem:[#allocation11 + $0x108] sm:$0xff]
    %v2458 = vld [vmem:[#allocation11 + $0x110] sm:$0xff]
    %v2459 = vld [vmem:[#allocation11 + $0x118] sm:$0xff]
    %v2460 = vld [vmem:[#allocation11 + $0x120] sm:$0xff]
    %v2461 = vld [vmem:[#allocation11 + $0x128] sm:$0xff]
    %v2462 = vld [vmem:[#allocation11 + $0x130] sm:$0xff]
    %v2463 = vld [vmem:[#allocation11 + $0x138] sm:$0xff]
    %v2464 = vld [vmem:[#allocation11 + $0x140] sm:$0xff]
    %v2465 = vld [vmem:[#allocation11 + $0x148] sm:$0xff]
    %v2466 = vld [vmem:[#allocation11 + $0x150] sm:$0xff]
    %v2467 = vld [vmem:[#allocation11 + $0x158] sm:$0xff]
    %v2468 = vld [vmem:[#allocation11 + $0x160] sm:$0xff]
    %v2469 = vld [vmem:[#allocation11 + $0x168] sm:$0xff]
    %v2470 = vld [vmem:[#allocation11 + $0x170] sm:$0xff]
    %v2471 = vld [vmem:[#allocation11 + $0x178] sm:$0xff]
    %v2472 = vld [vmem:[#allocation11 + $0x180] sm:$0xff]
    %v2473 = vld [vmem:[#allocation11 + $0x188] sm:$0xff]
    %v2474 = vld [vmem:[#allocation11 + $0x190] sm:$0xff]
    %v2475 = vld [vmem:[#allocation11 + $0x198] sm:$0xff]
    %v2476 = vld [vmem:[#allocation11 + $0x1a0] sm:$0xff]
    %v2477 = vld [vmem:[#allocation11 + $0x1a8] sm:$0xff]
    %v2478 = vld [vmem:[#allocation11 + $0x1b0] sm:$0xff]
    %v2479 = vld [vmem:[#allocation11 + $0x1b8] sm:$0xff]
    %v2480 = vld [vmem:[#allocation11 + $0x1c0] sm:$0xff]
    %v2481 = vld [vmem:[#allocation11 + $0x1c8] sm:$0xff]
    %v2482 = vld [vmem:[#allocation11 + $0x1d0] sm:$0xff]
    %v2483 = vld [vmem:[#allocation11 + $0x1d8] sm:$0xff]
    %v2484 = vld [vmem:[#allocation11 + $0x1e0] sm:$0xff]
    %v2485 = vld [vmem:[#allocation11 + $0x1e8] sm:$0xff]
    %v2486 = vld [vmem:[#allocation11 + $0x1f0] sm:$0xff]
    %v2487 = vld [vmem:[#allocation11 + $0x1f8] sm:$0xff]
    %v2552 = vunpack.c.l.b16 %v2424
    %v2553 = vunpack.c.h.b16 %v2424
    %v2554 = vunpack.c.l.b16 %v2425
    %v2555 = vunpack.c.h.b16 %v2425
    %v2556 = vunpack.c.l.b16 %v2426
    %v2557 = vunpack.c.h.b16 %v2426
    %v2558 = vunpack.c.l.b16 %v2427
    %v2559 = vunpack.c.h.b16 %v2427
    %v2560 = vunpack.c.l.b16 %v2428
    %v2561 = vunpack.c.h.b16 %v2428
    %v2562 = vunpack.c.l.b16 %v2429
    %v2563 = vunpack.c.h.b16 %v2429
    %v2564 = vunpack.c.l.b16 %v2430
    %v2565 = vunpack.c.h.b16 %v2430
    %v2566 = vunpack.c.l.b16 %v2431
    %v2567 = vunpack.c.h.b16 %v2431
    %v2568 = vunpack.c.l.b16 %v2432
    %v2569 = vunpack.c.h.b16 %v2432
    %v2570 = vunpack.c.l.b16 %v2433
    %v2571 = vunpack.c.h.b16 %v2433
    %v2572 = vunpack.c.l.b16 %v2434
    %v2573 = vunpack.c.h.b16 %v2434
    %v2574 = vunpack.c.l.b16 %v2435
    %v2575 = vunpack.c.h.b16 %v2435
    %v2576 = vunpack.c.l.b16 %v2436
    %v2577 = vunpack.c.h.b16 %v2436
    %v2578 = vunpack.c.l.b16 %v2437
    %v2579 = vunpack.c.h.b16 %v2437
    %v2580 = vunpack.c.l.b16 %v2438
    %v2581 = vunpack.c.h.b16 %v2438
    %v2582 = vunpack.c.l.b16 %v2439
    %v2583 = vunpack.c.h.b16 %v2439
    %v2584 = vunpack.c.l.b16 %v2440
    %v2585 = vunpack.c.h.b16 %v2440
    %v2586 = vunpack.c.l.b16 %v2441
    %v2587 = vunpack.c.h.b16 %v2441
    %v2588 = vunpack.c.l.b16 %v2442
    %v2589 = vunpack.c.h.b16 %v2442
    %v2590 = vunpack.c.l.b16 %v2443
    %v2591 = vunpack.c.h.b16 %v2443
    %v2592 = vunpack.c.l.b16 %v2444
    %v2593 = vunpack.c.h.b16 %v2444
    %v2594 = vunpack.c.l.b16 %v2445
    %v2595 = vunpack.c.h.b16 %v2445
    %v2596 = vunpack.c.l.b16 %v2446
    %v2597 = vunpack.c.h.b16 %v2446
    %v2598 = vunpack.c.l.b16 %v2447
    %v2599 = vunpack.c.h.b16 %v2447
    %v2600 = vunpack.c.l.b16 %v2448
    %v2601 = vunpack.c.h.b16 %v2448
    %v2602 = vunpack.c.l.b16 %v2449
    %v2603 = vunpack.c.h.b16 %v2449
    %v2604 = vunpack.c.l.b16 %v2450
    %v2605 = vunpack.c.h.b16 %v2450
    %v2606 = vunpack.c.l.b16 %v2451
    %v2607 = vunpack.c.h.b16 %v2451
    %v2608 = vunpack.c.l.b16 %v2452
    %v2609 = vunpack.c.h.b16 %v2452
    %v2610 = vunpack.c.l.b16 %v2453
    %v2611 = vunpack.c.h.b16 %v2453
    %v2612 = vunpack.c.l.b16 %v2454
    %v2613 = vunpack.c.h.b16 %v2454
    %v2614 = vunpack.c.l.b16 %v2455
    %v2615 = vunpack.c.h.b16 %v2455
    %v2616 = vunpack.c.l.b16 %v2456
    %v2617 = vunpack.c.h.b16 %v2456
    %v2618 = vunpack.c.l.b16 %v2457
    %v2619 = vunpack.c.h.b16 %v2457
    %v2620 = vunpack.c.l.b16 %v2458
    %v2621 = vunpack.c.h.b16 %v2458
    %v2622 = vunpack.c.l.b16 %v2459
    %v2623 = vunpack.c.h.b16 %v2459
    %v2624 = vunpack.c.l.b16 %v2460
    %v2625 = vunpack.c.h.b16 %v2460
    %v2626 = vunpack.c.l.b16 %v2461
    %v2627 = vunpack.c.h.b16 %v2461
    %v2628 = vunpack.c.l.b16 %v2462
    %v2629 = vunpack.c.h.b16 %v2462
    %v2630 = vunpack.c.l.b16 %v2463
    %v2631 = vunpack.c.h.b16 %v2463
    %v2632 = vunpack.c.l.b16 %v2464
    %v2633 = vunpack.c.h.b16 %v2464
    %v2634 = vunpack.c.l.b16 %v2465
    %v2635 = vunpack.c.h.b16 %v2465
    %v2636 = vunpack.c.l.b16 %v2466
    %v2637 = vunpack.c.h.b16 %v2466
    %v2638 = vunpack.c.l.b16 %v2467
    %v2639 = vunpack.c.h.b16 %v2467
    %v2640 = vunpack.c.l.b16 %v2468
    %v2641 = vunpack.c.h.b16 %v2468
    %v2642 = vunpack.c.l.b16 %v2469
    %v2643 = vunpack.c.h.b16 %v2469
    %v2644 = vunpack.c.l.b16 %v2470
    %v2645 = vunpack.c.h.b16 %v2470
    %v2646 = vunpack.c.l.b16 %v2471
    %v2647 = vunpack.c.h.b16 %v2471
    %v2648 = vunpack.c.l.b16 %v2472
    %v2649 = vunpack.c.h.b16 %v2472
    %v2650 = vunpack.c.l.b16 %v2473
    %v2651 = vunpack.c.h.b16 %v2473
    %v2652 = vunpack.c.l.b16 %v2474
    %v2653 = vunpack.c.h.b16 %v2474
    %v2654 = vunpack.c.l.b16 %v2475
    %v2655 = vunpack.c.h.b16 %v2475
    %v2656 = vunpack.c.l.b16 %v2476
    %v2657 = vunpack.c.h.b16 %v2476
    %v2658 = vunpack.c.l.b16 %v2477
    %v2659 = vunpack.c.h.b16 %v2477
    %v2660 = vunpack.c.l.b16 %v2478
    %v2661 = vunpack.c.h.b16 %v2478
    %v2662 = vunpack.c.l.b16 %v2479
    %v2663 = vunpack.c.h.b16 %v2479
    %v2664 = vunpack.c.l.b16 %v2480
    %v2665 = vunpack.c.h.b16 %v2480
    %v2666 = vunpack.c.l.b16 %v2481
    %v2667 = vunpack.c.h.b16 %v2481
    %v2668 = vunpack.c.l.b16 %v2482
    %v2669 = vunpack.c.h.b16 %v2482
    %v2670 = vunpack.c.l.b16 %v2483
    %v2671 = vunpack.c.h.b16 %v2483
    %v2672 = vunpack.c.l.b16 %v2484
    %v2673 = vunpack.c.h.b16 %v2484
    %v2674 = vunpack.c.l.b16 %v2485
    %v2675 = vunpack.c.h.b16 %v2485
    %v2676 = vunpack.c.l.b16 %v2486
    %v2677 = vunpack.c.h.b16 %v2486
    %v2678 = vunpack.c.l.b16 %v2487
    %v2679 = vunpack.c.h.b16 %v2487
    %v2680 = vpack.c.b16 %v2556, %v2552
    %v2681 = vpack.c.b16 %v2557, %v2553
    %v2682 = vpack.c.b16 %v2558, %v2554
    %v2683 = vpack.c.b16 %v2559, %v2555
    %v2684 = vpack.c.b16 %v2564, %v2560
    %v2685 = vpack.c.b16 %v2565, %v2561
    %v2686 = vpack.c.b16 %v2566, %v2562
    %v2687 = vpack.c.b16 %v2567, %v2563
    %v2688 = vpack.c.b16 %v2572, %v2568
    %v2689 = vpack.c.b16 %v2573, %v2569
    %v2690 = vpack.c.b16 %v2574, %v2570
    %v2691 = vpack.c.b16 %v2575, %v2571
    %v2692 = vpack.c.b16 %v2580, %v2576
    %v2693 = vpack.c.b16 %v2581, %v2577
    %v2694 = vpack.c.b16 %v2582, %v2578
    %v2695 = vpack.c.b16 %v2583, %v2579
    %v2696 = vpack.c.b16 %v2588, %v2584
    %v2697 = vpack.c.b16 %v2589, %v2585
    %v2698 = vpack.c.b16 %v2590, %v2586
    %v2699 = vpack.c.b16 %v2591, %v2587
    %v2700 = vpack.c.b16 %v2596, %v2592
    %v2701 = vpack.c.b16 %v2597, %v2593
    %v2702 = vpack.c.b16 %v2598, %v2594
    %v2703 = vpack.c.b16 %v2599, %v2595
    %v2704 = vpack.c.b16 %v2604, %v2600
    %v2705 = vpack.c.b16 %v2605, %v2601
    %v2706 = vpack.c.b16 %v2606, %v2602
    %v2707 = vpack.c.b16 %v2607, %v2603
    %v2708 = vpack.c.b16 %v2612, %v2608
    %v2709 = vpack.c.b16 %v2613, %v2609
    %v2710 = vpack.c.b16 %v2614, %v2610
    %v2711 = vpack.c.b16 %v2615, %v2611
    %v2712 = vpack.c.b16 %v2620, %v2616
    %v2713 = vpack.c.b16 %v2621, %v2617
    %v2714 = vpack.c.b16 %v2622, %v2618
    %v2715 = vpack.c.b16 %v2623, %v2619
    %v2716 = vpack.c.b16 %v2628, %v2624
    %v2717 = vpack.c.b16 %v2629, %v2625
    %v2718 = vpack.c.b16 %v2630, %v2626
    %v2719 = vpack.c.b16 %v2631, %v2627
    %v2720 = vpack.c.b16 %v2636, %v2632
    %v2721 = vpack.c.b16 %v2637, %v2633
    %v2722 = vpack.c.b16 %v2638, %v2634
    %v2723 = vpack.c.b16 %v2639, %v2635
    %v2724 = vpack.c.b16 %v2644, %v2640
    %v2725 = vpack.c.b16 %v2645, %v2641
    %v2726 = vpack.c.b16 %v2646, %v2642
    %v2727 = vpack.c.b16 %v2647, %v2643
    %v2728 = vpack.c.b16 %v2652, %v2648
    %v2729 = vpack.c.b16 %v2653, %v2649
    %v2730 = vpack.c.b16 %v2654, %v2650
    %v2731 = vpack.c.b16 %v2655, %v2651
    %v2732 = vpack.c.b16 %v2660, %v2656
    %v2733 = vpack.c.b16 %v2661, %v2657
    %v2734 = vpack.c.b16 %v2662, %v2658
    %v2735 = vpack.c.b16 %v2663, %v2659
    %v2736 = vpack.c.b16 %v2668, %v2664
    %v2737 = vpack.c.b16 %v2669, %v2665
    %v2738 = vpack.c.b16 %v2670, %v2666
    %v2739 = vpack.c.b16 %v2671, %v2667
    %v2740 = vpack.c.b16 %v2676, %v2672
    %v2741 = vpack.c.b16 %v2677, %v2673
    %v2742 = vpack.c.b16 %v2678, %v2674
    %v2743 = vpack.c.b16 %v2679, %v2675
    %2808 = vmatprep.subr.bf16.mxu0 %v2709
    %2809 = vmatpush1.bf16.msra.mxu0 %v2708
    %2810 = vmatprep.subr.bf16.mxu0 %v2705
    %2811 = vmatpush1.bf16.msra.mxu0 %v2704
    %2812 = vmatprep.subr.bf16.mxu0 %v2701
    %2813 = vmatpush1.bf16.msra.mxu0 %v2700
    %2814 = vmatprep.subr.bf16.mxu0 %v2697
    %2815 = vmatpush1.bf16.msra.mxu0 %v2696
    %2816 = vmatprep.subr.bf16.mxu0 %v2693
    %2817 = vmatpush1.bf16.msra.mxu0 %v2692
    %2818 = vmatprep.subr.bf16.mxu0 %v2689
    %2819 = vmatpush1.bf16.msra.mxu0 %v2688
    %2820 = vmatprep.subr.bf16.mxu0 %v2685
    %2821 = vmatpush1.bf16.msra.mxu0 %v2684
    %2822 = vmatprep.subr.bf16.mxu0 %v2681
    %2823 = vmatpush1.bf16.msra.mxu0 %v2680
    %2824 = vmatprep.subr.bf16.mxu0 %v2741
    %2825 = vmatpush2.bf16.msra.mxu0 %v2740
    %2826 = vmatprep.subr.bf16.mxu0 %v2737
    %2827 = vmatpush2.bf16.msra.mxu0 %v2736
    %2828 = vmatprep.subr.bf16.mxu0 %v2733
    %2829 = vmatpush2.bf16.msra.mxu0 %v2732
    %2830 = vmatprep.subr.bf16.mxu0 %v2729
    %2831 = vmatpush2.bf16.msra.mxu0 %v2728
    %2832 = vmatprep.subr.bf16.mxu0 %v2725
    %2833 = vmatpush2.bf16.msra.mxu0 %v2724
    %2834 = vmatprep.subr.bf16.mxu0 %v2721
    %2835 = vmatpush2.bf16.msra.mxu0 %v2720
    %2836 = vmatprep.subr.bf16.mxu0 %v2717
    %2837 = vmatpush2.bf16.msra.mxu0 %v2716
    %2838 = vmatprep.subr.bf16.mxu0 %v2713
    %2839 = vmatpush2.bf16.msra.mxu0 %v2712
    %2840 = vmatprep.mubr.bf16.mxu0 %v2423
    %2841 = vmatmul.mubr.bf16.gmra.mxu0 %v2422
    %v2842 = vpop.f32.mrf.mxu0
    %v2843 = vadd.f32 0.0, %v2842
    %v2844 = vpop.f32.mrf.mxu0
    %v2845 = vadd.f32 0.0, %v2844
    %v2846 = vpop.f32.mrf.mxu0
    %v2847 = vadd.f32 0.0, %v2846
    %v2848 = vpop.f32.mrf.mxu0
    %v2849 = vadd.f32 0.0, %v2848
    %2850 = vdwg.mxu0
    %2851 = vmatprep.subr.bf16.mxu0 %v2711
    %2852 = vmatpush1.bf16.msra.mxu0 %v2710
    %2853 = vmatprep.subr.bf16.mxu0 %v2707
    %2854 = vmatpush1.bf16.msra.mxu0 %v2706
    %2855 = vmatprep.subr.bf16.mxu0 %v2703
    %2856 = vmatpush1.bf16.msra.mxu0 %v2702
    %2857 = vmatprep.subr.bf16.mxu0 %v2699
    %2858 = vmatpush1.bf16.msra.mxu0 %v2698
    %2859 = vmatprep.subr.bf16.mxu0 %v2695
    %2860 = vmatpush1.bf16.msra.mxu0 %v2694
    %2861 = vmatprep.subr.bf16.mxu0 %v2691
    %2862 = vmatpush1.bf16.msra.mxu0 %v2690
    %2863 = vmatprep.subr.bf16.mxu0 %v2687
    %2864 = vmatpush1.bf16.msra.mxu0 %v2686
    %2865 = vmatprep.subr.bf16.mxu0 %v2683
    %2866 = vmatpush1.bf16.msra.mxu0 %v2682
    %2867 = vmatprep.subr.bf16.mxu0 %v2743
    %2868 = vmatpush2.bf16.msra.mxu0 %v2742
    %2869 = vmatprep.subr.bf16.mxu0 %v2739
    %2870 = vmatpush2.bf16.msra.mxu0 %v2738
    %2871 = vmatprep.subr.bf16.mxu0 %v2735
    %2872 = vmatpush2.bf16.msra.mxu0 %v2734
    %2873 = vmatprep.subr.bf16.mxu0 %v2731
    %2874 = vmatpush2.bf16.msra.mxu0 %v2730
    %2875 = vmatprep.subr.bf16.mxu0 %v2727
    %2876 = vmatpush2.bf16.msra.mxu0 %v2726
    %2877 = vmatprep.subr.bf16.mxu0 %v2723
    %2878 = vmatpush2.bf16.msra.mxu0 %v2722
    %2879 = vmatprep.subr.bf16.mxu0 %v2719
    %2880 = vmatpush2.bf16.msra.mxu0 %v2718
    %2881 = vmatprep.subr.bf16.mxu0 %v2715
    %2882 = vmatpush2.bf16.msra.mxu0 %v2714
    %2883 = vmatprep.mubr.bf16.mxu0 %v2423
    %2884 = vmatmul.mubr.bf16.gmra.mxu0 %v2422
    %v2885 = vpop.f32.mrf.mxu0
    %v2886 = vadd.f32 0.0, %v2885
    %v2887 = vpop.f32.mrf.mxu0
    %v2888 = vadd.f32 0.0, %v2887
    %v2889 = vpop.f32.mrf.mxu0
    %v2890 = vadd.f32 0.0, %v2889
    %v2891 = vpop.f32.mrf.mxu0
    %v2892 = vadd.f32 0.0, %v2891
    %2893 = vdwg.mxu0
    %v2894 = vmax.f32 %v2843, 0.0
    %v2895 = vmax.f32 %v2845, 0.0
    %v2896 = vmax.f32 %v2886, 0.0
    %v2897 = vmax.f32 %v2888, 0.0
    %v2898 = vmax.f32 %v2847, 0.0
    %v2899 = vmax.f32 %v2849, 0.0
    %v2900 = vmax.f32 %v2890, 0.0
    %v2901 = vmax.f32 %v2892, 0.0
    %v2902 = vpack.c.bf16 %v2898, %v2894
    %v2903 = vpack.c.bf16 %v2899, %v2895
    %v2904 = vpack.c.bf16 %v2900, %v2896
    %v2905 = vpack.c.bf16 %v2901, %v2897
    %v2906 = vld [vmem:[#allocation13] sm:$0xff]
    %v2907 = vld [vmem:[#allocation13 + $0x8] sm:$0xff]
    %v2908 = vld [vmem:[#allocation13 + $0x10] sm:$0xff]
    %v2909 = vld [vmem:[#allocation13 + $0x18] sm:$0xff]
    %v2910 = vld [vmem:[#allocation13 + $0x20] sm:$0xff]
    %v2911 = vld [vmem:[#allocation13 + $0x28] sm:$0xff]
    %v2912 = vld [vmem:[#allocation13 + $0x30] sm:$0xff]
    %v2913 = vld [vmem:[#allocation13 + $0x38] sm:$0xff]
    %v2914 = vld [vmem:[#allocation13 + $0x40] sm:$0xff]
    %v2915 = vld [vmem:[#allocation13 + $0x48] sm:$0xff]
    %v2916 = vld [vmem:[#allocation13 + $0x50] sm:$0xff]
    %v2917 = vld [vmem:[#allocation13 + $0x58] sm:$0xff]
    %v2918 = vld [vmem:[#allocation13 + $0x60] sm:$0xff]
    %v2919 = vld [vmem:[#allocation13 + $0x68] sm:$0xff]
    %v2920 = vld [vmem:[#allocation13 + $0x70] sm:$0xff]
    %v2921 = vld [vmem:[#allocation13 + $0x78] sm:$0xff]
    %v2922 = vld [vmem:[#allocation13 + $0x80] sm:$0xff]
    %v2923 = vld [vmem:[#allocation13 + $0x88] sm:$0xff]
    %v2924 = vld [vmem:[#allocation13 + $0x90] sm:$0xff]
    %v2925 = vld [vmem:[#allocation13 + $0x98] sm:$0xff]
    %v2926 = vld [vmem:[#allocation13 + $0xa0] sm:$0xff]
    %v2927 = vld [vmem:[#allocation13 + $0xa8] sm:$0xff]
    %v2928 = vld [vmem:[#allocation13 + $0xb0] sm:$0xff]
    %v2929 = vld [vmem:[#allocation13 + $0xb8] sm:$0xff]
    %v2930 = vld [vmem:[#allocation13 + $0xc0] sm:$0xff]
    %v2931 = vld [vmem:[#allocation13 + $0xc8] sm:$0xff]
    %v2932 = vld [vmem:[#allocation13 + $0xd0] sm:$0xff]
    %v2933 = vld [vmem:[#allocation13 + $0xd8] sm:$0xff]
    %v2934 = vld [vmem:[#allocation13 + $0xe0] sm:$0xff]
    %v2935 = vld [vmem:[#allocation13 + $0xe8] sm:$0xff]
    %v2936 = vld [vmem:[#allocation13 + $0xf0] sm:$0xff]
    %v2937 = vld [vmem:[#allocation13 + $0xf8] sm:$0xff]
    %v2938 = vld [vmem:[#allocation13 + $0x100] sm:$0xff]
    %v2939 = vld [vmem:[#allocation13 + $0x108] sm:$0xff]
    %v2940 = vld [vmem:[#allocation13 + $0x110] sm:$0xff]
    %v2941 = vld [vmem:[#allocation13 + $0x118] sm:$0xff]
    %v2942 = vld [vmem:[#allocation13 + $0x120] sm:$0xff]
    %v2943 = vld [vmem:[#allocation13 + $0x128] sm:$0xff]
    %v2944 = vld [vmem:[#allocation13 + $0x130] sm:$0xff]
    %v2945 = vld [vmem:[#allocation13 + $0x138] sm:$0xff]
    %v2946 = vld [vmem:[#allocation13 + $0x140] sm:$0xff]
    %v2947 = vld [vmem:[#allocation13 + $0x148] sm:$0xff]
    %v2948 = vld [vmem:[#allocation13 + $0x150] sm:$0xff]
    %v2949 = vld [vmem:[#allocation13 + $0x158] sm:$0xff]
    %v2950 = vld [vmem:[#allocation13 + $0x160] sm:$0xff]
    %v2951 = vld [vmem:[#allocation13 + $0x168] sm:$0xff]
    %v2952 = vld [vmem:[#allocation13 + $0x170] sm:$0xff]
    %v2953 = vld [vmem:[#allocation13 + $0x178] sm:$0xff]
    %v2954 = vld [vmem:[#allocation13 + $0x180] sm:$0xff]
    %v2955 = vld [vmem:[#allocation13 + $0x188] sm:$0xff]
    %v2956 = vld [vmem:[#allocation13 + $0x190] sm:$0xff]
    %v2957 = vld [vmem:[#allocation13 + $0x198] sm:$0xff]
    %v2958 = vld [vmem:[#allocation13 + $0x1a0] sm:$0xff]
    %v2959 = vld [vmem:[#allocation13 + $0x1a8] sm:$0xff]
    %v2960 = vld [vmem:[#allocation13 + $0x1b0] sm:$0xff]
    %v2961 = vld [vmem:[#allocation13 + $0x1b8] sm:$0xff]
    %v2962 = vld [vmem:[#allocation13 + $0x1c0] sm:$0xff]
    %v2963 = vld [vmem:[#allocation13 + $0x1c8] sm:$0xff]
    %v2964 = vld [vmem:[#allocation13 + $0x1d0] sm:$0xff]
    %v2965 = vld [vmem:[#allocation13 + $0x1d8] sm:$0xff]
    %v2966 = vld [vmem:[#allocation13 + $0x1e0] sm:$0xff]
    %v2967 = vld [vmem:[#allocation13 + $0x1e8] sm:$0xff]
    %v2968 = vld [vmem:[#allocation13 + $0x1f0] sm:$0xff]
    %v2969 = vld [vmem:[#allocation13 + $0x1f8] sm:$0xff]
    %v2970 = vld [vmem:[#allocation13 + $0x200] sm:$0xff]
    %v2971 = vld [vmem:[#allocation13 + $0x208] sm:$0xff]
    %v2972 = vld [vmem:[#allocation13 + $0x210] sm:$0xff]
    %v2973 = vld [vmem:[#allocation13 + $0x218] sm:$0xff]
    %v2974 = vld [vmem:[#allocation13 + $0x220] sm:$0xff]
    %v2975 = vld [vmem:[#allocation13 + $0x228] sm:$0xff]
    %v2976 = vld [vmem:[#allocation13 + $0x230] sm:$0xff]
    %v2977 = vld [vmem:[#allocation13 + $0x238] sm:$0xff]
    %v2978 = vld [vmem:[#allocation13 + $0x240] sm:$0xff]
    %v2979 = vld [vmem:[#allocation13 + $0x248] sm:$0xff]
    %v2980 = vld [vmem:[#allocation13 + $0x250] sm:$0xff]
    %v2981 = vld [vmem:[#allocation13 + $0x258] sm:$0xff]
    %v2982 = vld [vmem:[#allocation13 + $0x260] sm:$0xff]
    %v2983 = vld [vmem:[#allocation13 + $0x268] sm:$0xff]
    %v2984 = vld [vmem:[#allocation13 + $0x270] sm:$0xff]
    %v2985 = vld [vmem:[#allocation13 + $0x278] sm:$0xff]
    %v2986 = vld [vmem:[#allocation13 + $0x280] sm:$0xff]
    %v2987 = vld [vmem:[#allocation13 + $0x288] sm:$0xff]
    %v2988 = vld [vmem:[#allocation13 + $0x290] sm:$0xff]
    %v2989 = vld [vmem:[#allocation13 + $0x298] sm:$0xff]
    %v2990 = vld [vmem:[#allocation13 + $0x2a0] sm:$0xff]
    %v2991 = vld [vmem:[#allocation13 + $0x2a8] sm:$0xff]
    %v2992 = vld [vmem:[#allocation13 + $0x2b0] sm:$0xff]
    %v2993 = vld [vmem:[#allocation13 + $0x2b8] sm:$0xff]
    %v2994 = vld [vmem:[#allocation13 + $0x2c0] sm:$0xff]
    %v2995 = vld [vmem:[#allocation13 + $0x2c8] sm:$0xff]
    %v2996 = vld [vmem:[#allocation13 + $0x2d0] sm:$0xff]
    %v2997 = vld [vmem:[#allocation13 + $0x2d8] sm:$0xff]
    %v2998 = vld [vmem:[#allocation13 + $0x2e0] sm:$0xff]
    %v2999 = vld [vmem:[#allocation13 + $0x2e8] sm:$0xff]
    %v3000 = vld [vmem:[#allocation13 + $0x2f0] sm:$0xff]
    %v3001 = vld [vmem:[#allocation13 + $0x2f8] sm:$0xff]
    %v3002 = vld [vmem:[#allocation13 + $0x300] sm:$0xff]
    %v3003 = vld [vmem:[#allocation13 + $0x308] sm:$0xff]
    %v3004 = vld [vmem:[#allocation13 + $0x310] sm:$0xff]
    %v3005 = vld [vmem:[#allocation13 + $0x318] sm:$0xff]
    %v3006 = vld [vmem:[#allocation13 + $0x320] sm:$0xff]
    %v3007 = vld [vmem:[#allocation13 + $0x328] sm:$0xff]
    %v3008 = vld [vmem:[#allocation13 + $0x330] sm:$0xff]
    %v3009 = vld [vmem:[#allocation13 + $0x338] sm:$0xff]
    %v3010 = vld [vmem:[#allocation13 + $0x340] sm:$0xff]
    %v3011 = vld [vmem:[#allocation13 + $0x348] sm:$0xff]
    %v3012 = vld [vmem:[#allocation13 + $0x350] sm:$0xff]
    %v3013 = vld [vmem:[#allocation13 + $0x358] sm:$0xff]
    %v3014 = vld [vmem:[#allocation13 + $0x360] sm:$0xff]
    %v3015 = vld [vmem:[#allocation13 + $0x368] sm:$0xff]
    %v3016 = vld [vmem:[#allocation13 + $0x370] sm:$0xff]
    %v3017 = vld [vmem:[#allocation13 + $0x378] sm:$0xff]
    %v3018 = vld [vmem:[#allocation13 + $0x380] sm:$0xff]
    %v3019 = vld [vmem:[#allocation13 + $0x388] sm:$0xff]
    %v3020 = vld [vmem:[#allocation13 + $0x390] sm:$0xff]
    %v3021 = vld [vmem:[#allocation13 + $0x398] sm:$0xff]
    %v3022 = vld [vmem:[#allocation13 + $0x3a0] sm:$0xff]
    %v3023 = vld [vmem:[#allocation13 + $0x3a8] sm:$0xff]
    %v3024 = vld [vmem:[#allocation13 + $0x3b0] sm:$0xff]
    %v3025 = vld [vmem:[#allocation13 + $0x3b8] sm:$0xff]
    %v3026 = vld [vmem:[#allocation13 + $0x3c0] sm:$0xff]
    %v3027 = vld [vmem:[#allocation13 + $0x3c8] sm:$0xff]
    %v3028 = vld [vmem:[#allocation13 + $0x3d0] sm:$0xff]
    %v3029 = vld [vmem:[#allocation13 + $0x3d8] sm:$0xff]
    %v3030 = vld [vmem:[#allocation13 + $0x3e0] sm:$0xff]
    %v3031 = vld [vmem:[#allocation13 + $0x3e8] sm:$0xff]
    %v3032 = vld [vmem:[#allocation13 + $0x3f0] sm:$0xff]
    %v3033 = vld [vmem:[#allocation13 + $0x3f8] sm:$0xff]
    %v3034 = vld [vmem:[#allocation13 + $0x400] sm:$0xff]
    %v3035 = vld [vmem:[#allocation13 + $0x408] sm:$0xff]
    %v3036 = vld [vmem:[#allocation13 + $0x410] sm:$0xff]
    %v3037 = vld [vmem:[#allocation13 + $0x418] sm:$0xff]
    %v3038 = vld [vmem:[#allocation13 + $0x420] sm:$0xff]
    %v3039 = vld [vmem:[#allocation13 + $0x428] sm:$0xff]
    %v3040 = vld [vmem:[#allocation13 + $0x430] sm:$0xff]
    %v3041 = vld [vmem:[#allocation13 + $0x438] sm:$0xff]
    %v3042 = vld [vmem:[#allocation13 + $0x440] sm:$0xff]
    %v3043 = vld [vmem:[#allocation13 + $0x448] sm:$0xff]
    %v3044 = vld [vmem:[#allocation13 + $0x450] sm:$0xff]
    %v3045 = vld [vmem:[#allocation13 + $0x458] sm:$0xff]
    %v3046 = vld [vmem:[#allocation13 + $0x460] sm:$0xff]
    %v3047 = vld [vmem:[#allocation13 + $0x468] sm:$0xff]
    %v3048 = vld [vmem:[#allocation13 + $0x470] sm:$0xff]
    %v3049 = vld [vmem:[#allocation13 + $0x478] sm:$0xff]
    %v3050 = vld [vmem:[#allocation13 + $0x480] sm:$0xff]
    %v3051 = vld [vmem:[#allocation13 + $0x488] sm:$0xff]
    %v3052 = vld [vmem:[#allocation13 + $0x490] sm:$0xff]
    %v3053 = vld [vmem:[#allocation13 + $0x498] sm:$0xff]
    %v3054 = vld [vmem:[#allocation13 + $0x4a0] sm:$0xff]
    %v3055 = vld [vmem:[#allocation13 + $0x4a8] sm:$0xff]
    %v3056 = vld [vmem:[#allocation13 + $0x4b0] sm:$0xff]
    %v3057 = vld [vmem:[#allocation13 + $0x4b8] sm:$0xff]
    %v3058 = vld [vmem:[#allocation13 + $0x4c0] sm:$0xff]
    %v3059 = vld [vmem:[#allocation13 + $0x4c8] sm:$0xff]
    %v3060 = vld [vmem:[#allocation13 + $0x4d0] sm:$0xff]
    %v3061 = vld [vmem:[#allocation13 + $0x4d8] sm:$0xff]
    %v3062 = vld [vmem:[#allocation13 + $0x4e0] sm:$0xff]
    %v3063 = vld [vmem:[#allocation13 + $0x4e8] sm:$0xff]
    %v3064 = vld [vmem:[#allocation13 + $0x4f0] sm:$0xff]
    %v3065 = vld [vmem:[#allocation13 + $0x4f8] sm:$0xff]
    %v3066 = vld [vmem:[#allocation13 + $0x500] sm:$0xff]
    %v3067 = vld [vmem:[#allocation13 + $0x508] sm:$0xff]
    %v3068 = vld [vmem:[#allocation13 + $0x510] sm:$0xff]
    %v3069 = vld [vmem:[#allocation13 + $0x518] sm:$0xff]
    %v3070 = vld [vmem:[#allocation13 + $0x520] sm:$0xff]
    %v3071 = vld [vmem:[#allocation13 + $0x528] sm:$0xff]
    %v3072 = vld [vmem:[#allocation13 + $0x530] sm:$0xff]
    %v3073 = vld [vmem:[#allocation13 + $0x538] sm:$0xff]
    %v3074 = vld [vmem:[#allocation13 + $0x540] sm:$0xff]
    %v3075 = vld [vmem:[#allocation13 + $0x548] sm:$0xff]
    %v3076 = vld [vmem:[#allocation13 + $0x550] sm:$0xff]
    %v3077 = vld [vmem:[#allocation13 + $0x558] sm:$0xff]
    %v3078 = vld [vmem:[#allocation13 + $0x560] sm:$0xff]
    %v3079 = vld [vmem:[#allocation13 + $0x568] sm:$0xff]
    %v3080 = vld [vmem:[#allocation13 + $0x570] sm:$0xff]
    %v3081 = vld [vmem:[#allocation13 + $0x578] sm:$0xff]
    %v3082 = vld [vmem:[#allocation13 + $0x580] sm:$0xff]
    %v3083 = vld [vmem:[#allocation13 + $0x588] sm:$0xff]
    %v3084 = vld [vmem:[#allocation13 + $0x590] sm:$0xff]
    %v3085 = vld [vmem:[#allocation13 + $0x598] sm:$0xff]
    %v3086 = vld [vmem:[#allocation13 + $0x5a0] sm:$0xff]
    %v3087 = vld [vmem:[#allocation13 + $0x5a8] sm:$0xff]
    %v3088 = vld [vmem:[#allocation13 + $0x5b0] sm:$0xff]
    %v3089 = vld [vmem:[#allocation13 + $0x5b8] sm:$0xff]
    %v3090 = vld [vmem:[#allocation13 + $0x5c0] sm:$0xff]
    %v3091 = vld [vmem:[#allocation13 + $0x5c8] sm:$0xff]
    %v3092 = vld [vmem:[#allocation13 + $0x5d0] sm:$0xff]
    %v3093 = vld [vmem:[#allocation13 + $0x5d8] sm:$0xff]
    %v3094 = vld [vmem:[#allocation13 + $0x5e0] sm:$0xff]
    %v3095 = vld [vmem:[#allocation13 + $0x5e8] sm:$0xff]
    %v3096 = vld [vmem:[#allocation13 + $0x5f0] sm:$0xff]
    %v3097 = vld [vmem:[#allocation13 + $0x5f8] sm:$0xff]
    %v3290 = vunpack.c.l.b16 %v2906
    %v3291 = vunpack.c.h.b16 %v2906
    %v3292 = vunpack.c.l.b16 %v2907
    %v3293 = vunpack.c.h.b16 %v2907
    %v3294 = vunpack.c.l.b16 %v2908
    %v3295 = vunpack.c.h.b16 %v2908
    %v3296 = vunpack.c.l.b16 %v2909
    %v3297 = vunpack.c.h.b16 %v2909
    %v3298 = vunpack.c.l.b16 %v2910
    %v3299 = vunpack.c.h.b16 %v2910
    %v3300 = vunpack.c.l.b16 %v2911
    %v3301 = vunpack.c.h.b16 %v2911
    %v3302 = vunpack.c.l.b16 %v2912
    %v3303 = vunpack.c.h.b16 %v2912
    %v3304 = vunpack.c.l.b16 %v2913
    %v3305 = vunpack.c.h.b16 %v2913
    %v3306 = vunpack.c.l.b16 %v2914
    %v3307 = vunpack.c.h.b16 %v2914
    %v3308 = vunpack.c.l.b16 %v2915
    %v3309 = vunpack.c.h.b16 %v2915
    %v3310 = vunpack.c.l.b16 %v2916
    %v3311 = vunpack.c.h.b16 %v2916
    %v3312 = vunpack.c.l.b16 %v2917
    %v3313 = vunpack.c.h.b16 %v2917
    %v3314 = vunpack.c.l.b16 %v2918
    %v3315 = vunpack.c.h.b16 %v2918
    %v3316 = vunpack.c.l.b16 %v2919
    %v3317 = vunpack.c.h.b16 %v2919
    %v3318 = vunpack.c.l.b16 %v2920
    %v3319 = vunpack.c.h.b16 %v2920
    %v3320 = vunpack.c.l.b16 %v2921
    %v3321 = vunpack.c.h.b16 %v2921
    %v3322 = vunpack.c.l.b16 %v2922
    %v3323 = vunpack.c.h.b16 %v2922
    %v3324 = vunpack.c.l.b16 %v2923
    %v3325 = vunpack.c.h.b16 %v2923
    %v3326 = vunpack.c.l.b16 %v2924
    %v3327 = vunpack.c.h.b16 %v2924
    %v3328 = vunpack.c.l.b16 %v2925
    %v3329 = vunpack.c.h.b16 %v2925
    %v3330 = vunpack.c.l.b16 %v2926
    %v3331 = vunpack.c.h.b16 %v2926
    %v3332 = vunpack.c.l.b16 %v2927
    %v3333 = vunpack.c.h.b16 %v2927
    %v3334 = vunpack.c.l.b16 %v2928
    %v3335 = vunpack.c.h.b16 %v2928
    %v3336 = vunpack.c.l.b16 %v2929
    %v3337 = vunpack.c.h.b16 %v2929
    %v3338 = vunpack.c.l.b16 %v2930
    %v3339 = vunpack.c.h.b16 %v2930
    %v3340 = vunpack.c.l.b16 %v2931
    %v3341 = vunpack.c.h.b16 %v2931
    %v3342 = vunpack.c.l.b16 %v2932
    %v3343 = vunpack.c.h.b16 %v2932
    %v3344 = vunpack.c.l.b16 %v2933
    %v3345 = vunpack.c.h.b16 %v2933
    %v3346 = vunpack.c.l.b16 %v2934
    %v3347 = vunpack.c.h.b16 %v2934
    %v3348 = vunpack.c.l.b16 %v2935
    %v3349 = vunpack.c.h.b16 %v2935
    %v3350 = vunpack.c.l.b16 %v2936
    %v3351 = vunpack.c.h.b16 %v2936
    %v3352 = vunpack.c.l.b16 %v2937
    %v3353 = vunpack.c.h.b16 %v2937
    %v3354 = vunpack.c.l.b16 %v2938
    %v3355 = vunpack.c.h.b16 %v2938
    %v3356 = vunpack.c.l.b16 %v2939
    %v3357 = vunpack.c.h.b16 %v2939
    %v3358 = vunpack.c.l.b16 %v2940
    %v3359 = vunpack.c.h.b16 %v2940
    %v3360 = vunpack.c.l.b16 %v2941
    %v3361 = vunpack.c.h.b16 %v2941
    %v3362 = vunpack.c.l.b16 %v2942
    %v3363 = vunpack.c.h.b16 %v2942
    %v3364 = vunpack.c.l.b16 %v2943
    %v3365 = vunpack.c.h.b16 %v2943
    %v3366 = vunpack.c.l.b16 %v2944
    %v3367 = vunpack.c.h.b16 %v2944
    %v3368 = vunpack.c.l.b16 %v2945
    %v3369 = vunpack.c.h.b16 %v2945
    %v3370 = vunpack.c.l.b16 %v2946
    %v3371 = vunpack.c.h.b16 %v2946
    %v3372 = vunpack.c.l.b16 %v2947
    %v3373 = vunpack.c.h.b16 %v2947
    %v3374 = vunpack.c.l.b16 %v2948
    %v3375 = vunpack.c.h.b16 %v2948
    %v3376 = vunpack.c.l.b16 %v2949
    %v3377 = vunpack.c.h.b16 %v2949
    %v3378 = vunpack.c.l.b16 %v2950
    %v3379 = vunpack.c.h.b16 %v2950
    %v3380 = vunpack.c.l.b16 %v2951
    %v3381 = vunpack.c.h.b16 %v2951
    %v3382 = vunpack.c.l.b16 %v2952
    %v3383 = vunpack.c.h.b16 %v2952
    %v3384 = vunpack.c.l.b16 %v2953
    %v3385 = vunpack.c.h.b16 %v2953
    %v3386 = vunpack.c.l.b16 %v2954
    %v3387 = vunpack.c.h.b16 %v2954
    %v3388 = vunpack.c.l.b16 %v2955
    %v3389 = vunpack.c.h.b16 %v2955
    %v3390 = vunpack.c.l.b16 %v2956
    %v3391 = vunpack.c.h.b16 %v2956
    %v3392 = vunpack.c.l.b16 %v2957
    %v3393 = vunpack.c.h.b16 %v2957
    %v3394 = vunpack.c.l.b16 %v2958
    %v3395 = vunpack.c.h.b16 %v2958
    %v3396 = vunpack.c.l.b16 %v2959
    %v3397 = vunpack.c.h.b16 %v2959
    %v3398 = vunpack.c.l.b16 %v2960
    %v3399 = vunpack.c.h.b16 %v2960
    %v3400 = vunpack.c.l.b16 %v2961
    %v3401 = vunpack.c.h.b16 %v2961
    %v3402 = vunpack.c.l.b16 %v2962
    %v3403 = vunpack.c.h.b16 %v2962
    %v3404 = vunpack.c.l.b16 %v2963
    %v3405 = vunpack.c.h.b16 %v2963
    %v3406 = vunpack.c.l.b16 %v2964
    %v3407 = vunpack.c.h.b16 %v2964
    %v3408 = vunpack.c.l.b16 %v2965
    %v3409 = vunpack.c.h.b16 %v2965
    %v3410 = vunpack.c.l.b16 %v2966
    %v3411 = vunpack.c.h.b16 %v2966
    %v3412 = vunpack.c.l.b16 %v2967
    %v3413 = vunpack.c.h.b16 %v2967
    %v3414 = vunpack.c.l.b16 %v2968
    %v3415 = vunpack.c.h.b16 %v2968
    %v3416 = vunpack.c.l.b16 %v2969
    %v3417 = vunpack.c.h.b16 %v2969
    %v3418 = vunpack.c.l.b16 %v2970
    %v3419 = vunpack.c.h.b16 %v2970
    %v3420 = vunpack.c.l.b16 %v2971
    %v3421 = vunpack.c.h.b16 %v2971
    %v3422 = vunpack.c.l.b16 %v2972
    %v3423 = vunpack.c.h.b16 %v2972
    %v3424 = vunpack.c.l.b16 %v2973
    %v3425 = vunpack.c.h.b16 %v2973
    %v3426 = vunpack.c.l.b16 %v2974
    %v3427 = vunpack.c.h.b16 %v2974
    %v3428 = vunpack.c.l.b16 %v2975
    %v3429 = vunpack.c.h.b16 %v2975
    %v3430 = vunpack.c.l.b16 %v2976
    %v3431 = vunpack.c.h.b16 %v2976
    %v3432 = vunpack.c.l.b16 %v2977
    %v3433 = vunpack.c.h.b16 %v2977
    %v3434 = vunpack.c.l.b16 %v2978
    %v3435 = vunpack.c.h.b16 %v2978
    %v3436 = vunpack.c.l.b16 %v2979
    %v3437 = vunpack.c.h.b16 %v2979
    %v3438 = vunpack.c.l.b16 %v2980
    %v3439 = vunpack.c.h.b16 %v2980
    %v3440 = vunpack.c.l.b16 %v2981
    %v3441 = vunpack.c.h.b16 %v2981
    %v3442 = vunpack.c.l.b16 %v2982
    %v3443 = vunpack.c.h.b16 %v2982
    %v3444 = vunpack.c.l.b16 %v2983
    %v3445 = vunpack.c.h.b16 %v2983
    %v3446 = vunpack.c.l.b16 %v2984
    %v3447 = vunpack.c.h.b16 %v2984
    %v3448 = vunpack.c.l.b16 %v2985
    %v3449 = vunpack.c.h.b16 %v2985
    %v3450 = vunpack.c.l.b16 %v2986
    %v3451 = vunpack.c.h.b16 %v2986
    %v3452 = vunpack.c.l.b16 %v2987
    %v3453 = vunpack.c.h.b16 %v2987
    %v3454 = vunpack.c.l.b16 %v2988
    %v3455 = vunpack.c.h.b16 %v2988
    %v3456 = vunpack.c.l.b16 %v2989
    %v3457 = vunpack.c.h.b16 %v2989
    %v3458 = vunpack.c.l.b16 %v2990
    %v3459 = vunpack.c.h.b16 %v2990
    %v3460 = vunpack.c.l.b16 %v2991
    %v3461 = vunpack.c.h.b16 %v2991
    %v3462 = vunpack.c.l.b16 %v2992
    %v3463 = vunpack.c.h.b16 %v2992
    %v3464 = vunpack.c.l.b16 %v2993
    %v3465 = vunpack.c.h.b16 %v2993
    %v3466 = vunpack.c.l.b16 %v2994
    %v3467 = vunpack.c.h.b16 %v2994
    %v3468 = vunpack.c.l.b16 %v2995
    %v3469 = vunpack.c.h.b16 %v2995
    %v3470 = vunpack.c.l.b16 %v2996
    %v3471 = vunpack.c.h.b16 %v2996
    %v3472 = vunpack.c.l.b16 %v2997
    %v3473 = vunpack.c.h.b16 %v2997
    %v3474 = vunpack.c.l.b16 %v2998
    %v3475 = vunpack.c.h.b16 %v2998
    %v3476 = vunpack.c.l.b16 %v2999
    %v3477 = vunpack.c.h.b16 %v2999
    %v3478 = vunpack.c.l.b16 %v3000
    %v3479 = vunpack.c.h.b16 %v3000
    %v3480 = vunpack.c.l.b16 %v3001
    %v3481 = vunpack.c.h.b16 %v3001
    %v3482 = vunpack.c.l.b16 %v3002
    %v3483 = vunpack.c.h.b16 %v3002
    %v3484 = vunpack.c.l.b16 %v3003
    %v3485 = vunpack.c.h.b16 %v3003
    %v3486 = vunpack.c.l.b16 %v3004
    %v3487 = vunpack.c.h.b16 %v3004
    %v3488 = vunpack.c.l.b16 %v3005
    %v3489 = vunpack.c.h.b16 %v3005
    %v3490 = vunpack.c.l.b16 %v3006
    %v3491 = vunpack.c.h.b16 %v3006
    %v3492 = vunpack.c.l.b16 %v3007
    %v3493 = vunpack.c.h.b16 %v3007
    %v3494 = vunpack.c.l.b16 %v3008
    %v3495 = vunpack.c.h.b16 %v3008
    %v3496 = vunpack.c.l.b16 %v3009
    %v3497 = vunpack.c.h.b16 %v3009
    %v3498 = vunpack.c.l.b16 %v3010
    %v3499 = vunpack.c.h.b16 %v3010
    %v3500 = vunpack.c.l.b16 %v3011
    %v3501 = vunpack.c.h.b16 %v3011
    %v3502 = vunpack.c.l.b16 %v3012
    %v3503 = vunpack.c.h.b16 %v3012
    %v3504 = vunpack.c.l.b16 %v3013
    %v3505 = vunpack.c.h.b16 %v3013
    %v3506 = vunpack.c.l.b16 %v3014
    %v3507 = vunpack.c.h.b16 %v3014
    %v3508 = vunpack.c.l.b16 %v3015
    %v3509 = vunpack.c.h.b16 %v3015
    %v3510 = vunpack.c.l.b16 %v3016
    %v3511 = vunpack.c.h.b16 %v3016
    %v3512 = vunpack.c.l.b16 %v3017
    %v3513 = vunpack.c.h.b16 %v3017
    %v3514 = vunpack.c.l.b16 %v3018
    %v3515 = vunpack.c.h.b16 %v3018
    %v3516 = vunpack.c.l.b16 %v3019
    %v3517 = vunpack.c.h.b16 %v3019
    %v3518 = vunpack.c.l.b16 %v3020
    %v3519 = vunpack.c.h.b16 %v3020
    %v3520 = vunpack.c.l.b16 %v3021
    %v3521 = vunpack.c.h.b16 %v3021
    %v3522 = vunpack.c.l.b16 %v3022
    %v3523 = vunpack.c.h.b16 %v3022
    %v3524 = vunpack.c.l.b16 %v3023
    %v3525 = vunpack.c.h.b16 %v3023
    %v3526 = vunpack.c.l.b16 %v3024
    %v3527 = vunpack.c.h.b16 %v3024
    %v3528 = vunpack.c.l.b16 %v3025
    %v3529 = vunpack.c.h.b16 %v3025
    %v3530 = vunpack.c.l.b16 %v3026
    %v3531 = vunpack.c.h.b16 %v3026
    %v3532 = vunpack.c.l.b16 %v3027
    %v3533 = vunpack.c.h.b16 %v3027
    %v3534 = vunpack.c.l.b16 %v3028
    %v3535 = vunpack.c.h.b16 %v3028
    %v3536 = vunpack.c.l.b16 %v3029
    %v3537 = vunpack.c.h.b16 %v3029
    %v3538 = vunpack.c.l.b16 %v3030
    %v3539 = vunpack.c.h.b16 %v3030
    %v3540 = vunpack.c.l.b16 %v3031
    %v3541 = vunpack.c.h.b16 %v3031
    %v3542 = vunpack.c.l.b16 %v3032
    %v3543 = vunpack.c.h.b16 %v3032
    %v3544 = vunpack.c.l.b16 %v3033
    %v3545 = vunpack.c.h.b16 %v3033
    %v3546 = vunpack.c.l.b16 %v3034
    %v3547 = vunpack.c.h.b16 %v3034
    %v3548 = vunpack.c.l.b16 %v3035
    %v3549 = vunpack.c.h.b16 %v3035
    %v3550 = vunpack.c.l.b16 %v3036
    %v3551 = vunpack.c.h.b16 %v3036
    %v3552 = vunpack.c.l.b16 %v3037
    %v3553 = vunpack.c.h.b16 %v3037
    %v3554 = vunpack.c.l.b16 %v3038
    %v3555 = vunpack.c.h.b16 %v3038
    %v3556 = vunpack.c.l.b16 %v3039
    %v3557 = vunpack.c.h.b16 %v3039
    %v3558 = vunpack.c.l.b16 %v3040
    %v3559 = vunpack.c.h.b16 %v3040
    %v3560 = vunpack.c.l.b16 %v3041
    %v3561 = vunpack.c.h.b16 %v3041
    %v3562 = vunpack.c.l.b16 %v3042
    %v3563 = vunpack.c.h.b16 %v3042
    %v3564 = vunpack.c.l.b16 %v3043
    %v3565 = vunpack.c.h.b16 %v3043
    %v3566 = vunpack.c.l.b16 %v3044
    %v3567 = vunpack.c.h.b16 %v3044
    %v3568 = vunpack.c.l.b16 %v3045
    %v3569 = vunpack.c.h.b16 %v3045
    %v3570 = vunpack.c.l.b16 %v3046
    %v3571 = vunpack.c.h.b16 %v3046
    %v3572 = vunpack.c.l.b16 %v3047
    %v3573 = vunpack.c.h.b16 %v3047
    %v3574 = vunpack.c.l.b16 %v3048
    %v3575 = vunpack.c.h.b16 %v3048
    %v3576 = vunpack.c.l.b16 %v3049
    %v3577 = vunpack.c.h.b16 %v3049
    %v3578 = vunpack.c.l.b16 %v3050
    %v3579 = vunpack.c.h.b16 %v3050
    %v3580 = vunpack.c.l.b16 %v3051
    %v3581 = vunpack.c.h.b16 %v3051
    %v3582 = vunpack.c.l.b16 %v3052
    %v3583 = vunpack.c.h.b16 %v3052
    %v3584 = vunpack.c.l.b16 %v3053
    %v3585 = vunpack.c.h.b16 %v3053
    %v3586 = vunpack.c.l.b16 %v3054
    %v3587 = vunpack.c.h.b16 %v3054
    %v3588 = vunpack.c.l.b16 %v3055
    %v3589 = vunpack.c.h.b16 %v3055
    %v3590 = vunpack.c.l.b16 %v3056
    %v3591 = vunpack.c.h.b16 %v3056
    %v3592 = vunpack.c.l.b16 %v3057
    %v3593 = vunpack.c.h.b16 %v3057
    %v3594 = vunpack.c.l.b16 %v3058
    %v3595 = vunpack.c.h.b16 %v3058
    %v3596 = vunpack.c.l.b16 %v3059
    %v3597 = vunpack.c.h.b16 %v3059
    %v3598 = vunpack.c.l.b16 %v3060
    %v3599 = vunpack.c.h.b16 %v3060
    %v3600 = vunpack.c.l.b16 %v3061
    %v3601 = vunpack.c.h.b16 %v3061
    %v3602 = vunpack.c.l.b16 %v3062
    %v3603 = vunpack.c.h.b16 %v3062
    %v3604 = vunpack.c.l.b16 %v3063
    %v3605 = vunpack.c.h.b16 %v3063
    %v3606 = vunpack.c.l.b16 %v3064
    %v3607 = vunpack.c.h.b16 %v3064
    %v3608 = vunpack.c.l.b16 %v3065
    %v3609 = vunpack.c.h.b16 %v3065
    %v3610 = vunpack.c.l.b16 %v3066
    %v3611 = vunpack.c.h.b16 %v3066
    %v3612 = vunpack.c.l.b16 %v3067
    %v3613 = vunpack.c.h.b16 %v3067
    %v3614 = vunpack.c.l.b16 %v3068
    %v3615 = vunpack.c.h.b16 %v3068
    %v3616 = vunpack.c.l.b16 %v3069
    %v3617 = vunpack.c.h.b16 %v3069
    %v3618 = vunpack.c.l.b16 %v3070
    %v3619 = vunpack.c.h.b16 %v3070
    %v3620 = vunpack.c.l.b16 %v3071
    %v3621 = vunpack.c.h.b16 %v3071
    %v3622 = vunpack.c.l.b16 %v3072
    %v3623 = vunpack.c.h.b16 %v3072
    %v3624 = vunpack.c.l.b16 %v3073
    %v3625 = vunpack.c.h.b16 %v3073
    %v3626 = vunpack.c.l.b16 %v3074
    %v3627 = vunpack.c.h.b16 %v3074
    %v3628 = vunpack.c.l.b16 %v3075
    %v3629 = vunpack.c.h.b16 %v3075
    %v3630 = vunpack.c.l.b16 %v3076
    %v3631 = vunpack.c.h.b16 %v3076
    %v3632 = vunpack.c.l.b16 %v3077
    %v3633 = vunpack.c.h.b16 %v3077
    %v3634 = vunpack.c.l.b16 %v3078
    %v3635 = vunpack.c.h.b16 %v3078
    %v3636 = vunpack.c.l.b16 %v3079
    %v3637 = vunpack.c.h.b16 %v3079
    %v3638 = vunpack.c.l.b16 %v3080
    %v3639 = vunpack.c.h.b16 %v3080
    %v3640 = vunpack.c.l.b16 %v3081
    %v3641 = vunpack.c.h.b16 %v3081
    %v3642 = vunpack.c.l.b16 %v3082
    %v3643 = vunpack.c.h.b16 %v3082
    %v3644 = vunpack.c.l.b16 %v3083
    %v3645 = vunpack.c.h.b16 %v3083
    %v3646 = vunpack.c.l.b16 %v3084
    %v3647 = vunpack.c.h.b16 %v3084
    %v3648 = vunpack.c.l.b16 %v3085
    %v3649 = vunpack.c.h.b16 %v3085
    %v3650 = vunpack.c.l.b16 %v3086
    %v3651 = vunpack.c.h.b16 %v3086
    %v3652 = vunpack.c.l.b16 %v3087
    %v3653 = vunpack.c.h.b16 %v3087
    %v3654 = vunpack.c.l.b16 %v3088
    %v3655 = vunpack.c.h.b16 %v3088
    %v3656 = vunpack.c.l.b16 %v3089
    %v3657 = vunpack.c.h.b16 %v3089
    %v3658 = vunpack.c.l.b16 %v3090
    %v3659 = vunpack.c.h.b16 %v3090
    %v3660 = vunpack.c.l.b16 %v3091
    %v3661 = vunpack.c.h.b16 %v3091
    %v3662 = vunpack.c.l.b16 %v3092
    %v3663 = vunpack.c.h.b16 %v3092
    %v3664 = vunpack.c.l.b16 %v3093
    %v3665 = vunpack.c.h.b16 %v3093
    %v3666 = vunpack.c.l.b16 %v3094
    %v3667 = vunpack.c.h.b16 %v3094
    %v3668 = vunpack.c.l.b16 %v3095
    %v3669 = vunpack.c.h.b16 %v3095
    %v3670 = vunpack.c.l.b16 %v3096
    %v3671 = vunpack.c.h.b16 %v3096
    %v3672 = vunpack.c.l.b16 %v3097
    %v3673 = vunpack.c.h.b16 %v3097
    %v3674 = vpack.c.b16 %v3296, %v3290
    %v3675 = vpack.c.b16 %v3297, %v3291
    %v3676 = vpack.c.b16 %v3298, %v3292
    %v3677 = vpack.c.b16 %v3299, %v3293
    %v3678 = vpack.c.b16 %v3300, %v3294
    %v3679 = vpack.c.b16 %v3301, %v3295
    %v3680 = vpack.c.b16 %v3308, %v3302
    %v3681 = vpack.c.b16 %v3309, %v3303
    %v3682 = vpack.c.b16 %v3310, %v3304
    %v3683 = vpack.c.b16 %v3311, %v3305
    %v3684 = vpack.c.b16 %v3312, %v3306
    %v3685 = vpack.c.b16 %v3313, %v3307
    %v3686 = vpack.c.b16 %v3320, %v3314
    %v3687 = vpack.c.b16 %v3321, %v3315
    %v3688 = vpack.c.b16 %v3322, %v3316
    %v3689 = vpack.c.b16 %v3323, %v3317
    %v3690 = vpack.c.b16 %v3324, %v3318
    %v3691 = vpack.c.b16 %v3325, %v3319
    %v3692 = vpack.c.b16 %v3332, %v3326
    %v3693 = vpack.c.b16 %v3333, %v3327
    %v3694 = vpack.c.b16 %v3334, %v3328
    %v3695 = vpack.c.b16 %v3335, %v3329
    %v3696 = vpack.c.b16 %v3336, %v3330
    %v3697 = vpack.c.b16 %v3337, %v3331
    %v3698 = vpack.c.b16 %v3344, %v3338
    %v3699 = vpack.c.b16 %v3345, %v3339
    %v3700 = vpack.c.b16 %v3346, %v3340
    %v3701 = vpack.c.b16 %v3347, %v3341
    %v3702 = vpack.c.b16 %v3348, %v3342
    %v3703 = vpack.c.b16 %v3349, %v3343
    %v3704 = vpack.c.b16 %v3356, %v3350
    %v3705 = vpack.c.b16 %v3357, %v3351
    %v3706 = vpack.c.b16 %v3358, %v3352
    %v3707 = vpack.c.b16 %v3359, %v3353
    %v3708 = vpack.c.b16 %v3360, %v3354
    %v3709 = vpack.c.b16 %v3361, %v3355
    %v3710 = vpack.c.b16 %v3368, %v3362
    %v3711 = vpack.c.b16 %v3369, %v3363
    %v3712 = vpack.c.b16 %v3370, %v3364
    %v3713 = vpack.c.b16 %v3371, %v3365
    %v3714 = vpack.c.b16 %v3372, %v3366
    %v3715 = vpack.c.b16 %v3373, %v3367
    %v3716 = vpack.c.b16 %v3380, %v3374
    %v3717 = vpack.c.b16 %v3381, %v3375
    %v3718 = vpack.c.b16 %v3382, %v3376
    %v3719 = vpack.c.b16 %v3383, %v3377
    %v3720 = vpack.c.b16 %v3384, %v3378
    %v3721 = vpack.c.b16 %v3385, %v3379
    %v3722 = vpack.c.b16 %v3392, %v3386
    %v3723 = vpack.c.b16 %v3393, %v3387
    %v3724 = vpack.c.b16 %v3394, %v3388
    %v3725 = vpack.c.b16 %v3395, %v3389
    %v3726 = vpack.c.b16 %v3396, %v3390
    %v3727 = vpack.c.b16 %v3397, %v3391
    %v3728 = vpack.c.b16 %v3404, %v3398
    %v3729 = vpack.c.b16 %v3405, %v3399
    %v3730 = vpack.c.b16 %v3406, %v3400
    %v3731 = vpack.c.b16 %v3407, %v3401
    %v3732 = vpack.c.b16 %v3408, %v3402
    %v3733 = vpack.c.b16 %v3409, %v3403
    %v3734 = vpack.c.b16 %v3416, %v3410
    %v3735 = vpack.c.b16 %v3417, %v3411
    %v3736 = vpack.c.b16 %v3418, %v3412
    %v3737 = vpack.c.b16 %v3419, %v3413
    %v3738 = vpack.c.b16 %v3420, %v3414
    %v3739 = vpack.c.b16 %v3421, %v3415
    %v3740 = vpack.c.b16 %v3428, %v3422
    %v3741 = vpack.c.b16 %v3429, %v3423
    %v3742 = vpack.c.b16 %v3430, %v3424
    %v3743 = vpack.c.b16 %v3431, %v3425
    %v3744 = vpack.c.b16 %v3432, %v3426
    %v3745 = vpack.c.b16 %v3433, %v3427
    %v3746 = vpack.c.b16 %v3440, %v3434
    %v3747 = vpack.c.b16 %v3441, %v3435
    %v3748 = vpack.c.b16 %v3442, %v3436
    %v3749 = vpack.c.b16 %v3443, %v3437
    %v3750 = vpack.c.b16 %v3444, %v3438
    %v3751 = vpack.c.b16 %v3445, %v3439
    %v3752 = vpack.c.b16 %v3452, %v3446
    %v3753 = vpack.c.b16 %v3453, %v3447
    %v3754 = vpack.c.b16 %v3454, %v3448
    %v3755 = vpack.c.b16 %v3455, %v3449
    %v3756 = vpack.c.b16 %v3456, %v3450
    %v3757 = vpack.c.b16 %v3457, %v3451
    %v3758 = vpack.c.b16 %v3464, %v3458
    %v3759 = vpack.c.b16 %v3465, %v3459
    %v3760 = vpack.c.b16 %v3466, %v3460
    %v3761 = vpack.c.b16 %v3467, %v3461
    %v3762 = vpack.c.b16 %v3468, %v3462
    %v3763 = vpack.c.b16 %v3469, %v3463
    %v3764 = vpack.c.b16 %v3476, %v3470
    %v3765 = vpack.c.b16 %v3477, %v3471
    %v3766 = vpack.c.b16 %v3478, %v3472
    %v3767 = vpack.c.b16 %v3479, %v3473
    %v3768 = vpack.c.b16 %v3480, %v3474
    %v3769 = vpack.c.b16 %v3481, %v3475
    %v3770 = vpack.c.b16 %v3488, %v3482
    %v3771 = vpack.c.b16 %v3489, %v3483
    %v3772 = vpack.c.b16 %v3490, %v3484
    %v3773 = vpack.c.b16 %v3491, %v3485
    %v3774 = vpack.c.b16 %v3492, %v3486
    %v3775 = vpack.c.b16 %v3493, %v3487
    %v3776 = vpack.c.b16 %v3500, %v3494
    %v3777 = vpack.c.b16 %v3501, %v3495
    %v3778 = vpack.c.b16 %v3502, %v3496
    %v3779 = vpack.c.b16 %v3503, %v3497
    %v3780 = vpack.c.b16 %v3504, %v3498
    %v3781 = vpack.c.b16 %v3505, %v3499
    %v3782 = vpack.c.b16 %v3512, %v3506
    %v3783 = vpack.c.b16 %v3513, %v3507
    %v3784 = vpack.c.b16 %v3514, %v3508
    %v3785 = vpack.c.b16 %v3515, %v3509
    %v3786 = vpack.c.b16 %v3516, %v3510
    %v3787 = vpack.c.b16 %v3517, %v3511
    %v3788 = vpack.c.b16 %v3524, %v3518
    %v3789 = vpack.c.b16 %v3525, %v3519
    %v3790 = vpack.c.b16 %v3526, %v3520
    %v3791 = vpack.c.b16 %v3527, %v3521
    %v3792 = vpack.c.b16 %v3528, %v3522
    %v3793 = vpack.c.b16 %v3529, %v3523
    %v3794 = vpack.c.b16 %v3536, %v3530
    %v3795 = vpack.c.b16 %v3537, %v3531
    %v3796 = vpack.c.b16 %v3538, %v3532
    %v3797 = vpack.c.b16 %v3539, %v3533
    %v3798 = vpack.c.b16 %v3540, %v3534
    %v3799 = vpack.c.b16 %v3541, %v3535
    %v3800 = vpack.c.b16 %v3548, %v3542
    %v3801 = vpack.c.b16 %v3549, %v3543
    %v3802 = vpack.c.b16 %v3550, %v3544
    %v3803 = vpack.c.b16 %v3551, %v3545
    %v3804 = vpack.c.b16 %v3552, %v3546
    %v3805 = vpack.c.b16 %v3553, %v3547
    %v3806 = vpack.c.b16 %v3560, %v3554
    %v3807 = vpack.c.b16 %v3561, %v3555
    %v3808 = vpack.c.b16 %v3562, %v3556
    %v3809 = vpack.c.b16 %v3563, %v3557
    %v3810 = vpack.c.b16 %v3564, %v3558
    %v3811 = vpack.c.b16 %v3565, %v3559
    %v3812 = vpack.c.b16 %v3572, %v3566
    %v3813 = vpack.c.b16 %v3573, %v3567
    %v3814 = vpack.c.b16 %v3574, %v3568
    %v3815 = vpack.c.b16 %v3575, %v3569
    %v3816 = vpack.c.b16 %v3576, %v3570
    %v3817 = vpack.c.b16 %v3577, %v3571
    %v3818 = vpack.c.b16 %v3584, %v3578
    %v3819 = vpack.c.b16 %v3585, %v3579
    %v3820 = vpack.c.b16 %v3586, %v3580
    %v3821 = vpack.c.b16 %v3587, %v3581
    %v3822 = vpack.c.b16 %v3588, %v3582
    %v3823 = vpack.c.b16 %v3589, %v3583
    %v3824 = vpack.c.b16 %v3596, %v3590
    %v3825 = vpack.c.b16 %v3597, %v3591
    %v3826 = vpack.c.b16 %v3598, %v3592
    %v3827 = vpack.c.b16 %v3599, %v3593
    %v3828 = vpack.c.b16 %v3600, %v3594
    %v3829 = vpack.c.b16 %v3601, %v3595
    %v3830 = vpack.c.b16 %v3608, %v3602
    %v3831 = vpack.c.b16 %v3609, %v3603
    %v3832 = vpack.c.b16 %v3610, %v3604
    %v3833 = vpack.c.b16 %v3611, %v3605
    %v3834 = vpack.c.b16 %v3612, %v3606
    %v3835 = vpack.c.b16 %v3613, %v3607
    %v3836 = vpack.c.b16 %v3620, %v3614
    %v3837 = vpack.c.b16 %v3621, %v3615
    %v3838 = vpack.c.b16 %v3622, %v3616
    %v3839 = vpack.c.b16 %v3623, %v3617
    %v3840 = vpack.c.b16 %v3624, %v3618
    %v3841 = vpack.c.b16 %v3625, %v3619
    %v3842 = vpack.c.b16 %v3632, %v3626
    %v3843 = vpack.c.b16 %v3633, %v3627
    %v3844 = vpack.c.b16 %v3634, %v3628
    %v3845 = vpack.c.b16 %v3635, %v3629
    %v3846 = vpack.c.b16 %v3636, %v3630
    %v3847 = vpack.c.b16 %v3637, %v3631
    %v3848 = vpack.c.b16 %v3644, %v3638
    %v3849 = vpack.c.b16 %v3645, %v3639
    %v3850 = vpack.c.b16 %v3646, %v3640
    %v3851 = vpack.c.b16 %v3647, %v3641
    %v3852 = vpack.c.b16 %v3648, %v3642
    %v3853 = vpack.c.b16 %v3649, %v3643
    %v3854 = vpack.c.b16 %v3656, %v3650
    %v3855 = vpack.c.b16 %v3657, %v3651
    %v3856 = vpack.c.b16 %v3658, %v3652
    %v3857 = vpack.c.b16 %v3659, %v3653
    %v3858 = vpack.c.b16 %v3660, %v3654
    %v3859 = vpack.c.b16 %v3661, %v3655
    %v3860 = vpack.c.b16 %v3668, %v3662
    %v3861 = vpack.c.b16 %v3669, %v3663
    %v3862 = vpack.c.b16 %v3670, %v3664
    %v3863 = vpack.c.b16 %v3671, %v3665
    %v3864 = vpack.c.b16 %v3672, %v3666
    %v3865 = vpack.c.b16 %v3673, %v3667
    %4058 = vmatprep.subr.bf16.mxu0 %v3717
    %4059 = vmatpush1.bf16.msra.mxu0 %v3716
    %4060 = vmatprep.subr.bf16.mxu0 %v3711
    %4061 = vmatpush1.bf16.msra.mxu0 %v3710
    %4062 = vmatprep.subr.bf16.mxu0 %v3705
    %4063 = vmatpush1.bf16.msra.mxu0 %v3704
    %4064 = vmatprep.subr.bf16.mxu0 %v3699
    %4065 = vmatpush1.bf16.msra.mxu0 %v3698
    %4066 = vmatprep.subr.bf16.mxu0 %v3693
    %4067 = vmatpush1.bf16.msra.mxu0 %v3692
    %4068 = vmatprep.subr.bf16.mxu0 %v3687
    %4069 = vmatpush1.bf16.msra.mxu0 %v3686
    %4070 = vmatprep.subr.bf16.mxu0 %v3681
    %4071 = vmatpush1.bf16.msra.mxu0 %v3680
    %4072 = vmatprep.subr.bf16.mxu0 %v3675
    %4073 = vmatpush1.bf16.msra.mxu0 %v3674
    %4074 = vmatprep.subr.bf16.mxu0 %v3765
    %4075 = vmatpush2.bf16.msra.mxu0 %v3764
    %4076 = vmatprep.subr.bf16.mxu0 %v3759
    %4077 = vmatpush2.bf16.msra.mxu0 %v3758
    %4078 = vmatprep.subr.bf16.mxu0 %v3753
    %4079 = vmatpush2.bf16.msra.mxu0 %v3752
    %4080 = vmatprep.subr.bf16.mxu0 %v3747
    %4081 = vmatpush2.bf16.msra.mxu0 %v3746
    %4082 = vmatprep.subr.bf16.mxu0 %v3741
    %4083 = vmatpush2.bf16.msra.mxu0 %v3740
    %4084 = vmatprep.subr.bf16.mxu0 %v3735
    %4085 = vmatpush2.bf16.msra.mxu0 %v3734
    %4086 = vmatprep.subr.bf16.mxu0 %v3729
    %4087 = vmatpush2.bf16.msra.mxu0 %v3728
    %4088 = vmatprep.subr.bf16.mxu0 %v3723
    %4089 = vmatpush2.bf16.msra.mxu0 %v3722
    %4090 = vmatprep.mubr.bf16.mxu0 %v2903
    %4091 = vmatmul.mubr.bf16.gmra.mxu0 %v2902
    %v4092 = vpop.f32.mrf.mxu0
    %v4093 = vadd.f32 0.0, %v4092
    %v4094 = vpop.f32.mrf.mxu0
    %v4095 = vadd.f32 0.0, %v4094
    %v4096 = vpop.f32.mrf.mxu0
    %v4097 = vadd.f32 0.0, %v4096
    %v4098 = vpop.f32.mrf.mxu0
    %v4099 = vadd.f32 0.0, %v4098
    %4100 = vdwg.mxu0
    %4101 = vmatprep.subr.bf16.mxu0 %v3813
    %4102 = vmatpush1.bf16.msra.mxu0 %v3812
    %4103 = vmatprep.subr.bf16.mxu0 %v3807
    %4104 = vmatpush1.bf16.msra.mxu0 %v3806
    %4105 = vmatprep.subr.bf16.mxu0 %v3801
    %4106 = vmatpush1.bf16.msra.mxu0 %v3800
    %4107 = vmatprep.subr.bf16.mxu0 %v3795
    %4108 = vmatpush1.bf16.msra.mxu0 %v3794
    %4109 = vmatprep.subr.bf16.mxu0 %v3789
    %4110 = vmatpush1.bf16.msra.mxu0 %v3788
    %4111 = vmatprep.subr.bf16.mxu0 %v3783
    %4112 = vmatpush1.bf16.msra.mxu0 %v3782
    %4113 = vmatprep.subr.bf16.mxu0 %v3777
    %4114 = vmatpush1.bf16.msra.mxu0 %v3776
    %4115 = vmatprep.subr.bf16.mxu0 %v3771
    %4116 = vmatpush1.bf16.msra.mxu0 %v3770
    %4117 = vmatprep.subr.bf16.mxu0 %v3861
    %4118 = vmatpush2.bf16.msra.mxu0 %v3860
    %4119 = vmatprep.subr.bf16.mxu0 %v3855
    %4120 = vmatpush2.bf16.msra.mxu0 %v3854
    %4121 = vmatprep.subr.bf16.mxu0 %v3849
    %4122 = vmatpush2.bf16.msra.mxu0 %v3848
    %4123 = vmatprep.subr.bf16.mxu0 %v3843
    %4124 = vmatpush2.bf16.msra.mxu0 %v3842
    %4125 = vmatprep.subr.bf16.mxu0 %v3837
    %4126 = vmatpush2.bf16.msra.mxu0 %v3836
    %4127 = vmatprep.subr.bf16.mxu0 %v3831
    %4128 = vmatpush2.bf16.msra.mxu0 %v3830
    %4129 = vmatprep.subr.bf16.mxu0 %v3825
    %4130 = vmatpush2.bf16.msra.mxu0 %v3824
    %4131 = vmatprep.subr.bf16.mxu0 %v3819
    %4132 = vmatpush2.bf16.msra.mxu0 %v3818
    %4133 = vmatprep.mubr.bf16.mxu0 %v2905
    %4134 = vmatmul.mubr.bf16.gmra.mxu0 %v2904
    %v4135 = vpop.f32.mrf.mxu0
    %v4136 = vadd.f32 %v4093, %v4135
    %v4137 = vpop.f32.mrf.mxu0
    %v4138 = vadd.f32 %v4095, %v4137
    %v4139 = vpop.f32.mrf.mxu0
    %v4140 = vadd.f32 %v4097, %v4139
    %v4141 = vpop.f32.mrf.mxu0
    %v4142 = vadd.f32 %v4099, %v4141
    %4143 = vdwg.mxu0
    %4144 = vmatprep.subr.bf16.mxu0 %v3719
    %4145 = vmatpush1.bf16.msra.mxu0 %v3718
    %4146 = vmatprep.subr.bf16.mxu0 %v3713
    %4147 = vmatpush1.bf16.msra.mxu0 %v3712
    %4148 = vmatprep.subr.bf16.mxu0 %v3707
    %4149 = vmatpush1.bf16.msra.mxu0 %v3706
    %4150 = vmatprep.subr.bf16.mxu0 %v3701
    %4151 = vmatpush1.bf16.msra.mxu0 %v3700
    %4152 = vmatprep.subr.bf16.mxu0 %v3695
    %4153 = vmatpush1.bf16.msra.mxu0 %v3694
    %4154 = vmatprep.subr.bf16.mxu0 %v3689
    %4155 = vmatpush1.bf16.msra.mxu0 %v3688
    %4156 = vmatprep.subr.bf16.mxu0 %v3683
    %4157 = vmatpush1.bf16.msra.mxu0 %v3682
    %4158 = vmatprep.subr.bf16.mxu0 %v3677
    %4159 = vmatpush1.bf16.msra.mxu0 %v3676
    %4160 = vmatprep.subr.bf16.mxu0 %v3767
    %4161 = vmatpush2.bf16.msra.mxu0 %v3766
    %4162 = vmatprep.subr.bf16.mxu0 %v3761
    %4163 = vmatpush2.bf16.msra.mxu0 %v3760
    %4164 = vmatprep.subr.bf16.mxu0 %v3755
    %4165 = vmatpush2.bf16.msra.mxu0 %v3754
    %4166 = vmatprep.subr.bf16.mxu0 %v3749
    %4167 = vmatpush2.bf16.msra.mxu0 %v3748
    %4168 = vmatprep.subr.bf16.mxu0 %v3743
    %4169 = vmatpush2.bf16.msra.mxu0 %v3742
    %4170 = vmatprep.subr.bf16.mxu0 %v3737
    %4171 = vmatpush2.bf16.msra.mxu0 %v3736
    %4172 = vmatprep.subr.bf16.mxu0 %v3731
    %4173 = vmatpush2.bf16.msra.mxu0 %v3730
    %4174 = vmatprep.subr.bf16.mxu0 %v3725
    %4175 = vmatpush2.bf16.msra.mxu0 %v3724
    %4176 = vmatprep.mubr.bf16.mxu0 %v2903
    %4177 = vmatmul.mubr.bf16.gmra.mxu0 %v2902
    %v4178 = vpop.f32.mrf.mxu0
    %v4179 = vadd.f32 0.0, %v4178
    %v4180 = vpop.f32.mrf.mxu0
    %v4181 = vadd.f32 0.0, %v4180
    %v4182 = vpop.f32.mrf.mxu0
    %v4183 = vadd.f32 0.0, %v4182
    %v4184 = vpop.f32.mrf.mxu0
    %v4185 = vadd.f32 0.0, %v4184
    %4186 = vdwg.mxu0
    %4187 = vmatprep.subr.bf16.mxu0 %v3815
    %4188 = vmatpush1.bf16.msra.mxu0 %v3814
    %4189 = vmatprep.subr.bf16.mxu0 %v3809
    %4190 = vmatpush1.bf16.msra.mxu0 %v3808
    %4191 = vmatprep.subr.bf16.mxu0 %v3803
    %4192 = vmatpush1.bf16.msra.mxu0 %v3802
    %4193 = vmatprep.subr.bf16.mxu0 %v3797
    %4194 = vmatpush1.bf16.msra.mxu0 %v3796
    %4195 = vmatprep.subr.bf16.mxu0 %v3791
    %4196 = vmatpush1.bf16.msra.mxu0 %v3790
    %4197 = vmatprep.subr.bf16.mxu0 %v3785
    %4198 = vmatpush1.bf16.msra.mxu0 %v3784
    %4199 = vmatprep.subr.bf16.mxu0 %v3779
    %4200 = vmatpush1.bf16.msra.mxu0 %v3778
    %4201 = vmatprep.subr.bf16.mxu0 %v3773
    %4202 = vmatpush1.bf16.msra.mxu0 %v3772
    %4203 = vmatprep.subr.bf16.mxu0 %v3863
    %4204 = vmatpush2.bf16.msra.mxu0 %v3862
    %4205 = vmatprep.subr.bf16.mxu0 %v3857
    %4206 = vmatpush2.bf16.msra.mxu0 %v3856
    %4207 = vmatprep.subr.bf16.mxu0 %v3851
    %4208 = vmatpush2.bf16.msra.mxu0 %v3850
    %4209 = vmatprep.subr.bf16.mxu0 %v3845
    %4210 = vmatpush2.bf16.msra.mxu0 %v3844
    %4211 = vmatprep.subr.bf16.mxu0 %v3839
    %4212 = vmatpush2.bf16.msra.mxu0 %v3838
    %4213 = vmatprep.subr.bf16.mxu0 %v3833
    %4214 = vmatpush2.bf16.msra.mxu0 %v3832
    %4215 = vmatprep.subr.bf16.mxu0 %v3827
    %4216 = vmatpush2.bf16.msra.mxu0 %v3826
    %4217 = vmatprep.subr.bf16.mxu0 %v3821
    %4218 = vmatpush2.bf16.msra.mxu0 %v3820
    %4219 = vmatprep.mubr.bf16.mxu0 %v2905
    %4220 = vmatmul.mubr.bf16.gmra.mxu0 %v2904
    %v4221 = vpop.f32.mrf.mxu0
    %v4222 = vadd.f32 %v4179, %v4221
    %v4223 = vpop.f32.mrf.mxu0
    %v4224 = vadd.f32 %v4181, %v4223
    %v4225 = vpop.f32.mrf.mxu0
    %v4226 = vadd.f32 %v4183, %v4225
    %v4227 = vpop.f32.mrf.mxu0
    %v4228 = vadd.f32 %v4185, %v4227
    %4229 = vdwg.mxu0
    %4230 = vmatprep.subr.bf16.mxu0 %v3721
    %4231 = vmatpush1.bf16.msra.mxu0 %v3720
    %4232 = vmatprep.subr.bf16.mxu0 %v3715
    %4233 = vmatpush1.bf16.msra.mxu0 %v3714
    %4234 = vmatprep.subr.bf16.mxu0 %v3709
    %4235 = vmatpush1.bf16.msra.mxu0 %v3708
    %4236 = vmatprep.subr.bf16.mxu0 %v3703
    %4237 = vmatpush1.bf16.msra.mxu0 %v3702
    %4238 = vmatprep.subr.bf16.mxu0 %v3697
    %4239 = vmatpush1.bf16.msra.mxu0 %v3696
    %4240 = vmatprep.subr.bf16.mxu0 %v3691
    %4241 = vmatpush1.bf16.msra.mxu0 %v3690
    %4242 = vmatprep.subr.bf16.mxu0 %v3685
    %4243 = vmatpush1.bf16.msra.mxu0 %v3684
    %4244 = vmatprep.subr.bf16.mxu0 %v3679
    %4245 = vmatpush1.bf16.msra.mxu0 %v3678
    %4246 = vmatprep.subr.bf16.mxu0 %v3769
    %4247 = vmatpush2.bf16.msra.mxu0 %v3768
    %4248 = vmatprep.subr.bf16.mxu0 %v3763
    %4249 = vmatpush2.bf16.msra.mxu0 %v3762
    %4250 = vmatprep.subr.bf16.mxu0 %v3757
    %4251 = vmatpush2.bf16.msra.mxu0 %v3756
    %4252 = vmatprep.subr.bf16.mxu0 %v3751
    %4253 = vmatpush2.bf16.msra.mxu0 %v3750
    %4254 = vmatprep.subr.bf16.mxu0 %v3745
    %4255 = vmatpush2.bf16.msra.mxu0 %v3744
    %4256 = vmatprep.subr.bf16.mxu0 %v3739
    %4257 = vmatpush2.bf16.msra.mxu0 %v3738
    %4258 = vmatprep.subr.bf16.mxu0 %v3733
    %4259 = vmatpush2.bf16.msra.mxu0 %v3732
    %4260 = vmatprep.subr.bf16.mxu0 %v3727
    %4261 = vmatpush2.bf16.msra.mxu0 %v3726
    %4262 = vmatprep.mubr.bf16.mxu0 %v2903
    %4263 = vmatmul.mubr.bf16.gmra.mxu0 %v2902
    %v4264 = vpop.f32.mrf.mxu0
    %v4265 = vadd.f32 0.0, %v4264
    %v4266 = vpop.f32.mrf.mxu0
    %v4267 = vadd.f32 0.0, %v4266
    %v4268 = vpop.f32.mrf.mxu0
    %v4269 = vadd.f32 0.0, %v4268
    %v4270 = vpop.f32.mrf.mxu0
    %v4271 = vadd.f32 0.0, %v4270
    %4272 = vdwg.mxu0
    %4273 = vmatprep.subr.bf16.mxu0 %v3817
    %4274 = vmatpush1.bf16.msra.mxu0 %v3816
    %4275 = vmatprep.subr.bf16.mxu0 %v3811
    %4276 = vmatpush1.bf16.msra.mxu0 %v3810
    %4277 = vmatprep.subr.bf16.mxu0 %v3805
    %4278 = vmatpush1.bf16.msra.mxu0 %v3804
    %4279 = vmatprep.subr.bf16.mxu0 %v3799
    %4280 = vmatpush1.bf16.msra.mxu0 %v3798
    %4281 = vmatprep.subr.bf16.mxu0 %v3793
    %4282 = vmatpush1.bf16.msra.mxu0 %v3792
    %4283 = vmatprep.subr.bf16.mxu0 %v3787
    %4284 = vmatpush1.bf16.msra.mxu0 %v3786
    %4285 = vmatprep.subr.bf16.mxu0 %v3781
    %4286 = vmatpush1.bf16.msra.mxu0 %v3780
    %4287 = vmatprep.subr.bf16.mxu0 %v3775
    %4288 = vmatpush1.bf16.msra.mxu0 %v3774
    %4289 = vmatprep.subr.bf16.mxu0 %v3865
    %4290 = vmatpush2.bf16.msra.mxu0 %v3864
    %4291 = vmatprep.subr.bf16.mxu0 %v3859
    %4292 = vmatpush2.bf16.msra.mxu0 %v3858
    %4293 = vmatprep.subr.bf16.mxu0 %v3853
    %4294 = vmatpush2.bf16.msra.mxu0 %v3852
    %4295 = vmatprep.subr.bf16.mxu0 %v3847
    %4296 = vmatpush2.bf16.msra.mxu0 %v3846
    %4297 = vmatprep.subr.bf16.mxu0 %v3841
    %4298 = vmatpush2.bf16.msra.mxu0 %v3840
    %4299 = vmatprep.subr.bf16.mxu0 %v3835
    %4300 = vmatpush2.bf16.msra.mxu0 %v3834
    %4301 = vmatprep.subr.bf16.mxu0 %v3829
    %4302 = vmatpush2.bf16.msra.mxu0 %v3828
    %4303 = vmatprep.subr.bf16.mxu0 %v3823
    %4304 = vmatpush2.bf16.msra.mxu0 %v3822
    %4305 = vmatprep.mubr.bf16.mxu0 %v2905
    %4306 = vmatmul.mubr.bf16.gmra.mxu0 %v2904
    %v4307 = vpop.f32.mrf.mxu0
    %v4308 = vadd.f32 %v4265, %v4307
    %v4309 = vpop.f32.mrf.mxu0
    %v4310 = vadd.f32 %v4267, %v4309
    %v4311 = vpop.f32.mrf.mxu0
    %v4312 = vadd.f32 %v4269, %v4311
    %v4313 = vpop.f32.mrf.mxu0
    %v4314 = vadd.f32 %v4271, %v4313
    %4315 = vdwg.mxu0
    %v4316 = vmax.f32 %v4136, 0.0
    %v4317 = vmax.f32 %v4138, 0.0
    %v4318 = vmax.f32 %v4222, 0.0
    %v4319 = vmax.f32 %v4224, 0.0
    %v4320 = vmax.f32 %v4308, 0.0
    %v4321 = vmax.f32 %v4310, 0.0
    %v4322 = vmax.f32 %v4140, 0.0
    %v4323 = vmax.f32 %v4142, 0.0
    %v4324 = vmax.f32 %v4226, 0.0
    %v4325 = vmax.f32 %v4228, 0.0
    %v4326 = vmax.f32 %v4312, 0.0
    %v4327 = vmax.f32 %v4314, 0.0
    %v4328 = vtanh.pop %v4316
    %v4329 = vtanh.pop %v4317
    %v4330 = vtanh.pop %v4318
    %v4331 = vtanh.pop %v4319
    %v4332 = vtanh.pop %v4320
    %v4333 = vtanh.pop %v4321
    %v4334 = vtanh.pop %v4322
    %v4335 = vtanh.pop %v4323
    %v4336 = vtanh.pop %v4324
    %v4337 = vtanh.pop %v4325
    %v4338 = vtanh.pop %v4326
    %v4339 = vtanh.pop %v4327
    %v4340 = vmul.f32 %v4328, %v4328
    %v4341 = vmul.f32 %v4329, %v4329
    %v4342 = vmul.f32 %v4330, %v4330
    %v4343 = vmul.f32 %v4331, %v4331
    %v4344 = vmul.f32 %v4332, %v4332
    %v4345 = vmul.f32 %v4333, %v4333
    %v4346 = vmul.f32 %v4334, %v4334
    %v4347 = vmul.f32 %v4335, %v4335
    %v4348 = vmul.f32 %v4336, %v4336
    %v4349 = vmul.f32 %v4337, %v4337
    %v4350 = vmul.f32 %v4338, %v4338
    %v4351 = vmul.f32 %v4339, %v4339
    %4352 = vst [vmem:[#allocation14] sm:$0xff] %v4340
    %4353 = vst [vmem:[#allocation14 + $0x8] sm:$0xff] %v4341
    %4354 = vst [vmem:[#allocation14 + $0x10] sm:$0xff] %v4342
    %4355 = vst [vmem:[#allocation14 + $0x18] sm:$0xff] %v4343
    %4356 = vst [vmem:[#allocation14 + $0x20] sm:$0xff] %v4344
    %4357 = vst [vmem:[#allocation14 + $0x28] sm:$0xff] %v4345
    %4358 = vst [vmem:[#allocation14 + $0x30] sm:$0xff] %v4346
    %4359 = vst [vmem:[#allocation14 + $0x38] sm:$0xff] %v4347
    %4360 = vst [vmem:[#allocation14 + $0x40] sm:$0xff] %v4348
    %4361 = vst [vmem:[#allocation14 + $0x48] sm:$0xff] %v4349
    %4362 = vst [vmem:[#allocation14 + $0x50] sm:$0xff] %v4350
    %4363 = vst [vmem:[#allocation14 + $0x58] sm:$0xff] %v4351
    // Predicated region
    $region70: #{tpu_custom_call.1} parent=1 // pred_check
      _
    $region71: #{tpu_custom_call.1} parent=1 // pred_check_branch
      %4365 = sbr.rel (0) target = $region73
    $region72: #{tpu_custom_call.1} parent=1 // pred_region
      %s4367 = ssub.s32 1536, 1536
      %4368 = vsyncadd [#allocation4], %s4367
      %s4369 = sshll.u32 [#allocation14], 4
      %s4370 = int_to_ptr.vmem [resolvable:$true] %s4369
      %4375 = dma.vmem_to_hbm [thread:$0]  %s4370, 1536, %s10, [#allocation4], 768, 768, 48
    $region73: #{tpu_custom_call.1} parent=1 // pred_fallthru
      _
    // Predicated region
    $region74: #{tpu_custom_call.1} parent=1 // pred_check
      _
    $region75: #{tpu_custom_call.1} parent=1 // pred_check_branch
      %4377 = sbr.rel (0) target = $region77
    $region76: #{tpu_custom_call.1} parent=1 // pred_region
      %4378 = dma.done [#allocation4], 1536
    $region77: #{tpu_custom_call.1} parent=1 // pred_fallthru
      _
    %4379 = vsyncpa [#allocation3], 1
    %4380 = vsyncpa [#allocation6], 1
    %4381 = vsyncpa [#allocation9], 1
    %4382 = vsyncpa [#allocation12], 1
    %4383 = vsyncpa [#allocation4], 1

</llo_original>
